<compile_context>
chip_gen: v6e
topology: v6e:2x2x1
jax: 0.10.0
libtpu: 0.0.40
codegen_flags: <defaults>
</compile_context>

<pallas_src>
import math

import jax
import jax.numpy as jnp
from jax import lax
from jax.experimental import pallas as pl
from jax.experimental.pallas import tpu as pltpu


def _round_up(a, b):
    return (a + b - 1) // b * b


def _conv_out(s, k, st):
    return (s - k) // st + 1


_VMEM_LIMIT = 32 * 1024 * 1024   # fits scoped-VMEM budgets on v5e/v6e/v7x
_N300 = _round_up(300, 128)      # 384: lane-dense width for the 300-wide layers


def _row_tiles(n_rows, max_tile):
    """Pick (row_tile, padded_rows).

    Gives >=2 grid steps whenever the row count permits so the "parallel"
    grid axis can be sharded across both TensorCores on v7x; tile is a
    multiple of 8 (sublane) unless it equals the full (unpadded) extent.
    """
    if n_rows <= 8:
        return n_rows, n_rows
    tile = min(max_tile, _round_up((n_rows + 1) // 2, 8))
    return tile, _round_up(n_rows, tile)


# ----------------------------------------------------------------------------
# Shared in-kernel Swish (f32): y * sigmoid(beta * y)
# ----------------------------------------------------------------------------
def _swish_f32(y, beta):
    z = beta * y
    # exp -> EUP, reciprocal(approx) -> EUP vrcp; only the multiplies hit VALU.
    return y * pl.reciprocal(1.0 + jnp.exp(-z), approx=True)


# ----------------------------------------------------------------------------
# Call 1: fused Linear + bias + Swish (used for conv1's im2col matmul)
# ----------------------------------------------------------------------------
def _linear_swish_kernel(x_ref, w_ref, b_ref, beta_ref, o_ref):
    y = jnp.dot(x_ref[...].astype(jnp.bfloat16), w_ref[...],
                preferred_element_type=jnp.float32) + b_ref[...]
    o_ref[...] = _swish_f32(y, beta_ref[...]).astype(o_ref.dtype)


def linear_swish(x, w, b2d, beta2d, *, out_dtype=jnp.float32, max_tile=2048):
    """x:(M,K)  w:(K,N) bf16  b2d,beta2d:(1,N) f32  ->  (M,N) out_dtype."""
    M, K = x.shape
    Kw, N = w.shape
    assert K == Kw
    tm, Mp = _row_tiles(M, max_tile)
    xp = x if Mp == M else jnp.pad(x, ((0, Mp - M), (0, 0)))
    out = pl.pallas_call(
        _linear_swish_kernel,
        out_shape=jax.ShapeDtypeStruct((Mp, N), out_dtype),
        grid=(Mp // tm,),
        in_specs=[
            pl.BlockSpec((tm, K), lambda i: (i, 0)),
            pl.BlockSpec((K, N), lambda i: (0, 0)),
            pl.BlockSpec((1, N), lambda i: (0, 0)),
            pl.BlockSpec((1, N), lambda i: (0, 0)),
        ],
        out_specs=pl.BlockSpec((tm, N), lambda i: (i, 0)),
        compiler_params=pltpu.CompilerParams(
            dimension_semantics=("parallel",),
            vmem_limit_bytes=_VMEM_LIMIT),
    )(xp, w, b2d, beta2d)
    return out if Mp == M else out[:M]


# ----------------------------------------------------------------------------
# Call 2: mega fused kernel
#   x2 = swish(x1flat @ W2dense + b2)            (conv2, dense-lowered)
#   x3 = swish(x2 @ W3 + b3)                     (conv3, 3x3 over a 3x3 map)
#   xc = swish(x3 @ Wc + bc)                     (NatureCnn tail MLP)
#   xi = swish(x @ Wmx + onehot(cond) @ Wmc + bm)  (ToyNet.mlp, concat-free)
#   h  = swish(xi @ Wf1a + xc @ Wf1b + bf1)      (fuse layer 1, concat-free)
#   e  = sum(h * wf2, -1) + bf2                  (fuse Linear(300,1) as reduce)
# ----------------------------------------------------------------------------
def _tail_kernel(cond_ref, x_ref, x1_ref,
                 c2w_ref, c2b_ref, c2beta_ref,
                 c3w_ref, c3b_ref, c3beta_ref,
                 cnw_ref, cnb_ref, cnbeta_ref,
                 mwx_ref, mwc_ref, mb_ref, mbeta_ref,
                 f1wa_ref, f1wb_ref, f1b_ref, f1beta_ref,
                 f2w_ref, f2b_ref, o_ref):
    # conv2 (dense-lowered) + Swish(64) (beta tiled per spatial position)
    x2 = _swish_f32(
        jnp.dot(x1_ref[...].astype(jnp.bfloat16), c2w_ref[...],
                preferred_element_type=jnp.float32) + c2b_ref[...],
        c2beta_ref[...])
    # conv3 (plain Linear since its kernel covers the whole 3x3 map) + Swish(64)
    x3 = _swish_f32(
        jnp.dot(x2.astype(jnp.bfloat16), c3w_ref[...],
                preferred_element_type=jnp.float32) + c3b_ref[...],
        c3beta_ref[...])
    # NatureCnn tail MLP: Linear(64, 512) + Swish(512)
    xc = _swish_f32(
        jnp.dot(x3.astype(jnp.bfloat16), cnw_ref[...],
                preferred_element_type=jnp.float32) + cnb_ref[...],
        cnbeta_ref[...])
    # ToyNet.mlp on [x, one_hot(cond)]  (one-hot built in-kernel, no concat)
    tb = cond_ref.shape[0]
    nc = mwc_ref.shape[0]
    onehot = (cond_ref[...] ==
              lax.broadcasted_iota(jnp.int32, (tb, nc), 1)).astype(jnp.bfloat16)
    xi_pre = jnp.dot(x_ref[...].astype(jnp.bfloat16), mwx_ref[...],
                     preferred_element_type=jnp.float32)
    xi_pre = xi_pre + jnp.dot(onehot, mwc_ref[...],
                              preferred_element_type=jnp.float32)
    xi = _swish_f32(xi_pre + mb_ref[...], mbeta_ref[...])
    # fuse layer 1: Linear(300+512, 300) + Swish(300), split row blocks
    h = jnp.dot(xi.astype(jnp.bfloat16), f1wa_ref[...],
                preferred_element_type=jnp.float32)
    h = h + jnp.dot(xc.astype(jnp.bfloat16), f1wb_ref[...],
                    preferred_element_type=jnp.float32)
    h = _swish_f32(h + f1b_ref[...], f1beta_ref[...])
    # fuse layer 2: Linear(300, 1) as a row reduction
    o_ref[...] = jnp.sum(h * f2w_ref[...], axis=-1, keepdims=True) + f2b_ref[...]


def fused_tail(params, x, cond2d, x1flat, num_classes, *, max_tile=512):
    B, D = x.shape
    tb, Bp = _row_tiles(B, max_tile)
    if Bp != B:
        pad = ((0, Bp - B), (0, 0))
        x = jnp.pad(x, pad)
        cond2d = jnp.pad(cond2d, pad)
        x1flat = jnp.pad(x1flat, pad)
    K1 = x1flat.shape[1]
    n2 = params["c2_w"].shape[1]
    row = lambda i: (i, 0)
    rep = lambda i: (0, 0)
    out = pl.pallas_call(
        _tail_kernel,
        out_shape=jax.ShapeDtypeStruct((Bp, 1), jnp.float32),
        grid=(Bp // tb,),
        in_specs=[
            pl.BlockSpec((tb, 1), row),            # cond (int32)
            pl.BlockSpec((tb, D), row),            # x
            pl.BlockSpec((tb, K1), row),           # conv1 output, flattened
            pl.BlockSpec((K1, n2), rep),           # conv2 dense-lowered weight
            pl.BlockSpec((1, n2), rep),
            pl.BlockSpec((1, n2), rep),
            pl.BlockSpec((n2, 64), rep),           # conv3 weight
            pl.BlockSpec((1, 64), rep),
            pl.BlockSpec((1, 64), rep),
            pl.BlockSpec((64, 512), rep),          # cnn tail MLP
            pl.BlockSpec((1, 512), rep),
            pl.BlockSpec((1, 512), rep),
            pl.BlockSpec((D, _N300), rep),         # ToyNet.mlp (x rows)
            pl.BlockSpec((num_classes, _N300), rep),  # ToyNet.mlp (cond rows)
            pl.BlockSpec((1, _N300), rep),
            pl.BlockSpec((1, _N300), rep),
            pl.BlockSpec((_N300, _N300), rep),     # fuse1 (x_inp rows)
            pl.BlockSpec((512, _N300), rep),       # fuse1 (x_chart rows)
            pl.BlockSpec((1, _N300), rep),
            pl.BlockSpec((1, _N300), rep),
            pl.BlockSpec((1, _N300), rep),         # fuse2 weight (row vector)
            pl.BlockSpec((1, 1), rep),             # fuse2 bias
        ],
        out_specs=pl.BlockSpec((tb, 1), row),
        compiler_params=pltpu.CompilerParams(
            dimension_semantics=("parallel",),
            vmem_limit_bytes=_VMEM_LIMIT),
    )(cond2d, x, x1flat,
      params["c2_w"], params["c2_b"], params["c2_beta"],
      params["c3_w"], params["c3_b"], params["c3_beta"],
      params["cnn_w"], params["cnn_b"], params["cnn_beta"],
      params["mlp_wx"], params["mlp_wc"], params["mlp_b"], params["mlp_beta"],
      params["f1a_w"], params["f1b_w"], params["f1_b"], params["f1_beta"],
      params["f2_w"], params["f2_b"])
    return out if Bp == B else out[:B]


# ----------------------------------------------------------------------------
# conv1 im2col (XLA glue): cheap 4-view block decomposition when k == 2*stride
# ----------------------------------------------------------------------------
def _im2col_conv1(x_nhwc, k, s):
    B, H, W, C = x_nhwc.shape
    oh, ow = _conv_out(H, k, s), _conv_out(W, k, s)
    if k == 2 * s and H % s == 0 and W % s == 0:
        xb = x_nhwc.reshape(B, H // s, s, W // s, s, C)
        tl = xb[:, :-1, :, :-1]
        tr = xb[:, :-1, :, 1:]
        bl = xb[:, 1:, :, :-1]
        br = xb[:, 1:, :, 1:]
        top = jnp.concatenate([tl, tr], axis=4)        # (B, oh, s, ow, k, C)
        bot = jnp.concatenate([bl, br], axis=4)
        full = jnp.concatenate([top, bot], axis=2)     # (B, oh, k, ow, k, C)
        cols = jnp.transpose(full, (0, 1, 3, 2, 4, 5))  # (B, oh, ow, k, k, C)
    else:
        # TODO(synk): fold this generic (many-slice) path into the Pallas kernel.
        patches = []
        for i in range(k):
            for j in range(k):
                patches.append(jax.lax.slice(
                    x_nhwc, (0, i, j, 0),
                    (B, i + (oh - 1) * s + 1, j + (ow - 1) * s + 1, C),
                    (1, s, s, 1)))
        cols = jnp.stack(patches, axis=3).reshape(B, oh, ow, k, k, C)
    return cols.reshape(B * oh * ow, k * k * C), oh, ow


# ----------------------------------------------------------------------------
# Parameter init (PyTorch-like uniform fan-in), pre-laid-out for the kernels
# ----------------------------------------------------------------------------
def init_params(key, x_dim, num_classes, chart_shape):
    C, H, W = chart_shape
    o1h, o1w = _conv_out(H, 8, 4), _conv_out(W, 8, 4)
    o2h, o2w = _conv_out(o1h, 4, 2), _conv_out(o1w, 4, 2)
    o3h, o3w = _conv_out(o2h, 3, 1), _conv_out(o2w, 3, 1)
    # The fused tail kernel assumes conv3's output is spatially 1x1 and the
    # dense-lowered conv2 weight stays small enough to be VMEM-resident.
    assert o3h == 1 and o3w == 1, "fused tail assumes conv3 output is 1x1"
    assert o1h * o1w * 32 * o2h * o2w * 64 * 2 <= 8 * 1024 * 1024

    keys = iter(jax.random.split(key, 8))

    def lin_init(k, fan_in, fan_out):
        s = 1.0 / math.sqrt(fan_in)
        kw_, kb_ = jax.random.split(k)
        w = jax.random.uniform(kw_, (fan_in, fan_out), jnp.float32, -s, s)
        b = jax.random.uniform(kb_, (fan_out,), jnp.float32, -s, s)
        return w, b

    def conv_init(k, cin, cout, ksz):
        s = 1.0 / math.sqrt(cin * ksz * ksz)
        kw_, kb_ = jax.random.split(k)
        w = jax.random.uniform(kw_, (cout, cin, ksz, ksz), jnp.float32, -s, s)
        b = jax.random.uniform(kb_, (cout,), jnp.float32, -s, s)
        return w, b

    p = {}

    # conv1: (32, C, 8, 8) -> im2col (8*8*C, 32) in (kh, kw, C) tap order.
    w1, b1 = conv_init(next(keys), C, 32, 8)
    p["c1_w"] = jnp.transpose(w1, (2, 3, 1, 0)).reshape(64 * C, 32).astype(jnp.bfloat16)
    p["c1_b"] = b1.reshape(1, 32)
    p["c1_beta"] = jnp.ones((1, 32), jnp.float32)

    # conv2: (64, 32, 4, 4), stride 2 -> dense-lowered (o1h*o1w*32, o2h*o2w*64).
    w2, b2 = conv_init(next(keys), 32, 64, 4)
    w2_t = jnp.transpose(w2, (2, 3, 1, 0))                    # (kh, kw, ci, co)
    dense = jnp.zeros((o2h, o2w, o1h, o1w, 32, 64), jnp.float32)
    for oy in range(o2h):
        for ox in range(o2w):
            dense = dense.at[oy, ox, 2 * oy:2 * oy + 4, 2 * ox:2 * ox + 4].set(w2_t)
    p["c2_w"] = jnp.transpose(dense, (2, 3, 4, 0, 1, 5)).reshape(
        o1h * o1w * 32, o2h * o2w * 64).astype(jnp.bfloat16)
    p["c2_b"] = jnp.tile(b2, o2h * o2w).reshape(1, o2h * o2w * 64)
    p["c2_beta"] = jnp.ones((1, o2h * o2w * 64), jnp.float32)  # per-channel, tiled

    # conv3: (64, 64, 3, 3) over a 3x3 map -> Linear(o2h*o2w*64, 64).
    w3, b3 = conv_init(next(keys), 64, 64, 3)
    p["c3_w"] = jnp.transpose(w3, (2, 3, 1, 0)).reshape(o2h * o2w * 64, 64).astype(jnp.bfloat16)
    p["c3_b"] = b3.reshape(1, 64)
    p["c3_beta"] = jnp.ones((1, 64), jnp.float32)

    # NatureCnn tail MLP: Linear(64, 512) + Swish(512).
    w, b = lin_init(next(keys), 64, 512)
    p["cnn_w"] = w.astype(jnp.bfloat16)
    p["cnn_b"] = b.reshape(1, 512)
    p["cnn_beta"] = jnp.ones((1, 512), jnp.float32)

    pad300 = _N300 - 300

    # ToyNet.mlp: Linear(x_dim + num_classes, 300) + Swish(300); split into the
    # x rows and the one-hot(cond) rows, zero-padded 300 -> 384 lanes.
    w, b = lin_init(next(keys), x_dim + num_classes, 300)
    wp = jnp.pad(w, ((0, 0), (0, pad300)))
    p["mlp_wx"] = wp[:x_dim].astype(jnp.bfloat16)
    p["mlp_wc"] = wp[x_dim:].astype(jnp.bfloat16)
    p["mlp_b"] = jnp.pad(b, (0, pad300)).reshape(1, _N300)
    p["mlp_beta"] = jnp.ones((1, _N300), jnp.float32)

    # fuse layer 1: Linear(300+512, 300) + Swish(300); split into x_inp /
    # x_chart row blocks (removes the runtime concat), zero-padded to 384.
    w, b = lin_init(next(keys), 300 + 512, 300)
    p["f1a_w"] = jnp.pad(w[:300], ((0, pad300), (0, pad300))).astype(jnp.bfloat16)
    p["f1b_w"] = jnp.pad(w[300:], ((0, 0), (0, pad300))).astype(jnp.bfloat16)
    p["f1_b"] = jnp.pad(b, (0, pad300)).reshape(1, _N300)
    p["f1_beta"] = jnp.ones((1, _N300), jnp.float32)

    # fuse layer 2: Linear(300, 1), kept f32, applied as a row reduction.
    w, b = lin_init(next(keys), 300, 1)
    p["f2_w"] = jnp.pad(w.T, ((0, 0), (0, pad300)))            # (1, 384) f32
    p["f2_b"] = b.reshape(1, 1)
    return p


# ----------------------------------------------------------------------------
# Energy.forward (get_score=False path)
# ----------------------------------------------------------------------------
def energy_forward(params, x, cond, chart, num_classes):
    B = x.shape[0]
    # NCHW -> NHWC once at entry; bf16 activations for the MXU.
    h = jnp.transpose(chart, (0, 2, 3, 1)).astype(jnp.bfloat16)
    cols, o1h, o1w = _im2col_conv1(h, 8, 4)
    # Call 1: conv1 = im2col matmul + bias + Swish (bf16 output).
    x1 = linear_swish(cols, params["c1_w"], params["c1_b"], params["c1_beta"],
                      out_dtype=jnp.bfloat16, max_tile=2048)
    # Row-major reshape (free): (B*o1h*o1w, 32) -> (B, o1h*o1w*32) NHWC flatten.
    x1flat = x1.reshape(B, o1h * o1w * 32)
    cond2d = cond.astype(jnp.int32).reshape(B, 1)
    # Call 2: conv2 + conv3 + cnn tail MLP + ToyNet.mlp + fuse MLP, fully fused.
    return fused_tail(params, x, cond2d, x1flat, num_classes)
    # TODO(synk): get_score=True path (grad of -E wrt x) not implemented.


if __name__ == "__main__":
    key = jax.random.PRNGKey(0)
    B = 2
    x_dim = 3
    num_classes = 5
    chart_shape = (4, 36, 36)  # (C, H, W); 36 -> 8 -> 3 -> 1 through the convs

    k_x, k_c, k_chart, k_p = jax.random.split(key, 4)
    x = jax.random.normal(k_x, (B, x_dim), jnp.float32)
    cond = jax.random.randint(k_c, (B,), 0, num_classes)
    chart = jax.random.normal(k_chart, (B, *chart_shape), jnp.float32)

    params = init_params(k_p, x_dim, num_classes, chart_shape)

    fwd = jax.jit(lambda p, xx, cc, ch: energy_forward(p, xx, cc, ch, num_classes))
    e = jax.block_until_ready(fwd(params, x, cond, chart))

    assert e.shape == (B, 1), e.shape
    assert bool(jnp.all(jnp.isfinite(e)))
    print("KERNEL_OK")
</pallas_src>

<mosaic_0001>
module attributes {stable_mosaic.version = 11 : i64} {
  func.func @_linear_swish_kernel(%arg0: i32, %arg1: memref<64x256xbf16, #tpu.memory_space<vmem>>, %arg2: memref<256x32xbf16, #tpu.memory_space<vmem>>, %arg3: memref<1x32xf32, #tpu.memory_space<vmem>>, %arg4: memref<1x32xf32, #tpu.memory_space<vmem>>, %arg5: memref<64x32xbf16, #tpu.memory_space<vmem>>) attributes {dimension_semantics = [#tpu.dimension_semantics<parallel>], iteration_bounds = array<i64: 2>, scalar_prefetch = 0 : i64, scratch_operands = 0 : i64, tpu.core_type = #tpu.core_type<tc>, window_params = [{transform_indices = @transform_0, window_bounds = array<i64: 64, 256>}, {pipeline_mode = #tpu.pipeline_mode<synchronous>, transform_indices = @transform_1, window_bounds = array<i64: 256, 32>}, {pipeline_mode = #tpu.pipeline_mode<synchronous>, transform_indices = @transform_2, window_bounds = array<i64: 1, 32>}, {pipeline_mode = #tpu.pipeline_mode<synchronous>, transform_indices = @transform_3, window_bounds = array<i64: 1, 32>}, {transform_indices = @transform_4, window_bounds = array<i64: 64, 32>}]} {
    %c0 = arith.constant 0 : index
    %c0_0 = arith.constant 0 : index
    %0 = vector.load %arg1[%c0, %c0_0] : memref<64x256xbf16, #tpu.memory_space<vmem>>, vector<64x256xbf16>
    %c0_1 = arith.constant 0 : index
    %c0_2 = arith.constant 0 : index
    %1 = vector.load %arg2[%c0_1, %c0_2] : memref<256x32xbf16, #tpu.memory_space<vmem>>, vector<256x32xbf16>
    %cst = arith.constant dense<0.000000e+00> : vector<64x32xf32>
    %2 = tpu.matmul %0, %1, %cst {dimension_numbers = #tpu.dot_dimension_numbers<[1], [0], [0], [1], [0, 0, 1, 1], [], []>} : vector<64x256xbf16>, vector<256x32xbf16>, vector<64x32xf32> -> vector<64x32xf32>
    %c0_3 = arith.constant 0 : index
    %c0_4 = arith.constant 0 : index
    %3 = vector.load %arg3[%c0_3, %c0_4] : memref<1x32xf32, #tpu.memory_space<vmem>>, vector<1x32xf32>
    %4 = vector.broadcast %3 : vector<1x32xf32> to vector<64x32xf32>
    %5 = arith.addf %2, %4 : vector<64x32xf32>
    %c0_5 = arith.constant 0 : index
    %c0_6 = arith.constant 0 : index
    %6 = vector.load %arg4[%c0_5, %c0_6] : memref<1x32xf32, #tpu.memory_space<vmem>>, vector<1x32xf32>
    %7 = vector.broadcast %6 : vector<1x32xf32> to vector<64x32xf32>
    %8 = arith.mulf %7, %5 : vector<64x32xf32>
    %cst_7 = arith.constant 0.000000e+00 : f32
    %9 = vector.broadcast %cst_7 : f32 to vector<64x32xf32>
    %10 = arith.subf %9, %8 : vector<64x32xf32>
    %11 = math.exp %10 : vector<64x32xf32>
    %cst_8 = arith.constant 1.000000e+00 : f32
    %12 = vector.broadcast %cst_8 : f32 to vector<64x32xf32>
    %13 = arith.addf %12, %11 : vector<64x32xf32>
    %14 = tpu.reciprocal %13 {approx = true} : vector<64x32xf32> -> vector<64x32xf32>
    %15 = arith.mulf %5, %14 : vector<64x32xf32>
    %16 = arith.truncf %15 : vector<64x32xf32> to vector<64x32xbf16>
    %c0_9 = arith.constant 0 : index
    %c0_10 = arith.constant 0 : index
    %17 = vector.load %arg5[%c0_9, %c0_10] : memref<64x32xbf16, #tpu.memory_space<vmem>>, vector<64x32xbf16>
    tpu.vector_store %arg5[%c0_9, %c0_10], %16 {strides = array<i32>} : memref<64x32xbf16, #tpu.memory_space<vmem>>, vector<64x32xbf16>,
    return
  }
  func.func @transform_0(%arg0: i32) -> (i32, i32) {
    %c0_i32 = arith.constant 0 : i32
    %c0_i32_0 = arith.constant 0 : i32
    return %arg0, %c0_i32 : i32, i32
  }
  func.func @transform_1(%arg0: i32) -> (i32, i32) {
    %c0_i32 = arith.constant 0 : i32
    %c0_i32_0 = arith.constant 0 : i32
    %c0_i32_1 = arith.constant 0 : i32
    return %c0_i32, %c0_i32_0 : i32, i32
  }
  func.func @transform_2(%arg0: i32) -> (i32, i32) {
    %c0_i32 = arith.constant 0 : i32
    %c0_i32_0 = arith.constant 0 : i32
    %c0_i32_1 = arith.constant 0 : i32
    return %c0_i32, %c0_i32_0 : i32, i32
  }
  func.func @transform_3(%arg0: i32) -> (i32, i32) {
    %c0_i32 = arith.constant 0 : i32
    %c0_i32_0 = arith.constant 0 : i32
    %c0_i32_1 = arith.constant 0 : i32
    return %c0_i32, %c0_i32_0 : i32, i32
  }
  func.func @transform_4(%arg0: i32) -> (i32, i32) {
    %c0_i32 = arith.constant 0 : i32
    %c0_i32_0 = arith.constant 0 : i32
    return %arg0, %c0_i32 : i32, i32
  }
}

module attributes {stable_mosaic.version = 11 : i64} {
  func.func @_tail_kernel(%arg0: i32, %arg1: memref<2x1xi32, #tpu.memory_space<vmem>>, %arg2: memref<2x3xf32, #tpu.memory_space<vmem>>, %arg3: memref<2x2048xbf16, #tpu.memory_space<vmem>>, %arg4: memref<2048x576xbf16, #tpu.memory_space<vmem>>, %arg5: memref<1x576xf32, #tpu.memory_space<vmem>>, %arg6: memref<1x576xf32, #tpu.memory_space<vmem>>, %arg7: memref<576x64xbf16, #tpu.memory_space<vmem>>, %arg8: memref<1x64xf32, #tpu.memory_space<vmem>>, %arg9: memref<1x64xf32, #tpu.memory_space<vmem>>, %arg10: memref<64x512xbf16, #tpu.memory_space<vmem>>, %arg11: memref<1x512xf32, #tpu.memory_space<vmem>>, %arg12: memref<1x512xf32, #tpu.memory_space<vmem>>, %arg13: memref<3x384xbf16, #tpu.memory_space<vmem>>, %arg14: memref<5x384xbf16, #tpu.memory_space<vmem>>, %arg15: memref<1x384xf32, #tpu.memory_space<vmem>>, %arg16: memref<1x384xf32, #tpu.memory_space<vmem>>, %arg17: memref<384x384xbf16, #tpu.memory_space<vmem>>, %arg18: memref<512x384xbf16, #tpu.memory_space<vmem>>, %arg19: memref<1x384xf32, #tpu.memory_space<vmem>>, %arg20: memref<1x384xf32, #tpu.memory_space<vmem>>, %arg21: memref<1x384xf32, #tpu.memory_space<vmem>>, %arg22: memref<1x1xf32, #tpu.memory_space<vmem>>, %arg23: memref<2x1xf32, #tpu.memory_space<vmem>>) attributes {dimension_semantics = [#tpu.dimension_semantics<parallel>], iteration_bounds = array<i64: 1>, scalar_prefetch = 0 : i64, scratch_operands = 0 : i64, tpu.core_type = #tpu.core_type<tc>, window_params = [{transform_indices = @transform_0, window_bounds = array<i64: 2, 1>}, {transform_indices = @transform_1, window_bounds = array<i64: 2, 3>}, {transform_indices = @transform_2, window_bounds = array<i64: 2, 2048>}, {pipeline_mode = #tpu.pipeline_mode<synchronous>, transform_indices = @transform_3, window_bounds = array<i64: 2048, 576>}, {pipeline_mode = #tpu.pipeline_mode<synchronous>, transform_indices = @transform_4, window_bounds = array<i64: 1, 576>}, {pipeline_mode = #tpu.pipeline_mode<synchronous>, transform_indices = @transform_5, window_bounds = array<i64: 1, 576>}, {pipeline_mode = #tpu.pipeline_mode<synchronous>, transform_indices = @transform_6, window_bounds = array<i64: 576, 64>}, {pipeline_mode = #tpu.pipeline_mode<synchronous>, transform_indices = @transform_7, window_bounds = array<i64: 1, 64>}, {pipeline_mode = #tpu.pipeline_mode<synchronous>, transform_indices = @transform_8, window_bounds = array<i64: 1, 64>}, {pipeline_mode = #tpu.pipeline_mode<synchronous>, transform_indices = @transform_9, window_bounds = array<i64: 64, 512>}, {pipeline_mode = #tpu.pipeline_mode<synchronous>, transform_indices = @transform_10, window_bounds = array<i64: 1, 512>}, {pipeline_mode = #tpu.pipeline_mode<synchronous>, transform_indices = @transform_11, window_bounds = array<i64: 1, 512>}, {pipeline_mode = #tpu.pipeline_mode<synchronous>, transform_indices = @transform_12, window_bounds = array<i64: 3, 384>}, {pipeline_mode = #tpu.pipeline_mode<synchronous>, transform_indices = @transform_13, window_bounds = array<i64: 5, 384>}, {pipeline_mode = #tpu.pipeline_mode<synchronous>, transform_indices = @transform_14, window_bounds = array<i64: 1, 384>}, {pipeline_mode = #tpu.pipeline_mode<synchronous>, transform_indices = @transform_15, window_bounds = array<i64: 1, 384>}, {pipeline_mode = #tpu.pipeline_mode<synchronous>, transform_indices = @transform_16, window_bounds = array<i64: 384, 384>}, {pipeline_mode = #tpu.pipeline_mode<synchronous>, transform_indices = @transform_17, window_bounds = array<i64: 512, 384>}, {pipeline_mode = #tpu.pipeline_mode<synchronous>, transform_indices = @transform_18, window_bounds = array<i64: 1, 384>}, {pipeline_mode = #tpu.pipeline_mode<synchronous>, transform_indices = @transform_19, window_bounds = array<i64: 1, 384>}, {pipeline_mode = #tpu.pipeline_mode<synchronous>, transform_indices = @transform_20, window_bounds = array<i64: 1, 384>}, {pipeline_mode = #tpu.pipeline_mode<synchronous>, transform_indices = @transform_21, window_bounds = array<i64: 1, 1>}, {transform_indices = @transform_22, window_bounds = array<i64: 2, 1>}]} {
    %c0 = arith.constant 0 : index
    %c0_0 = arith.constant 0 : index
    %0 = vector.load %arg3[%c0, %c0_0] : memref<2x2048xbf16, #tpu.memory_space<vmem>>, vector<2x2048xbf16>
    %c0_1 = arith.constant 0 : index
    %c0_2 = arith.constant 0 : index
    %1 = vector.load %arg4[%c0_1, %c0_2] : memref<2048x576xbf16, #tpu.memory_space<vmem>>, vector<2048x576xbf16>
    %cst = arith.constant dense<0.000000e+00> : vector<2x576xf32>
    %2 = tpu.matmul %0, %1, %cst {dimension_numbers = #tpu.dot_dimension_numbers<[1], [0], [0], [1], [0, 0, 1, 1], [], []>} : vector<2x2048xbf16>, vector<2048x576xbf16>, vector<2x576xf32> -> vector<2x576xf32>
    %c0_3 = arith.constant 0 : index
    %c0_4 = arith.constant 0 : index
    %3 = vector.load %arg5[%c0_3, %c0_4] : memref<1x576xf32, #tpu.memory_space<vmem>>, vector<1x576xf32>
    %4 = vector.broadcast %3 : vector<1x576xf32> to vector<2x576xf32>
    %5 = arith.addf %2, %4 : vector<2x576xf32>
    %c0_5 = arith.constant 0 : index
    %c0_6 = arith.constant 0 : index
    %6 = vector.load %arg6[%c0_5, %c0_6] : memref<1x576xf32, #tpu.memory_space<vmem>>, vector<1x576xf32>
    %7 = vector.broadcast %6 : vector<1x576xf32> to vector<2x576xf32>
    %8 = arith.mulf %7, %5 : vector<2x576xf32>
    %cst_7 = arith.constant 0.000000e+00 : f32
    %9 = vector.broadcast %cst_7 : f32 to vector<2x576xf32>
    %10 = arith.subf %9, %8 : vector<2x576xf32>
    %11 = math.exp %10 : vector<2x576xf32>
    %cst_8 = arith.constant 1.000000e+00 : f32
    %12 = vector.broadcast %cst_8 : f32 to vector<2x576xf32>
    %13 = arith.addf %12, %11 : vector<2x576xf32>
    %14 = tpu.reciprocal %13 {approx = true} : vector<2x576xf32> -> vector<2x576xf32>
    %15 = arith.mulf %5, %14 : vector<2x576xf32>
    %16 = arith.truncf %15 : vector<2x576xf32> to vector<2x576xbf16>
    %c0_9 = arith.constant 0 : index
    %c0_10 = arith.constant 0 : index
    %17 = vector.load %arg7[%c0_9, %c0_10] : memref<576x64xbf16, #tpu.memory_space<vmem>>, vector<576x64xbf16>
    %cst_11 = arith.constant dense<0.000000e+00> : vector<2x64xf32>
    %18 = tpu.matmul %16, %17, %cst_11 {dimension_numbers = #tpu.dot_dimension_numbers<[1], [0], [0], [1], [0, 0, 1, 1], [], []>} : vector<2x576xbf16>, vector<576x64xbf16>, vector<2x64xf32> -> vector<2x64xf32>
    %c0_12 = arith.constant 0 : index
    %c0_13 = arith.constant 0 : index
    %19 = vector.load %arg8[%c0_12, %c0_13] : memref<1x64xf32, #tpu.memory_space<vmem>>, vector<1x64xf32>
    %20 = vector.broadcast %19 : vector<1x64xf32> to vector<2x64xf32>
    %21 = arith.addf %18, %20 : vector<2x64xf32>
    %c0_14 = arith.constant 0 : index
    %c0_15 = arith.constant 0 : index
    %22 = vector.load %arg9[%c0_14, %c0_15] : memref<1x64xf32, #tpu.memory_space<vmem>>, vector<1x64xf32>
    %23 = vector.broadcast %22 : vector<1x64xf32> to vector<2x64xf32>
    %24 = arith.mulf %23, %21 : vector<2x64xf32>
    %cst_16 = arith.constant 0.000000e+00 : f32
    %25 = vector.broadcast %cst_16 : f32 to vector<2x64xf32>
    %26 = arith.subf %25, %24 : vector<2x64xf32>
    %27 = math.exp %26 : vector<2x64xf32>
    %cst_17 = arith.constant 1.000000e+00 : f32
    %28 = vector.broadcast %cst_17 : f32 to vector<2x64xf32>
    %29 = arith.addf %28, %27 : vector<2x64xf32>
    %30 = tpu.reciprocal %29 {approx = true} : vector<2x64xf32> -> vector<2x64xf32>
    %31 = arith.mulf %21, %30 : vector<2x64xf32>
    %32 = arith.truncf %31 : vector<2x64xf32> to vector<2x64xbf16>
    %c0_18 = arith.constant 0 : index
    %c0_19 = arith.constant 0 : index
    %33 = vector.load %arg10[%c0_18, %c0_19] : memref<64x512xbf16, #tpu.memory_space<vmem>>, vector<64x512xbf16>
    %cst_20 = arith.constant dense<0.000000e+00> : vector<2x512xf32>
    %34 = tpu.matmul %32, %33, %cst_20 {dimension_numbers = #tpu.dot_dimension_numbers<[1], [0], [0], [1], [0, 0, 1, 1], [], []>} : vector<2x64xbf16>, vector<64x512xbf16>, vector<2x512xf32> -> vector<2x512xf32>
    %c0_21 = arith.constant 0 : index
    %c0_22 = arith.constant 0 : index
    %35 = vector.load %arg11[%c0_21, %c0_22] : memref<1x512xf32, #tpu.memory_space<vmem>>, vector<1x512xf32>
    %36 = vector.broadcast %35 : vector<1x512xf32> to vector<2x512xf32>
    %37 = arith.addf %34, %36 : vector<2x512xf32>
    %c0_23 = arith.constant 0 : index
    %c0_24 = arith.constant 0 : index
    %38 = vector.load %arg12[%c0_23, %c0_24] : memref<1x512xf32, #tpu.memory_space<vmem>>, vector<1x512xf32>
    %39 = vector.broadcast %38 : vector<1x512xf32> to vector<2x512xf32>
    %40 = arith.mulf %39, %37 : vector<2x512xf32>
    %cst_25 = arith.constant 0.000000e+00 : f32
    %41 = vector.broadcast %cst_25 : f32 to vector<2x512xf32>
    %42 = arith.subf %41, %40 : vector<2x512xf32>
    %43 = math.exp %42 : vector<2x512xf32>
    %cst_26 = arith.constant 1.000000e+00 : f32
    %44 = vector.broadcast %cst_26 : f32 to vector<2x512xf32>
    %45 = arith.addf %44, %43 : vector<2x512xf32>
    %46 = tpu.reciprocal %45 {approx = true} : vector<2x512xf32> -> vector<2x512xf32>
    %47 = arith.mulf %37, %46 : vector<2x512xf32>
    %c0_27 = arith.constant 0 : index
    %c0_28 = arith.constant 0 : index
    %48 = vector.load %arg1[%c0_27, %c0_28] : memref<2x1xi32, #tpu.memory_space<vmem>>, vector<2x1xi32>
    %49 = tpu.iota {dimensions = array<i32: 1>} : vector<2x5xi32>
    %50 = vector.broadcast %48 : vector<2x1xi32> to vector<2x5xi32>
    %51 = arith.cmpi eq, %50, %49 : vector<2x5xi32>
    %52 = arith.extui %51 : vector<2x5xi1> to vector<2x5xi32>
    %53 = arith.sitofp %52 : vector<2x5xi32> to vector<2x5xf32>
    %54 = arith.truncf %53 : vector<2x5xf32> to vector<2x5xbf16>
    %c0_29 = arith.constant 0 : index
    %c0_30 = arith.constant 0 : index
    %55 = vector.load %arg2[%c0_29, %c0_30] : memref<2x3xf32, #tpu.memory_space<vmem>>, vector<2x3xf32>
    %56 = arith.truncf %55 : vector<2x3xf32> to vector<2x3xbf16>
    %c0_31 = arith.constant 0 : index
    %c0_32 = arith.constant 0 : index
    %57 = vector.load %arg13[%c0_31, %c0_32] : memref<3x384xbf16, #tpu.memory_space<vmem>>, vector<3x384xbf16>
    %cst_33 = arith.constant dense<0.000000e+00> : vector<2x384xf32>
    %58 = tpu.matmul %56, %57, %cst_33 {dimension_numbers = #tpu.dot_dimension_numbers<[1], [0], [0], [1], [0, 0, 1, 1], [], []>} : vector<2x3xbf16>, vector<3x384xbf16>, vector<2x384xf32> -> vector<2x384xf32>
    %c0_34 = arith.constant 0 : index
    %c0_35 = arith.constant 0 : index
    %59 = vector.load %arg14[%c0_34, %c0_35] : memref<5x384xbf16, #tpu.memory_space<vmem>>, vector<5x384xbf16>
    %cst_36 = arith.constant dense<0.000000e+00> : vector<2x384xf32>
    %60 = tpu.matmul %54, %59, %cst_36 {dimension_numbers = #tpu.dot_dimension_numbers<[1], [0], [0], [1], [0, 0, 1, 1], [], []>} : vector<2x5xbf16>, vector<5x384xbf16>, vector<2x384xf32> -> vector<2x384xf32>
    %61 = arith.addf %58, %60 : vector<2x384xf32>
    %c0_37 = arith.constant 0 : index
    %c0_38 = arith.constant 0 : index
    %62 = vector.load %arg15[%c0_37, %c0_38] : memref<1x384xf32, #tpu.memory_space<vmem>>, vector<1x384xf32>
    %63 = vector.broadcast %62 : vector<1x384xf32> to vector<2x384xf32>
    %64 = arith.addf %61, %63 : vector<2x384xf32>
    %c0_39 = arith.constant 0 : index
    %c0_40 = arith.constant 0 : index
    %65 = vector.load %arg16[%c0_39, %c0_40] : memref<1x384xf32, #tpu.memory_space<vmem>>, vector<1x384xf32>
    %66 = vector.broadcast %65 : vector<1x384xf32> to vector<2x384xf32>
    %67 = arith.mulf %66, %64 : vector<2x384xf32>
    %cst_41 = arith.constant 0.000000e+00 : f32
    %68 = vector.broadcast %cst_41 : f32 to vector<2x384xf32>
    %69 = arith.subf %68, %67 : vector<2x384xf32>
    %70 = math.exp %69 : vector<2x384xf32>
    %cst_42 = arith.constant 1.000000e+00 : f32
    %71 = vector.broadcast %cst_42 : f32 to vector<2x384xf32>
    %72 = arith.addf %71, %70 : vector<2x384xf32>
    %73 = tpu.reciprocal %72 {approx = true} : vector<2x384xf32> -> vector<2x384xf32>
    %74 = arith.mulf %64, %73 : vector<2x384xf32>
    %75 = arith.truncf %74 : vector<2x384xf32> to vector<2x384xbf16>
    %c0_43 = arith.constant 0 : index
    %c0_44 = arith.constant 0 : index
    %76 = vector.load %arg17[%c0_43, %c0_44] : memref<384x384xbf16, #tpu.memory_space<vmem>>, vector<384x384xbf16>
    %cst_45 = arith.constant dense<0.000000e+00> : vector<2x384xf32>
    %77 = tpu.matmul %75, %76, %cst_45 {dimension_numbers = #tpu.dot_dimension_numbers<[1], [0], [0], [1], [0, 0, 1, 1], [], []>} : vector<2x384xbf16>, vector<384x384xbf16>, vector<2x384xf32> -> vector<2x384xf32>
    %78 = arith.truncf %47 : vector<2x512xf32> to vector<2x512xbf16>
    %c0_46 = arith.constant 0 : index
    %c0_47 = arith.constant 0 : index
    %79 = vector.load %arg18[%c0_46, %c0_47] : memref<512x384xbf16, #tpu.memory_space<vmem>>, vector<512x384xbf16>
    %cst_48 = arith.constant dense<0.000000e+00> : vector<2x384xf32>
    %80 = tpu.matmul %78, %79, %cst_48 {dimension_numbers = #tpu.dot_dimension_numbers<[1], [0], [0], [1], [0, 0, 1, 1], [], []>} : vector<2x512xbf16>, vector<512x384xbf16>, vector<2x384xf32> -> vector<2x384xf32>
    %81 = arith.addf %77, %80 : vector<2x384xf32>
    %c0_49 = arith.constant 0 : index
    %c0_50 = arith.constant 0 : index
    %82 = vector.load %arg19[%c0_49, %c0_50] : memref<1x384xf32, #tpu.memory_space<vmem>>, vector<1x384xf32>
    %83 = vector.broadcast %82 : vector<1x384xf32> to vector<2x384xf32>
    %84 = arith.addf %81, %83 : vector<2x384xf32>
    %c0_51 = arith.constant 0 : index
    %c0_52 = arith.constant 0 : index
    %85 = vector.load %arg20[%c0_51, %c0_52] : memref<1x384xf32, #tpu.memory_space<vmem>>, vector<1x384xf32>
    %86 = vector.broadcast %85 : vector<1x384xf32> to vector<2x384xf32>
    %87 = arith.mulf %86, %84 : vector<2x384xf32>
    %cst_53 = arith.constant 0.000000e+00 : f32
    %88 = vector.broadcast %cst_53 : f32 to vector<2x384xf32>
    %89 = arith.subf %88, %87 : vector<2x384xf32>
    %90 = math.exp %89 : vector<2x384xf32>
    %cst_54 = arith.constant 1.000000e+00 : f32
    %91 = vector.broadcast %cst_54 : f32 to vector<2x384xf32>
    %92 = arith.addf %91, %90 : vector<2x384xf32>
    %93 = tpu.reciprocal %92 {approx = true} : vector<2x384xf32> -> vector<2x384xf32>
    %94 = arith.mulf %84, %93 : vector<2x384xf32>
    %c0_55 = arith.constant 0 : index
    %c0_56 = arith.constant 0 : index
    %95 = vector.load %arg21[%c0_55, %c0_56] : memref<1x384xf32, #tpu.memory_space<vmem>>, vector<1x384xf32>
    %96 = vector.broadcast %95 : vector<1x384xf32> to vector<2x384xf32>
    %97 = arith.mulf %94, %96 : vector<2x384xf32>
    %cst_57 = arith.constant dense<0.000000e+00> : vector<2xf32>
    %98 = vector.multi_reduction <add>, %97, %cst_57 [1] : vector<2x384xf32> to vector<2xf32>
    %99 = vector.shape_cast %98 : vector<2xf32> to vector<2x1xf32>
    %c0_58 = arith.constant 0 : index
    %c0_59 = arith.constant 0 : index
    %100 = vector.load %arg22[%c0_58, %c0_59] : memref<1x1xf32, #tpu.memory_space<vmem>>, vector<1x1xf32>
    %101 = vector.broadcast %100 : vector<1x1xf32> to vector<2x1xf32>
    %102 = arith.addf %99, %101 : vector<2x1xf32>
    %c0_60 = arith.constant 0 : index
    %c0_61 = arith.constant 0 : index
    %103 = vector.load %arg23[%c0_60, %c0_61] : memref<2x1xf32, #tpu.memory_space<vmem>>, vector<2x1xf32>
    tpu.vector_store %arg23[%c0_60, %c0_61], %102 {strides = array<i32>} : memref<2x1xf32, #tpu.memory_space<vmem>>, vector<2x1xf32>,
    return
  }
  func.func @transform_0(%arg0: i32) -> (i32, i32) {
    %c0_i32 = arith.constant 0 : i32
    %c0_i32_0 = arith.constant 0 : i32
    return %arg0, %c0_i32 : i32, i32
  }
  func.func @transform_1(%arg0: i32) -> (i32, i32) {
    %c0_i32 = arith.constant 0 : i32
    %c0_i32_0 = arith.constant 0 : i32
    return %arg0, %c0_i32 : i32, i32
  }
  func.func @transform_2(%arg0: i32) -> (i32, i32) {
    %c0_i32 = arith.constant 0 : i32
    %c0_i32_0 = arith.constant 0 : i32
    return %arg0, %c0_i32 : i32, i32
  }
  func.func @transform_3(%arg0: i32) -> (i32, i32) {
    %c0_i32 = arith.constant 0 : i32
    %c0_i32_0 = arith.constant 0 : i32
    %c0_i32_1 = arith.constant 0 : i32
    return %c0_i32, %c0_i32_0 : i32, i32
  }
  func.func @transform_4(%arg0: i32) -> (i32, i32) {
    %c0_i32 = arith.constant 0 : i32
    %c0_i32_0 = arith.constant 0 : i32
    %c0_i32_1 = arith.constant 0 : i32
    return %c0_i32, %c0_i32_0 : i32, i32
  }
  func.func @transform_5(%arg0: i32) -> (i32, i32) {
    %c0_i32 = arith.constant 0 : i32
    %c0_i32_0 = arith.constant 0 : i32
    %c0_i32_1 = arith.constant 0 : i32
    return %c0_i32, %c0_i32_0 : i32, i32
  }
  func.func @transform_6(%arg0: i32) -> (i32, i32) {
    %c0_i32 = arith.constant 0 : i32
    %c0_i32_0 = arith.constant 0 : i32
    %c0_i32_1 = arith.constant 0 : i32
    return %c0_i32, %c0_i32_0 : i32, i32
  }
  func.func @transform_7(%arg0: i32) -> (i32, i32) {
    %c0_i32 = arith.constant 0 : i32
    %c0_i32_0 = arith.constant 0 : i32
    %c0_i32_1 = arith.constant 0 : i32
    return %c0_i32, %c0_i32_0 : i32, i32
  }
  func.func @transform_8(%arg0: i32) -> (i32, i32) {
    %c0_i32 = arith.constant 0 : i32
    %c0_i32_0 = arith.constant 0 : i32
    %c0_i32_1 = arith.constant 0 : i32
    return %c0_i32, %c0_i32_0 : i32, i32
  }
  func.func @transform_9(%arg0: i32) -> (i32, i32) {
    %c0_i32 = arith.constant 0 : i32
    %c0_i32_0 = arith.constant 0 : i32
    %c0_i32_1 = arith.constant 0 : i32
    return %c0_i32, %c0_i32_0 : i32, i32
  }
  func.func @transform_10(%arg0: i32) -> (i32, i32) {
    %c0_i32 = arith.constant 0 : i32
    %c0_i32_0 = arith.constant 0 : i32
    %c0_i32_1 = arith.constant 0 : i32
    return %c0_i32, %c0_i32_0 : i32, i32
  }
  func.func @transform_11(%arg0: i32) -> (i32, i32) {
    %c0_i32 = arith.constant 0 : i32
    %c0_i32_0 = arith.constant 0 : i32
    %c0_i32_1 = arith.constant 0 : i32
    return %c0_i32, %c0_i32_0 : i32, i32
  }
  func.func @transform_12(%arg0: i32) -> (i32, i32) {
    %c0_i32 = arith.constant 0 : i32
    %c0_i32_0 = arith.constant 0 : i32
    %c0_i32_1 = arith.constant 0 : i32
    return %c0_i32, %c0_i32_0 : i32, i32
  }
  func.func @transform_13(%arg0: i32) -> (i32, i32) {
    %c0_i32 = arith.constant 0 : i32
    %c0_i32_0 = arith.constant 0 : i32
    %c0_i32_1 = arith.constant 0 : i32
    return %c0_i32, %c0_i32_0 : i32, i32
  }
  func.func @transform_14(%arg0: i32) -> (i32, i32) {
    %c0_i32 = arith.constant 0 : i32
    %c0_i32_0 = arith.constant 0 : i32
    %c0_i32_1 = arith.constant 0 : i32
    return %c0_i32, %c0_i32_0 : i32, i32
  }
  func.func @transform_15(%arg0: i32) -> (i32, i32) {
    %c0_i32 = arith.constant 0 : i32
    %c0_i32_0 = arith.constant 0 : i32
    %c0_i32_1 = arith.constant 0 : i32
    return %c0_i32, %c0_i32_0 : i32, i32
  }
  func.func @transform_16(%arg0: i32) -> (i32, i32) {
    %c0_i32 = arith.constant 0 : i32
    %c0_i32_0 = arith.constant 0 : i32
    %c0_i32_1 = arith.constant 0 : i32
    return %c0_i32, %c0_i32_0 : i32, i32
  }
  func.func @transform_17(%arg0: i32) -> (i32, i32) {
    %c0_i32 = arith.constant 0 : i32
    %c0_i32_0 = arith.constant 0 : i32
    %c0_i32_1 = arith.constant 0 : i32
    return %c0_i32, %c0_i32_0 : i32, i32
  }
  func.func @transform_18(%arg0: i32) -> (i32, i32) {
    %c0_i32 = arith.constant 0 : i32
    %c0_i32_0 = arith.constant 0 : i32
    %c0_i32_1 = arith.constant 0 : i32
    return %c0_i32, %c0_i32_0 : i32, i32
  }
  func.func @transform_19(%arg0: i32) -> (i32, i32) {
    %c0_i32 = arith.constant 0 : i32
    %c0_i32_0 = arith.constant 0 : i32
    %c0_i32_1 = arith.constant 0 : i32
    return %c0_i32, %c0_i32_0 : i32, i32
  }
  func.func @transform_20(%arg0: i32) -> (i32, i32) {
    %c0_i32 = arith.constant 0 : i32
    %c0_i32_0 = arith.constant 0 : i32
    %c0_i32_1 = arith.constant 0 : i32
    return %c0_i32, %c0_i32_0 : i32, i32
  }
  func.func @transform_21(%arg0: i32) -> (i32, i32) {
    %c0_i32 = arith.constant 0 : i32
    %c0_i32_0 = arith.constant 0 : i32
    %c0_i32_1 = arith.constant 0 : i32
    return %c0_i32, %c0_i32_0 : i32, i32
  }
  func.func @transform_22(%arg0: i32) -> (i32, i32) {
    %c0_i32 = arith.constant 0 : i32
    %c0_i32_0 = arith.constant 0 : i32
    return %arg0, %c0_i32 : i32, i32
  }
}

</mosaic_0001>

<llo_original>
// kernel: _lambda_.2
$region0: #{_lambda_.2}
  #allocation0 [shape = 'u32[]', space=smem, size = 0x4, offset = 0x4, fixed_abs, tag = 'smem constant byte address 0x4 - core index']
  #allocation1 [shape = 'u32[144,128]{1,0:T(1,128)}', space=vmem, size = 0x12000, scoped, tag = 'internal scratch']
  %s0 = inlined_call_operand.vmem [shape: bf16[128,256], index: 0, kind: input, shape index: {}]
  %s1 = inlined_call_operand.vmem [shape: bf16[256,32], index: 1, kind: input, shape index: {}]
  %s2 = inlined_call_operand.vmem [shape: f32[1,32], index: 2, kind: input, shape index: {}]
  %s3 = inlined_call_operand.vmem [shape: f32[1,32], index: 3, kind: input, shape index: {}]
  %s4 = inlined_call_operand.vmem [shape: bf16[128,32], index: 4, kind: output, shape index: {}]
  %s5 = sld [smem:[#allocation0]]
  $region49: #{_lambda_.2} parent=0
    _
  %s7 = ssub.s32 1, %s5
  %s8 = scalar_select 0, %s7, %s5
  loop: start=0, step=1, limit=4
  $region2: #{_lambda_.2} parent=0 // loop_pre_header
    _
  $region3: #{_lambda_.2} parent=0 // loop_header
    %s10 = sphi 0, %s14
    %p11 = scmp.ge.s32.totalorder %s10, 4
    %s20 = sphi 0, %s22
    %s23 = sphi 0, %s20
    %s24 = sphi 0, %s23
    %s40 = sphi 0, %s24
    %s44 = sphi 0, %s44
    %s46 = sphi 0, %s44
    %s47 = sphi 0, %s46
    %s61 = sphi 0, %s47
    %s65 = sphi 0, %s65
    %s67 = sphi 0, %s65
    %s68 = sphi 0, %s67
    %s82 = sphi 0, %s68
    %s86 = sphi 0, %s86
    %s88 = sphi 0, %s86
    %s89 = sphi 0, %s88
    %s103 = sphi 0, %s89
    %s109 = sphi 0, %s111
    %s112 = sphi 0, %s109
    %s113 = sphi 0, %s112
    %s129 = sphi 0, %s113
  $region4: #{_lambda_.2} parent=0 // loop_header_branch
    %13 = sbr.rel (%p11) target = $region8
  $region5: #{_lambda_.2} parent=0 // loop_body
    %s15 = ssub.s32 %s10, 1
    %s16 = ssub.s32 %s10, 2
    %s17 = sadd.s32 %s10, 1
    %s18 = ssub.s32 %s10, %s17
    %p19 = scmp.eq.s32.totalorder %s18, 0
    %s21 = sadd.s32 %s20, 1
    %s22 = scalar_select %p19, %s20, %s21
    %p25 = pneg %p19
    %p26 = scmp.eq.s32.totalorder %s10, 1
    %p27 = por %p25, %p26
    %p28 = scmp.ne.s32.totalorder %s20, %s23
    %p29 = scmp.eq.s32.totalorder %s10, 0
    %p30 = por %p28, %p29
    %p31 = scmp.ne.s32.totalorder %s20, %s23
    %p32 = scmp.eq.s32.totalorder %s15, 1
    %p33 = por %p31, %p32
    %p34 = scmp.ne.s32.totalorder %s23, %s24
    %p35 = scmp.eq.s32.totalorder %s15, 0
    %p36 = por %p34, %p35
    %p37 = scmp.ne.s32.totalorder %s23, %s24
    %p38 = scmp.eq.s32.totalorder %s16, 1
    %p39 = por %p37, %p38
    %p41 = scmp.ne.s32.totalorder %s24, %s40
    %p42 = scmp.eq.s32.totalorder %s16, 0
    %p43 = por %p41, %p42
    %s45 = sadd.s32 %s44, 1
    %p48 = scmp.eq.s32.totalorder %s10, 1
    %p49 = scmp.ne.s32.totalorder %s44, %s46
    %p50 = scmp.eq.s32.totalorder %s10, 0
    %p51 = por %p49, %p50
    %p52 = scmp.ne.s32.totalorder %s44, %s46
    %p53 = scmp.eq.s32.totalorder %s15, 1
    %p54 = por %p52, %p53
    %p55 = scmp.ne.s32.totalorder %s46, %s47
    %p56 = scmp.eq.s32.totalorder %s15, 0
    %p57 = por %p55, %p56
    %p58 = scmp.ne.s32.totalorder %s46, %s47
    %p59 = scmp.eq.s32.totalorder %s16, 1
    %p60 = por %p58, %p59
    %p62 = scmp.ne.s32.totalorder %s47, %s61
    %p63 = scmp.eq.s32.totalorder %s16, 0
    %p64 = por %p62, %p63
    %s66 = sadd.s32 %s65, 1
    %p69 = scmp.eq.s32.totalorder %s10, 1
    %p70 = scmp.ne.s32.totalorder %s65, %s67
    %p71 = scmp.eq.s32.totalorder %s10, 0
    %p72 = por %p70, %p71
    %p73 = scmp.ne.s32.totalorder %s65, %s67
    %p74 = scmp.eq.s32.totalorder %s15, 1
    %p75 = por %p73, %p74
    %p76 = scmp.ne.s32.totalorder %s67, %s68
    %p77 = scmp.eq.s32.totalorder %s15, 0
    %p78 = por %p76, %p77
    %p79 = scmp.ne.s32.totalorder %s67, %s68
    %p80 = scmp.eq.s32.totalorder %s16, 1
    %p81 = por %p79, %p80
    %p83 = scmp.ne.s32.totalorder %s68, %s82
    %p84 = scmp.eq.s32.totalorder %s16, 0
    %p85 = por %p83, %p84
    %s87 = sadd.s32 %s86, 1
    %p90 = scmp.eq.s32.totalorder %s10, 1
    %p91 = scmp.ne.s32.totalorder %s86, %s88
    %p92 = scmp.eq.s32.totalorder %s10, 0
    %p93 = por %p91, %p92
    %p94 = scmp.ne.s32.totalorder %s86, %s88
    %p95 = scmp.eq.s32.totalorder %s15, 1
    %p96 = por %p94, %p95
    %p97 = scmp.ne.s32.totalorder %s88, %s89
    %p98 = scmp.eq.s32.totalorder %s15, 0
    %p99 = por %p97, %p98
    %p100 = scmp.ne.s32.totalorder %s88, %s89
    %p101 = scmp.eq.s32.totalorder %s16, 1
    %p102 = por %p100, %p101
    %p104 = scmp.ne.s32.totalorder %s89, %s103
    %p105 = scmp.eq.s32.totalorder %s16, 0
    %p106 = por %p104, %p105
    %s107 = ssub.s32 %s10, %s17
    %p108 = scmp.eq.s32.totalorder %s107, 0
    %s110 = sadd.s32 %s109, 1
    %s111 = scalar_select %p108, %s109, %s110
    %p114 = pneg %p108
    %p115 = scmp.eq.s32.totalorder %s10, 1
    %p116 = por %p114, %p115
    %p117 = scmp.ne.s32.totalorder %s109, %s112
    %p118 = scmp.eq.s32.totalorder %s10, 0
    %p119 = por %p117, %p118
    %p120 = scmp.ne.s32.totalorder %s109, %s112
    %p121 = scmp.eq.s32.totalorder %s15, 1
    %p122 = por %p120, %p121
    %p123 = scmp.ne.s32.totalorder %s112, %s113
    %p124 = scmp.eq.s32.totalorder %s15, 0
    %p125 = por %p123, %p124
    %p126 = scmp.ne.s32.totalorder %s112, %s113
    %p127 = scmp.eq.s32.totalorder %s16, 1
    %p128 = por %p126, %p127
    %p130 = scmp.ne.s32.totalorder %s113, %s129
    %p131 = scmp.eq.s32.totalorder %s16, 0
    %p132 = por %p130, %p131
    %p133 = scmp.le.s32.totalorder 1, %s10
    %p134 = scmp.lt.s32.totalorder %s10, 3
    %p135 = pnand %p133, %p134
    %p136 = pneg %p135
    // Predicated region
    $region9: #{_lambda_.2} parent=5 // pred_check
      _
    $region10: #{_lambda_.2} parent=5 // pred_check_branch
      %138 = sbr.rel (%p135) target = $region12
    $region11: #{_lambda_.2} parent=5 // pred_region
      %s139 = ssub.s32 %s10, 1
      // Predicated region
      $region13: #{_lambda_.2} parent=11 // pred_check
        %p140 = pneg %p57
      $region14: #{_lambda_.2} parent=11 // pred_check_branch
        %142 = sbr.rel (%p140) target = $region16
      $region15: #{_lambda_.2} parent=11 // pred_region
        _
      $region16: #{_lambda_.2} parent=11 // pred_fallthru
        _
      // Predicated region
      $region17: #{_lambda_.2} parent=11 // pred_check
        %p143 = pneg %p78
      $region18: #{_lambda_.2} parent=11 // pred_check_branch
        %145 = sbr.rel (%p143) target = $region20
      $region19: #{_lambda_.2} parent=11 // pred_region
        _
      $region20: #{_lambda_.2} parent=11 // pred_fallthru
        _
      // Predicated region
      $region21: #{_lambda_.2} parent=11 // pred_check
        %p146 = pneg %p99
      $region22: #{_lambda_.2} parent=11 // pred_check_branch
        %148 = sbr.rel (%p146) target = $region24
      $region23: #{_lambda_.2} parent=11 // pred_region
        _
      $region24: #{_lambda_.2} parent=11 // pred_fallthru
        _
    $region12: #{_lambda_.2} parent=5 // pred_fallthru
      _
    %p149 = scmp.lt.s32.totalorder %s10, 2
    // Predicated region
    $region25: #{_lambda_.2} parent=5 // pred_check
      %p150 = pneg %p149
    $region26: #{_lambda_.2} parent=5 // pred_check_branch
      %152 = sbr.rel (%p150) target = $region28
    $region27: #{_lambda_.2} parent=5 // pred_region
      // Predicated region
      $region29: #{_lambda_.2} parent=27 // pred_check
        %p153 = pneg %p30
      $region30: #{_lambda_.2} parent=27 // pred_check_branch
        %155 = sbr.rel (%p153) target = $region32
      $region31: #{_lambda_.2} parent=27 // pred_region
        %s156 = smul.u32 8, %s10
        %p157 = scmp.lt.s32.totalorder %s156, 15
        %s158 = scalar_select %p157, %s156, 15
        %s159 = smul.addr %s158, 2
        %s160 = smul.addr %s159, 4
        %s161 = scalar_lea.vmem %s0, %s160
        %s162 = smul.u32 8, %s10
      $region32: #{_lambda_.2} parent=27 // pred_fallthru
        _
    $region28: #{_lambda_.2} parent=5 // pred_fallthru
      _
    %p163 = scmp.le.s32.totalorder 1, %s10
    %p164 = scmp.lt.s32.totalorder %s10, 3
    %p165 = pnand %p163, %p164
    %p166 = pneg %p165
    // Predicated region
    $region33: #{_lambda_.2} parent=5 // pred_check
      _
    $region34: #{_lambda_.2} parent=5 // pred_check_branch
      %168 = sbr.rel (%p165) target = $region36
    $region35: #{_lambda_.2} parent=5 // pred_region
      %s169 = ssub.s32 %s10, 1
      %s170 = smul.u32 8, %s15
      %p171 = scmp.lt.s32.totalorder %s170, 15
      %s172 = scalar_select %p171, %s170, 15
      %s173 = smul.addr %s172, 2
      %s174 = smul.addr %s173, 4
      %s175 = scalar_lea.vmem %s0, %s174
      %p176 = pneg %p36
      %p177 = pneg %p33
      %p178 = pneg %p57
      %p179 = pneg %p54
      %p180 = pneg %p78
      %p181 = pneg %p75
      %p182 = pneg %p99
      %p183 = pneg %p96
      %p184 = pneg %p125
      %p185 = pneg %p122
      %s186 = smul.u32 8, %s15
      %p187 = scmp.lt.s32.totalorder %s186, 15
      %s188 = scalar_select %p187, %s186, 15
      %s189 = smul.addr %s188, 4
      %s190 = scalar_lea.vmem %s4, %s189
      %s191 = smul.u32 8, %s15
      %p192 = scmp.lt.s32.totalorder %s191, 15
      %s193 = scalar_select %p192, %s191, 15
      %s194 = smul.addr %s193, 2
      %s195 = smul.addr %s194, 4
      %s196 = scalar_lea.vmem %s0, %s195
      %s197 = smul.u32 8, %s15
      %s198 = smul.u32 8, %s15
      %p199 = scmp.lt.s32.totalorder %s198, 15
      %s200 = scalar_select %p199, %s198, 15
      %s201 = smul.addr %s200, 4
      %s202 = scalar_lea.vmem %s4, %s201
      %s203 = smul.u32 8, %s15
      %v205 = vld [vmem:[%s196] sm:$0xff]
      %v206 = vld [vmem:[%s196 + $0x8] sm:$0xff]
      %v207 = vld [vmem:[%s196 + $0x10] sm:$0xff]
      %v208 = vld [vmem:[%s196 + $0x18] sm:$0xff]
      %v209 = vld [vmem:[%s196 + $0x20] sm:$0xff]
      %v210 = vld [vmem:[%s196 + $0x28] sm:$0xff]
      %v211 = vld [vmem:[%s196 + $0x30] sm:$0xff]
      %v212 = vld [vmem:[%s196 + $0x38] sm:$0xff]
      %v213 = vld [vmem:[%s1] sm:$0xf]
      %v214 = vld [vmem:[%s1 + $0x4] sm:$0xf]
      %v215 = vld [vmem:[%s1 + $0x8] sm:$0xf]
      %v216 = vld [vmem:[%s1 + $0xc] sm:$0xf]
      %v217 = vld [vmem:[%s1 + $0x10] sm:$0xf]
      %v218 = vld [vmem:[%s1 + $0x14] sm:$0xf]
      %v219 = vld [vmem:[%s1 + $0x18] sm:$0xf]
      %v220 = vld [vmem:[%s1 + $0x1c] sm:$0xf]
      %v221 = vld [vmem:[%s1 + $0x20] sm:$0xf]
      %v222 = vld [vmem:[%s1 + $0x24] sm:$0xf]
      %v223 = vld [vmem:[%s1 + $0x28] sm:$0xf]
      %v224 = vld [vmem:[%s1 + $0x2c] sm:$0xf]
      %v225 = vld [vmem:[%s1 + $0x30] sm:$0xf]
      %v226 = vld [vmem:[%s1 + $0x34] sm:$0xf]
      %v227 = vld [vmem:[%s1 + $0x38] sm:$0xf]
      %v228 = vld [vmem:[%s1 + $0x3c] sm:$0xf]
      %v229 = vld [vmem:[%s1 + $0x40] sm:$0xf]
      %v230 = vld [vmem:[%s1 + $0x44] sm:$0xf]
      %v231 = vld [vmem:[%s1 + $0x48] sm:$0xf]
      %v232 = vld [vmem:[%s1 + $0x4c] sm:$0xf]
      %v233 = vld [vmem:[%s1 + $0x50] sm:$0xf]
      %v234 = vld [vmem:[%s1 + $0x54] sm:$0xf]
      %v235 = vld [vmem:[%s1 + $0x58] sm:$0xf]
      %v236 = vld [vmem:[%s1 + $0x5c] sm:$0xf]
      %v237 = vld [vmem:[%s1 + $0x60] sm:$0xf]
      %v238 = vld [vmem:[%s1 + $0x64] sm:$0xf]
      %v239 = vld [vmem:[%s1 + $0x68] sm:$0xf]
      %v240 = vld [vmem:[%s1 + $0x6c] sm:$0xf]
      %v241 = vld [vmem:[%s1 + $0x70] sm:$0xf]
      %v242 = vld [vmem:[%s1 + $0x74] sm:$0xf]
      %v243 = vld [vmem:[%s1 + $0x78] sm:$0xf]
      %v244 = vld [vmem:[%s1 + $0x7c] sm:$0xf]
      %v245 = vld [vmem:[%s2] sm:$0x1]
      %v247 = vlaneseq
      %v248 = vshrl.u32 %v247, 7
      %v249 = vsub.s32 0, %v248
      %v250 = vrot.slane %v245, %v249
      %v260 = vunpack.c.l.b16 %v205
      %v261 = vunpack.c.h.b16 %v205
      %v262 = vunpack.c.l.b16 %v206
      %v263 = vunpack.c.h.b16 %v206
      %v264 = vunpack.c.l.b16 %v207
      %v265 = vunpack.c.h.b16 %v207
      %v266 = vunpack.c.l.b16 %v208
      %v267 = vunpack.c.h.b16 %v208
      %v268 = vunpack.c.l.b16 %v209
      %v269 = vunpack.c.h.b16 %v209
      %v270 = vunpack.c.l.b16 %v210
      %v271 = vunpack.c.h.b16 %v210
      %v272 = vunpack.c.l.b16 %v211
      %v273 = vunpack.c.h.b16 %v211
      %v274 = vunpack.c.l.b16 %v212
      %v275 = vunpack.c.h.b16 %v212
      %v276 = vpack.c.b16 %v262, %v260
      %v277 = vpack.c.b16 %v263, %v261
      %v278 = vpack.c.b16 %v266, %v264
      %v279 = vpack.c.b16 %v267, %v265
      %v280 = vpack.c.b16 %v270, %v268
      %v281 = vpack.c.b16 %v271, %v269
      %v282 = vpack.c.b16 %v274, %v272
      %v283 = vpack.c.b16 %v275, %v273
      %v324 = vunpack.c.l.b16 %v213
      %v325 = vunpack.c.l.b16 %v214
      %v326 = vunpack.c.l.b16 %v215
      %v327 = vunpack.c.l.b16 %v216
      %v328 = vunpack.c.l.b16 %v217
      %v329 = vunpack.c.l.b16 %v218
      %v330 = vunpack.c.l.b16 %v219
      %v331 = vunpack.c.l.b16 %v220
      %v332 = vunpack.c.l.b16 %v221
      %v333 = vunpack.c.l.b16 %v222
      %v334 = vunpack.c.l.b16 %v223
      %v335 = vunpack.c.l.b16 %v224
      %v336 = vunpack.c.l.b16 %v225
      %v337 = vunpack.c.l.b16 %v226
      %v338 = vunpack.c.l.b16 %v227
      %v339 = vunpack.c.l.b16 %v228
      %v340 = vunpack.c.l.b16 %v229
      %v341 = vunpack.c.l.b16 %v230
      %v342 = vunpack.c.l.b16 %v231
      %v343 = vunpack.c.l.b16 %v232
      %v344 = vunpack.c.l.b16 %v233
      %v345 = vunpack.c.l.b16 %v234
      %v346 = vunpack.c.l.b16 %v235
      %v347 = vunpack.c.l.b16 %v236
      %v348 = vunpack.c.l.b16 %v237
      %v349 = vunpack.c.l.b16 %v238
      %v350 = vunpack.c.l.b16 %v239
      %v351 = vunpack.c.l.b16 %v240
      %v352 = vunpack.c.l.b16 %v241
      %v353 = vunpack.c.l.b16 %v242
      %v354 = vunpack.c.l.b16 %v243
      %v355 = vunpack.c.l.b16 %v244
      %v356 = vpack.c.b16 %v325, %v324
      %v357 = vpack.c.b16 %v327, %v326
      %v358 = vpack.c.b16 %v329, %v328
      %v359 = vpack.c.b16 %v331, %v330
      %v360 = vpack.c.b16 %v333, %v332
      %v361 = vpack.c.b16 %v335, %v334
      %v362 = vpack.c.b16 %v337, %v336
      %v363 = vpack.c.b16 %v339, %v338
      %v364 = vpack.c.b16 %v341, %v340
      %v365 = vpack.c.b16 %v343, %v342
      %v366 = vpack.c.b16 %v345, %v344
      %v367 = vpack.c.b16 %v347, %v346
      %v368 = vpack.c.b16 %v349, %v348
      %v369 = vpack.c.b16 %v351, %v350
      %v370 = vpack.c.b16 %v353, %v352
      %v371 = vpack.c.b16 %v355, %v354
      %388 = vmatprep.subr.bf16.mxu0 0
      %389 = vmatpush1.bf16.msra.mxu0 %v363
      %390 = vmatprep.subr.bf16.mxu0 0
      %391 = vmatpush1.bf16.msra.mxu0 %v362
      %392 = vmatprep.subr.bf16.mxu0 0
      %393 = vmatpush1.bf16.msra.mxu0 %v361
      %394 = vmatprep.subr.bf16.mxu0 0
      %395 = vmatpush1.bf16.msra.mxu0 %v360
      %396 = vmatprep.subr.bf16.mxu0 0
      %397 = vmatpush1.bf16.msra.mxu0 %v359
      %398 = vmatprep.subr.bf16.mxu0 0
      %399 = vmatpush1.bf16.msra.mxu0 %v358
      %400 = vmatprep.subr.bf16.mxu0 0
      %401 = vmatpush1.bf16.msra.mxu0 %v357
      %402 = vmatprep.subr.bf16.mxu0 0
      %403 = vmatpush1.bf16.msra.mxu0 %v356
      %404 = vmatprep.subr.bf16.mxu0 0
      %405 = vmatpush2.bf16.msra.mxu0 %v371
      %406 = vmatprep.subr.bf16.mxu0 0
      %407 = vmatpush2.bf16.msra.mxu0 %v370
      %408 = vmatprep.subr.bf16.mxu0 0
      %409 = vmatpush2.bf16.msra.mxu0 %v369
      %410 = vmatprep.subr.bf16.mxu0 0
      %411 = vmatpush2.bf16.msra.mxu0 %v368
      %412 = vmatprep.subr.bf16.mxu0 0
      %413 = vmatpush2.bf16.msra.mxu0 %v367
      %414 = vmatprep.subr.bf16.mxu0 0
      %415 = vmatpush2.bf16.msra.mxu0 %v366
      %416 = vmatprep.subr.bf16.mxu0 0
      %417 = vmatpush2.bf16.msra.mxu0 %v365
      %418 = vmatprep.subr.bf16.mxu0 0
      %419 = vmatpush2.bf16.msra.mxu0 %v364
      %420 = vmatprep.mubr.bf16.mxu0 %v277
      %421 = vmatmul.mubr.bf16.gmra.mxu0 %v276
      %v422 = vpop.f32.mrf.mxu0
      %v423 = vadd.f32 %v250, %v422
      %v424 = vpop.f32.mrf.mxu0
      %v425 = vpop.f32.mrf.mxu0
      %v426 = vadd.f32 %v250, %v425
      %v427 = vpop.f32.mrf.mxu0
      %428 = vmatprep.mubr.bf16.mxu0 %v279
      %429 = vmatmul.mubr.bf16.gmra.mxu0 %v278
      %v430 = vpop.f32.mrf.mxu0
      %v431 = vadd.f32 %v250, %v430
      %v432 = vpop.f32.mrf.mxu0
      %v433 = vpop.f32.mrf.mxu0
      %v434 = vadd.f32 %v250, %v433
      %v435 = vpop.f32.mrf.mxu0
      %436 = vmatprep.mubr.bf16.mxu0 %v281
      %437 = vmatmul.mubr.bf16.gmra.mxu0 %v280
      %v438 = vpop.f32.mrf.mxu0
      %v439 = vadd.f32 %v250, %v438
      %v440 = vpop.f32.mrf.mxu0
      %v441 = vpop.f32.mrf.mxu0
      %v442 = vadd.f32 %v250, %v441
      %v443 = vpop.f32.mrf.mxu0
      %444 = vmatprep.mubr.bf16.mxu0 %v283
      %445 = vmatmul.mubr.bf16.gmra.mxu0 %v282
      %v446 = vpop.f32.mrf.mxu0
      %v447 = vadd.f32 %v250, %v446
      %v448 = vpop.f32.mrf.mxu0
      %v449 = vpop.f32.mrf.mxu0
      %v450 = vadd.f32 %v250, %v449
      %v451 = vpop.f32.mrf.mxu0
      %452 = vdwg.mxu0
      %v453 = vld [vmem:[%s3] sm:$0x1]
      %v455 = vlaneseq
      %v456 = vshrl.u32 %v455, 7
      %v457 = vsub.s32 0, %v456
      %v458 = vrot.slane %v453, %v457
      %v460 = vmul.f32 %v458, %v423
      %v461 = vmul.f32 %v458, %v426
      %v462 = vmul.f32 %v458, %v431
      %v463 = vmul.f32 %v458, %v434
      %v464 = vmul.f32 %v458, %v439
      %v465 = vmul.f32 %v458, %v442
      %v466 = vmul.f32 %v458, %v447
      %v467 = vmul.f32 %v458, %v450
      %v468 = vsub.f32 0.0, %v460
      %v469 = vsub.f32 0.0, %v461
      %v470 = vsub.f32 0.0, %v462
      %v471 = vsub.f32 0.0, %v463
      %v472 = vsub.f32 0.0, %v464
      %v473 = vsub.f32 0.0, %v465
      %v474 = vsub.f32 0.0, %v466
      %v475 = vsub.f32 0.0, %v467
      %v476 = vmul.f32 %v468, 1.442695
      %v477 = vpow.pop %v476
      %v478 = vmul.f32 %v469, 1.442695
      %v479 = vpow.pop %v478
      %v480 = vmul.f32 %v470, 1.442695
      %v481 = vpow.pop %v480
      %v482 = vmul.f32 %v471, 1.442695
      %v483 = vpow.pop %v482
      %v484 = vmul.f32 %v472, 1.442695
      %v485 = vpow.pop %v484
      %v486 = vmul.f32 %v473, 1.442695
      %v487 = vpow.pop %v486
      %v488 = vmul.f32 %v474, 1.442695
      %v489 = vpow.pop %v488
      %v490 = vmul.f32 %v475, 1.442695
      %v491 = vpow.pop %v490
      %v492 = vadd.f32 %v477, 1.0
      %v493 = vadd.f32 %v479, 1.0
      %v494 = vadd.f32 %v481, 1.0
      %v495 = vadd.f32 %v483, 1.0
      %v496 = vadd.f32 %v485, 1.0
      %v497 = vadd.f32 %v487, 1.0
      %v498 = vadd.f32 %v489, 1.0
      %v499 = vadd.f32 %v491, 1.0
      %v500 = vrcp.pop %v492
      %v501 = vrcp.pop %v493
      %v502 = vrcp.pop %v494
      %v503 = vrcp.pop %v495
      %v504 = vrcp.pop %v496
      %v505 = vrcp.pop %v497
      %v506 = vrcp.pop %v498
      %v507 = vrcp.pop %v499
      %v508 = vmul.f32 %v423, %v500
      %v509 = vmul.f32 %v426, %v501
      %v510 = vmul.f32 %v431, %v502
      %v511 = vmul.f32 %v434, %v503
      %v512 = vmul.f32 %v439, %v504
      %v513 = vmul.f32 %v442, %v505
      %v514 = vmul.f32 %v447, %v506
      %v515 = vmul.f32 %v450, %v507
      %v516 = vpack.c.bf16 %v509, %v508
      %v517 = vpack.c.bf16 %v511, %v510
      %v518 = vpack.c.bf16 %v513, %v512
      %v519 = vpack.c.bf16 %v515, %v514
      %v524 = vunpack.c.l.b16 %v516
      %v525 = vunpack.c.h.b16 %v516
      %v526 = vunpack.c.l.b16 %v517
      %v527 = vunpack.c.h.b16 %v517
      %v528 = vunpack.c.l.b16 %v518
      %v529 = vunpack.c.h.b16 %v518
      %v530 = vunpack.c.l.b16 %v519
      %v531 = vunpack.c.h.b16 %v519
      %v532 = vpack.c.b16 %v524, %v524
      %v533 = vpack.c.b16 %v525, %v525
      %v534 = vpack.c.b16 %v526, %v526
      %v535 = vpack.c.b16 %v527, %v527
      %v536 = vpack.c.b16 %v528, %v528
      %v537 = vpack.c.b16 %v529, %v529
      %v538 = vpack.c.b16 %v530, %v530
      %v539 = vpack.c.b16 %v531, %v531
      %vm548 = vcmask 257024
      %549 = vst.msk [vmem:[%s202] sm:$0xf] %vm548, %v532
      %550 = vst.msk [vmem:[%s202 + $0x4] sm:$0xf] %vm548, %v533
      %551 = vst.msk [vmem:[%s202 + $0x8] sm:$0xf] %vm548, %v534
      %552 = vst.msk [vmem:[%s202 + $0xc] sm:$0xf] %vm548, %v535
      %553 = vst.msk [vmem:[%s202 + $0x10] sm:$0xf] %vm548, %v536
      %554 = vst.msk [vmem:[%s202 + $0x14] sm:$0xf] %vm548, %v537
      %555 = vst.msk [vmem:[%s202 + $0x18] sm:$0xf] %vm548, %v538
      %556 = vst.msk [vmem:[%s202 + $0x1c] sm:$0xf] %vm548, %v539
      %s557 = smul.u32 8, %s15
      %p558 = scmp.lt.s32.totalorder %s557, 15
      %s559 = scalar_select %p558, %s557, 15
      %s560 = smul.addr %s559, 4
      %s561 = scalar_lea.vmem %s4, %s560
      // Predicated region
      $region37: #{_lambda_.2} parent=35 // pred_check
        %p562 = pneg %p122
      $region38: #{_lambda_.2} parent=35 // pred_check_branch
        %564 = sbr.rel (%p562) target = $region40
      $region39: #{_lambda_.2} parent=35 // pred_region
        %s565 = smul.u32 8, %s15
      $region40: #{_lambda_.2} parent=35 // pred_fallthru
        _
    $region36: #{_lambda_.2} parent=5 // pred_fallthru
      _
    %p566 = scmp.le.s32.totalorder 2, %s10
    // Predicated region
    $region41: #{_lambda_.2} parent=5 // pred_check
      %p567 = pneg %p566
    $region42: #{_lambda_.2} parent=5 // pred_check_branch
      %569 = sbr.rel (%p567) target = $region44
    $region43: #{_lambda_.2} parent=5 // pred_region
      %s570 = ssub.s32 %s10, 2
      // Predicated region
      $region45: #{_lambda_.2} parent=43 // pred_check
        %p571 = pneg %p128
      $region46: #{_lambda_.2} parent=43 // pred_check_branch
        %573 = sbr.rel (%p571) target = $region48
      $region47: #{_lambda_.2} parent=43 // pred_region
        %s574 = smul.u32 8, %s16
        %p575 = scmp.lt.s32.totalorder %s574, 15
        %s576 = scalar_select %p575, %s574, 15
        %s577 = smul.addr %s576, 4
        %s578 = scalar_lea.vmem %s4, %s577
      $region48: #{_lambda_.2} parent=43 // pred_fallthru
        _
    $region44: #{_lambda_.2} parent=5 // pred_fallthru
      _
  $region6: #{_lambda_.2} parent=0 // loop_footer
    %s14 = sadd.s32 1, %s10
  $region7: #{_lambda_.2} parent=0 // loop_footer_branch
    %9 = sbr.rel target = $region3
  $region8: #{_lambda_.2} parent=0 // loop_exit
    _

// kernel: _lambda_.3
$region0: #{_lambda_.3}
  #allocation0 [shape = 'u32[]', space=smem, size = 0x4, offset = 0x4, fixed_abs, tag = 'smem constant byte address 0x4 - core index']
  #allocation1 [shape = 'u32[144,128]{1,0:T(1,128)}', space=vmem, size = 0x12000, scoped, tag = 'internal scratch']
  #allocation2 [shape = 'f32[1,1]{1,0:T(1,128)S(1)}', space=vmem, size = 0x200, scoped, tag = 'scoped memory for _lambda_.3']
  %s0 = inlined_call_operand.vmem [shape: s32[2,1], index: 0, kind: input, shape index: {}]
  %s1 = inlined_call_operand.vmem [shape: f32[2,3], index: 1, kind: input, shape index: {}]
  %s2 = inlined_call_operand.vmem [shape: bf16[2,2048], index: 2, kind: input, shape index: {}]
  %s3 = inlined_call_operand.vmem [shape: bf16[2048,576], index: 3, kind: input, shape index: {}]
  %s4 = inlined_call_operand.vmem [shape: f32[1,576], index: 4, kind: input, shape index: {}]
  %s5 = inlined_call_operand.vmem [shape: f32[1,576], index: 5, kind: input, shape index: {}]
  %s6 = inlined_call_operand.vmem [shape: bf16[576,64], index: 6, kind: input, shape index: {}]
  %s7 = inlined_call_operand.vmem [shape: f32[1,64], index: 7, kind: input, shape index: {}]
  %s8 = inlined_call_operand.vmem [shape: f32[1,64], index: 8, kind: input, shape index: {}]
  %s9 = inlined_call_operand.vmem [shape: bf16[64,512], index: 9, kind: input, shape index: {}]
  %s10 = inlined_call_operand.vmem [shape: f32[1,512], index: 10, kind: input, shape index: {}]
  %s11 = inlined_call_operand.vmem [shape: f32[1,512], index: 11, kind: input, shape index: {}]
  %s12 = inlined_call_operand.vmem [shape: bf16[3,384], index: 12, kind: input, shape index: {}]
  %s13 = inlined_call_operand.vmem [shape: bf16[5,384], index: 13, kind: input, shape index: {}]
  %s14 = inlined_call_operand.vmem [shape: f32[1,384], index: 14, kind: input, shape index: {}]
  %s15 = inlined_call_operand.vmem [shape: f32[1,384], index: 15, kind: input, shape index: {}]
  %s16 = inlined_call_operand.vmem [shape: bf16[384,384], index: 16, kind: input, shape index: {}]
  %s17 = inlined_call_operand.vmem [shape: bf16[512,384], index: 17, kind: input, shape index: {}]
  %s18 = inlined_call_operand.vmem [shape: f32[1,384], index: 18, kind: input, shape index: {}]
  %s19 = inlined_call_operand.vmem [shape: f32[1,384], index: 19, kind: input, shape index: {}]
  %s20 = inlined_call_operand.vmem [shape: f32[1,384], index: 20, kind: input, shape index: {}]
  %s21 = inlined_call_operand.<no memory space> [shape: f32[1,1], index: 21, kind: input, shape index: {}]
  %s22 = inlined_call_operand.vmem [shape: f32[2,1], index: 22, kind: output, shape index: {}]
  %s23 = sld [smem:[#allocation0]]
  $region98: #{_lambda_.3} parent=0
    _
  %s25 = ssub.s32 1, %s23
  %s26 = scalar_select 0, %s25, %s23
  %v27 = vstv %s21
  %28 = vst [vmem:[#allocation2] sm:$0x1] %v27
  // Predicated region
  $region2: #{_lambda_.3} parent=0 // pred_check
    _
  $region3: #{_lambda_.3} parent=0 // pred_check_branch
    %30 = sbr.rel (0) target = $region5
  $region4: #{_lambda_.3} parent=0 // pred_region
    _
  $region5: #{_lambda_.3} parent=0 // pred_fallthru
    _
  // Predicated region
  $region6: #{_lambda_.3} parent=0 // pred_check
    _
  $region7: #{_lambda_.3} parent=0 // pred_check_branch
    %32 = sbr.rel (0) target = $region9
  $region8: #{_lambda_.3} parent=0 // pred_region
    _
  $region9: #{_lambda_.3} parent=0 // pred_fallthru
    _
  // Predicated region
  $region10: #{_lambda_.3} parent=0 // pred_check
    _
  $region11: #{_lambda_.3} parent=0 // pred_check_branch
    %34 = sbr.rel (0) target = $region13
  $region12: #{_lambda_.3} parent=0 // pred_region
    _
  $region13: #{_lambda_.3} parent=0 // pred_fallthru
    _
  // Predicated region
  $region14: #{_lambda_.3} parent=0 // pred_check
    _
  $region15: #{_lambda_.3} parent=0 // pred_check_branch
    %36 = sbr.rel (0) target = $region17
  $region16: #{_lambda_.3} parent=0 // pred_region
    _
  $region17: #{_lambda_.3} parent=0 // pred_fallthru
    _
  // Predicated region
  $region18: #{_lambda_.3} parent=0 // pred_check
    _
  $region19: #{_lambda_.3} parent=0 // pred_check_branch
    %38 = sbr.rel (0) target = $region21
  $region20: #{_lambda_.3} parent=0 // pred_region
    _
  $region21: #{_lambda_.3} parent=0 // pred_fallthru
    _
  // Predicated region
  $region22: #{_lambda_.3} parent=0 // pred_check
    _
  $region23: #{_lambda_.3} parent=0 // pred_check_branch
    %40 = sbr.rel (0) target = $region25
  $region24: #{_lambda_.3} parent=0 // pred_region
    _
  $region25: #{_lambda_.3} parent=0 // pred_fallthru
    _
  // Predicated region
  $region26: #{_lambda_.3} parent=0 // pred_check
    _
  $region27: #{_lambda_.3} parent=0 // pred_check_branch
    %42 = sbr.rel (0) target = $region29
  $region28: #{_lambda_.3} parent=0 // pred_region
    _
  $region29: #{_lambda_.3} parent=0 // pred_fallthru
    _
  // Predicated region
  $region30: #{_lambda_.3} parent=0 // pred_check
    _
  $region31: #{_lambda_.3} parent=0 // pred_check_branch
    %44 = sbr.rel (0) target = $region33
  $region32: #{_lambda_.3} parent=0 // pred_region
    _
  $region33: #{_lambda_.3} parent=0 // pred_fallthru
    _
  // Predicated region
  $region34: #{_lambda_.3} parent=0 // pred_check
    _
  $region35: #{_lambda_.3} parent=0 // pred_check_branch
    %46 = sbr.rel (0) target = $region37
  $region36: #{_lambda_.3} parent=0 // pred_region
    _
  $region37: #{_lambda_.3} parent=0 // pred_fallthru
    _
  // Predicated region
  $region38: #{_lambda_.3} parent=0 // pred_check
    _
  $region39: #{_lambda_.3} parent=0 // pred_check_branch
    %48 = sbr.rel (0) target = $region41
  $region40: #{_lambda_.3} parent=0 // pred_region
    _
  $region41: #{_lambda_.3} parent=0 // pred_fallthru
    _
  // Predicated region
  $region42: #{_lambda_.3} parent=0 // pred_check
    _
  $region43: #{_lambda_.3} parent=0 // pred_check_branch
    %50 = sbr.rel (0) target = $region45
  $region44: #{_lambda_.3} parent=0 // pred_region
    _
  $region45: #{_lambda_.3} parent=0 // pred_fallthru
    _
  // Predicated region
  $region46: #{_lambda_.3} parent=0 // pred_check
    _
  $region47: #{_lambda_.3} parent=0 // pred_check_branch
    %52 = sbr.rel (0) target = $region49
  $region48: #{_lambda_.3} parent=0 // pred_region
    _
  $region49: #{_lambda_.3} parent=0 // pred_fallthru
    _
  // Predicated region
  $region50: #{_lambda_.3} parent=0 // pred_check
    _
  $region51: #{_lambda_.3} parent=0 // pred_check_branch
    %54 = sbr.rel (0) target = $region53
  $region52: #{_lambda_.3} parent=0 // pred_region
    _
  $region53: #{_lambda_.3} parent=0 // pred_fallthru
    _
  // Predicated region
  $region54: #{_lambda_.3} parent=0 // pred_check
    _
  $region55: #{_lambda_.3} parent=0 // pred_check_branch
    %56 = sbr.rel (0) target = $region57
  $region56: #{_lambda_.3} parent=0 // pred_region
    _
  $region57: #{_lambda_.3} parent=0 // pred_fallthru
    _
  // Predicated region
  $region58: #{_lambda_.3} parent=0 // pred_check
    _
  $region59: #{_lambda_.3} parent=0 // pred_check_branch
    %58 = sbr.rel (0) target = $region61
  $region60: #{_lambda_.3} parent=0 // pred_region
    _
  $region61: #{_lambda_.3} parent=0 // pred_fallthru
    _
  // Predicated region
  $region62: #{_lambda_.3} parent=0 // pred_check
    _
  $region63: #{_lambda_.3} parent=0 // pred_check_branch
    %60 = sbr.rel (0) target = $region65
  $region64: #{_lambda_.3} parent=0 // pred_region
    _
  $region65: #{_lambda_.3} parent=0 // pred_fallthru
    _
  // Predicated region
  $region66: #{_lambda_.3} parent=0 // pred_check
    _
  $region67: #{_lambda_.3} parent=0 // pred_check_branch
    %62 = sbr.rel (0) target = $region69
  $region68: #{_lambda_.3} parent=0 // pred_region
    _
  $region69: #{_lambda_.3} parent=0 // pred_fallthru
    _
  // Predicated region
  $region70: #{_lambda_.3} parent=0 // pred_check
    _
  $region71: #{_lambda_.3} parent=0 // pred_check_branch
    %64 = sbr.rel (0) target = $region73
  $region72: #{_lambda_.3} parent=0 // pred_region
    _
  $region73: #{_lambda_.3} parent=0 // pred_fallthru
    _
  // Predicated region
  $region74: #{_lambda_.3} parent=0 // pred_check
    _
  $region75: #{_lambda_.3} parent=0 // pred_check_branch
    %66 = sbr.rel (0) target = $region77
  $region76: #{_lambda_.3} parent=0 // pred_region
    _
  $region77: #{_lambda_.3} parent=0 // pred_fallthru
    _
  // Predicated region
  $region78: #{_lambda_.3} parent=0 // pred_check
    _
  $region79: #{_lambda_.3} parent=0 // pred_check_branch
    %68 = sbr.rel (0) target = $region81
  $region80: #{_lambda_.3} parent=0 // pred_region
    _
  $region81: #{_lambda_.3} parent=0 // pred_fallthru
    _
  // Predicated region
  $region82: #{_lambda_.3} parent=0 // pred_check
    _
  $region83: #{_lambda_.3} parent=0 // pred_check_branch
    %70 = sbr.rel (0) target = $region85
  $region84: #{_lambda_.3} parent=0 // pred_region
    _
  $region85: #{_lambda_.3} parent=0 // pred_fallthru
    _
  // Predicated region
  $region86: #{_lambda_.3} parent=0 // pred_check
    _
  $region87: #{_lambda_.3} parent=0 // pred_check_branch
    %72 = sbr.rel (0) target = $region89
  $region88: #{_lambda_.3} parent=0 // pred_region
    _
  $region89: #{_lambda_.3} parent=0 // pred_fallthru
    _
  %v74 = vld [vmem:[%s2] sm:$0xff]
  %v75 = vld [vmem:[%s2 + $0x8] sm:$0xff]
  %v76 = vld [vmem:[%s3] sm:$0xff]
  %v77 = vld [vmem:[%s3 + $0x8] sm:$0xff]
  %v78 = vld [vmem:[%s3 + $0x10] sm:$0xf]
  %v79 = vld [vmem:[%s3 + $0x14] sm:$0xff]
  %v80 = vld [vmem:[%s3 + $0x1c] sm:$0xff]
  %v81 = vld [vmem:[%s3 + $0x24] sm:$0xf]
  %v82 = vld [vmem:[%s3 + $0x28] sm:$0xff]
  %v83 = vld [vmem:[%s3 + $0x30] sm:$0xff]
  %v84 = vld [vmem:[%s3 + $0x38] sm:$0xf]
  %v85 = vld [vmem:[%s3 + $0x3c] sm:$0xff]
  %v86 = vld [vmem:[%s3 + $0x44] sm:$0xff]
  %v87 = vld [vmem:[%s3 + $0x4c] sm:$0xf]
  %v88 = vld [vmem:[%s3 + $0x50] sm:$0xff]
  %v89 = vld [vmem:[%s3 + $0x58] sm:$0xff]
  %v90 = vld [vmem:[%s3 + $0x60] sm:$0xf]
  %v91 = vld [vmem:[%s3 + $0x64] sm:$0xff]
  %v92 = vld [vmem:[%s3 + $0x6c] sm:$0xff]
  %v93 = vld [vmem:[%s3 + $0x74] sm:$0xf]
  %v94 = vld [vmem:[%s3 + $0x78] sm:$0xff]
  %v95 = vld [vmem:[%s3 + $0x80] sm:$0xff]
  %v96 = vld [vmem:[%s3 + $0x88] sm:$0xf]
  %v97 = vld [vmem:[%s3 + $0x8c] sm:$0xff]
  %v98 = vld [vmem:[%s3 + $0x94] sm:$0xff]
  %v99 = vld [vmem:[%s3 + $0x9c] sm:$0xf]
  %v100 = vld [vmem:[%s3 + $0xa0] sm:$0xff]
  %v101 = vld [vmem:[%s3 + $0xa8] sm:$0xff]
  %v102 = vld [vmem:[%s3 + $0xb0] sm:$0xf]
  %v103 = vld [vmem:[%s3 + $0xb4] sm:$0xff]
  %v104 = vld [vmem:[%s3 + $0xbc] sm:$0xff]
  %v105 = vld [vmem:[%s3 + $0xc4] sm:$0xf]
  %v106 = vld [vmem:[%s3 + $0xc8] sm:$0xff]
  %v107 = vld [vmem:[%s3 + $0xd0] sm:$0xff]
  %v108 = vld [vmem:[%s3 + $0xd8] sm:$0xf]
  %v109 = vld [vmem:[%s3 + $0xdc] sm:$0xff]
  %v110 = vld [vmem:[%s3 + $0xe4] sm:$0xff]
  %v111 = vld [vmem:[%s3 + $0xec] sm:$0xf]
  %v112 = vld [vmem:[%s3 + $0xf0] sm:$0xff]
  %v113 = vld [vmem:[%s3 + $0xf8] sm:$0xff]
  %v114 = vld [vmem:[%s3 + $0x100] sm:$0xf]
  %v115 = vld [vmem:[%s3 + $0x104] sm:$0xff]
  %v116 = vld [vmem:[%s3 + $0x10c] sm:$0xff]
  %v117 = vld [vmem:[%s3 + $0x114] sm:$0xf]
  %v118 = vld [vmem:[%s3 + $0x118] sm:$0xff]
  %v119 = vld [vmem:[%s3 + $0x120] sm:$0xff]
  %v120 = vld [vmem:[%s3 + $0x128] sm:$0xf]
  %v121 = vld [vmem:[%s3 + $0x12c] sm:$0xff]
  %v122 = vld [vmem:[%s3 + $0x134] sm:$0xff]
  %v123 = vld [vmem:[%s3 + $0x13c] sm:$0xf]
  %v124 = vld [vmem:[%s3 + $0x140] sm:$0xff]
  %v125 = vld [vmem:[%s3 + $0x148] sm:$0xff]
  %v126 = vld [vmem:[%s3 + $0x150] sm:$0xf]
  %v127 = vld [vmem:[%s3 + $0x154] sm:$0xff]
  %v128 = vld [vmem:[%s3 + $0x15c] sm:$0xff]
  %v129 = vld [vmem:[%s3 + $0x164] sm:$0xf]
  %v130 = vld [vmem:[%s3 + $0x168] sm:$0xff]
  %v131 = vld [vmem:[%s3 + $0x170] sm:$0xff]
  %v132 = vld [vmem:[%s3 + $0x178] sm:$0xf]
  %v133 = vld [vmem:[%s3 + $0x17c] sm:$0xff]
  %v134 = vld [vmem:[%s3 + $0x184] sm:$0xff]
  %v135 = vld [vmem:[%s3 + $0x18c] sm:$0xf]
  %v136 = vld [vmem:[%s3 + $0x190] sm:$0xff]
  %v137 = vld [vmem:[%s3 + $0x198] sm:$0xff]
  %v138 = vld [vmem:[%s3 + $0x1a0] sm:$0xf]
  %v139 = vld [vmem:[%s3 + $0x1a4] sm:$0xff]
  %v140 = vld [vmem:[%s3 + $0x1ac] sm:$0xff]
  %v141 = vld [vmem:[%s3 + $0x1b4] sm:$0xf]
  %v142 = vld [vmem:[%s3 + $0x1b8] sm:$0xff]
  %v143 = vld [vmem:[%s3 + $0x1c0] sm:$0xff]
  %v144 = vld [vmem:[%s3 + $0x1c8] sm:$0xf]
  %v145 = vld [vmem:[%s3 + $0x1cc] sm:$0xff]
  %v146 = vld [vmem:[%s3 + $0x1d4] sm:$0xff]
  %v147 = vld [vmem:[%s3 + $0x1dc] sm:$0xf]
  %v148 = vld [vmem:[%s3 + $0x1e0] sm:$0xff]
  %v149 = vld [vmem:[%s3 + $0x1e8] sm:$0xff]
  %v150 = vld [vmem:[%s3 + $0x1f0] sm:$0xf]
  %v151 = vld [vmem:[%s3 + $0x1f4] sm:$0xff]
  %v152 = vld [vmem:[%s3 + $0x1fc] sm:$0xff]
  %v153 = vld [vmem:[%s3 + $0x204] sm:$0xf]
  %v154 = vld [vmem:[%s3 + $0x208] sm:$0xff]
  %v155 = vld [vmem:[%s3 + $0x210] sm:$0xff]
  %v156 = vld [vmem:[%s3 + $0x218] sm:$0xf]
  %v157 = vld [vmem:[%s3 + $0x21c] sm:$0xff]
  %v158 = vld [vmem:[%s3 + $0x224] sm:$0xff]
  %v159 = vld [vmem:[%s3 + $0x22c] sm:$0xf]
  %v160 = vld [vmem:[%s3 + $0x230] sm:$0xff]
  %v161 = vld [vmem:[%s3 + $0x238] sm:$0xff]
  %v162 = vld [vmem:[%s3 + $0x240] sm:$0xf]
  %v163 = vld [vmem:[%s3 + $0x244] sm:$0xff]
  %v164 = vld [vmem:[%s3 + $0x24c] sm:$0xff]
  %v165 = vld [vmem:[%s3 + $0x254] sm:$0xf]
  %v166 = vld [vmem:[%s3 + $0x258] sm:$0xff]
  %v167 = vld [vmem:[%s3 + $0x260] sm:$0xff]
  %v168 = vld [vmem:[%s3 + $0x268] sm:$0xf]
  %v169 = vld [vmem:[%s3 + $0x26c] sm:$0xff]
  %v170 = vld [vmem:[%s3 + $0x274] sm:$0xff]
  %v171 = vld [vmem:[%s3 + $0x27c] sm:$0xf]
  %v172 = vld [vmem:[%s3 + $0x280] sm:$0xff]
  %v173 = vld [vmem:[%s3 + $0x288] sm:$0xff]
  %v174 = vld [vmem:[%s3 + $0x290] sm:$0xf]
  %v175 = vld [vmem:[%s3 + $0x294] sm:$0xff]
  %v176 = vld [vmem:[%s3 + $0x29c] sm:$0xff]
  %v177 = vld [vmem:[%s3 + $0x2a4] sm:$0xf]
  %v178 = vld [vmem:[%s3 + $0x2a8] sm:$0xff]
  %v179 = vld [vmem:[%s3 + $0x2b0] sm:$0xff]
  %v180 = vld [vmem:[%s3 + $0x2b8] sm:$0xf]
  %v181 = vld [vmem:[%s3 + $0x2bc] sm:$0xff]
  %v182 = vld [vmem:[%s3 + $0x2c4] sm:$0xff]
  %v183 = vld [vmem:[%s3 + $0x2cc] sm:$0xf]
  %v184 = vld [vmem:[%s3 + $0x2d0] sm:$0xff]
  %v185 = vld [vmem:[%s3 + $0x2d8] sm:$0xff]
  %v186 = vld [vmem:[%s3 + $0x2e0] sm:$0xf]
  %v187 = vld [vmem:[%s3 + $0x2e4] sm:$0xff]
  %v188 = vld [vmem:[%s3 + $0x2ec] sm:$0xff]
  %v189 = vld [vmem:[%s3 + $0x2f4] sm:$0xf]
  %v190 = vld [vmem:[%s3 + $0x2f8] sm:$0xff]
  %v191 = vld [vmem:[%s3 + $0x300] sm:$0xff]
  %v192 = vld [vmem:[%s3 + $0x308] sm:$0xf]
  %v193 = vld [vmem:[%s3 + $0x30c] sm:$0xff]
  %v194 = vld [vmem:[%s3 + $0x314] sm:$0xff]
  %v195 = vld [vmem:[%s3 + $0x31c] sm:$0xf]
  %v196 = vld [vmem:[%s3 + $0x320] sm:$0xff]
  %v197 = vld [vmem:[%s3 + $0x328] sm:$0xff]
  %v198 = vld [vmem:[%s3 + $0x330] sm:$0xf]
  %v199 = vld [vmem:[%s3 + $0x334] sm:$0xff]
  %v200 = vld [vmem:[%s3 + $0x33c] sm:$0xff]
  %v201 = vld [vmem:[%s3 + $0x344] sm:$0xf]
  %v202 = vld [vmem:[%s3 + $0x348] sm:$0xff]
  %v203 = vld [vmem:[%s3 + $0x350] sm:$0xff]
  %v204 = vld [vmem:[%s3 + $0x358] sm:$0xf]
  %v205 = vld [vmem:[%s3 + $0x35c] sm:$0xff]
  %v206 = vld [vmem:[%s3 + $0x364] sm:$0xff]
  %v207 = vld [vmem:[%s3 + $0x36c] sm:$0xf]
  %v208 = vld [vmem:[%s3 + $0x370] sm:$0xff]
  %v209 = vld [vmem:[%s3 + $0x378] sm:$0xff]
  %v210 = vld [vmem:[%s3 + $0x380] sm:$0xf]
  %v211 = vld [vmem:[%s3 + $0x384] sm:$0xff]
  %v212 = vld [vmem:[%s3 + $0x38c] sm:$0xff]
  %v213 = vld [vmem:[%s3 + $0x394] sm:$0xf]
  %v214 = vld [vmem:[%s3 + $0x398] sm:$0xff]
  %v215 = vld [vmem:[%s3 + $0x3a0] sm:$0xff]
  %v216 = vld [vmem:[%s3 + $0x3a8] sm:$0xf]
  %v217 = vld [vmem:[%s3 + $0x3ac] sm:$0xff]
  %v218 = vld [vmem:[%s3 + $0x3b4] sm:$0xff]
  %v219 = vld [vmem:[%s3 + $0x3bc] sm:$0xf]
  %v220 = vld [vmem:[%s3 + $0x3c0] sm:$0xff]
  %v221 = vld [vmem:[%s3 + $0x3c8] sm:$0xff]
  %v222 = vld [vmem:[%s3 + $0x3d0] sm:$0xf]
  %v223 = vld [vmem:[%s3 + $0x3d4] sm:$0xff]
  %v224 = vld [vmem:[%s3 + $0x3dc] sm:$0xff]
  %v225 = vld [vmem:[%s3 + $0x3e4] sm:$0xf]
  %v226 = vld [vmem:[%s3 + $0x3e8] sm:$0xff]
  %v227 = vld [vmem:[%s3 + $0x3f0] sm:$0xff]
  %v228 = vld [vmem:[%s3 + $0x3f8] sm:$0xf]
  %v229 = vld [vmem:[%s3 + $0x3fc] sm:$0xff]
  %v230 = vld [vmem:[%s3 + $0x404] sm:$0xff]
  %v231 = vld [vmem:[%s3 + $0x40c] sm:$0xf]
  %v232 = vld [vmem:[%s3 + $0x410] sm:$0xff]
  %v233 = vld [vmem:[%s3 + $0x418] sm:$0xff]
  %v234 = vld [vmem:[%s3 + $0x420] sm:$0xf]
  %v235 = vld [vmem:[%s3 + $0x424] sm:$0xff]
  %v236 = vld [vmem:[%s3 + $0x42c] sm:$0xff]
  %v237 = vld [vmem:[%s3 + $0x434] sm:$0xf]
  %v238 = vld [vmem:[%s3 + $0x438] sm:$0xff]
  %v239 = vld [vmem:[%s3 + $0x440] sm:$0xff]
  %v240 = vld [vmem:[%s3 + $0x448] sm:$0xf]
  %v241 = vld [vmem:[%s3 + $0x44c] sm:$0xff]
  %v242 = vld [vmem:[%s3 + $0x454] sm:$0xff]
  %v243 = vld [vmem:[%s3 + $0x45c] sm:$0xf]
  %v244 = vld [vmem:[%s3 + $0x460] sm:$0xff]
  %v245 = vld [vmem:[%s3 + $0x468] sm:$0xff]
  %v246 = vld [vmem:[%s3 + $0x470] sm:$0xf]
  %v247 = vld [vmem:[%s3 + $0x474] sm:$0xff]
  %v248 = vld [vmem:[%s3 + $0x47c] sm:$0xff]
  %v249 = vld [vmem:[%s3 + $0x484] sm:$0xf]
  %v250 = vld [vmem:[%s3 + $0x488] sm:$0xff]
  %v251 = vld [vmem:[%s3 + $0x490] sm:$0xff]
  %v252 = vld [vmem:[%s3 + $0x498] sm:$0xf]
  %v253 = vld [vmem:[%s3 + $0x49c] sm:$0xff]
  %v254 = vld [vmem:[%s3 + $0x4a4] sm:$0xff]
  %v255 = vld [vmem:[%s3 + $0x4ac] sm:$0xf]
  %v256 = vld [vmem:[%s3 + $0x4b0] sm:$0xff]
  %v257 = vld [vmem:[%s3 + $0x4b8] sm:$0xff]
  %v258 = vld [vmem:[%s3 + $0x4c0] sm:$0xf]
  %v259 = vld [vmem:[%s3 + $0x4c4] sm:$0xff]
  %v260 = vld [vmem:[%s3 + $0x4cc] sm:$0xff]
  %v261 = vld [vmem:[%s3 + $0x4d4] sm:$0xf]
  %v262 = vld [vmem:[%s3 + $0x4d8] sm:$0xff]
  %v263 = vld [vmem:[%s3 + $0x4e0] sm:$0xff]
  %v264 = vld [vmem:[%s3 + $0x4e8] sm:$0xf]
  %v265 = vld [vmem:[%s3 + $0x4ec] sm:$0xff]
  %v266 = vld [vmem:[%s3 + $0x4f4] sm:$0xff]
  %v267 = vld [vmem:[%s3 + $0x4fc] sm:$0xf]
  %v268 = vld [vmem:[%s3 + $0x500] sm:$0xff]
  %v269 = vld [vmem:[%s3 + $0x508] sm:$0xff]
  %v270 = vld [vmem:[%s3 + $0x510] sm:$0xf]
  %v271 = vld [vmem:[%s3 + $0x514] sm:$0xff]
  %v272 = vld [vmem:[%s3 + $0x51c] sm:$0xff]
  %v273 = vld [vmem:[%s3 + $0x524] sm:$0xf]
  %v274 = vld [vmem:[%s3 + $0x528] sm:$0xff]
  %v275 = vld [vmem:[%s3 + $0x530] sm:$0xff]
  %v276 = vld [vmem:[%s3 + $0x538] sm:$0xf]
  %v277 = vld [vmem:[%s3 + $0x53c] sm:$0xff]
  %v278 = vld [vmem:[%s3 + $0x544] sm:$0xff]
  %v279 = vld [vmem:[%s3 + $0x54c] sm:$0xf]
  %v280 = vld [vmem:[%s3 + $0x550] sm:$0xff]
  %v281 = vld [vmem:[%s3 + $0x558] sm:$0xff]
  %v282 = vld [vmem:[%s3 + $0x560] sm:$0xf]
  %v283 = vld [vmem:[%s3 + $0x564] sm:$0xff]
  %v284 = vld [vmem:[%s3 + $0x56c] sm:$0xff]
  %v285 = vld [vmem:[%s3 + $0x574] sm:$0xf]
  %v286 = vld [vmem:[%s3 + $0x578] sm:$0xff]
  %v287 = vld [vmem:[%s3 + $0x580] sm:$0xff]
  %v288 = vld [vmem:[%s3 + $0x588] sm:$0xf]
  %v289 = vld [vmem:[%s3 + $0x58c] sm:$0xff]
  %v290 = vld [vmem:[%s3 + $0x594] sm:$0xff]
  %v291 = vld [vmem:[%s3 + $0x59c] sm:$0xf]
  %v292 = vld [vmem:[%s3 + $0x5a0] sm:$0xff]
  %v293 = vld [vmem:[%s3 + $0x5a8] sm:$0xff]
  %v294 = vld [vmem:[%s3 + $0x5b0] sm:$0xf]
  %v295 = vld [vmem:[%s3 + $0x5b4] sm:$0xff]
  %v296 = vld [vmem:[%s3 + $0x5bc] sm:$0xff]
  %v297 = vld [vmem:[%s3 + $0x5c4] sm:$0xf]
  %v298 = vld [vmem:[%s3 + $0x5c8] sm:$0xff]
  %v299 = vld [vmem:[%s3 + $0x5d0] sm:$0xff]
  %v300 = vld [vmem:[%s3 + $0x5d8] sm:$0xf]
  %v301 = vld [vmem:[%s3 + $0x5dc] sm:$0xff]
  %v302 = vld [vmem:[%s3 + $0x5e4] sm:$0xff]
  %v303 = vld [vmem:[%s3 + $0x5ec] sm:$0xf]
  %v304 = vld [vmem:[%s3 + $0x5f0] sm:$0xff]
  %v305 = vld [vmem:[%s3 + $0x5f8] sm:$0xff]
  %v306 = vld [vmem:[%s3 + $0x600] sm:$0xf]
  %v307 = vld [vmem:[%s3 + $0x604] sm:$0xff]
  %v308 = vld [vmem:[%s3 + $0x60c] sm:$0xff]
  %v309 = vld [vmem:[%s3 + $0x614] sm:$0xf]
  %v310 = vld [vmem:[%s3 + $0x618] sm:$0xff]
  %v311 = vld [vmem:[%s3 + $0x620] sm:$0xff]
  %v312 = vld [vmem:[%s3 + $0x628] sm:$0xf]
  %v313 = vld [vmem:[%s3 + $0x62c] sm:$0xff]
  %v314 = vld [vmem:[%s3 + $0x634] sm:$0xff]
  %v315 = vld [vmem:[%s3 + $0x63c] sm:$0xf]
  %v316 = vld [vmem:[%s3 + $0x640] sm:$0xff]
  %v317 = vld [vmem:[%s3 + $0x648] sm:$0xff]
  %v318 = vld [vmem:[%s3 + $0x650] sm:$0xf]
  %v319 = vld [vmem:[%s3 + $0x654] sm:$0xff]
  %v320 = vld [vmem:[%s3 + $0x65c] sm:$0xff]
  %v321 = vld [vmem:[%s3 + $0x664] sm:$0xf]
  %v322 = vld [vmem:[%s3 + $0x668] sm:$0xff]
  %v323 = vld [vmem:[%s3 + $0x670] sm:$0xff]
  %v324 = vld [vmem:[%s3 + $0x678] sm:$0xf]
  %v325 = vld [vmem:[%s3 + $0x67c] sm:$0xff]
  %v326 = vld [vmem:[%s3 + $0x684] sm:$0xff]
  %v327 = vld [vmem:[%s3 + $0x68c] sm:$0xf]
  %v328 = vld [vmem:[%s3 + $0x690] sm:$0xff]
  %v329 = vld [vmem:[%s3 + $0x698] sm:$0xff]
  %v330 = vld [vmem:[%s3 + $0x6a0] sm:$0xf]
  %v331 = vld [vmem:[%s3 + $0x6a4] sm:$0xff]
  %v332 = vld [vmem:[%s3 + $0x6ac] sm:$0xff]
  %v333 = vld [vmem:[%s3 + $0x6b4] sm:$0xf]
  %v334 = vld [vmem:[%s3 + $0x6b8] sm:$0xff]
  %v335 = vld [vmem:[%s3 + $0x6c0] sm:$0xff]
  %v336 = vld [vmem:[%s3 + $0x6c8] sm:$0xf]
  %v337 = vld [vmem:[%s3 + $0x6cc] sm:$0xff]
  %v338 = vld [vmem:[%s3 + $0x6d4] sm:$0xff]
  %v339 = vld [vmem:[%s3 + $0x6dc] sm:$0xf]
  %v340 = vld [vmem:[%s3 + $0x6e0] sm:$0xff]
  %v341 = vld [vmem:[%s3 + $0x6e8] sm:$0xff]
  %v342 = vld [vmem:[%s3 + $0x6f0] sm:$0xf]
  %v343 = vld [vmem:[%s3 + $0x6f4] sm:$0xff]
  %v344 = vld [vmem:[%s3 + $0x6fc] sm:$0xff]
  %v345 = vld [vmem:[%s3 + $0x704] sm:$0xf]
  %v346 = vld [vmem:[%s3 + $0x708] sm:$0xff]
  %v347 = vld [vmem:[%s3 + $0x710] sm:$0xff]
  %v348 = vld [vmem:[%s3 + $0x718] sm:$0xf]
  %v349 = vld [vmem:[%s3 + $0x71c] sm:$0xff]
  %v350 = vld [vmem:[%s3 + $0x724] sm:$0xff]
  %v351 = vld [vmem:[%s3 + $0x72c] sm:$0xf]
  %v352 = vld [vmem:[%s3 + $0x730] sm:$0xff]
  %v353 = vld [vmem:[%s3 + $0x738] sm:$0xff]
  %v354 = vld [vmem:[%s3 + $0x740] sm:$0xf]
  %v355 = vld [vmem:[%s3 + $0x744] sm:$0xff]
  %v356 = vld [vmem:[%s3 + $0x74c] sm:$0xff]
  %v357 = vld [vmem:[%s3 + $0x754] sm:$0xf]
  %v358 = vld [vmem:[%s3 + $0x758] sm:$0xff]
  %v359 = vld [vmem:[%s3 + $0x760] sm:$0xff]
  %v360 = vld [vmem:[%s3 + $0x768] sm:$0xf]
  %v361 = vld [vmem:[%s3 + $0x76c] sm:$0xff]
  %v362 = vld [vmem:[%s3 + $0x774] sm:$0xff]
  %v363 = vld [vmem:[%s3 + $0x77c] sm:$0xf]
  %v364 = vld [vmem:[%s3 + $0x780] sm:$0xff]
  %v365 = vld [vmem:[%s3 + $0x788] sm:$0xff]
  %v366 = vld [vmem:[%s3 + $0x790] sm:$0xf]
  %v367 = vld [vmem:[%s3 + $0x794] sm:$0xff]
  %v368 = vld [vmem:[%s3 + $0x79c] sm:$0xff]
  %v369 = vld [vmem:[%s3 + $0x7a4] sm:$0xf]
  %v370 = vld [vmem:[%s3 + $0x7a8] sm:$0xff]
  %v371 = vld [vmem:[%s3 + $0x7b0] sm:$0xff]
  %v372 = vld [vmem:[%s3 + $0x7b8] sm:$0xf]
  %v373 = vld [vmem:[%s3 + $0x7bc] sm:$0xff]
  %v374 = vld [vmem:[%s3 + $0x7c4] sm:$0xff]
  %v375 = vld [vmem:[%s3 + $0x7cc] sm:$0xf]
  %v376 = vld [vmem:[%s3 + $0x7d0] sm:$0xff]
  %v377 = vld [vmem:[%s3 + $0x7d8] sm:$0xff]
  %v378 = vld [vmem:[%s3 + $0x7e0] sm:$0xf]
  %v379 = vld [vmem:[%s3 + $0x7e4] sm:$0xff]
  %v380 = vld [vmem:[%s3 + $0x7ec] sm:$0xff]
  %v381 = vld [vmem:[%s3 + $0x7f4] sm:$0xf]
  %v382 = vld [vmem:[%s3 + $0x7f8] sm:$0xff]
  %v383 = vld [vmem:[%s3 + $0x800] sm:$0xff]
  %v384 = vld [vmem:[%s3 + $0x808] sm:$0xf]
  %v385 = vld [vmem:[%s3 + $0x80c] sm:$0xff]
  %v386 = vld [vmem:[%s3 + $0x814] sm:$0xff]
  %v387 = vld [vmem:[%s3 + $0x81c] sm:$0xf]
  %v388 = vld [vmem:[%s3 + $0x820] sm:$0xff]
  %v389 = vld [vmem:[%s3 + $0x828] sm:$0xff]
  %v390 = vld [vmem:[%s3 + $0x830] sm:$0xf]
  %v391 = vld [vmem:[%s3 + $0x834] sm:$0xff]
  %v392 = vld [vmem:[%s3 + $0x83c] sm:$0xff]
  %v393 = vld [vmem:[%s3 + $0x844] sm:$0xf]
  %v394 = vld [vmem:[%s3 + $0x848] sm:$0xff]
  %v395 = vld [vmem:[%s3 + $0x850] sm:$0xff]
  %v396 = vld [vmem:[%s3 + $0x858] sm:$0xf]
  %v397 = vld [vmem:[%s3 + $0x85c] sm:$0xff]
  %v398 = vld [vmem:[%s3 + $0x864] sm:$0xff]
  %v399 = vld [vmem:[%s3 + $0x86c] sm:$0xf]
  %v400 = vld [vmem:[%s3 + $0x870] sm:$0xff]
  %v401 = vld [vmem:[%s3 + $0x878] sm:$0xff]
  %v402 = vld [vmem:[%s3 + $0x880] sm:$0xf]
  %v403 = vld [vmem:[%s3 + $0x884] sm:$0xff]
  %v404 = vld [vmem:[%s3 + $0x88c] sm:$0xff]
  %v405 = vld [vmem:[%s3 + $0x894] sm:$0xf]
  %v406 = vld [vmem:[%s3 + $0x898] sm:$0xff]
  %v407 = vld [vmem:[%s3 + $0x8a0] sm:$0xff]
  %v408 = vld [vmem:[%s3 + $0x8a8] sm:$0xf]
  %v409 = vld [vmem:[%s3 + $0x8ac] sm:$0xff]
  %v410 = vld [vmem:[%s3 + $0x8b4] sm:$0xff]
  %v411 = vld [vmem:[%s3 + $0x8bc] sm:$0xf]
  %v412 = vld [vmem:[%s3 + $0x8c0] sm:$0xff]
  %v413 = vld [vmem:[%s3 + $0x8c8] sm:$0xff]
  %v414 = vld [vmem:[%s3 + $0x8d0] sm:$0xf]
  %v415 = vld [vmem:[%s3 + $0x8d4] sm:$0xff]
  %v416 = vld [vmem:[%s3 + $0x8dc] sm:$0xff]
  %v417 = vld [vmem:[%s3 + $0x8e4] sm:$0xf]
  %v418 = vld [vmem:[%s3 + $0x8e8] sm:$0xff]
  %v419 = vld [vmem:[%s3 + $0x8f0] sm:$0xff]
  %v420 = vld [vmem:[%s3 + $0x8f8] sm:$0xf]
  %v421 = vld [vmem:[%s3 + $0x8fc] sm:$0xff]
  %v422 = vld [vmem:[%s3 + $0x904] sm:$0xff]
  %v423 = vld [vmem:[%s3 + $0x90c] sm:$0xf]
  %v424 = vld [vmem:[%s3 + $0x910] sm:$0xff]
  %v425 = vld [vmem:[%s3 + $0x918] sm:$0xff]
  %v426 = vld [vmem:[%s3 + $0x920] sm:$0xf]
  %v427 = vld [vmem:[%s3 + $0x924] sm:$0xff]
  %v428 = vld [vmem:[%s3 + $0x92c] sm:$0xff]
  %v429 = vld [vmem:[%s3 + $0x934] sm:$0xf]
  %v430 = vld [vmem:[%s3 + $0x938] sm:$0xff]
  %v431 = vld [vmem:[%s3 + $0x940] sm:$0xff]
  %v432 = vld [vmem:[%s3 + $0x948] sm:$0xf]
  %v433 = vld [vmem:[%s3 + $0x94c] sm:$0xff]
  %v434 = vld [vmem:[%s3 + $0x954] sm:$0xff]
  %v435 = vld [vmem:[%s3 + $0x95c] sm:$0xf]
  %v436 = vld [vmem:[%s3 + $0x960] sm:$0xff]
  %v437 = vld [vmem:[%s3 + $0x968] sm:$0xff]
  %v438 = vld [vmem:[%s3 + $0x970] sm:$0xf]
  %v439 = vld [vmem:[%s3 + $0x974] sm:$0xff]
  %v440 = vld [vmem:[%s3 + $0x97c] sm:$0xff]
  %v441 = vld [vmem:[%s3 + $0x984] sm:$0xf]
  %v442 = vld [vmem:[%s3 + $0x988] sm:$0xff]
  %v443 = vld [vmem:[%s3 + $0x990] sm:$0xff]
  %v444 = vld [vmem:[%s3 + $0x998] sm:$0xf]
  %v445 = vld [vmem:[%s3 + $0x99c] sm:$0xff]
  %v446 = vld [vmem:[%s3 + $0x9a4] sm:$0xff]
  %v447 = vld [vmem:[%s3 + $0x9ac] sm:$0xf]
  %v448 = vld [vmem:[%s3 + $0x9b0] sm:$0xff]
  %v449 = vld [vmem:[%s3 + $0x9b8] sm:$0xff]
  %v450 = vld [vmem:[%s3 + $0x9c0] sm:$0xf]
  %v451 = vld [vmem:[%s3 + $0x9c4] sm:$0xff]
  %v452 = vld [vmem:[%s3 + $0x9cc] sm:$0xff]
  %v453 = vld [vmem:[%s3 + $0x9d4] sm:$0xf]
  %v454 = vld [vmem:[%s3 + $0x9d8] sm:$0xff]
  %v455 = vld [vmem:[%s3 + $0x9e0] sm:$0xff]
  %v456 = vld [vmem:[%s3 + $0x9e8] sm:$0xf]
  %v457 = vld [vmem:[%s3 + $0x9ec] sm:$0xff]
  %v458 = vld [vmem:[%s3 + $0x9f4] sm:$0xff]
  %v459 = vld [vmem:[%s3 + $0x9fc] sm:$0xf]
  %v460 = vld [vmem:[%s3 + $0xa00] sm:$0xff]
  %v461 = vld [vmem:[%s3 + $0xa08] sm:$0xff]
  %v462 = vld [vmem:[%s3 + $0xa10] sm:$0xf]
  %v463 = vld [vmem:[%s3 + $0xa14] sm:$0xff]
  %v464 = vld [vmem:[%s3 + $0xa1c] sm:$0xff]
  %v465 = vld [vmem:[%s3 + $0xa24] sm:$0xf]
  %v466 = vld [vmem:[%s3 + $0xa28] sm:$0xff]
  %v467 = vld [vmem:[%s3 + $0xa30] sm:$0xff]
  %v468 = vld [vmem:[%s3 + $0xa38] sm:$0xf]
  %v469 = vld [vmem:[%s3 + $0xa3c] sm:$0xff]
  %v470 = vld [vmem:[%s3 + $0xa44] sm:$0xff]
  %v471 = vld [vmem:[%s3 + $0xa4c] sm:$0xf]
  %v472 = vld [vmem:[%s3 + $0xa50] sm:$0xff]
  %v473 = vld [vmem:[%s3 + $0xa58] sm:$0xff]
  %v474 = vld [vmem:[%s3 + $0xa60] sm:$0xf]
  %v475 = vld [vmem:[%s3 + $0xa64] sm:$0xff]
  %v476 = vld [vmem:[%s3 + $0xa6c] sm:$0xff]
  %v477 = vld [vmem:[%s3 + $0xa74] sm:$0xf]
  %v478 = vld [vmem:[%s3 + $0xa78] sm:$0xff]
  %v479 = vld [vmem:[%s3 + $0xa80] sm:$0xff]
  %v480 = vld [vmem:[%s3 + $0xa88] sm:$0xf]
  %v481 = vld [vmem:[%s3 + $0xa8c] sm:$0xff]
  %v482 = vld [vmem:[%s3 + $0xa94] sm:$0xff]
  %v483 = vld [vmem:[%s3 + $0xa9c] sm:$0xf]
  %v484 = vld [vmem:[%s3 + $0xaa0] sm:$0xff]
  %v485 = vld [vmem:[%s3 + $0xaa8] sm:$0xff]
  %v486 = vld [vmem:[%s3 + $0xab0] sm:$0xf]
  %v487 = vld [vmem:[%s3 + $0xab4] sm:$0xff]
  %v488 = vld [vmem:[%s3 + $0xabc] sm:$0xff]
  %v489 = vld [vmem:[%s3 + $0xac4] sm:$0xf]
  %v490 = vld [vmem:[%s3 + $0xac8] sm:$0xff]
  %v491 = vld [vmem:[%s3 + $0xad0] sm:$0xff]
  %v492 = vld [vmem:[%s3 + $0xad8] sm:$0xf]
  %v493 = vld [vmem:[%s3 + $0xadc] sm:$0xff]
  %v494 = vld [vmem:[%s3 + $0xae4] sm:$0xff]
  %v495 = vld [vmem:[%s3 + $0xaec] sm:$0xf]
  %v496 = vld [vmem:[%s3 + $0xaf0] sm:$0xff]
  %v497 = vld [vmem:[%s3 + $0xaf8] sm:$0xff]
  %v498 = vld [vmem:[%s3 + $0xb00] sm:$0xf]
  %v499 = vld [vmem:[%s3 + $0xb04] sm:$0xff]
  %v500 = vld [vmem:[%s3 + $0xb0c] sm:$0xff]
  %v501 = vld [vmem:[%s3 + $0xb14] sm:$0xf]
  %v502 = vld [vmem:[%s3 + $0xb18] sm:$0xff]
  %v503 = vld [vmem:[%s3 + $0xb20] sm:$0xff]
  %v504 = vld [vmem:[%s3 + $0xb28] sm:$0xf]
  %v505 = vld [vmem:[%s3 + $0xb2c] sm:$0xff]
  %v506 = vld [vmem:[%s3 + $0xb34] sm:$0xff]
  %v507 = vld [vmem:[%s3 + $0xb3c] sm:$0xf]
  %v508 = vld [vmem:[%s3 + $0xb40] sm:$0xff]
  %v509 = vld [vmem:[%s3 + $0xb48] sm:$0xff]
  %v510 = vld [vmem:[%s3 + $0xb50] sm:$0xf]
  %v511 = vld [vmem:[%s3 + $0xb54] sm:$0xff]
  %v512 = vld [vmem:[%s3 + $0xb5c] sm:$0xff]
  %v513 = vld [vmem:[%s3 + $0xb64] sm:$0xf]
  %v514 = vld [vmem:[%s3 + $0xb68] sm:$0xff]
  %v515 = vld [vmem:[%s3 + $0xb70] sm:$0xff]
  %v516 = vld [vmem:[%s3 + $0xb78] sm:$0xf]
  %v517 = vld [vmem:[%s3 + $0xb7c] sm:$0xff]
  %v518 = vld [vmem:[%s3 + $0xb84] sm:$0xff]
  %v519 = vld [vmem:[%s3 + $0xb8c] sm:$0xf]
  %v520 = vld [vmem:[%s3 + $0xb90] sm:$0xff]
  %v521 = vld [vmem:[%s3 + $0xb98] sm:$0xff]
  %v522 = vld [vmem:[%s3 + $0xba0] sm:$0xf]
  %v523 = vld [vmem:[%s3 + $0xba4] sm:$0xff]
  %v524 = vld [vmem:[%s3 + $0xbac] sm:$0xff]
  %v525 = vld [vmem:[%s3 + $0xbb4] sm:$0xf]
  %v526 = vld [vmem:[%s3 + $0xbb8] sm:$0xff]
  %v527 = vld [vmem:[%s3 + $0xbc0] sm:$0xff]
  %v528 = vld [vmem:[%s3 + $0xbc8] sm:$0xf]
  %v529 = vld [vmem:[%s3 + $0xbcc] sm:$0xff]
  %v530 = vld [vmem:[%s3 + $0xbd4] sm:$0xff]
  %v531 = vld [vmem:[%s3 + $0xbdc] sm:$0xf]
  %v532 = vld [vmem:[%s3 + $0xbe0] sm:$0xff]
  %v533 = vld [vmem:[%s3 + $0xbe8] sm:$0xff]
  %v534 = vld [vmem:[%s3 + $0xbf0] sm:$0xf]
  %v535 = vld [vmem:[%s3 + $0xbf4] sm:$0xff]
  %v536 = vld [vmem:[%s3 + $0xbfc] sm:$0xff]
  %v537 = vld [vmem:[%s3 + $0xc04] sm:$0xf]
  %v538 = vld [vmem:[%s3 + $0xc08] sm:$0xff]
  %v539 = vld [vmem:[%s3 + $0xc10] sm:$0xff]
  %v540 = vld [vmem:[%s3 + $0xc18] sm:$0xf]
  %v541 = vld [vmem:[%s3 + $0xc1c] sm:$0xff]
  %v542 = vld [vmem:[%s3 + $0xc24] sm:$0xff]
  %v543 = vld [vmem:[%s3 + $0xc2c] sm:$0xf]
  %v544 = vld [vmem:[%s3 + $0xc30] sm:$0xff]
  %v545 = vld [vmem:[%s3 + $0xc38] sm:$0xff]
  %v546 = vld [vmem:[%s3 + $0xc40] sm:$0xf]
  %v547 = vld [vmem:[%s3 + $0xc44] sm:$0xff]
  %v548 = vld [vmem:[%s3 + $0xc4c] sm:$0xff]
  %v549 = vld [vmem:[%s3 + $0xc54] sm:$0xf]
  %v550 = vld [vmem:[%s3 + $0xc58] sm:$0xff]
  %v551 = vld [vmem:[%s3 + $0xc60] sm:$0xff]
  %v552 = vld [vmem:[%s3 + $0xc68] sm:$0xf]
  %v553 = vld [vmem:[%s3 + $0xc6c] sm:$0xff]
  %v554 = vld [vmem:[%s3 + $0xc74] sm:$0xff]
  %v555 = vld [vmem:[%s3 + $0xc7c] sm:$0xf]
  %v556 = vld [vmem:[%s3 + $0xc80] sm:$0xff]
  %v557 = vld [vmem:[%s3 + $0xc88] sm:$0xff]
  %v558 = vld [vmem:[%s3 + $0xc90] sm:$0xf]
  %v559 = vld [vmem:[%s3 + $0xc94] sm:$0xff]
  %v560 = vld [vmem:[%s3 + $0xc9c] sm:$0xff]
  %v561 = vld [vmem:[%s3 + $0xca4] sm:$0xf]
  %v562 = vld [vmem:[%s3 + $0xca8] sm:$0xff]
  %v563 = vld [vmem:[%s3 + $0xcb0] sm:$0xff]
  %v564 = vld [vmem:[%s3 + $0xcb8] sm:$0xf]
  %v565 = vld [vmem:[%s3 + $0xcbc] sm:$0xff]
  %v566 = vld [vmem:[%s3 + $0xcc4] sm:$0xff]
  %v567 = vld [vmem:[%s3 + $0xccc] sm:$0xf]
  %v568 = vld [vmem:[%s3 + $0xcd0] sm:$0xff]
  %v569 = vld [vmem:[%s3 + $0xcd8] sm:$0xff]
  %v570 = vld [vmem:[%s3 + $0xce0] sm:$0xf]
  %v571 = vld [vmem:[%s3 + $0xce4] sm:$0xff]
  %v572 = vld [vmem:[%s3 + $0xcec] sm:$0xff]
  %v573 = vld [vmem:[%s3 + $0xcf4] sm:$0xf]
  %v574 = vld [vmem:[%s3 + $0xcf8] sm:$0xff]
  %v575 = vld [vmem:[%s3 + $0xd00] sm:$0xff]
  %v576 = vld [vmem:[%s3 + $0xd08] sm:$0xf]
  %v577 = vld [vmem:[%s3 + $0xd0c] sm:$0xff]
  %v578 = vld [vmem:[%s3 + $0xd14] sm:$0xff]
  %v579 = vld [vmem:[%s3 + $0xd1c] sm:$0xf]
  %v580 = vld [vmem:[%s3 + $0xd20] sm:$0xff]
  %v581 = vld [vmem:[%s3 + $0xd28] sm:$0xff]
  %v582 = vld [vmem:[%s3 + $0xd30] sm:$0xf]
  %v583 = vld [vmem:[%s3 + $0xd34] sm:$0xff]
  %v584 = vld [vmem:[%s3 + $0xd3c] sm:$0xff]
  %v585 = vld [vmem:[%s3 + $0xd44] sm:$0xf]
  %v586 = vld [vmem:[%s3 + $0xd48] sm:$0xff]
  %v587 = vld [vmem:[%s3 + $0xd50] sm:$0xff]
  %v588 = vld [vmem:[%s3 + $0xd58] sm:$0xf]
  %v589 = vld [vmem:[%s3 + $0xd5c] sm:$0xff]
  %v590 = vld [vmem:[%s3 + $0xd64] sm:$0xff]
  %v591 = vld [vmem:[%s3 + $0xd6c] sm:$0xf]
  %v592 = vld [vmem:[%s3 + $0xd70] sm:$0xff]
  %v593 = vld [vmem:[%s3 + $0xd78] sm:$0xff]
  %v594 = vld [vmem:[%s3 + $0xd80] sm:$0xf]
  %v595 = vld [vmem:[%s3 + $0xd84] sm:$0xff]
  %v596 = vld [vmem:[%s3 + $0xd8c] sm:$0xff]
  %v597 = vld [vmem:[%s3 + $0xd94] sm:$0xf]
  %v598 = vld [vmem:[%s3 + $0xd98] sm:$0xff]
  %v599 = vld [vmem:[%s3 + $0xda0] sm:$0xff]
  %v600 = vld [vmem:[%s3 + $0xda8] sm:$0xf]
  %v601 = vld [vmem:[%s3 + $0xdac] sm:$0xff]
  %v602 = vld [vmem:[%s3 + $0xdb4] sm:$0xff]
  %v603 = vld [vmem:[%s3 + $0xdbc] sm:$0xf]
  %v604 = vld [vmem:[%s3 + $0xdc0] sm:$0xff]
  %v605 = vld [vmem:[%s3 + $0xdc8] sm:$0xff]
  %v606 = vld [vmem:[%s3 + $0xdd0] sm:$0xf]
  %v607 = vld [vmem:[%s3 + $0xdd4] sm:$0xff]
  %v608 = vld [vmem:[%s3 + $0xddc] sm:$0xff]
  %v609 = vld [vmem:[%s3 + $0xde4] sm:$0xf]
  %v610 = vld [vmem:[%s3 + $0xde8] sm:$0xff]
  %v611 = vld [vmem:[%s3 + $0xdf0] sm:$0xff]
  %v612 = vld [vmem:[%s3 + $0xdf8] sm:$0xf]
  %v613 = vld [vmem:[%s3 + $0xdfc] sm:$0xff]
  %v614 = vld [vmem:[%s3 + $0xe04] sm:$0xff]
  %v615 = vld [vmem:[%s3 + $0xe0c] sm:$0xf]
  %v616 = vld [vmem:[%s3 + $0xe10] sm:$0xff]
  %v617 = vld [vmem:[%s3 + $0xe18] sm:$0xff]
  %v618 = vld [vmem:[%s3 + $0xe20] sm:$0xf]
  %v619 = vld [vmem:[%s3 + $0xe24] sm:$0xff]
  %v620 = vld [vmem:[%s3 + $0xe2c] sm:$0xff]
  %v621 = vld [vmem:[%s3 + $0xe34] sm:$0xf]
  %v622 = vld [vmem:[%s3 + $0xe38] sm:$0xff]
  %v623 = vld [vmem:[%s3 + $0xe40] sm:$0xff]
  %v624 = vld [vmem:[%s3 + $0xe48] sm:$0xf]
  %v625 = vld [vmem:[%s3 + $0xe4c] sm:$0xff]
  %v626 = vld [vmem:[%s3 + $0xe54] sm:$0xff]
  %v627 = vld [vmem:[%s3 + $0xe5c] sm:$0xf]
  %v628 = vld [vmem:[%s3 + $0xe60] sm:$0xff]
  %v629 = vld [vmem:[%s3 + $0xe68] sm:$0xff]
  %v630 = vld [vmem:[%s3 + $0xe70] sm:$0xf]
  %v631 = vld [vmem:[%s3 + $0xe74] sm:$0xff]
  %v632 = vld [vmem:[%s3 + $0xe7c] sm:$0xff]
  %v633 = vld [vmem:[%s3 + $0xe84] sm:$0xf]
  %v634 = vld [vmem:[%s3 + $0xe88] sm:$0xff]
  %v635 = vld [vmem:[%s3 + $0xe90] sm:$0xff]
  %v636 = vld [vmem:[%s3 + $0xe98] sm:$0xf]
  %v637 = vld [vmem:[%s3 + $0xe9c] sm:$0xff]
  %v638 = vld [vmem:[%s3 + $0xea4] sm:$0xff]
  %v639 = vld [vmem:[%s3 + $0xeac] sm:$0xf]
  %v640 = vld [vmem:[%s3 + $0xeb0] sm:$0xff]
  %v641 = vld [vmem:[%s3 + $0xeb8] sm:$0xff]
  %v642 = vld [vmem:[%s3 + $0xec0] sm:$0xf]
  %v643 = vld [vmem:[%s3 + $0xec4] sm:$0xff]
  %v644 = vld [vmem:[%s3 + $0xecc] sm:$0xff]
  %v645 = vld [vmem:[%s3 + $0xed4] sm:$0xf]
  %v646 = vld [vmem:[%s3 + $0xed8] sm:$0xff]
  %v647 = vld [vmem:[%s3 + $0xee0] sm:$0xff]
  %v648 = vld [vmem:[%s3 + $0xee8] sm:$0xf]
  %v649 = vld [vmem:[%s3 + $0xeec] sm:$0xff]
  %v650 = vld [vmem:[%s3 + $0xef4] sm:$0xff]
  %v651 = vld [vmem:[%s3 + $0xefc] sm:$0xf]
  %v652 = vld [vmem:[%s3 + $0xf00] sm:$0xff]
  %v653 = vld [vmem:[%s3 + $0xf08] sm:$0xff]
  %v654 = vld [vmem:[%s3 + $0xf10] sm:$0xf]
  %v655 = vld [vmem:[%s3 + $0xf14] sm:$0xff]
  %v656 = vld [vmem:[%s3 + $0xf1c] sm:$0xff]
  %v657 = vld [vmem:[%s3 + $0xf24] sm:$0xf]
  %v658 = vld [vmem:[%s3 + $0xf28] sm:$0xff]
  %v659 = vld [vmem:[%s3 + $0xf30] sm:$0xff]
  %v660 = vld [vmem:[%s3 + $0xf38] sm:$0xf]
  %v661 = vld [vmem:[%s3 + $0xf3c] sm:$0xff]
  %v662 = vld [vmem:[%s3 + $0xf44] sm:$0xff]
  %v663 = vld [vmem:[%s3 + $0xf4c] sm:$0xf]
  %v664 = vld [vmem:[%s3 + $0xf50] sm:$0xff]
  %v665 = vld [vmem:[%s3 + $0xf58] sm:$0xff]
  %v666 = vld [vmem:[%s3 + $0xf60] sm:$0xf]
  %v667 = vld [vmem:[%s3 + $0xf64] sm:$0xff]
  %v668 = vld [vmem:[%s3 + $0xf6c] sm:$0xff]
  %v669 = vld [vmem:[%s3 + $0xf74] sm:$0xf]
  %v670 = vld [vmem:[%s3 + $0xf78] sm:$0xff]
  %v671 = vld [vmem:[%s3 + $0xf80] sm:$0xff]
  %v672 = vld [vmem:[%s3 + $0xf88] sm:$0xf]
  %v673 = vld [vmem:[%s3 + $0xf8c] sm:$0xff]
  %v674 = vld [vmem:[%s3 + $0xf94] sm:$0xff]
  %v675 = vld [vmem:[%s3 + $0xf9c] sm:$0xf]
  %v676 = vld [vmem:[%s3 + $0xfa0] sm:$0xff]
  %v677 = vld [vmem:[%s3 + $0xfa8] sm:$0xff]
  %v678 = vld [vmem:[%s3 + $0xfb0] sm:$0xf]
  %v679 = vld [vmem:[%s3 + $0xfb4] sm:$0xff]
  %v680 = vld [vmem:[%s3 + $0xfbc] sm:$0xff]
  %v681 = vld [vmem:[%s3 + $0xfc4] sm:$0xf]
  %v682 = vld [vmem:[%s3 + $0xfc8] sm:$0xff]
  %v683 = vld [vmem:[%s3 + $0xfd0] sm:$0xff]
  %v684 = vld [vmem:[%s3 + $0xfd8] sm:$0xf]
  %v685 = vld [vmem:[%s3 + $0xfdc] sm:$0xff]
  %v686 = vld [vmem:[%s3 + $0xfe4] sm:$0xff]
  %v687 = vld [vmem:[%s3 + $0xfec] sm:$0xf]
  %v688 = vld [vmem:[%s3 + $0xff0] sm:$0xff]
  %v689 = vld [vmem:[%s3 + $0xff8] sm:$0xff]
  %v690 = vld [vmem:[%s3 + $0x1000] sm:$0xf]
  %v691 = vld [vmem:[%s3 + $0x1004] sm:$0xff]
  %v692 = vld [vmem:[%s3 + $0x100c] sm:$0xff]
  %v693 = vld [vmem:[%s3 + $0x1014] sm:$0xf]
  %v694 = vld [vmem:[%s3 + $0x1018] sm:$0xff]
  %v695 = vld [vmem:[%s3 + $0x1020] sm:$0xff]
  %v696 = vld [vmem:[%s3 + $0x1028] sm:$0xf]
  %v697 = vld [vmem:[%s3 + $0x102c] sm:$0xff]
  %v698 = vld [vmem:[%s3 + $0x1034] sm:$0xff]
  %v699 = vld [vmem:[%s3 + $0x103c] sm:$0xf]
  %v700 = vld [vmem:[%s3 + $0x1040] sm:$0xff]
  %v701 = vld [vmem:[%s3 + $0x1048] sm:$0xff]
  %v702 = vld [vmem:[%s3 + $0x1050] sm:$0xf]
  %v703 = vld [vmem:[%s3 + $0x1054] sm:$0xff]
  %v704 = vld [vmem:[%s3 + $0x105c] sm:$0xff]
  %v705 = vld [vmem:[%s3 + $0x1064] sm:$0xf]
  %v706 = vld [vmem:[%s3 + $0x1068] sm:$0xff]
  %v707 = vld [vmem:[%s3 + $0x1070] sm:$0xff]
  %v708 = vld [vmem:[%s3 + $0x1078] sm:$0xf]
  %v709 = vld [vmem:[%s3 + $0x107c] sm:$0xff]
  %v710 = vld [vmem:[%s3 + $0x1084] sm:$0xff]
  %v711 = vld [vmem:[%s3 + $0x108c] sm:$0xf]
  %v712 = vld [vmem:[%s3 + $0x1090] sm:$0xff]
  %v713 = vld [vmem:[%s3 + $0x1098] sm:$0xff]
  %v714 = vld [vmem:[%s3 + $0x10a0] sm:$0xf]
  %v715 = vld [vmem:[%s3 + $0x10a4] sm:$0xff]
  %v716 = vld [vmem:[%s3 + $0x10ac] sm:$0xff]
  %v717 = vld [vmem:[%s3 + $0x10b4] sm:$0xf]
  %v718 = vld [vmem:[%s3 + $0x10b8] sm:$0xff]
  %v719 = vld [vmem:[%s3 + $0x10c0] sm:$0xff]
  %v720 = vld [vmem:[%s3 + $0x10c8] sm:$0xf]
  %v721 = vld [vmem:[%s3 + $0x10cc] sm:$0xff]
  %v722 = vld [vmem:[%s3 + $0x10d4] sm:$0xff]
  %v723 = vld [vmem:[%s3 + $0x10dc] sm:$0xf]
  %v724 = vld [vmem:[%s3 + $0x10e0] sm:$0xff]
  %v725 = vld [vmem:[%s3 + $0x10e8] sm:$0xff]
  %v726 = vld [vmem:[%s3 + $0x10f0] sm:$0xf]
  %v727 = vld [vmem:[%s3 + $0x10f4] sm:$0xff]
  %v728 = vld [vmem:[%s3 + $0x10fc] sm:$0xff]
  %v729 = vld [vmem:[%s3 + $0x1104] sm:$0xf]
  %v730 = vld [vmem:[%s3 + $0x1108] sm:$0xff]
  %v731 = vld [vmem:[%s3 + $0x1110] sm:$0xff]
  %v732 = vld [vmem:[%s3 + $0x1118] sm:$0xf]
  %v733 = vld [vmem:[%s3 + $0x111c] sm:$0xff]
  %v734 = vld [vmem:[%s3 + $0x1124] sm:$0xff]
  %v735 = vld [vmem:[%s3 + $0x112c] sm:$0xf]
  %v736 = vld [vmem:[%s3 + $0x1130] sm:$0xff]
  %v737 = vld [vmem:[%s3 + $0x1138] sm:$0xff]
  %v738 = vld [vmem:[%s3 + $0x1140] sm:$0xf]
  %v739 = vld [vmem:[%s3 + $0x1144] sm:$0xff]
  %v740 = vld [vmem:[%s3 + $0x114c] sm:$0xff]
  %v741 = vld [vmem:[%s3 + $0x1154] sm:$0xf]
  %v742 = vld [vmem:[%s3 + $0x1158] sm:$0xff]
  %v743 = vld [vmem:[%s3 + $0x1160] sm:$0xff]
  %v744 = vld [vmem:[%s3 + $0x1168] sm:$0xf]
  %v745 = vld [vmem:[%s3 + $0x116c] sm:$0xff]
  %v746 = vld [vmem:[%s3 + $0x1174] sm:$0xff]
  %v747 = vld [vmem:[%s3 + $0x117c] sm:$0xf]
  %v748 = vld [vmem:[%s3 + $0x1180] sm:$0xff]
  %v749 = vld [vmem:[%s3 + $0x1188] sm:$0xff]
  %v750 = vld [vmem:[%s3 + $0x1190] sm:$0xf]
  %v751 = vld [vmem:[%s3 + $0x1194] sm:$0xff]
  %v752 = vld [vmem:[%s3 + $0x119c] sm:$0xff]
  %v753 = vld [vmem:[%s3 + $0x11a4] sm:$0xf]
  %v754 = vld [vmem:[%s3 + $0x11a8] sm:$0xff]
  %v755 = vld [vmem:[%s3 + $0x11b0] sm:$0xff]
  %v756 = vld [vmem:[%s3 + $0x11b8] sm:$0xf]
  %v757 = vld [vmem:[%s3 + $0x11bc] sm:$0xff]
  %v758 = vld [vmem:[%s3 + $0x11c4] sm:$0xff]
  %v759 = vld [vmem:[%s3 + $0x11cc] sm:$0xf]
  %v760 = vld [vmem:[%s3 + $0x11d0] sm:$0xff]
  %v761 = vld [vmem:[%s3 + $0x11d8] sm:$0xff]
  %v762 = vld [vmem:[%s3 + $0x11e0] sm:$0xf]
  %v763 = vld [vmem:[%s3 + $0x11e4] sm:$0xff]
  %v764 = vld [vmem:[%s3 + $0x11ec] sm:$0xff]
  %v765 = vld [vmem:[%s3 + $0x11f4] sm:$0xf]
  %v766 = vld [vmem:[%s3 + $0x11f8] sm:$0xff]
  %v767 = vld [vmem:[%s3 + $0x1200] sm:$0xff]
  %v768 = vld [vmem:[%s3 + $0x1208] sm:$0xf]
  %v769 = vld [vmem:[%s3 + $0x120c] sm:$0xff]
  %v770 = vld [vmem:[%s3 + $0x1214] sm:$0xff]
  %v771 = vld [vmem:[%s3 + $0x121c] sm:$0xf]
  %v772 = vld [vmem:[%s3 + $0x1220] sm:$0xff]
  %v773 = vld [vmem:[%s3 + $0x1228] sm:$0xff]
  %v774 = vld [vmem:[%s3 + $0x1230] sm:$0xf]
  %v775 = vld [vmem:[%s3 + $0x1234] sm:$0xff]
  %v776 = vld [vmem:[%s3 + $0x123c] sm:$0xff]
  %v777 = vld [vmem:[%s3 + $0x1244] sm:$0xf]
  %v778 = vld [vmem:[%s3 + $0x1248] sm:$0xff]
  %v779 = vld [vmem:[%s3 + $0x1250] sm:$0xff]
  %v780 = vld [vmem:[%s3 + $0x1258] sm:$0xf]
  %v781 = vld [vmem:[%s3 + $0x125c] sm:$0xff]
  %v782 = vld [vmem:[%s3 + $0x1264] sm:$0xff]
  %v783 = vld [vmem:[%s3 + $0x126c] sm:$0xf]
  %v784 = vld [vmem:[%s3 + $0x1270] sm:$0xff]
  %v785 = vld [vmem:[%s3 + $0x1278] sm:$0xff]
  %v786 = vld [vmem:[%s3 + $0x1280] sm:$0xf]
  %v787 = vld [vmem:[%s3 + $0x1284] sm:$0xff]
  %v788 = vld [vmem:[%s3 + $0x128c] sm:$0xff]
  %v789 = vld [vmem:[%s3 + $0x1294] sm:$0xf]
  %v790 = vld [vmem:[%s3 + $0x1298] sm:$0xff]
  %v791 = vld [vmem:[%s3 + $0x12a0] sm:$0xff]
  %v792 = vld [vmem:[%s3 + $0x12a8] sm:$0xf]
  %v793 = vld [vmem:[%s3 + $0x12ac] sm:$0xff]
  %v794 = vld [vmem:[%s3 + $0x12b4] sm:$0xff]
  %v795 = vld [vmem:[%s3 + $0x12bc] sm:$0xf]
  %v796 = vld [vmem:[%s3 + $0x12c0] sm:$0xff]
  %v797 = vld [vmem:[%s3 + $0x12c8] sm:$0xff]
  %v798 = vld [vmem:[%s3 + $0x12d0] sm:$0xf]
  %v799 = vld [vmem:[%s3 + $0x12d4] sm:$0xff]
  %v800 = vld [vmem:[%s3 + $0x12dc] sm:$0xff]
  %v801 = vld [vmem:[%s3 + $0x12e4] sm:$0xf]
  %v802 = vld [vmem:[%s3 + $0x12e8] sm:$0xff]
  %v803 = vld [vmem:[%s3 + $0x12f0] sm:$0xff]
  %v804 = vld [vmem:[%s3 + $0x12f8] sm:$0xf]
  %v805 = vld [vmem:[%s3 + $0x12fc] sm:$0xff]
  %v806 = vld [vmem:[%s3 + $0x1304] sm:$0xff]
  %v807 = vld [vmem:[%s3 + $0x130c] sm:$0xf]
  %v808 = vld [vmem:[%s3 + $0x1310] sm:$0xff]
  %v809 = vld [vmem:[%s3 + $0x1318] sm:$0xff]
  %v810 = vld [vmem:[%s3 + $0x1320] sm:$0xf]
  %v811 = vld [vmem:[%s3 + $0x1324] sm:$0xff]
  %v812 = vld [vmem:[%s3 + $0x132c] sm:$0xff]
  %v813 = vld [vmem:[%s3 + $0x1334] sm:$0xf]
  %v814 = vld [vmem:[%s3 + $0x1338] sm:$0xff]
  %v815 = vld [vmem:[%s3 + $0x1340] sm:$0xff]
  %v816 = vld [vmem:[%s3 + $0x1348] sm:$0xf]
  %v817 = vld [vmem:[%s3 + $0x134c] sm:$0xff]
  %v818 = vld [vmem:[%s3 + $0x1354] sm:$0xff]
  %v819 = vld [vmem:[%s3 + $0x135c] sm:$0xf]
  %v820 = vld [vmem:[%s3 + $0x1360] sm:$0xff]
  %v821 = vld [vmem:[%s3 + $0x1368] sm:$0xff]
  %v822 = vld [vmem:[%s3 + $0x1370] sm:$0xf]
  %v823 = vld [vmem:[%s3 + $0x1374] sm:$0xff]
  %v824 = vld [vmem:[%s3 + $0x137c] sm:$0xff]
  %v825 = vld [vmem:[%s3 + $0x1384] sm:$0xf]
  %v826 = vld [vmem:[%s3 + $0x1388] sm:$0xff]
  %v827 = vld [vmem:[%s3 + $0x1390] sm:$0xff]
  %v828 = vld [vmem:[%s3 + $0x1398] sm:$0xf]
  %v829 = vld [vmem:[%s3 + $0x139c] sm:$0xff]
  %v830 = vld [vmem:[%s3 + $0x13a4] sm:$0xff]
  %v831 = vld [vmem:[%s3 + $0x13ac] sm:$0xf]
  %v832 = vld [vmem:[%s3 + $0x13b0] sm:$0xff]
  %v833 = vld [vmem:[%s3 + $0x13b8] sm:$0xff]
  %v834 = vld [vmem:[%s3 + $0x13c0] sm:$0xf]
  %v835 = vld [vmem:[%s3 + $0x13c4] sm:$0xff]
  %v836 = vld [vmem:[%s3 + $0x13cc] sm:$0xff]
  %v837 = vld [vmem:[%s3 + $0x13d4] sm:$0xf]
  %v838 = vld [vmem:[%s3 + $0x13d8] sm:$0xff]
  %v839 = vld [vmem:[%s3 + $0x13e0] sm:$0xff]
  %v840 = vld [vmem:[%s3 + $0x13e8] sm:$0xf]
  %v841 = vld [vmem:[%s3 + $0x13ec] sm:$0xff]
  %v842 = vld [vmem:[%s3 + $0x13f4] sm:$0xff]
  %v843 = vld [vmem:[%s3 + $0x13fc] sm:$0xf]
  %v844 = vld [vmem:[%s4] sm:$0x1f]
  %v846 = vlaneseq
  %v847 = vshrl.u32 %v846, 7
  %v848 = vsub.s32 0, %v847
  %v849 = vrot.slane %v844, %v848
  %v850 = vlaneseq
  %v851 = vshrl.u32 %v850, 7
  %v852 = vsub.s32 1, %v851
  %v853 = vrot.slane %v844, %v852
  %v854 = vlaneseq
  %v855 = vshrl.u32 %v854, 7
  %v856 = vsub.s32 2, %v855
  %v857 = vrot.slane %v844, %v856
  %v858 = vlaneseq
  %v859 = vshrl.u32 %v858, 7
  %v860 = vsub.s32 3, %v859
  %v861 = vrot.slane %v844, %v860
  %v862 = vlaneseq
  %v863 = vshrl.u32 %v862, 7
  %v864 = vsub.s32 4, %v863
  %v865 = vrot.slane %v844, %v864
  %v873 = vcombine.high %v74, %v74
  %v875 = vunpack.c.l.s4 1966171168
  %v876 = vunpack.c.0.s8 %v875
  %v877 = vlaneseq
  %v878 = vshrl.u32 %v877, 7
  %v879 = vsub.s32 %v876, %v878
  %v880 = vrot.slane %v74, %v879
  %v882 = vunpack.c.l.s4 1966171168
  %v883 = vunpack.c.0.s8 %v882
  %v884 = vlaneseq
  %v885 = vshrl.u32 %v884, 7
  %v886 = vsub.s32 %v883, %v885
  %v887 = vrot.slane %v873, %v886
  %v888 = vcombine.high %v880, %v880
  %v889 = vcombine.high %v887, %v887
  %v891 = vunpack.c.l.s4 1966171168
  %v892 = vunpack.c.0.s8 %v891
  %v893 = vlaneseq
  %v894 = vshrl.u32 %v893, 7
  %v895 = vsub.s32 %v892, %v894
  %v896 = vrot.slane %v880, %v895
  %v898 = vunpack.c.l.s4 1966171168
  %v899 = vunpack.c.0.s8 %v898
  %v900 = vlaneseq
  %v901 = vshrl.u32 %v900, 7
  %v902 = vsub.s32 %v899, %v901
  %v903 = vrot.slane %v887, %v902
  %v905 = vunpack.c.l.s4 1966171168
  %v906 = vunpack.c.0.s8 %v905
  %v907 = vlaneseq
  %v908 = vshrl.u32 %v907, 7
  %v909 = vsub.s32 %v906, %v908
  %v910 = vrot.slane %v888, %v909
  %v912 = vunpack.c.l.s4 1966171168
  %v913 = vunpack.c.0.s8 %v912
  %v914 = vlaneseq
  %v915 = vshrl.u32 %v914, 7
  %v916 = vsub.s32 %v913, %v915
  %v917 = vrot.slane %v889, %v916
  %v918 = vcombine.high %v896, %v896
  %v919 = vcombine.high %v903, %v903
  %v920 = vcombine.high %v910, %v910
  %v921 = vcombine.high %v917, %v917
  %v922 = vcombine.high %v75, %v75
  %v924 = vunpack.c.l.s4 1966171168
  %v925 = vunpack.c.0.s8 %v924
  %v926 = vlaneseq
  %v927 = vshrl.u32 %v926, 7
  %v928 = vsub.s32 %v925, %v927
  %v929 = vrot.slane %v75, %v928
  %v931 = vunpack.c.l.s4 1966171168
  %v932 = vunpack.c.0.s8 %v931
  %v933 = vlaneseq
  %v934 = vshrl.u32 %v933, 7
  %v935 = vsub.s32 %v932, %v934
  %v936 = vrot.slane %v922, %v935
  %v937 = vcombine.high %v929, %v929
  %v938 = vcombine.high %v936, %v936
  %v940 = vunpack.c.l.s4 1966171168
  %v941 = vunpack.c.0.s8 %v940
  %v942 = vlaneseq
  %v943 = vshrl.u32 %v942, 7
  %v944 = vsub.s32 %v941, %v943
  %v945 = vrot.slane %v929, %v944
  %v947 = vunpack.c.l.s4 1966171168
  %v948 = vunpack.c.0.s8 %v947
  %v949 = vlaneseq
  %v950 = vshrl.u32 %v949, 7
  %v951 = vsub.s32 %v948, %v950
  %v952 = vrot.slane %v936, %v951
  %v954 = vunpack.c.l.s4 1966171168
  %v955 = vunpack.c.0.s8 %v954
  %v956 = vlaneseq
  %v957 = vshrl.u32 %v956, 7
  %v958 = vsub.s32 %v955, %v957
  %v959 = vrot.slane %v937, %v958
  %v961 = vunpack.c.l.s4 1966171168
  %v962 = vunpack.c.0.s8 %v961
  %v963 = vlaneseq
  %v964 = vshrl.u32 %v963, 7
  %v965 = vsub.s32 %v962, %v964
  %v966 = vrot.slane %v938, %v965
  %v967 = vcombine.high %v945, %v945
  %v968 = vcombine.high %v952, %v952
  %v969 = vcombine.high %v959, %v959
  %v970 = vcombine.high %v966, %v966
  %v1755 = vunpack.c.l.b16 %v76
  %v1756 = vunpack.c.h.b16 %v76
  %v1757 = vunpack.c.l.b16 %v77
  %v1758 = vunpack.c.h.b16 %v77
  %v1759 = vunpack.c.l.b16 %v78
  %v1760 = vunpack.c.l.b16 %v79
  %v1761 = vunpack.c.h.b16 %v79
  %v1762 = vunpack.c.l.b16 %v80
  %v1763 = vunpack.c.h.b16 %v80
  %v1764 = vunpack.c.l.b16 %v81
  %v1765 = vunpack.c.l.b16 %v82
  %v1766 = vunpack.c.h.b16 %v82
  %v1767 = vunpack.c.l.b16 %v83
  %v1768 = vunpack.c.h.b16 %v83
  %v1769 = vunpack.c.l.b16 %v84
  %v1770 = vunpack.c.l.b16 %v85
  %v1771 = vunpack.c.h.b16 %v85
  %v1772 = vunpack.c.l.b16 %v86
  %v1773 = vunpack.c.h.b16 %v86
  %v1774 = vunpack.c.l.b16 %v87
  %v1775 = vunpack.c.l.b16 %v88
  %v1776 = vunpack.c.h.b16 %v88
  %v1777 = vunpack.c.l.b16 %v89
  %v1778 = vunpack.c.h.b16 %v89
  %v1779 = vunpack.c.l.b16 %v90
  %v1780 = vunpack.c.l.b16 %v91
  %v1781 = vunpack.c.h.b16 %v91
  %v1782 = vunpack.c.l.b16 %v92
  %v1783 = vunpack.c.h.b16 %v92
  %v1784 = vunpack.c.l.b16 %v93
  %v1785 = vunpack.c.l.b16 %v94
  %v1786 = vunpack.c.h.b16 %v94
  %v1787 = vunpack.c.l.b16 %v95
  %v1788 = vunpack.c.h.b16 %v95
  %v1789 = vunpack.c.l.b16 %v96
  %v1790 = vunpack.c.l.b16 %v97
  %v1791 = vunpack.c.h.b16 %v97
  %v1792 = vunpack.c.l.b16 %v98
  %v1793 = vunpack.c.h.b16 %v98
  %v1794 = vunpack.c.l.b16 %v99
  %v1795 = vunpack.c.l.b16 %v100
  %v1796 = vunpack.c.h.b16 %v100
  %v1797 = vunpack.c.l.b16 %v101
  %v1798 = vunpack.c.h.b16 %v101
  %v1799 = vunpack.c.l.b16 %v102
  %v1800 = vunpack.c.l.b16 %v103
  %v1801 = vunpack.c.h.b16 %v103
  %v1802 = vunpack.c.l.b16 %v104
  %v1803 = vunpack.c.h.b16 %v104
  %v1804 = vunpack.c.l.b16 %v105
  %v1805 = vunpack.c.l.b16 %v106
  %v1806 = vunpack.c.h.b16 %v106
  %v1807 = vunpack.c.l.b16 %v107
  %v1808 = vunpack.c.h.b16 %v107
  %v1809 = vunpack.c.l.b16 %v108
  %v1810 = vunpack.c.l.b16 %v109
  %v1811 = vunpack.c.h.b16 %v109
  %v1812 = vunpack.c.l.b16 %v110
  %v1813 = vunpack.c.h.b16 %v110
  %v1814 = vunpack.c.l.b16 %v111
  %v1815 = vunpack.c.l.b16 %v112
  %v1816 = vunpack.c.h.b16 %v112
  %v1817 = vunpack.c.l.b16 %v113
  %v1818 = vunpack.c.h.b16 %v113
  %v1819 = vunpack.c.l.b16 %v114
  %v1820 = vunpack.c.l.b16 %v115
  %v1821 = vunpack.c.h.b16 %v115
  %v1822 = vunpack.c.l.b16 %v116
  %v1823 = vunpack.c.h.b16 %v116
  %v1824 = vunpack.c.l.b16 %v117
  %v1825 = vunpack.c.l.b16 %v118
  %v1826 = vunpack.c.h.b16 %v118
  %v1827 = vunpack.c.l.b16 %v119
  %v1828 = vunpack.c.h.b16 %v119
  %v1829 = vunpack.c.l.b16 %v120
  %v1830 = vunpack.c.l.b16 %v121
  %v1831 = vunpack.c.h.b16 %v121
  %v1832 = vunpack.c.l.b16 %v122
  %v1833 = vunpack.c.h.b16 %v122
  %v1834 = vunpack.c.l.b16 %v123
  %v1835 = vunpack.c.l.b16 %v124
  %v1836 = vunpack.c.h.b16 %v124
  %v1837 = vunpack.c.l.b16 %v125
  %v1838 = vunpack.c.h.b16 %v125
  %v1839 = vunpack.c.l.b16 %v126
  %v1840 = vunpack.c.l.b16 %v127
  %v1841 = vunpack.c.h.b16 %v127
  %v1842 = vunpack.c.l.b16 %v128
  %v1843 = vunpack.c.h.b16 %v128
  %v1844 = vunpack.c.l.b16 %v129
  %v1845 = vunpack.c.l.b16 %v130
  %v1846 = vunpack.c.h.b16 %v130
  %v1847 = vunpack.c.l.b16 %v131
  %v1848 = vunpack.c.h.b16 %v131
  %v1849 = vunpack.c.l.b16 %v132
  %v1850 = vunpack.c.l.b16 %v133
  %v1851 = vunpack.c.h.b16 %v133
  %v1852 = vunpack.c.l.b16 %v134
  %v1853 = vunpack.c.h.b16 %v134
  %v1854 = vunpack.c.l.b16 %v135
  %v1855 = vunpack.c.l.b16 %v136
  %v1856 = vunpack.c.h.b16 %v136
  %v1857 = vunpack.c.l.b16 %v137
  %v1858 = vunpack.c.h.b16 %v137
  %v1859 = vunpack.c.l.b16 %v138
  %v1860 = vunpack.c.l.b16 %v139
  %v1861 = vunpack.c.h.b16 %v139
  %v1862 = vunpack.c.l.b16 %v140
  %v1863 = vunpack.c.h.b16 %v140
  %v1864 = vunpack.c.l.b16 %v141
  %v1865 = vunpack.c.l.b16 %v142
  %v1866 = vunpack.c.h.b16 %v142
  %v1867 = vunpack.c.l.b16 %v143
  %v1868 = vunpack.c.h.b16 %v143
  %v1869 = vunpack.c.l.b16 %v144
  %v1870 = vunpack.c.l.b16 %v145
  %v1871 = vunpack.c.h.b16 %v145
  %v1872 = vunpack.c.l.b16 %v146
  %v1873 = vunpack.c.h.b16 %v146
  %v1874 = vunpack.c.l.b16 %v147
  %v1875 = vunpack.c.l.b16 %v148
  %v1876 = vunpack.c.h.b16 %v148
  %v1877 = vunpack.c.l.b16 %v149
  %v1878 = vunpack.c.h.b16 %v149
  %v1879 = vunpack.c.l.b16 %v150
  %v1880 = vunpack.c.l.b16 %v151
  %v1881 = vunpack.c.h.b16 %v151
  %v1882 = vunpack.c.l.b16 %v152
  %v1883 = vunpack.c.h.b16 %v152
  %v1884 = vunpack.c.l.b16 %v153
  %v1885 = vunpack.c.l.b16 %v154
  %v1886 = vunpack.c.h.b16 %v154
  %v1887 = vunpack.c.l.b16 %v155
  %v1888 = vunpack.c.h.b16 %v155
  %v1889 = vunpack.c.l.b16 %v156
  %v1890 = vunpack.c.l.b16 %v157
  %v1891 = vunpack.c.h.b16 %v157
  %v1892 = vunpack.c.l.b16 %v158
  %v1893 = vunpack.c.h.b16 %v158
  %v1894 = vunpack.c.l.b16 %v159
  %v1895 = vunpack.c.l.b16 %v160
  %v1896 = vunpack.c.h.b16 %v160
  %v1897 = vunpack.c.l.b16 %v161
  %v1898 = vunpack.c.h.b16 %v161
  %v1899 = vunpack.c.l.b16 %v162
  %v1900 = vunpack.c.l.b16 %v163
  %v1901 = vunpack.c.h.b16 %v163
  %v1902 = vunpack.c.l.b16 %v164
  %v1903 = vunpack.c.h.b16 %v164
  %v1904 = vunpack.c.l.b16 %v165
  %v1905 = vunpack.c.l.b16 %v166
  %v1906 = vunpack.c.h.b16 %v166
  %v1907 = vunpack.c.l.b16 %v167
  %v1908 = vunpack.c.h.b16 %v167
  %v1909 = vunpack.c.l.b16 %v168
  %v1910 = vunpack.c.l.b16 %v169
  %v1911 = vunpack.c.h.b16 %v169
  %v1912 = vunpack.c.l.b16 %v170
  %v1913 = vunpack.c.h.b16 %v170
  %v1914 = vunpack.c.l.b16 %v171
  %v1915 = vunpack.c.l.b16 %v172
  %v1916 = vunpack.c.h.b16 %v172
  %v1917 = vunpack.c.l.b16 %v173
  %v1918 = vunpack.c.h.b16 %v173
  %v1919 = vunpack.c.l.b16 %v174
  %v1920 = vunpack.c.l.b16 %v175
  %v1921 = vunpack.c.h.b16 %v175
  %v1922 = vunpack.c.l.b16 %v176
  %v1923 = vunpack.c.h.b16 %v176
  %v1924 = vunpack.c.l.b16 %v177
  %v1925 = vunpack.c.l.b16 %v178
  %v1926 = vunpack.c.h.b16 %v178
  %v1927 = vunpack.c.l.b16 %v179
  %v1928 = vunpack.c.h.b16 %v179
  %v1929 = vunpack.c.l.b16 %v180
  %v1930 = vunpack.c.l.b16 %v181
  %v1931 = vunpack.c.h.b16 %v181
  %v1932 = vunpack.c.l.b16 %v182
  %v1933 = vunpack.c.h.b16 %v182
  %v1934 = vunpack.c.l.b16 %v183
  %v1935 = vunpack.c.l.b16 %v184
  %v1936 = vunpack.c.h.b16 %v184
  %v1937 = vunpack.c.l.b16 %v185
  %v1938 = vunpack.c.h.b16 %v185
  %v1939 = vunpack.c.l.b16 %v186
  %v1940 = vunpack.c.l.b16 %v187
  %v1941 = vunpack.c.h.b16 %v187
  %v1942 = vunpack.c.l.b16 %v188
  %v1943 = vunpack.c.h.b16 %v188
  %v1944 = vunpack.c.l.b16 %v189
  %v1945 = vunpack.c.l.b16 %v190
  %v1946 = vunpack.c.h.b16 %v190
  %v1947 = vunpack.c.l.b16 %v191
  %v1948 = vunpack.c.h.b16 %v191
  %v1949 = vunpack.c.l.b16 %v192
  %v1950 = vunpack.c.l.b16 %v193
  %v1951 = vunpack.c.h.b16 %v193
  %v1952 = vunpack.c.l.b16 %v194
  %v1953 = vunpack.c.h.b16 %v194
  %v1954 = vunpack.c.l.b16 %v195
  %v1955 = vunpack.c.l.b16 %v196
  %v1956 = vunpack.c.h.b16 %v196
  %v1957 = vunpack.c.l.b16 %v197
  %v1958 = vunpack.c.h.b16 %v197
  %v1959 = vunpack.c.l.b16 %v198
  %v1960 = vunpack.c.l.b16 %v199
  %v1961 = vunpack.c.h.b16 %v199
  %v1962 = vunpack.c.l.b16 %v200
  %v1963 = vunpack.c.h.b16 %v200
  %v1964 = vunpack.c.l.b16 %v201
  %v1965 = vunpack.c.l.b16 %v202
  %v1966 = vunpack.c.h.b16 %v202
  %v1967 = vunpack.c.l.b16 %v203
  %v1968 = vunpack.c.h.b16 %v203
  %v1969 = vunpack.c.l.b16 %v204
  %v1970 = vunpack.c.l.b16 %v205
  %v1971 = vunpack.c.h.b16 %v205
  %v1972 = vunpack.c.l.b16 %v206
  %v1973 = vunpack.c.h.b16 %v206
  %v1974 = vunpack.c.l.b16 %v207
  %v1975 = vunpack.c.l.b16 %v208
  %v1976 = vunpack.c.h.b16 %v208
  %v1977 = vunpack.c.l.b16 %v209
  %v1978 = vunpack.c.h.b16 %v209
  %v1979 = vunpack.c.l.b16 %v210
  %v1980 = vunpack.c.l.b16 %v211
  %v1981 = vunpack.c.h.b16 %v211
  %v1982 = vunpack.c.l.b16 %v212
  %v1983 = vunpack.c.h.b16 %v212
  %v1984 = vunpack.c.l.b16 %v213
  %v1985 = vunpack.c.l.b16 %v214
  %v1986 = vunpack.c.h.b16 %v214
  %v1987 = vunpack.c.l.b16 %v215
  %v1988 = vunpack.c.h.b16 %v215
  %v1989 = vunpack.c.l.b16 %v216
  %v1990 = vunpack.c.l.b16 %v217
  %v1991 = vunpack.c.h.b16 %v217
  %v1992 = vunpack.c.l.b16 %v218
  %v1993 = vunpack.c.h.b16 %v218
  %v1994 = vunpack.c.l.b16 %v219
  %v1995 = vunpack.c.l.b16 %v220
  %v1996 = vunpack.c.h.b16 %v220
  %v1997 = vunpack.c.l.b16 %v221
  %v1998 = vunpack.c.h.b16 %v221
  %v1999 = vunpack.c.l.b16 %v222
  %v2000 = vunpack.c.l.b16 %v223
  %v2001 = vunpack.c.h.b16 %v223
  %v2002 = vunpack.c.l.b16 %v224
  %v2003 = vunpack.c.h.b16 %v224
  %v2004 = vunpack.c.l.b16 %v225
  %v2005 = vunpack.c.l.b16 %v226
  %v2006 = vunpack.c.h.b16 %v226
  %v2007 = vunpack.c.l.b16 %v227
  %v2008 = vunpack.c.h.b16 %v227
  %v2009 = vunpack.c.l.b16 %v228
  %v2010 = vunpack.c.l.b16 %v229
  %v2011 = vunpack.c.h.b16 %v229
  %v2012 = vunpack.c.l.b16 %v230
  %v2013 = vunpack.c.h.b16 %v230
  %v2014 = vunpack.c.l.b16 %v231
  %v2015 = vunpack.c.l.b16 %v232
  %v2016 = vunpack.c.h.b16 %v232
  %v2017 = vunpack.c.l.b16 %v233
  %v2018 = vunpack.c.h.b16 %v233
  %v2019 = vunpack.c.l.b16 %v234
  %v2020 = vunpack.c.l.b16 %v235
  %v2021 = vunpack.c.h.b16 %v235
  %v2022 = vunpack.c.l.b16 %v236
  %v2023 = vunpack.c.h.b16 %v236
  %v2024 = vunpack.c.l.b16 %v237
  %v2025 = vunpack.c.l.b16 %v238
  %v2026 = vunpack.c.h.b16 %v238
  %v2027 = vunpack.c.l.b16 %v239
  %v2028 = vunpack.c.h.b16 %v239
  %v2029 = vunpack.c.l.b16 %v240
  %v2030 = vunpack.c.l.b16 %v241
  %v2031 = vunpack.c.h.b16 %v241
  %v2032 = vunpack.c.l.b16 %v242
  %v2033 = vunpack.c.h.b16 %v242
  %v2034 = vunpack.c.l.b16 %v243
  %v2035 = vunpack.c.l.b16 %v244
  %v2036 = vunpack.c.h.b16 %v244
  %v2037 = vunpack.c.l.b16 %v245
  %v2038 = vunpack.c.h.b16 %v245
  %v2039 = vunpack.c.l.b16 %v246
  %v2040 = vunpack.c.l.b16 %v247
  %v2041 = vunpack.c.h.b16 %v247
  %v2042 = vunpack.c.l.b16 %v248
  %v2043 = vunpack.c.h.b16 %v248
  %v2044 = vunpack.c.l.b16 %v249
  %v2045 = vunpack.c.l.b16 %v250
  %v2046 = vunpack.c.h.b16 %v250
  %v2047 = vunpack.c.l.b16 %v251
  %v2048 = vunpack.c.h.b16 %v251
  %v2049 = vunpack.c.l.b16 %v252
  %v2050 = vunpack.c.l.b16 %v253
  %v2051 = vunpack.c.h.b16 %v253
  %v2052 = vunpack.c.l.b16 %v254
  %v2053 = vunpack.c.h.b16 %v254
  %v2054 = vunpack.c.l.b16 %v255
  %v2055 = vunpack.c.l.b16 %v256
  %v2056 = vunpack.c.h.b16 %v256
  %v2057 = vunpack.c.l.b16 %v257
  %v2058 = vunpack.c.h.b16 %v257
  %v2059 = vunpack.c.l.b16 %v258
  %v2060 = vunpack.c.l.b16 %v259
  %v2061 = vunpack.c.h.b16 %v259
  %v2062 = vunpack.c.l.b16 %v260
  %v2063 = vunpack.c.h.b16 %v260
  %v2064 = vunpack.c.l.b16 %v261
  %v2065 = vunpack.c.l.b16 %v262
  %v2066 = vunpack.c.h.b16 %v262
  %v2067 = vunpack.c.l.b16 %v263
  %v2068 = vunpack.c.h.b16 %v263
  %v2069 = vunpack.c.l.b16 %v264
  %v2070 = vunpack.c.l.b16 %v265
  %v2071 = vunpack.c.h.b16 %v265
  %v2072 = vunpack.c.l.b16 %v266
  %v2073 = vunpack.c.h.b16 %v266
  %v2074 = vunpack.c.l.b16 %v267
  %v2075 = vunpack.c.l.b16 %v268
  %v2076 = vunpack.c.h.b16 %v268
  %v2077 = vunpack.c.l.b16 %v269
  %v2078 = vunpack.c.h.b16 %v269
  %v2079 = vunpack.c.l.b16 %v270
  %v2080 = vunpack.c.l.b16 %v271
  %v2081 = vunpack.c.h.b16 %v271
  %v2082 = vunpack.c.l.b16 %v272
  %v2083 = vunpack.c.h.b16 %v272
  %v2084 = vunpack.c.l.b16 %v273
  %v2085 = vunpack.c.l.b16 %v274
  %v2086 = vunpack.c.h.b16 %v274
  %v2087 = vunpack.c.l.b16 %v275
  %v2088 = vunpack.c.h.b16 %v275
  %v2089 = vunpack.c.l.b16 %v276
  %v2090 = vunpack.c.l.b16 %v277
  %v2091 = vunpack.c.h.b16 %v277
  %v2092 = vunpack.c.l.b16 %v278
  %v2093 = vunpack.c.h.b16 %v278
  %v2094 = vunpack.c.l.b16 %v279
  %v2095 = vunpack.c.l.b16 %v280
  %v2096 = vunpack.c.h.b16 %v280
  %v2097 = vunpack.c.l.b16 %v281
  %v2098 = vunpack.c.h.b16 %v281
  %v2099 = vunpack.c.l.b16 %v282
  %v2100 = vunpack.c.l.b16 %v283
  %v2101 = vunpack.c.h.b16 %v283
  %v2102 = vunpack.c.l.b16 %v284
  %v2103 = vunpack.c.h.b16 %v284
  %v2104 = vunpack.c.l.b16 %v285
  %v2105 = vunpack.c.l.b16 %v286
  %v2106 = vunpack.c.h.b16 %v286
  %v2107 = vunpack.c.l.b16 %v287
  %v2108 = vunpack.c.h.b16 %v287
  %v2109 = vunpack.c.l.b16 %v288
  %v2110 = vunpack.c.l.b16 %v289
  %v2111 = vunpack.c.h.b16 %v289
  %v2112 = vunpack.c.l.b16 %v290
  %v2113 = vunpack.c.h.b16 %v290
  %v2114 = vunpack.c.l.b16 %v291
  %v2115 = vunpack.c.l.b16 %v292
  %v2116 = vunpack.c.h.b16 %v292
  %v2117 = vunpack.c.l.b16 %v293
  %v2118 = vunpack.c.h.b16 %v293
  %v2119 = vunpack.c.l.b16 %v294
  %v2120 = vunpack.c.l.b16 %v295
  %v2121 = vunpack.c.h.b16 %v295
  %v2122 = vunpack.c.l.b16 %v296
  %v2123 = vunpack.c.h.b16 %v296
  %v2124 = vunpack.c.l.b16 %v297
  %v2125 = vunpack.c.l.b16 %v298
  %v2126 = vunpack.c.h.b16 %v298
  %v2127 = vunpack.c.l.b16 %v299
  %v2128 = vunpack.c.h.b16 %v299
  %v2129 = vunpack.c.l.b16 %v300
  %v2130 = vunpack.c.l.b16 %v301
  %v2131 = vunpack.c.h.b16 %v301
  %v2132 = vunpack.c.l.b16 %v302
  %v2133 = vunpack.c.h.b16 %v302
  %v2134 = vunpack.c.l.b16 %v303
  %v2135 = vunpack.c.l.b16 %v304
  %v2136 = vunpack.c.h.b16 %v304
  %v2137 = vunpack.c.l.b16 %v305
  %v2138 = vunpack.c.h.b16 %v305
  %v2139 = vunpack.c.l.b16 %v306
  %v2140 = vunpack.c.l.b16 %v307
  %v2141 = vunpack.c.h.b16 %v307
  %v2142 = vunpack.c.l.b16 %v308
  %v2143 = vunpack.c.h.b16 %v308
  %v2144 = vunpack.c.l.b16 %v309
  %v2145 = vunpack.c.l.b16 %v310
  %v2146 = vunpack.c.h.b16 %v310
  %v2147 = vunpack.c.l.b16 %v311
  %v2148 = vunpack.c.h.b16 %v311
  %v2149 = vunpack.c.l.b16 %v312
  %v2150 = vunpack.c.l.b16 %v313
  %v2151 = vunpack.c.h.b16 %v313
  %v2152 = vunpack.c.l.b16 %v314
  %v2153 = vunpack.c.h.b16 %v314
  %v2154 = vunpack.c.l.b16 %v315
  %v2155 = vunpack.c.l.b16 %v316
  %v2156 = vunpack.c.h.b16 %v316
  %v2157 = vunpack.c.l.b16 %v317
  %v2158 = vunpack.c.h.b16 %v317
  %v2159 = vunpack.c.l.b16 %v318
  %v2160 = vunpack.c.l.b16 %v319
  %v2161 = vunpack.c.h.b16 %v319
  %v2162 = vunpack.c.l.b16 %v320
  %v2163 = vunpack.c.h.b16 %v320
  %v2164 = vunpack.c.l.b16 %v321
  %v2165 = vunpack.c.l.b16 %v322
  %v2166 = vunpack.c.h.b16 %v322
  %v2167 = vunpack.c.l.b16 %v323
  %v2168 = vunpack.c.h.b16 %v323
  %v2169 = vunpack.c.l.b16 %v324
  %v2170 = vunpack.c.l.b16 %v325
  %v2171 = vunpack.c.h.b16 %v325
  %v2172 = vunpack.c.l.b16 %v326
  %v2173 = vunpack.c.h.b16 %v326
  %v2174 = vunpack.c.l.b16 %v327
  %v2175 = vunpack.c.l.b16 %v328
  %v2176 = vunpack.c.h.b16 %v328
  %v2177 = vunpack.c.l.b16 %v329
  %v2178 = vunpack.c.h.b16 %v329
  %v2179 = vunpack.c.l.b16 %v330
  %v2180 = vunpack.c.l.b16 %v331
  %v2181 = vunpack.c.h.b16 %v331
  %v2182 = vunpack.c.l.b16 %v332
  %v2183 = vunpack.c.h.b16 %v332
  %v2184 = vunpack.c.l.b16 %v333
  %v2185 = vunpack.c.l.b16 %v334
  %v2186 = vunpack.c.h.b16 %v334
  %v2187 = vunpack.c.l.b16 %v335
  %v2188 = vunpack.c.h.b16 %v335
  %v2189 = vunpack.c.l.b16 %v336
  %v2190 = vunpack.c.l.b16 %v337
  %v2191 = vunpack.c.h.b16 %v337
  %v2192 = vunpack.c.l.b16 %v338
  %v2193 = vunpack.c.h.b16 %v338
  %v2194 = vunpack.c.l.b16 %v339
  %v2195 = vunpack.c.l.b16 %v340
  %v2196 = vunpack.c.h.b16 %v340
  %v2197 = vunpack.c.l.b16 %v341
  %v2198 = vunpack.c.h.b16 %v341
  %v2199 = vunpack.c.l.b16 %v342
  %v2200 = vunpack.c.l.b16 %v343
  %v2201 = vunpack.c.h.b16 %v343
  %v2202 = vunpack.c.l.b16 %v344
  %v2203 = vunpack.c.h.b16 %v344
  %v2204 = vunpack.c.l.b16 %v345
  %v2205 = vunpack.c.l.b16 %v346
  %v2206 = vunpack.c.h.b16 %v346
  %v2207 = vunpack.c.l.b16 %v347
  %v2208 = vunpack.c.h.b16 %v347
  %v2209 = vunpack.c.l.b16 %v348
  %v2210 = vunpack.c.l.b16 %v349
  %v2211 = vunpack.c.h.b16 %v349
  %v2212 = vunpack.c.l.b16 %v350
  %v2213 = vunpack.c.h.b16 %v350
  %v2214 = vunpack.c.l.b16 %v351
  %v2215 = vunpack.c.l.b16 %v352
  %v2216 = vunpack.c.h.b16 %v352
  %v2217 = vunpack.c.l.b16 %v353
  %v2218 = vunpack.c.h.b16 %v353
  %v2219 = vunpack.c.l.b16 %v354
  %v2220 = vunpack.c.l.b16 %v355
  %v2221 = vunpack.c.h.b16 %v355
  %v2222 = vunpack.c.l.b16 %v356
  %v2223 = vunpack.c.h.b16 %v356
  %v2224 = vunpack.c.l.b16 %v357
  %v2225 = vunpack.c.l.b16 %v358
  %v2226 = vunpack.c.h.b16 %v358
  %v2227 = vunpack.c.l.b16 %v359
  %v2228 = vunpack.c.h.b16 %v359
  %v2229 = vunpack.c.l.b16 %v360
  %v2230 = vunpack.c.l.b16 %v361
  %v2231 = vunpack.c.h.b16 %v361
  %v2232 = vunpack.c.l.b16 %v362
  %v2233 = vunpack.c.h.b16 %v362
  %v2234 = vunpack.c.l.b16 %v363
  %v2235 = vunpack.c.l.b16 %v364
  %v2236 = vunpack.c.h.b16 %v364
  %v2237 = vunpack.c.l.b16 %v365
  %v2238 = vunpack.c.h.b16 %v365
  %v2239 = vunpack.c.l.b16 %v366
  %v2240 = vunpack.c.l.b16 %v367
  %v2241 = vunpack.c.h.b16 %v367
  %v2242 = vunpack.c.l.b16 %v368
  %v2243 = vunpack.c.h.b16 %v368
  %v2244 = vunpack.c.l.b16 %v369
  %v2245 = vunpack.c.l.b16 %v370
  %v2246 = vunpack.c.h.b16 %v370
  %v2247 = vunpack.c.l.b16 %v371
  %v2248 = vunpack.c.h.b16 %v371
  %v2249 = vunpack.c.l.b16 %v372
  %v2250 = vunpack.c.l.b16 %v373
  %v2251 = vunpack.c.h.b16 %v373
  %v2252 = vunpack.c.l.b16 %v374
  %v2253 = vunpack.c.h.b16 %v374
  %v2254 = vunpack.c.l.b16 %v375
  %v2255 = vunpack.c.l.b16 %v376
  %v2256 = vunpack.c.h.b16 %v376
  %v2257 = vunpack.c.l.b16 %v377
  %v2258 = vunpack.c.h.b16 %v377
  %v2259 = vunpack.c.l.b16 %v378
  %v2260 = vunpack.c.l.b16 %v379
  %v2261 = vunpack.c.h.b16 %v379
  %v2262 = vunpack.c.l.b16 %v380
  %v2263 = vunpack.c.h.b16 %v380
  %v2264 = vunpack.c.l.b16 %v381
  %v2265 = vunpack.c.l.b16 %v382
  %v2266 = vunpack.c.h.b16 %v382
  %v2267 = vunpack.c.l.b16 %v383
  %v2268 = vunpack.c.h.b16 %v383
  %v2269 = vunpack.c.l.b16 %v384
  %v2270 = vunpack.c.l.b16 %v385
  %v2271 = vunpack.c.h.b16 %v385
  %v2272 = vunpack.c.l.b16 %v386
  %v2273 = vunpack.c.h.b16 %v386
  %v2274 = vunpack.c.l.b16 %v387
  %v2275 = vunpack.c.l.b16 %v388
  %v2276 = vunpack.c.h.b16 %v388
  %v2277 = vunpack.c.l.b16 %v389
  %v2278 = vunpack.c.h.b16 %v389
  %v2279 = vunpack.c.l.b16 %v390
  %v2280 = vunpack.c.l.b16 %v391
  %v2281 = vunpack.c.h.b16 %v391
  %v2282 = vunpack.c.l.b16 %v392
  %v2283 = vunpack.c.h.b16 %v392
  %v2284 = vunpack.c.l.b16 %v393
  %v2285 = vunpack.c.l.b16 %v394
  %v2286 = vunpack.c.h.b16 %v394
  %v2287 = vunpack.c.l.b16 %v395
  %v2288 = vunpack.c.h.b16 %v395
  %v2289 = vunpack.c.l.b16 %v396
  %v2290 = vunpack.c.l.b16 %v397
  %v2291 = vunpack.c.h.b16 %v397
  %v2292 = vunpack.c.l.b16 %v398
  %v2293 = vunpack.c.h.b16 %v398
  %v2294 = vunpack.c.l.b16 %v399
  %v2295 = vunpack.c.l.b16 %v400
  %v2296 = vunpack.c.h.b16 %v400
  %v2297 = vunpack.c.l.b16 %v401
  %v2298 = vunpack.c.h.b16 %v401
  %v2299 = vunpack.c.l.b16 %v402
  %v2300 = vunpack.c.l.b16 %v403
  %v2301 = vunpack.c.h.b16 %v403
  %v2302 = vunpack.c.l.b16 %v404
  %v2303 = vunpack.c.h.b16 %v404
  %v2304 = vunpack.c.l.b16 %v405
  %v2305 = vunpack.c.l.b16 %v406
  %v2306 = vunpack.c.h.b16 %v406
  %v2307 = vunpack.c.l.b16 %v407
  %v2308 = vunpack.c.h.b16 %v407
  %v2309 = vunpack.c.l.b16 %v408
  %v2310 = vunpack.c.l.b16 %v409
  %v2311 = vunpack.c.h.b16 %v409
  %v2312 = vunpack.c.l.b16 %v410
  %v2313 = vunpack.c.h.b16 %v410
  %v2314 = vunpack.c.l.b16 %v411
  %v2315 = vunpack.c.l.b16 %v412
  %v2316 = vunpack.c.h.b16 %v412
  %v2317 = vunpack.c.l.b16 %v413
  %v2318 = vunpack.c.h.b16 %v413
  %v2319 = vunpack.c.l.b16 %v414
  %v2320 = vunpack.c.l.b16 %v415
  %v2321 = vunpack.c.h.b16 %v415
  %v2322 = vunpack.c.l.b16 %v416
  %v2323 = vunpack.c.h.b16 %v416
  %v2324 = vunpack.c.l.b16 %v417
  %v2325 = vunpack.c.l.b16 %v418
  %v2326 = vunpack.c.h.b16 %v418
  %v2327 = vunpack.c.l.b16 %v419
  %v2328 = vunpack.c.h.b16 %v419
  %v2329 = vunpack.c.l.b16 %v420
  %v2330 = vunpack.c.l.b16 %v421
  %v2331 = vunpack.c.h.b16 %v421
  %v2332 = vunpack.c.l.b16 %v422
  %v2333 = vunpack.c.h.b16 %v422
  %v2334 = vunpack.c.l.b16 %v423
  %v2335 = vunpack.c.l.b16 %v424
  %v2336 = vunpack.c.h.b16 %v424
  %v2337 = vunpack.c.l.b16 %v425
  %v2338 = vunpack.c.h.b16 %v425
  %v2339 = vunpack.c.l.b16 %v426
  %v2340 = vunpack.c.l.b16 %v427
  %v2341 = vunpack.c.h.b16 %v427
  %v2342 = vunpack.c.l.b16 %v428
  %v2343 = vunpack.c.h.b16 %v428
  %v2344 = vunpack.c.l.b16 %v429
  %v2345 = vunpack.c.l.b16 %v430
  %v2346 = vunpack.c.h.b16 %v430
  %v2347 = vunpack.c.l.b16 %v431
  %v2348 = vunpack.c.h.b16 %v431
  %v2349 = vunpack.c.l.b16 %v432
  %v2350 = vunpack.c.l.b16 %v433
  %v2351 = vunpack.c.h.b16 %v433
  %v2352 = vunpack.c.l.b16 %v434
  %v2353 = vunpack.c.h.b16 %v434
  %v2354 = vunpack.c.l.b16 %v435
  %v2355 = vunpack.c.l.b16 %v436
  %v2356 = vunpack.c.h.b16 %v436
  %v2357 = vunpack.c.l.b16 %v437
  %v2358 = vunpack.c.h.b16 %v437
  %v2359 = vunpack.c.l.b16 %v438
  %v2360 = vunpack.c.l.b16 %v439
  %v2361 = vunpack.c.h.b16 %v439
  %v2362 = vunpack.c.l.b16 %v440
  %v2363 = vunpack.c.h.b16 %v440
  %v2364 = vunpack.c.l.b16 %v441
  %v2365 = vunpack.c.l.b16 %v442
  %v2366 = vunpack.c.h.b16 %v442
  %v2367 = vunpack.c.l.b16 %v443
  %v2368 = vunpack.c.h.b16 %v443
  %v2369 = vunpack.c.l.b16 %v444
  %v2370 = vunpack.c.l.b16 %v445
  %v2371 = vunpack.c.h.b16 %v445
  %v2372 = vunpack.c.l.b16 %v446
  %v2373 = vunpack.c.h.b16 %v446
  %v2374 = vunpack.c.l.b16 %v447
  %v2375 = vunpack.c.l.b16 %v448
  %v2376 = vunpack.c.h.b16 %v448
  %v2377 = vunpack.c.l.b16 %v449
  %v2378 = vunpack.c.h.b16 %v449
  %v2379 = vunpack.c.l.b16 %v450
  %v2380 = vunpack.c.l.b16 %v451
  %v2381 = vunpack.c.h.b16 %v451
  %v2382 = vunpack.c.l.b16 %v452
  %v2383 = vunpack.c.h.b16 %v452
  %v2384 = vunpack.c.l.b16 %v453
  %v2385 = vunpack.c.l.b16 %v454
  %v2386 = vunpack.c.h.b16 %v454
  %v2387 = vunpack.c.l.b16 %v455
  %v2388 = vunpack.c.h.b16 %v455
  %v2389 = vunpack.c.l.b16 %v456
  %v2390 = vunpack.c.l.b16 %v457
  %v2391 = vunpack.c.h.b16 %v457
  %v2392 = vunpack.c.l.b16 %v458
  %v2393 = vunpack.c.h.b16 %v458
  %v2394 = vunpack.c.l.b16 %v459
  %v2395 = vunpack.c.l.b16 %v460
  %v2396 = vunpack.c.h.b16 %v460
  %v2397 = vunpack.c.l.b16 %v461
  %v2398 = vunpack.c.h.b16 %v461
  %v2399 = vunpack.c.l.b16 %v462
  %v2400 = vunpack.c.l.b16 %v463
  %v2401 = vunpack.c.h.b16 %v463
  %v2402 = vunpack.c.l.b16 %v464
  %v2403 = vunpack.c.h.b16 %v464
  %v2404 = vunpack.c.l.b16 %v465
  %v2405 = vunpack.c.l.b16 %v466
  %v2406 = vunpack.c.h.b16 %v466
  %v2407 = vunpack.c.l.b16 %v467
  %v2408 = vunpack.c.h.b16 %v467
  %v2409 = vunpack.c.l.b16 %v468
  %v2410 = vunpack.c.l.b16 %v469
  %v2411 = vunpack.c.h.b16 %v469
  %v2412 = vunpack.c.l.b16 %v470
  %v2413 = vunpack.c.h.b16 %v470
  %v2414 = vunpack.c.l.b16 %v471
  %v2415 = vunpack.c.l.b16 %v472
  %v2416 = vunpack.c.h.b16 %v472
  %v2417 = vunpack.c.l.b16 %v473
  %v2418 = vunpack.c.h.b16 %v473
  %v2419 = vunpack.c.l.b16 %v474
  %v2420 = vunpack.c.l.b16 %v475
  %v2421 = vunpack.c.h.b16 %v475
  %v2422 = vunpack.c.l.b16 %v476
  %v2423 = vunpack.c.h.b16 %v476
  %v2424 = vunpack.c.l.b16 %v477
  %v2425 = vunpack.c.l.b16 %v478
  %v2426 = vunpack.c.h.b16 %v478
  %v2427 = vunpack.c.l.b16 %v479
  %v2428 = vunpack.c.h.b16 %v479
  %v2429 = vunpack.c.l.b16 %v480
  %v2430 = vunpack.c.l.b16 %v481
  %v2431 = vunpack.c.h.b16 %v481
  %v2432 = vunpack.c.l.b16 %v482
  %v2433 = vunpack.c.h.b16 %v482
  %v2434 = vunpack.c.l.b16 %v483
  %v2435 = vunpack.c.l.b16 %v484
  %v2436 = vunpack.c.h.b16 %v484
  %v2437 = vunpack.c.l.b16 %v485
  %v2438 = vunpack.c.h.b16 %v485
  %v2439 = vunpack.c.l.b16 %v486
  %v2440 = vunpack.c.l.b16 %v487
  %v2441 = vunpack.c.h.b16 %v487
  %v2442 = vunpack.c.l.b16 %v488
  %v2443 = vunpack.c.h.b16 %v488
  %v2444 = vunpack.c.l.b16 %v489
  %v2445 = vunpack.c.l.b16 %v490
  %v2446 = vunpack.c.h.b16 %v490
  %v2447 = vunpack.c.l.b16 %v491
  %v2448 = vunpack.c.h.b16 %v491
  %v2449 = vunpack.c.l.b16 %v492
  %v2450 = vunpack.c.l.b16 %v493
  %v2451 = vunpack.c.h.b16 %v493
  %v2452 = vunpack.c.l.b16 %v494
  %v2453 = vunpack.c.h.b16 %v494
  %v2454 = vunpack.c.l.b16 %v495
  %v2455 = vunpack.c.l.b16 %v496
  %v2456 = vunpack.c.h.b16 %v496
  %v2457 = vunpack.c.l.b16 %v497
  %v2458 = vunpack.c.h.b16 %v497
  %v2459 = vunpack.c.l.b16 %v498
  %v2460 = vunpack.c.l.b16 %v499
  %v2461 = vunpack.c.h.b16 %v499
  %v2462 = vunpack.c.l.b16 %v500
  %v2463 = vunpack.c.h.b16 %v500
  %v2464 = vunpack.c.l.b16 %v501
  %v2465 = vunpack.c.l.b16 %v502
  %v2466 = vunpack.c.h.b16 %v502
  %v2467 = vunpack.c.l.b16 %v503
  %v2468 = vunpack.c.h.b16 %v503
  %v2469 = vunpack.c.l.b16 %v504
  %v2470 = vunpack.c.l.b16 %v505
  %v2471 = vunpack.c.h.b16 %v505
  %v2472 = vunpack.c.l.b16 %v506
  %v2473 = vunpack.c.h.b16 %v506
  %v2474 = vunpack.c.l.b16 %v507
  %v2475 = vunpack.c.l.b16 %v508
  %v2476 = vunpack.c.h.b16 %v508
  %v2477 = vunpack.c.l.b16 %v509
  %v2478 = vunpack.c.h.b16 %v509
  %v2479 = vunpack.c.l.b16 %v510
  %v2480 = vunpack.c.l.b16 %v511
  %v2481 = vunpack.c.h.b16 %v511
  %v2482 = vunpack.c.l.b16 %v512
  %v2483 = vunpack.c.h.b16 %v512
  %v2484 = vunpack.c.l.b16 %v513
  %v2485 = vunpack.c.l.b16 %v514
  %v2486 = vunpack.c.h.b16 %v514
  %v2487 = vunpack.c.l.b16 %v515
  %v2488 = vunpack.c.h.b16 %v515
  %v2489 = vunpack.c.l.b16 %v516
  %v2490 = vunpack.c.l.b16 %v517
  %v2491 = vunpack.c.h.b16 %v517
  %v2492 = vunpack.c.l.b16 %v518
  %v2493 = vunpack.c.h.b16 %v518
  %v2494 = vunpack.c.l.b16 %v519
  %v2495 = vunpack.c.l.b16 %v520
  %v2496 = vunpack.c.h.b16 %v520
  %v2497 = vunpack.c.l.b16 %v521
  %v2498 = vunpack.c.h.b16 %v521
  %v2499 = vunpack.c.l.b16 %v522
  %v2500 = vunpack.c.l.b16 %v523
  %v2501 = vunpack.c.h.b16 %v523
  %v2502 = vunpack.c.l.b16 %v524
  %v2503 = vunpack.c.h.b16 %v524
  %v2504 = vunpack.c.l.b16 %v525
  %v2505 = vunpack.c.l.b16 %v526
  %v2506 = vunpack.c.h.b16 %v526
  %v2507 = vunpack.c.l.b16 %v527
  %v2508 = vunpack.c.h.b16 %v527
  %v2509 = vunpack.c.l.b16 %v528
  %v2510 = vunpack.c.l.b16 %v529
  %v2511 = vunpack.c.h.b16 %v529
  %v2512 = vunpack.c.l.b16 %v530
  %v2513 = vunpack.c.h.b16 %v530
  %v2514 = vunpack.c.l.b16 %v531
  %v2515 = vunpack.c.l.b16 %v532
  %v2516 = vunpack.c.h.b16 %v532
  %v2517 = vunpack.c.l.b16 %v533
  %v2518 = vunpack.c.h.b16 %v533
  %v2519 = vunpack.c.l.b16 %v534
  %v2520 = vunpack.c.l.b16 %v535
  %v2521 = vunpack.c.h.b16 %v535
  %v2522 = vunpack.c.l.b16 %v536
  %v2523 = vunpack.c.h.b16 %v536
  %v2524 = vunpack.c.l.b16 %v537
  %v2525 = vunpack.c.l.b16 %v538
  %v2526 = vunpack.c.h.b16 %v538
  %v2527 = vunpack.c.l.b16 %v539
  %v2528 = vunpack.c.h.b16 %v539
  %v2529 = vunpack.c.l.b16 %v540
  %v2530 = vunpack.c.l.b16 %v541
  %v2531 = vunpack.c.h.b16 %v541
  %v2532 = vunpack.c.l.b16 %v542
  %v2533 = vunpack.c.h.b16 %v542
  %v2534 = vunpack.c.l.b16 %v543
  %v2535 = vunpack.c.l.b16 %v544
  %v2536 = vunpack.c.h.b16 %v544
  %v2537 = vunpack.c.l.b16 %v545
  %v2538 = vunpack.c.h.b16 %v545
  %v2539 = vunpack.c.l.b16 %v546
  %v2540 = vunpack.c.l.b16 %v547
  %v2541 = vunpack.c.h.b16 %v547
  %v2542 = vunpack.c.l.b16 %v548
  %v2543 = vunpack.c.h.b16 %v548
  %v2544 = vunpack.c.l.b16 %v549
  %v2545 = vunpack.c.l.b16 %v550
  %v2546 = vunpack.c.h.b16 %v550
  %v2547 = vunpack.c.l.b16 %v551
  %v2548 = vunpack.c.h.b16 %v551
  %v2549 = vunpack.c.l.b16 %v552
  %v2550 = vunpack.c.l.b16 %v553
  %v2551 = vunpack.c.h.b16 %v553
  %v2552 = vunpack.c.l.b16 %v554
  %v2553 = vunpack.c.h.b16 %v554
  %v2554 = vunpack.c.l.b16 %v555
  %v2555 = vunpack.c.l.b16 %v556
  %v2556 = vunpack.c.h.b16 %v556
  %v2557 = vunpack.c.l.b16 %v557
  %v2558 = vunpack.c.h.b16 %v557
  %v2559 = vunpack.c.l.b16 %v558
  %v2560 = vunpack.c.l.b16 %v559
  %v2561 = vunpack.c.h.b16 %v559
  %v2562 = vunpack.c.l.b16 %v560
  %v2563 = vunpack.c.h.b16 %v560
  %v2564 = vunpack.c.l.b16 %v561
  %v2565 = vunpack.c.l.b16 %v562
  %v2566 = vunpack.c.h.b16 %v562
  %v2567 = vunpack.c.l.b16 %v563
  %v2568 = vunpack.c.h.b16 %v563
  %v2569 = vunpack.c.l.b16 %v564
  %v2570 = vunpack.c.l.b16 %v565
  %v2571 = vunpack.c.h.b16 %v565
  %v2572 = vunpack.c.l.b16 %v566
  %v2573 = vunpack.c.h.b16 %v566
  %v2574 = vunpack.c.l.b16 %v567
  %v2575 = vunpack.c.l.b16 %v568
  %v2576 = vunpack.c.h.b16 %v568
  %v2577 = vunpack.c.l.b16 %v569
  %v2578 = vunpack.c.h.b16 %v569
  %v2579 = vunpack.c.l.b16 %v570
  %v2580 = vunpack.c.l.b16 %v571
  %v2581 = vunpack.c.h.b16 %v571
  %v2582 = vunpack.c.l.b16 %v572
  %v2583 = vunpack.c.h.b16 %v572
  %v2584 = vunpack.c.l.b16 %v573
  %v2585 = vunpack.c.l.b16 %v574
  %v2586 = vunpack.c.h.b16 %v574
  %v2587 = vunpack.c.l.b16 %v575
  %v2588 = vunpack.c.h.b16 %v575
  %v2589 = vunpack.c.l.b16 %v576
  %v2590 = vunpack.c.l.b16 %v577
  %v2591 = vunpack.c.h.b16 %v577
  %v2592 = vunpack.c.l.b16 %v578
  %v2593 = vunpack.c.h.b16 %v578
  %v2594 = vunpack.c.l.b16 %v579
  %v2595 = vunpack.c.l.b16 %v580
  %v2596 = vunpack.c.h.b16 %v580
  %v2597 = vunpack.c.l.b16 %v581
  %v2598 = vunpack.c.h.b16 %v581
  %v2599 = vunpack.c.l.b16 %v582
  %v2600 = vunpack.c.l.b16 %v583
  %v2601 = vunpack.c.h.b16 %v583
  %v2602 = vunpack.c.l.b16 %v584
  %v2603 = vunpack.c.h.b16 %v584
  %v2604 = vunpack.c.l.b16 %v585
  %v2605 = vunpack.c.l.b16 %v586
  %v2606 = vunpack.c.h.b16 %v586
  %v2607 = vunpack.c.l.b16 %v587
  %v2608 = vunpack.c.h.b16 %v587
  %v2609 = vunpack.c.l.b16 %v588
  %v2610 = vunpack.c.l.b16 %v589
  %v2611 = vunpack.c.h.b16 %v589
  %v2612 = vunpack.c.l.b16 %v590
  %v2613 = vunpack.c.h.b16 %v590
  %v2614 = vunpack.c.l.b16 %v591
  %v2615 = vunpack.c.l.b16 %v592
  %v2616 = vunpack.c.h.b16 %v592
  %v2617 = vunpack.c.l.b16 %v593
  %v2618 = vunpack.c.h.b16 %v593
  %v2619 = vunpack.c.l.b16 %v594
  %v2620 = vunpack.c.l.b16 %v595
  %v2621 = vunpack.c.h.b16 %v595
  %v2622 = vunpack.c.l.b16 %v596
  %v2623 = vunpack.c.h.b16 %v596
  %v2624 = vunpack.c.l.b16 %v597
  %v2625 = vunpack.c.l.b16 %v598
  %v2626 = vunpack.c.h.b16 %v598
  %v2627 = vunpack.c.l.b16 %v599
  %v2628 = vunpack.c.h.b16 %v599
  %v2629 = vunpack.c.l.b16 %v600
  %v2630 = vunpack.c.l.b16 %v601
  %v2631 = vunpack.c.h.b16 %v601
  %v2632 = vunpack.c.l.b16 %v602
  %v2633 = vunpack.c.h.b16 %v602
  %v2634 = vunpack.c.l.b16 %v603
  %v2635 = vunpack.c.l.b16 %v604
  %v2636 = vunpack.c.h.b16 %v604
  %v2637 = vunpack.c.l.b16 %v605
  %v2638 = vunpack.c.h.b16 %v605
  %v2639 = vunpack.c.l.b16 %v606
  %v2640 = vunpack.c.l.b16 %v607
  %v2641 = vunpack.c.h.b16 %v607
  %v2642 = vunpack.c.l.b16 %v608
  %v2643 = vunpack.c.h.b16 %v608
  %v2644 = vunpack.c.l.b16 %v609
  %v2645 = vunpack.c.l.b16 %v610
  %v2646 = vunpack.c.h.b16 %v610
  %v2647 = vunpack.c.l.b16 %v611
  %v2648 = vunpack.c.h.b16 %v611
  %v2649 = vunpack.c.l.b16 %v612
  %v2650 = vunpack.c.l.b16 %v613
  %v2651 = vunpack.c.h.b16 %v613
  %v2652 = vunpack.c.l.b16 %v614
  %v2653 = vunpack.c.h.b16 %v614
  %v2654 = vunpack.c.l.b16 %v615
  %v2655 = vunpack.c.l.b16 %v616
  %v2656 = vunpack.c.h.b16 %v616
  %v2657 = vunpack.c.l.b16 %v617
  %v2658 = vunpack.c.h.b16 %v617
  %v2659 = vunpack.c.l.b16 %v618
  %v2660 = vunpack.c.l.b16 %v619
  %v2661 = vunpack.c.h.b16 %v619
  %v2662 = vunpack.c.l.b16 %v620
  %v2663 = vunpack.c.h.b16 %v620
  %v2664 = vunpack.c.l.b16 %v621
  %v2665 = vunpack.c.l.b16 %v622
  %v2666 = vunpack.c.h.b16 %v622
  %v2667 = vunpack.c.l.b16 %v623
  %v2668 = vunpack.c.h.b16 %v623
  %v2669 = vunpack.c.l.b16 %v624
  %v2670 = vunpack.c.l.b16 %v625
  %v2671 = vunpack.c.h.b16 %v625
  %v2672 = vunpack.c.l.b16 %v626
  %v2673 = vunpack.c.h.b16 %v626
  %v2674 = vunpack.c.l.b16 %v627
  %v2675 = vunpack.c.l.b16 %v628
  %v2676 = vunpack.c.h.b16 %v628
  %v2677 = vunpack.c.l.b16 %v629
  %v2678 = vunpack.c.h.b16 %v629
  %v2679 = vunpack.c.l.b16 %v630
  %v2680 = vunpack.c.l.b16 %v631
  %v2681 = vunpack.c.h.b16 %v631
  %v2682 = vunpack.c.l.b16 %v632
  %v2683 = vunpack.c.h.b16 %v632
  %v2684 = vunpack.c.l.b16 %v633
  %v2685 = vunpack.c.l.b16 %v634
  %v2686 = vunpack.c.h.b16 %v634
  %v2687 = vunpack.c.l.b16 %v635
  %v2688 = vunpack.c.h.b16 %v635
  %v2689 = vunpack.c.l.b16 %v636
  %v2690 = vunpack.c.l.b16 %v637
  %v2691 = vunpack.c.h.b16 %v637
  %v2692 = vunpack.c.l.b16 %v638
  %v2693 = vunpack.c.h.b16 %v638
  %v2694 = vunpack.c.l.b16 %v639
  %v2695 = vunpack.c.l.b16 %v640
  %v2696 = vunpack.c.h.b16 %v640
  %v2697 = vunpack.c.l.b16 %v641
  %v2698 = vunpack.c.h.b16 %v641
  %v2699 = vunpack.c.l.b16 %v642
  %v2700 = vunpack.c.l.b16 %v643
  %v2701 = vunpack.c.h.b16 %v643
  %v2702 = vunpack.c.l.b16 %v644
  %v2703 = vunpack.c.h.b16 %v644
  %v2704 = vunpack.c.l.b16 %v645
  %v2705 = vunpack.c.l.b16 %v646
  %v2706 = vunpack.c.h.b16 %v646
  %v2707 = vunpack.c.l.b16 %v647
  %v2708 = vunpack.c.h.b16 %v647
  %v2709 = vunpack.c.l.b16 %v648
  %v2710 = vunpack.c.l.b16 %v649
  %v2711 = vunpack.c.h.b16 %v649
  %v2712 = vunpack.c.l.b16 %v650
  %v2713 = vunpack.c.h.b16 %v650
  %v2714 = vunpack.c.l.b16 %v651
  %v2715 = vunpack.c.l.b16 %v652
  %v2716 = vunpack.c.h.b16 %v652
  %v2717 = vunpack.c.l.b16 %v653
  %v2718 = vunpack.c.h.b16 %v653
  %v2719 = vunpack.c.l.b16 %v654
  %v2720 = vunpack.c.l.b16 %v655
  %v2721 = vunpack.c.h.b16 %v655
  %v2722 = vunpack.c.l.b16 %v656
  %v2723 = vunpack.c.h.b16 %v656
  %v2724 = vunpack.c.l.b16 %v657
  %v2725 = vunpack.c.l.b16 %v658
  %v2726 = vunpack.c.h.b16 %v658
  %v2727 = vunpack.c.l.b16 %v659
  %v2728 = vunpack.c.h.b16 %v659
  %v2729 = vunpack.c.l.b16 %v660
  %v2730 = vunpack.c.l.b16 %v661
  %v2731 = vunpack.c.h.b16 %v661
  %v2732 = vunpack.c.l.b16 %v662
  %v2733 = vunpack.c.h.b16 %v662
  %v2734 = vunpack.c.l.b16 %v663
  %v2735 = vunpack.c.l.b16 %v664
  %v2736 = vunpack.c.h.b16 %v664
  %v2737 = vunpack.c.l.b16 %v665
  %v2738 = vunpack.c.h.b16 %v665
  %v2739 = vunpack.c.l.b16 %v666
  %v2740 = vunpack.c.l.b16 %v667
  %v2741 = vunpack.c.h.b16 %v667
  %v2742 = vunpack.c.l.b16 %v668
  %v2743 = vunpack.c.h.b16 %v668
  %v2744 = vunpack.c.l.b16 %v669
  %v2745 = vunpack.c.l.b16 %v670
  %v2746 = vunpack.c.h.b16 %v670
  %v2747 = vunpack.c.l.b16 %v671
  %v2748 = vunpack.c.h.b16 %v671
  %v2749 = vunpack.c.l.b16 %v672
  %v2750 = vunpack.c.l.b16 %v673
  %v2751 = vunpack.c.h.b16 %v673
  %v2752 = vunpack.c.l.b16 %v674
  %v2753 = vunpack.c.h.b16 %v674
  %v2754 = vunpack.c.l.b16 %v675
  %v2755 = vunpack.c.l.b16 %v676
  %v2756 = vunpack.c.h.b16 %v676
  %v2757 = vunpack.c.l.b16 %v677
  %v2758 = vunpack.c.h.b16 %v677
  %v2759 = vunpack.c.l.b16 %v678
  %v2760 = vunpack.c.l.b16 %v679
  %v2761 = vunpack.c.h.b16 %v679
  %v2762 = vunpack.c.l.b16 %v680
  %v2763 = vunpack.c.h.b16 %v680
  %v2764 = vunpack.c.l.b16 %v681
  %v2765 = vunpack.c.l.b16 %v682
  %v2766 = vunpack.c.h.b16 %v682
  %v2767 = vunpack.c.l.b16 %v683
  %v2768 = vunpack.c.h.b16 %v683
  %v2769 = vunpack.c.l.b16 %v684
  %v2770 = vunpack.c.l.b16 %v685
  %v2771 = vunpack.c.h.b16 %v685
  %v2772 = vunpack.c.l.b16 %v686
  %v2773 = vunpack.c.h.b16 %v686
  %v2774 = vunpack.c.l.b16 %v687
  %v2775 = vunpack.c.l.b16 %v688
  %v2776 = vunpack.c.h.b16 %v688
  %v2777 = vunpack.c.l.b16 %v689
  %v2778 = vunpack.c.h.b16 %v689
  %v2779 = vunpack.c.l.b16 %v690
  %v2780 = vunpack.c.l.b16 %v691
  %v2781 = vunpack.c.h.b16 %v691
  %v2782 = vunpack.c.l.b16 %v692
  %v2783 = vunpack.c.h.b16 %v692
  %v2784 = vunpack.c.l.b16 %v693
  %v2785 = vunpack.c.l.b16 %v694
  %v2786 = vunpack.c.h.b16 %v694
  %v2787 = vunpack.c.l.b16 %v695
  %v2788 = vunpack.c.h.b16 %v695
  %v2789 = vunpack.c.l.b16 %v696
  %v2790 = vunpack.c.l.b16 %v697
  %v2791 = vunpack.c.h.b16 %v697
  %v2792 = vunpack.c.l.b16 %v698
  %v2793 = vunpack.c.h.b16 %v698
  %v2794 = vunpack.c.l.b16 %v699
  %v2795 = vunpack.c.l.b16 %v700
  %v2796 = vunpack.c.h.b16 %v700
  %v2797 = vunpack.c.l.b16 %v701
  %v2798 = vunpack.c.h.b16 %v701
  %v2799 = vunpack.c.l.b16 %v702
  %v2800 = vunpack.c.l.b16 %v703
  %v2801 = vunpack.c.h.b16 %v703
  %v2802 = vunpack.c.l.b16 %v704
  %v2803 = vunpack.c.h.b16 %v704
  %v2804 = vunpack.c.l.b16 %v705
  %v2805 = vunpack.c.l.b16 %v706
  %v2806 = vunpack.c.h.b16 %v706
  %v2807 = vunpack.c.l.b16 %v707
  %v2808 = vunpack.c.h.b16 %v707
  %v2809 = vunpack.c.l.b16 %v708
  %v2810 = vunpack.c.l.b16 %v709
  %v2811 = vunpack.c.h.b16 %v709
  %v2812 = vunpack.c.l.b16 %v710
  %v2813 = vunpack.c.h.b16 %v710
  %v2814 = vunpack.c.l.b16 %v711
  %v2815 = vunpack.c.l.b16 %v712
  %v2816 = vunpack.c.h.b16 %v712
  %v2817 = vunpack.c.l.b16 %v713
  %v2818 = vunpack.c.h.b16 %v713
  %v2819 = vunpack.c.l.b16 %v714
  %v2820 = vunpack.c.l.b16 %v715
  %v2821 = vunpack.c.h.b16 %v715
  %v2822 = vunpack.c.l.b16 %v716
  %v2823 = vunpack.c.h.b16 %v716
  %v2824 = vunpack.c.l.b16 %v717
  %v2825 = vunpack.c.l.b16 %v718
  %v2826 = vunpack.c.h.b16 %v718
  %v2827 = vunpack.c.l.b16 %v719
  %v2828 = vunpack.c.h.b16 %v719
  %v2829 = vunpack.c.l.b16 %v720
  %v2830 = vunpack.c.l.b16 %v721
  %v2831 = vunpack.c.h.b16 %v721
  %v2832 = vunpack.c.l.b16 %v722
  %v2833 = vunpack.c.h.b16 %v722
  %v2834 = vunpack.c.l.b16 %v723
  %v2835 = vunpack.c.l.b16 %v724
  %v2836 = vunpack.c.h.b16 %v724
  %v2837 = vunpack.c.l.b16 %v725
  %v2838 = vunpack.c.h.b16 %v725
  %v2839 = vunpack.c.l.b16 %v726
  %v2840 = vunpack.c.l.b16 %v727
  %v2841 = vunpack.c.h.b16 %v727
  %v2842 = vunpack.c.l.b16 %v728
  %v2843 = vunpack.c.h.b16 %v728
  %v2844 = vunpack.c.l.b16 %v729
  %v2845 = vunpack.c.l.b16 %v730
  %v2846 = vunpack.c.h.b16 %v730
  %v2847 = vunpack.c.l.b16 %v731
  %v2848 = vunpack.c.h.b16 %v731
  %v2849 = vunpack.c.l.b16 %v732
  %v2850 = vunpack.c.l.b16 %v733
  %v2851 = vunpack.c.h.b16 %v733
  %v2852 = vunpack.c.l.b16 %v734
  %v2853 = vunpack.c.h.b16 %v734
  %v2854 = vunpack.c.l.b16 %v735
  %v2855 = vunpack.c.l.b16 %v736
  %v2856 = vunpack.c.h.b16 %v736
  %v2857 = vunpack.c.l.b16 %v737
  %v2858 = vunpack.c.h.b16 %v737
  %v2859 = vunpack.c.l.b16 %v738
  %v2860 = vunpack.c.l.b16 %v739
  %v2861 = vunpack.c.h.b16 %v739
  %v2862 = vunpack.c.l.b16 %v740
  %v2863 = vunpack.c.h.b16 %v740
  %v2864 = vunpack.c.l.b16 %v741
  %v2865 = vunpack.c.l.b16 %v742
  %v2866 = vunpack.c.h.b16 %v742
  %v2867 = vunpack.c.l.b16 %v743
  %v2868 = vunpack.c.h.b16 %v743
  %v2869 = vunpack.c.l.b16 %v744
  %v2870 = vunpack.c.l.b16 %v745
  %v2871 = vunpack.c.h.b16 %v745
  %v2872 = vunpack.c.l.b16 %v746
  %v2873 = vunpack.c.h.b16 %v746
  %v2874 = vunpack.c.l.b16 %v747
  %v2875 = vunpack.c.l.b16 %v748
  %v2876 = vunpack.c.h.b16 %v748
  %v2877 = vunpack.c.l.b16 %v749
  %v2878 = vunpack.c.h.b16 %v749
  %v2879 = vunpack.c.l.b16 %v750
  %v2880 = vunpack.c.l.b16 %v751
  %v2881 = vunpack.c.h.b16 %v751
  %v2882 = vunpack.c.l.b16 %v752
  %v2883 = vunpack.c.h.b16 %v752
  %v2884 = vunpack.c.l.b16 %v753
  %v2885 = vunpack.c.l.b16 %v754
  %v2886 = vunpack.c.h.b16 %v754
  %v2887 = vunpack.c.l.b16 %v755
  %v2888 = vunpack.c.h.b16 %v755
  %v2889 = vunpack.c.l.b16 %v756
  %v2890 = vunpack.c.l.b16 %v757
  %v2891 = vunpack.c.h.b16 %v757
  %v2892 = vunpack.c.l.b16 %v758
  %v2893 = vunpack.c.h.b16 %v758
  %v2894 = vunpack.c.l.b16 %v759
  %v2895 = vunpack.c.l.b16 %v760
  %v2896 = vunpack.c.h.b16 %v760
  %v2897 = vunpack.c.l.b16 %v761
  %v2898 = vunpack.c.h.b16 %v761
  %v2899 = vunpack.c.l.b16 %v762
  %v2900 = vunpack.c.l.b16 %v763
  %v2901 = vunpack.c.h.b16 %v763
  %v2902 = vunpack.c.l.b16 %v764
  %v2903 = vunpack.c.h.b16 %v764
  %v2904 = vunpack.c.l.b16 %v765
  %v2905 = vunpack.c.l.b16 %v766
  %v2906 = vunpack.c.h.b16 %v766
  %v2907 = vunpack.c.l.b16 %v767
  %v2908 = vunpack.c.h.b16 %v767
  %v2909 = vunpack.c.l.b16 %v768
  %v2910 = vunpack.c.l.b16 %v769
  %v2911 = vunpack.c.h.b16 %v769
  %v2912 = vunpack.c.l.b16 %v770
  %v2913 = vunpack.c.h.b16 %v770
  %v2914 = vunpack.c.l.b16 %v771
  %v2915 = vunpack.c.l.b16 %v772
  %v2916 = vunpack.c.h.b16 %v772
  %v2917 = vunpack.c.l.b16 %v773
  %v2918 = vunpack.c.h.b16 %v773
  %v2919 = vunpack.c.l.b16 %v774
  %v2920 = vunpack.c.l.b16 %v775
  %v2921 = vunpack.c.h.b16 %v775
  %v2922 = vunpack.c.l.b16 %v776
  %v2923 = vunpack.c.h.b16 %v776
  %v2924 = vunpack.c.l.b16 %v777
  %v2925 = vunpack.c.l.b16 %v778
  %v2926 = vunpack.c.h.b16 %v778
  %v2927 = vunpack.c.l.b16 %v779
  %v2928 = vunpack.c.h.b16 %v779
  %v2929 = vunpack.c.l.b16 %v780
  %v2930 = vunpack.c.l.b16 %v781
  %v2931 = vunpack.c.h.b16 %v781
  %v2932 = vunpack.c.l.b16 %v782
  %v2933 = vunpack.c.h.b16 %v782
  %v2934 = vunpack.c.l.b16 %v783
  %v2935 = vunpack.c.l.b16 %v784
  %v2936 = vunpack.c.h.b16 %v784
  %v2937 = vunpack.c.l.b16 %v785
  %v2938 = vunpack.c.h.b16 %v785
  %v2939 = vunpack.c.l.b16 %v786
  %v2940 = vunpack.c.l.b16 %v787
  %v2941 = vunpack.c.h.b16 %v787
  %v2942 = vunpack.c.l.b16 %v788
  %v2943 = vunpack.c.h.b16 %v788
  %v2944 = vunpack.c.l.b16 %v789
  %v2945 = vunpack.c.l.b16 %v790
  %v2946 = vunpack.c.h.b16 %v790
  %v2947 = vunpack.c.l.b16 %v791
  %v2948 = vunpack.c.h.b16 %v791
  %v2949 = vunpack.c.l.b16 %v792
  %v2950 = vunpack.c.l.b16 %v793
  %v2951 = vunpack.c.h.b16 %v793
  %v2952 = vunpack.c.l.b16 %v794
  %v2953 = vunpack.c.h.b16 %v794
  %v2954 = vunpack.c.l.b16 %v795
  %v2955 = vunpack.c.l.b16 %v796
  %v2956 = vunpack.c.h.b16 %v796
  %v2957 = vunpack.c.l.b16 %v797
  %v2958 = vunpack.c.h.b16 %v797
  %v2959 = vunpack.c.l.b16 %v798
  %v2960 = vunpack.c.l.b16 %v799
  %v2961 = vunpack.c.h.b16 %v799
  %v2962 = vunpack.c.l.b16 %v800
  %v2963 = vunpack.c.h.b16 %v800
  %v2964 = vunpack.c.l.b16 %v801
  %v2965 = vunpack.c.l.b16 %v802
  %v2966 = vunpack.c.h.b16 %v802
  %v2967 = vunpack.c.l.b16 %v803
  %v2968 = vunpack.c.h.b16 %v803
  %v2969 = vunpack.c.l.b16 %v804
  %v2970 = vunpack.c.l.b16 %v805
  %v2971 = vunpack.c.h.b16 %v805
  %v2972 = vunpack.c.l.b16 %v806
  %v2973 = vunpack.c.h.b16 %v806
  %v2974 = vunpack.c.l.b16 %v807
  %v2975 = vunpack.c.l.b16 %v808
  %v2976 = vunpack.c.h.b16 %v808
  %v2977 = vunpack.c.l.b16 %v809
  %v2978 = vunpack.c.h.b16 %v809
  %v2979 = vunpack.c.l.b16 %v810
  %v2980 = vunpack.c.l.b16 %v811
  %v2981 = vunpack.c.h.b16 %v811
  %v2982 = vunpack.c.l.b16 %v812
  %v2983 = vunpack.c.h.b16 %v812
  %v2984 = vunpack.c.l.b16 %v813
  %v2985 = vunpack.c.l.b16 %v814
  %v2986 = vunpack.c.h.b16 %v814
  %v2987 = vunpack.c.l.b16 %v815
  %v2988 = vunpack.c.h.b16 %v815
  %v2989 = vunpack.c.l.b16 %v816
  %v2990 = vunpack.c.l.b16 %v817
  %v2991 = vunpack.c.h.b16 %v817
  %v2992 = vunpack.c.l.b16 %v818
  %v2993 = vunpack.c.h.b16 %v818
  %v2994 = vunpack.c.l.b16 %v819
  %v2995 = vunpack.c.l.b16 %v820
  %v2996 = vunpack.c.h.b16 %v820
  %v2997 = vunpack.c.l.b16 %v821
  %v2998 = vunpack.c.h.b16 %v821
  %v2999 = vunpack.c.l.b16 %v822
  %v3000 = vunpack.c.l.b16 %v823
  %v3001 = vunpack.c.h.b16 %v823
  %v3002 = vunpack.c.l.b16 %v824
  %v3003 = vunpack.c.h.b16 %v824
  %v3004 = vunpack.c.l.b16 %v825
  %v3005 = vunpack.c.l.b16 %v826
  %v3006 = vunpack.c.h.b16 %v826
  %v3007 = vunpack.c.l.b16 %v827
  %v3008 = vunpack.c.h.b16 %v827
  %v3009 = vunpack.c.l.b16 %v828
  %v3010 = vunpack.c.l.b16 %v829
  %v3011 = vunpack.c.h.b16 %v829
  %v3012 = vunpack.c.l.b16 %v830
  %v3013 = vunpack.c.h.b16 %v830
  %v3014 = vunpack.c.l.b16 %v831
  %v3015 = vunpack.c.l.b16 %v832
  %v3016 = vunpack.c.h.b16 %v832
  %v3017 = vunpack.c.l.b16 %v833
  %v3018 = vunpack.c.h.b16 %v833
  %v3019 = vunpack.c.l.b16 %v834
  %v3020 = vunpack.c.l.b16 %v835
  %v3021 = vunpack.c.h.b16 %v835
  %v3022 = vunpack.c.l.b16 %v836
  %v3023 = vunpack.c.h.b16 %v836
  %v3024 = vunpack.c.l.b16 %v837
  %v3025 = vunpack.c.l.b16 %v838
  %v3026 = vunpack.c.h.b16 %v838
  %v3027 = vunpack.c.l.b16 %v839
  %v3028 = vunpack.c.h.b16 %v839
  %v3029 = vunpack.c.l.b16 %v840
  %v3030 = vunpack.c.l.b16 %v841
  %v3031 = vunpack.c.h.b16 %v841
  %v3032 = vunpack.c.l.b16 %v842
  %v3033 = vunpack.c.h.b16 %v842
  %v3034 = vunpack.c.l.b16 %v843
  %v3035 = vpack.c.b16 %v1760, %v1755
  %v3036 = vpack.c.b16 %v1761, %v1756
  %v3037 = vpack.c.b16 %v1762, %v1757
  %v3038 = vpack.c.b16 %v1763, %v1758
  %v3039 = vpack.c.b16 %v1764, %v1759
  %v3040 = vpack.c.b16 %v1770, %v1765
  %v3041 = vpack.c.b16 %v1771, %v1766
  %v3042 = vpack.c.b16 %v1772, %v1767
  %v3043 = vpack.c.b16 %v1773, %v1768
  %v3044 = vpack.c.b16 %v1774, %v1769
  %v3045 = vpack.c.b16 %v1780, %v1775
  %v3046 = vpack.c.b16 %v1781, %v1776
  %v3047 = vpack.c.b16 %v1782, %v1777
  %v3048 = vpack.c.b16 %v1783, %v1778
  %v3049 = vpack.c.b16 %v1784, %v1779
  %v3050 = vpack.c.b16 %v1790, %v1785
  %v3051 = vpack.c.b16 %v1791, %v1786
  %v3052 = vpack.c.b16 %v1792, %v1787
  %v3053 = vpack.c.b16 %v1793, %v1788
  %v3054 = vpack.c.b16 %v1794, %v1789
  %v3055 = vpack.c.b16 %v1800, %v1795
  %v3056 = vpack.c.b16 %v1801, %v1796
  %v3057 = vpack.c.b16 %v1802, %v1797
  %v3058 = vpack.c.b16 %v1803, %v1798
  %v3059 = vpack.c.b16 %v1804, %v1799
  %v3060 = vpack.c.b16 %v1810, %v1805
  %v3061 = vpack.c.b16 %v1811, %v1806
  %v3062 = vpack.c.b16 %v1812, %v1807
  %v3063 = vpack.c.b16 %v1813, %v1808
  %v3064 = vpack.c.b16 %v1814, %v1809
  %v3065 = vpack.c.b16 %v1820, %v1815
  %v3066 = vpack.c.b16 %v1821, %v1816
  %v3067 = vpack.c.b16 %v1822, %v1817
  %v3068 = vpack.c.b16 %v1823, %v1818
  %v3069 = vpack.c.b16 %v1824, %v1819
  %v3070 = vpack.c.b16 %v1830, %v1825
  %v3071 = vpack.c.b16 %v1831, %v1826
  %v3072 = vpack.c.b16 %v1832, %v1827
  %v3073 = vpack.c.b16 %v1833, %v1828
  %v3074 = vpack.c.b16 %v1834, %v1829
  %v3075 = vpack.c.b16 %v1840, %v1835
  %v3076 = vpack.c.b16 %v1841, %v1836
  %v3077 = vpack.c.b16 %v1842, %v1837
  %v3078 = vpack.c.b16 %v1843, %v1838
  %v3079 = vpack.c.b16 %v1844, %v1839
  %v3080 = vpack.c.b16 %v1850, %v1845
  %v3081 = vpack.c.b16 %v1851, %v1846
  %v3082 = vpack.c.b16 %v1852, %v1847
  %v3083 = vpack.c.b16 %v1853, %v1848
  %v3084 = vpack.c.b16 %v1854, %v1849
  %v3085 = vpack.c.b16 %v1860, %v1855
  %v3086 = vpack.c.b16 %v1861, %v1856
  %v3087 = vpack.c.b16 %v1862, %v1857
  %v3088 = vpack.c.b16 %v1863, %v1858
  %v3089 = vpack.c.b16 %v1864, %v1859
  %v3090 = vpack.c.b16 %v1870, %v1865
  %v3091 = vpack.c.b16 %v1871, %v1866
  %v3092 = vpack.c.b16 %v1872, %v1867
  %v3093 = vpack.c.b16 %v1873, %v1868
  %v3094 = vpack.c.b16 %v1874, %v1869
  %v3095 = vpack.c.b16 %v1880, %v1875
  %v3096 = vpack.c.b16 %v1881, %v1876
  %v3097 = vpack.c.b16 %v1882, %v1877
  %v3098 = vpack.c.b16 %v1883, %v1878
  %v3099 = vpack.c.b16 %v1884, %v1879
  %v3100 = vpack.c.b16 %v1890, %v1885
  %v3101 = vpack.c.b16 %v1891, %v1886
  %v3102 = vpack.c.b16 %v1892, %v1887
  %v3103 = vpack.c.b16 %v1893, %v1888
  %v3104 = vpack.c.b16 %v1894, %v1889
  %v3105 = vpack.c.b16 %v1900, %v1895
  %v3106 = vpack.c.b16 %v1901, %v1896
  %v3107 = vpack.c.b16 %v1902, %v1897
  %v3108 = vpack.c.b16 %v1903, %v1898
  %v3109 = vpack.c.b16 %v1904, %v1899
  %v3110 = vpack.c.b16 %v1910, %v1905
  %v3111 = vpack.c.b16 %v1911, %v1906
  %v3112 = vpack.c.b16 %v1912, %v1907
  %v3113 = vpack.c.b16 %v1913, %v1908
  %v3114 = vpack.c.b16 %v1914, %v1909
  %v3115 = vpack.c.b16 %v1920, %v1915
  %v3116 = vpack.c.b16 %v1921, %v1916
  %v3117 = vpack.c.b16 %v1922, %v1917
  %v3118 = vpack.c.b16 %v1923, %v1918
  %v3119 = vpack.c.b16 %v1924, %v1919
  %v3120 = vpack.c.b16 %v1930, %v1925
  %v3121 = vpack.c.b16 %v1931, %v1926
  %v3122 = vpack.c.b16 %v1932, %v1927
  %v3123 = vpack.c.b16 %v1933, %v1928
  %v3124 = vpack.c.b16 %v1934, %v1929
  %v3125 = vpack.c.b16 %v1940, %v1935
  %v3126 = vpack.c.b16 %v1941, %v1936
  %v3127 = vpack.c.b16 %v1942, %v1937
  %v3128 = vpack.c.b16 %v1943, %v1938
  %v3129 = vpack.c.b16 %v1944, %v1939
  %v3130 = vpack.c.b16 %v1950, %v1945
  %v3131 = vpack.c.b16 %v1951, %v1946
  %v3132 = vpack.c.b16 %v1952, %v1947
  %v3133 = vpack.c.b16 %v1953, %v1948
  %v3134 = vpack.c.b16 %v1954, %v1949
  %v3135 = vpack.c.b16 %v1960, %v1955
  %v3136 = vpack.c.b16 %v1961, %v1956
  %v3137 = vpack.c.b16 %v1962, %v1957
  %v3138 = vpack.c.b16 %v1963, %v1958
  %v3139 = vpack.c.b16 %v1964, %v1959
  %v3140 = vpack.c.b16 %v1970, %v1965
  %v3141 = vpack.c.b16 %v1971, %v1966
  %v3142 = vpack.c.b16 %v1972, %v1967
  %v3143 = vpack.c.b16 %v1973, %v1968
  %v3144 = vpack.c.b16 %v1974, %v1969
  %v3145 = vpack.c.b16 %v1980, %v1975
  %v3146 = vpack.c.b16 %v1981, %v1976
  %v3147 = vpack.c.b16 %v1982, %v1977
  %v3148 = vpack.c.b16 %v1983, %v1978
  %v3149 = vpack.c.b16 %v1984, %v1979
  %v3150 = vpack.c.b16 %v1990, %v1985
  %v3151 = vpack.c.b16 %v1991, %v1986
  %v3152 = vpack.c.b16 %v1992, %v1987
  %v3153 = vpack.c.b16 %v1993, %v1988
  %v3154 = vpack.c.b16 %v1994, %v1989
  %v3155 = vpack.c.b16 %v2000, %v1995
  %v3156 = vpack.c.b16 %v2001, %v1996
  %v3157 = vpack.c.b16 %v2002, %v1997
  %v3158 = vpack.c.b16 %v2003, %v1998
  %v3159 = vpack.c.b16 %v2004, %v1999
  %v3160 = vpack.c.b16 %v2010, %v2005
  %v3161 = vpack.c.b16 %v2011, %v2006
  %v3162 = vpack.c.b16 %v2012, %v2007
  %v3163 = vpack.c.b16 %v2013, %v2008
  %v3164 = vpack.c.b16 %v2014, %v2009
  %v3165 = vpack.c.b16 %v2020, %v2015
  %v3166 = vpack.c.b16 %v2021, %v2016
  %v3167 = vpack.c.b16 %v2022, %v2017
  %v3168 = vpack.c.b16 %v2023, %v2018
  %v3169 = vpack.c.b16 %v2024, %v2019
  %v3170 = vpack.c.b16 %v2030, %v2025
  %v3171 = vpack.c.b16 %v2031, %v2026
  %v3172 = vpack.c.b16 %v2032, %v2027
  %v3173 = vpack.c.b16 %v2033, %v2028
  %v3174 = vpack.c.b16 %v2034, %v2029
  %v3175 = vpack.c.b16 %v2040, %v2035
  %v3176 = vpack.c.b16 %v2041, %v2036
  %v3177 = vpack.c.b16 %v2042, %v2037
  %v3178 = vpack.c.b16 %v2043, %v2038
  %v3179 = vpack.c.b16 %v2044, %v2039
  %v3180 = vpack.c.b16 %v2050, %v2045
  %v3181 = vpack.c.b16 %v2051, %v2046
  %v3182 = vpack.c.b16 %v2052, %v2047
  %v3183 = vpack.c.b16 %v2053, %v2048
  %v3184 = vpack.c.b16 %v2054, %v2049
  %v3185 = vpack.c.b16 %v2060, %v2055
  %v3186 = vpack.c.b16 %v2061, %v2056
  %v3187 = vpack.c.b16 %v2062, %v2057
  %v3188 = vpack.c.b16 %v2063, %v2058
  %v3189 = vpack.c.b16 %v2064, %v2059
  %v3190 = vpack.c.b16 %v2070, %v2065
  %v3191 = vpack.c.b16 %v2071, %v2066
  %v3192 = vpack.c.b16 %v2072, %v2067
  %v3193 = vpack.c.b16 %v2073, %v2068
  %v3194 = vpack.c.b16 %v2074, %v2069
  %v3195 = vpack.c.b16 %v2080, %v2075
  %v3196 = vpack.c.b16 %v2081, %v2076
  %v3197 = vpack.c.b16 %v2082, %v2077
  %v3198 = vpack.c.b16 %v2083, %v2078
  %v3199 = vpack.c.b16 %v2084, %v2079
  %v3200 = vpack.c.b16 %v2090, %v2085
  %v3201 = vpack.c.b16 %v2091, %v2086
  %v3202 = vpack.c.b16 %v2092, %v2087
  %v3203 = vpack.c.b16 %v2093, %v2088
  %v3204 = vpack.c.b16 %v2094, %v2089
  %v3205 = vpack.c.b16 %v2100, %v2095
  %v3206 = vpack.c.b16 %v2101, %v2096
  %v3207 = vpack.c.b16 %v2102, %v2097
  %v3208 = vpack.c.b16 %v2103, %v2098
  %v3209 = vpack.c.b16 %v2104, %v2099
  %v3210 = vpack.c.b16 %v2110, %v2105
  %v3211 = vpack.c.b16 %v2111, %v2106
  %v3212 = vpack.c.b16 %v2112, %v2107
  %v3213 = vpack.c.b16 %v2113, %v2108
  %v3214 = vpack.c.b16 %v2114, %v2109
  %v3215 = vpack.c.b16 %v2120, %v2115
  %v3216 = vpack.c.b16 %v2121, %v2116
  %v3217 = vpack.c.b16 %v2122, %v2117
  %v3218 = vpack.c.b16 %v2123, %v2118
  %v3219 = vpack.c.b16 %v2124, %v2119
  %v3220 = vpack.c.b16 %v2130, %v2125
  %v3221 = vpack.c.b16 %v2131, %v2126
  %v3222 = vpack.c.b16 %v2132, %v2127
  %v3223 = vpack.c.b16 %v2133, %v2128
  %v3224 = vpack.c.b16 %v2134, %v2129
  %v3225 = vpack.c.b16 %v2140, %v2135
  %v3226 = vpack.c.b16 %v2141, %v2136
  %v3227 = vpack.c.b16 %v2142, %v2137
  %v3228 = vpack.c.b16 %v2143, %v2138
  %v3229 = vpack.c.b16 %v2144, %v2139
  %v3230 = vpack.c.b16 %v2150, %v2145
  %v3231 = vpack.c.b16 %v2151, %v2146
  %v3232 = vpack.c.b16 %v2152, %v2147
  %v3233 = vpack.c.b16 %v2153, %v2148
  %v3234 = vpack.c.b16 %v2154, %v2149
  %v3235 = vpack.c.b16 %v2160, %v2155
  %v3236 = vpack.c.b16 %v2161, %v2156
  %v3237 = vpack.c.b16 %v2162, %v2157
  %v3238 = vpack.c.b16 %v2163, %v2158
  %v3239 = vpack.c.b16 %v2164, %v2159
  %v3240 = vpack.c.b16 %v2170, %v2165
  %v3241 = vpack.c.b16 %v2171, %v2166
  %v3242 = vpack.c.b16 %v2172, %v2167
  %v3243 = vpack.c.b16 %v2173, %v2168
  %v3244 = vpack.c.b16 %v2174, %v2169
  %v3245 = vpack.c.b16 %v2180, %v2175
  %v3246 = vpack.c.b16 %v2181, %v2176
  %v3247 = vpack.c.b16 %v2182, %v2177
  %v3248 = vpack.c.b16 %v2183, %v2178
  %v3249 = vpack.c.b16 %v2184, %v2179
  %v3250 = vpack.c.b16 %v2190, %v2185
  %v3251 = vpack.c.b16 %v2191, %v2186
  %v3252 = vpack.c.b16 %v2192, %v2187
  %v3253 = vpack.c.b16 %v2193, %v2188
  %v3254 = vpack.c.b16 %v2194, %v2189
  %v3255 = vpack.c.b16 %v2200, %v2195
  %v3256 = vpack.c.b16 %v2201, %v2196
  %v3257 = vpack.c.b16 %v2202, %v2197
  %v3258 = vpack.c.b16 %v2203, %v2198
  %v3259 = vpack.c.b16 %v2204, %v2199
  %v3260 = vpack.c.b16 %v2210, %v2205
  %v3261 = vpack.c.b16 %v2211, %v2206
  %v3262 = vpack.c.b16 %v2212, %v2207
  %v3263 = vpack.c.b16 %v2213, %v2208
  %v3264 = vpack.c.b16 %v2214, %v2209
  %v3265 = vpack.c.b16 %v2220, %v2215
  %v3266 = vpack.c.b16 %v2221, %v2216
  %v3267 = vpack.c.b16 %v2222, %v2217
  %v3268 = vpack.c.b16 %v2223, %v2218
  %v3269 = vpack.c.b16 %v2224, %v2219
  %v3270 = vpack.c.b16 %v2230, %v2225
  %v3271 = vpack.c.b16 %v2231, %v2226
  %v3272 = vpack.c.b16 %v2232, %v2227
  %v3273 = vpack.c.b16 %v2233, %v2228
  %v3274 = vpack.c.b16 %v2234, %v2229
  %v3275 = vpack.c.b16 %v2240, %v2235
  %v3276 = vpack.c.b16 %v2241, %v2236
  %v3277 = vpack.c.b16 %v2242, %v2237
  %v3278 = vpack.c.b16 %v2243, %v2238
  %v3279 = vpack.c.b16 %v2244, %v2239
  %v3280 = vpack.c.b16 %v2250, %v2245
  %v3281 = vpack.c.b16 %v2251, %v2246
  %v3282 = vpack.c.b16 %v2252, %v2247
  %v3283 = vpack.c.b16 %v2253, %v2248
  %v3284 = vpack.c.b16 %v2254, %v2249
  %v3285 = vpack.c.b16 %v2260, %v2255
  %v3286 = vpack.c.b16 %v2261, %v2256
  %v3287 = vpack.c.b16 %v2262, %v2257
  %v3288 = vpack.c.b16 %v2263, %v2258
  %v3289 = vpack.c.b16 %v2264, %v2259
  %v3290 = vpack.c.b16 %v2270, %v2265
  %v3291 = vpack.c.b16 %v2271, %v2266
  %v3292 = vpack.c.b16 %v2272, %v2267
  %v3293 = vpack.c.b16 %v2273, %v2268
  %v3294 = vpack.c.b16 %v2274, %v2269
  %v3295 = vpack.c.b16 %v2280, %v2275
  %v3296 = vpack.c.b16 %v2281, %v2276
  %v3297 = vpack.c.b16 %v2282, %v2277
  %v3298 = vpack.c.b16 %v2283, %v2278
  %v3299 = vpack.c.b16 %v2284, %v2279
  %v3300 = vpack.c.b16 %v2290, %v2285
  %v3301 = vpack.c.b16 %v2291, %v2286
  %v3302 = vpack.c.b16 %v2292, %v2287
  %v3303 = vpack.c.b16 %v2293, %v2288
  %v3304 = vpack.c.b16 %v2294, %v2289
  %v3305 = vpack.c.b16 %v2300, %v2295
  %v3306 = vpack.c.b16 %v2301, %v2296
  %v3307 = vpack.c.b16 %v2302, %v2297
  %v3308 = vpack.c.b16 %v2303, %v2298
  %v3309 = vpack.c.b16 %v2304, %v2299
  %v3310 = vpack.c.b16 %v2310, %v2305
  %v3311 = vpack.c.b16 %v2311, %v2306
  %v3312 = vpack.c.b16 %v2312, %v2307
  %v3313 = vpack.c.b16 %v2313, %v2308
  %v3314 = vpack.c.b16 %v2314, %v2309
  %v3315 = vpack.c.b16 %v2320, %v2315
  %v3316 = vpack.c.b16 %v2321, %v2316
  %v3317 = vpack.c.b16 %v2322, %v2317
  %v3318 = vpack.c.b16 %v2323, %v2318
  %v3319 = vpack.c.b16 %v2324, %v2319
  %v3320 = vpack.c.b16 %v2330, %v2325
  %v3321 = vpack.c.b16 %v2331, %v2326
  %v3322 = vpack.c.b16 %v2332, %v2327
  %v3323 = vpack.c.b16 %v2333, %v2328
  %v3324 = vpack.c.b16 %v2334, %v2329
  %v3325 = vpack.c.b16 %v2340, %v2335
  %v3326 = vpack.c.b16 %v2341, %v2336
  %v3327 = vpack.c.b16 %v2342, %v2337
  %v3328 = vpack.c.b16 %v2343, %v2338
  %v3329 = vpack.c.b16 %v2344, %v2339
  %v3330 = vpack.c.b16 %v2350, %v2345
  %v3331 = vpack.c.b16 %v2351, %v2346
  %v3332 = vpack.c.b16 %v2352, %v2347
  %v3333 = vpack.c.b16 %v2353, %v2348
  %v3334 = vpack.c.b16 %v2354, %v2349
  %v3335 = vpack.c.b16 %v2360, %v2355
  %v3336 = vpack.c.b16 %v2361, %v2356
  %v3337 = vpack.c.b16 %v2362, %v2357
  %v3338 = vpack.c.b16 %v2363, %v2358
  %v3339 = vpack.c.b16 %v2364, %v2359
  %v3340 = vpack.c.b16 %v2370, %v2365
  %v3341 = vpack.c.b16 %v2371, %v2366
  %v3342 = vpack.c.b16 %v2372, %v2367
  %v3343 = vpack.c.b16 %v2373, %v2368
  %v3344 = vpack.c.b16 %v2374, %v2369
  %v3345 = vpack.c.b16 %v2380, %v2375
  %v3346 = vpack.c.b16 %v2381, %v2376
  %v3347 = vpack.c.b16 %v2382, %v2377
  %v3348 = vpack.c.b16 %v2383, %v2378
  %v3349 = vpack.c.b16 %v2384, %v2379
  %v3350 = vpack.c.b16 %v2390, %v2385
  %v3351 = vpack.c.b16 %v2391, %v2386
  %v3352 = vpack.c.b16 %v2392, %v2387
  %v3353 = vpack.c.b16 %v2393, %v2388
  %v3354 = vpack.c.b16 %v2394, %v2389
  %v3355 = vpack.c.b16 %v2400, %v2395
  %v3356 = vpack.c.b16 %v2401, %v2396
  %v3357 = vpack.c.b16 %v2402, %v2397
  %v3358 = vpack.c.b16 %v2403, %v2398
  %v3359 = vpack.c.b16 %v2404, %v2399
  %v3360 = vpack.c.b16 %v2410, %v2405
  %v3361 = vpack.c.b16 %v2411, %v2406
  %v3362 = vpack.c.b16 %v2412, %v2407
  %v3363 = vpack.c.b16 %v2413, %v2408
  %v3364 = vpack.c.b16 %v2414, %v2409
  %v3365 = vpack.c.b16 %v2420, %v2415
  %v3366 = vpack.c.b16 %v2421, %v2416
  %v3367 = vpack.c.b16 %v2422, %v2417
  %v3368 = vpack.c.b16 %v2423, %v2418
  %v3369 = vpack.c.b16 %v2424, %v2419
  %v3370 = vpack.c.b16 %v2430, %v2425
  %v3371 = vpack.c.b16 %v2431, %v2426
  %v3372 = vpack.c.b16 %v2432, %v2427
  %v3373 = vpack.c.b16 %v2433, %v2428
  %v3374 = vpack.c.b16 %v2434, %v2429
  %v3375 = vpack.c.b16 %v2440, %v2435
  %v3376 = vpack.c.b16 %v2441, %v2436
  %v3377 = vpack.c.b16 %v2442, %v2437
  %v3378 = vpack.c.b16 %v2443, %v2438
  %v3379 = vpack.c.b16 %v2444, %v2439
  %v3380 = vpack.c.b16 %v2450, %v2445
  %v3381 = vpack.c.b16 %v2451, %v2446
  %v3382 = vpack.c.b16 %v2452, %v2447
  %v3383 = vpack.c.b16 %v2453, %v2448
  %v3384 = vpack.c.b16 %v2454, %v2449
  %v3385 = vpack.c.b16 %v2460, %v2455
  %v3386 = vpack.c.b16 %v2461, %v2456
  %v3387 = vpack.c.b16 %v2462, %v2457
  %v3388 = vpack.c.b16 %v2463, %v2458
  %v3389 = vpack.c.b16 %v2464, %v2459
  %v3390 = vpack.c.b16 %v2470, %v2465
  %v3391 = vpack.c.b16 %v2471, %v2466
  %v3392 = vpack.c.b16 %v2472, %v2467
  %v3393 = vpack.c.b16 %v2473, %v2468
  %v3394 = vpack.c.b16 %v2474, %v2469
  %v3395 = vpack.c.b16 %v2480, %v2475
  %v3396 = vpack.c.b16 %v2481, %v2476
  %v3397 = vpack.c.b16 %v2482, %v2477
  %v3398 = vpack.c.b16 %v2483, %v2478
  %v3399 = vpack.c.b16 %v2484, %v2479
  %v3400 = vpack.c.b16 %v2490, %v2485
  %v3401 = vpack.c.b16 %v2491, %v2486
  %v3402 = vpack.c.b16 %v2492, %v2487
  %v3403 = vpack.c.b16 %v2493, %v2488
  %v3404 = vpack.c.b16 %v2494, %v2489
  %v3405 = vpack.c.b16 %v2500, %v2495
  %v3406 = vpack.c.b16 %v2501, %v2496
  %v3407 = vpack.c.b16 %v2502, %v2497
  %v3408 = vpack.c.b16 %v2503, %v2498
  %v3409 = vpack.c.b16 %v2504, %v2499
  %v3410 = vpack.c.b16 %v2510, %v2505
  %v3411 = vpack.c.b16 %v2511, %v2506
  %v3412 = vpack.c.b16 %v2512, %v2507
  %v3413 = vpack.c.b16 %v2513, %v2508
  %v3414 = vpack.c.b16 %v2514, %v2509
  %v3415 = vpack.c.b16 %v2520, %v2515
  %v3416 = vpack.c.b16 %v2521, %v2516
  %v3417 = vpack.c.b16 %v2522, %v2517
  %v3418 = vpack.c.b16 %v2523, %v2518
  %v3419 = vpack.c.b16 %v2524, %v2519
  %v3420 = vpack.c.b16 %v2530, %v2525
  %v3421 = vpack.c.b16 %v2531, %v2526
  %v3422 = vpack.c.b16 %v2532, %v2527
  %v3423 = vpack.c.b16 %v2533, %v2528
  %v3424 = vpack.c.b16 %v2534, %v2529
  %v3425 = vpack.c.b16 %v2540, %v2535
  %v3426 = vpack.c.b16 %v2541, %v2536
  %v3427 = vpack.c.b16 %v2542, %v2537
  %v3428 = vpack.c.b16 %v2543, %v2538
  %v3429 = vpack.c.b16 %v2544, %v2539
  %v3430 = vpack.c.b16 %v2550, %v2545
  %v3431 = vpack.c.b16 %v2551, %v2546
  %v3432 = vpack.c.b16 %v2552, %v2547
  %v3433 = vpack.c.b16 %v2553, %v2548
  %v3434 = vpack.c.b16 %v2554, %v2549
  %v3435 = vpack.c.b16 %v2560, %v2555
  %v3436 = vpack.c.b16 %v2561, %v2556
  %v3437 = vpack.c.b16 %v2562, %v2557
  %v3438 = vpack.c.b16 %v2563, %v2558
  %v3439 = vpack.c.b16 %v2564, %v2559
  %v3440 = vpack.c.b16 %v2570, %v2565
  %v3441 = vpack.c.b16 %v2571, %v2566
  %v3442 = vpack.c.b16 %v2572, %v2567
  %v3443 = vpack.c.b16 %v2573, %v2568
  %v3444 = vpack.c.b16 %v2574, %v2569
  %v3445 = vpack.c.b16 %v2580, %v2575
  %v3446 = vpack.c.b16 %v2581, %v2576
  %v3447 = vpack.c.b16 %v2582, %v2577
  %v3448 = vpack.c.b16 %v2583, %v2578
  %v3449 = vpack.c.b16 %v2584, %v2579
  %v3450 = vpack.c.b16 %v2590, %v2585
  %v3451 = vpack.c.b16 %v2591, %v2586
  %v3452 = vpack.c.b16 %v2592, %v2587
  %v3453 = vpack.c.b16 %v2593, %v2588
  %v3454 = vpack.c.b16 %v2594, %v2589
  %v3455 = vpack.c.b16 %v2600, %v2595
  %v3456 = vpack.c.b16 %v2601, %v2596
  %v3457 = vpack.c.b16 %v2602, %v2597
  %v3458 = vpack.c.b16 %v2603, %v2598
  %v3459 = vpack.c.b16 %v2604, %v2599
  %v3460 = vpack.c.b16 %v2610, %v2605
  %v3461 = vpack.c.b16 %v2611, %v2606
  %v3462 = vpack.c.b16 %v2612, %v2607
  %v3463 = vpack.c.b16 %v2613, %v2608
  %v3464 = vpack.c.b16 %v2614, %v2609
  %v3465 = vpack.c.b16 %v2620, %v2615
  %v3466 = vpack.c.b16 %v2621, %v2616
  %v3467 = vpack.c.b16 %v2622, %v2617
  %v3468 = vpack.c.b16 %v2623, %v2618
  %v3469 = vpack.c.b16 %v2624, %v2619
  %v3470 = vpack.c.b16 %v2630, %v2625
  %v3471 = vpack.c.b16 %v2631, %v2626
  %v3472 = vpack.c.b16 %v2632, %v2627
  %v3473 = vpack.c.b16 %v2633, %v2628
  %v3474 = vpack.c.b16 %v2634, %v2629
  %v3475 = vpack.c.b16 %v2640, %v2635
  %v3476 = vpack.c.b16 %v2641, %v2636
  %v3477 = vpack.c.b16 %v2642, %v2637
  %v3478 = vpack.c.b16 %v2643, %v2638
  %v3479 = vpack.c.b16 %v2644, %v2639
  %v3480 = vpack.c.b16 %v2650, %v2645
  %v3481 = vpack.c.b16 %v2651, %v2646
  %v3482 = vpack.c.b16 %v2652, %v2647
  %v3483 = vpack.c.b16 %v2653, %v2648
  %v3484 = vpack.c.b16 %v2654, %v2649
  %v3485 = vpack.c.b16 %v2660, %v2655
  %v3486 = vpack.c.b16 %v2661, %v2656
  %v3487 = vpack.c.b16 %v2662, %v2657
  %v3488 = vpack.c.b16 %v2663, %v2658
  %v3489 = vpack.c.b16 %v2664, %v2659
  %v3490 = vpack.c.b16 %v2670, %v2665
  %v3491 = vpack.c.b16 %v2671, %v2666
  %v3492 = vpack.c.b16 %v2672, %v2667
  %v3493 = vpack.c.b16 %v2673, %v2668
  %v3494 = vpack.c.b16 %v2674, %v2669
  %v3495 = vpack.c.b16 %v2680, %v2675
  %v3496 = vpack.c.b16 %v2681, %v2676
  %v3497 = vpack.c.b16 %v2682, %v2677
  %v3498 = vpack.c.b16 %v2683, %v2678
  %v3499 = vpack.c.b16 %v2684, %v2679
  %v3500 = vpack.c.b16 %v2690, %v2685
  %v3501 = vpack.c.b16 %v2691, %v2686
  %v3502 = vpack.c.b16 %v2692, %v2687
  %v3503 = vpack.c.b16 %v2693, %v2688
  %v3504 = vpack.c.b16 %v2694, %v2689
  %v3505 = vpack.c.b16 %v2700, %v2695
  %v3506 = vpack.c.b16 %v2701, %v2696
  %v3507 = vpack.c.b16 %v2702, %v2697
  %v3508 = vpack.c.b16 %v2703, %v2698
  %v3509 = vpack.c.b16 %v2704, %v2699
  %v3510 = vpack.c.b16 %v2710, %v2705
  %v3511 = vpack.c.b16 %v2711, %v2706
  %v3512 = vpack.c.b16 %v2712, %v2707
  %v3513 = vpack.c.b16 %v2713, %v2708
  %v3514 = vpack.c.b16 %v2714, %v2709
  %v3515 = vpack.c.b16 %v2720, %v2715
  %v3516 = vpack.c.b16 %v2721, %v2716
  %v3517 = vpack.c.b16 %v2722, %v2717
  %v3518 = vpack.c.b16 %v2723, %v2718
  %v3519 = vpack.c.b16 %v2724, %v2719
  %v3520 = vpack.c.b16 %v2730, %v2725
  %v3521 = vpack.c.b16 %v2731, %v2726
  %v3522 = vpack.c.b16 %v2732, %v2727
  %v3523 = vpack.c.b16 %v2733, %v2728
  %v3524 = vpack.c.b16 %v2734, %v2729
  %v3525 = vpack.c.b16 %v2740, %v2735
  %v3526 = vpack.c.b16 %v2741, %v2736
  %v3527 = vpack.c.b16 %v2742, %v2737
  %v3528 = vpack.c.b16 %v2743, %v2738
  %v3529 = vpack.c.b16 %v2744, %v2739
  %v3530 = vpack.c.b16 %v2750, %v2745
  %v3531 = vpack.c.b16 %v2751, %v2746
  %v3532 = vpack.c.b16 %v2752, %v2747
  %v3533 = vpack.c.b16 %v2753, %v2748
  %v3534 = vpack.c.b16 %v2754, %v2749
  %v3535 = vpack.c.b16 %v2760, %v2755
  %v3536 = vpack.c.b16 %v2761, %v2756
  %v3537 = vpack.c.b16 %v2762, %v2757
  %v3538 = vpack.c.b16 %v2763, %v2758
  %v3539 = vpack.c.b16 %v2764, %v2759
  %v3540 = vpack.c.b16 %v2770, %v2765
  %v3541 = vpack.c.b16 %v2771, %v2766
  %v3542 = vpack.c.b16 %v2772, %v2767
  %v3543 = vpack.c.b16 %v2773, %v2768
  %v3544 = vpack.c.b16 %v2774, %v2769
  %v3545 = vpack.c.b16 %v2780, %v2775
  %v3546 = vpack.c.b16 %v2781, %v2776
  %v3547 = vpack.c.b16 %v2782, %v2777
  %v3548 = vpack.c.b16 %v2783, %v2778
  %v3549 = vpack.c.b16 %v2784, %v2779
  %v3550 = vpack.c.b16 %v2790, %v2785
  %v3551 = vpack.c.b16 %v2791, %v2786
  %v3552 = vpack.c.b16 %v2792, %v2787
  %v3553 = vpack.c.b16 %v2793, %v2788
  %v3554 = vpack.c.b16 %v2794, %v2789
  %v3555 = vpack.c.b16 %v2800, %v2795
  %v3556 = vpack.c.b16 %v2801, %v2796
  %v3557 = vpack.c.b16 %v2802, %v2797
  %v3558 = vpack.c.b16 %v2803, %v2798
  %v3559 = vpack.c.b16 %v2804, %v2799
  %v3560 = vpack.c.b16 %v2810, %v2805
  %v3561 = vpack.c.b16 %v2811, %v2806
  %v3562 = vpack.c.b16 %v2812, %v2807
  %v3563 = vpack.c.b16 %v2813, %v2808
  %v3564 = vpack.c.b16 %v2814, %v2809
  %v3565 = vpack.c.b16 %v2820, %v2815
  %v3566 = vpack.c.b16 %v2821, %v2816
  %v3567 = vpack.c.b16 %v2822, %v2817
  %v3568 = vpack.c.b16 %v2823, %v2818
  %v3569 = vpack.c.b16 %v2824, %v2819
  %v3570 = vpack.c.b16 %v2830, %v2825
  %v3571 = vpack.c.b16 %v2831, %v2826
  %v3572 = vpack.c.b16 %v2832, %v2827
  %v3573 = vpack.c.b16 %v2833, %v2828
  %v3574 = vpack.c.b16 %v2834, %v2829
  %v3575 = vpack.c.b16 %v2840, %v2835
  %v3576 = vpack.c.b16 %v2841, %v2836
  %v3577 = vpack.c.b16 %v2842, %v2837
  %v3578 = vpack.c.b16 %v2843, %v2838
  %v3579 = vpack.c.b16 %v2844, %v2839
  %v3580 = vpack.c.b16 %v2850, %v2845
  %v3581 = vpack.c.b16 %v2851, %v2846
  %v3582 = vpack.c.b16 %v2852, %v2847
  %v3583 = vpack.c.b16 %v2853, %v2848
  %v3584 = vpack.c.b16 %v2854, %v2849
  %v3585 = vpack.c.b16 %v2860, %v2855
  %v3586 = vpack.c.b16 %v2861, %v2856
  %v3587 = vpack.c.b16 %v2862, %v2857
  %v3588 = vpack.c.b16 %v2863, %v2858
  %v3589 = vpack.c.b16 %v2864, %v2859
  %v3590 = vpack.c.b16 %v2870, %v2865
  %v3591 = vpack.c.b16 %v2871, %v2866
  %v3592 = vpack.c.b16 %v2872, %v2867
  %v3593 = vpack.c.b16 %v2873, %v2868
  %v3594 = vpack.c.b16 %v2874, %v2869
  %v3595 = vpack.c.b16 %v2880, %v2875
  %v3596 = vpack.c.b16 %v2881, %v2876
  %v3597 = vpack.c.b16 %v2882, %v2877
  %v3598 = vpack.c.b16 %v2883, %v2878
  %v3599 = vpack.c.b16 %v2884, %v2879
  %v3600 = vpack.c.b16 %v2890, %v2885
  %v3601 = vpack.c.b16 %v2891, %v2886
  %v3602 = vpack.c.b16 %v2892, %v2887
  %v3603 = vpack.c.b16 %v2893, %v2888
  %v3604 = vpack.c.b16 %v2894, %v2889
  %v3605 = vpack.c.b16 %v2900, %v2895
  %v3606 = vpack.c.b16 %v2901, %v2896
  %v3607 = vpack.c.b16 %v2902, %v2897
  %v3608 = vpack.c.b16 %v2903, %v2898
  %v3609 = vpack.c.b16 %v2904, %v2899
  %v3610 = vpack.c.b16 %v2910, %v2905
  %v3611 = vpack.c.b16 %v2911, %v2906
  %v3612 = vpack.c.b16 %v2912, %v2907
  %v3613 = vpack.c.b16 %v2913, %v2908
  %v3614 = vpack.c.b16 %v2914, %v2909
  %v3615 = vpack.c.b16 %v2920, %v2915
  %v3616 = vpack.c.b16 %v2921, %v2916
  %v3617 = vpack.c.b16 %v2922, %v2917
  %v3618 = vpack.c.b16 %v2923, %v2918
  %v3619 = vpack.c.b16 %v2924, %v2919
  %v3620 = vpack.c.b16 %v2930, %v2925
  %v3621 = vpack.c.b16 %v2931, %v2926
  %v3622 = vpack.c.b16 %v2932, %v2927
  %v3623 = vpack.c.b16 %v2933, %v2928
  %v3624 = vpack.c.b16 %v2934, %v2929
  %v3625 = vpack.c.b16 %v2940, %v2935
  %v3626 = vpack.c.b16 %v2941, %v2936
  %v3627 = vpack.c.b16 %v2942, %v2937
  %v3628 = vpack.c.b16 %v2943, %v2938
  %v3629 = vpack.c.b16 %v2944, %v2939
  %v3630 = vpack.c.b16 %v2950, %v2945
  %v3631 = vpack.c.b16 %v2951, %v2946
  %v3632 = vpack.c.b16 %v2952, %v2947
  %v3633 = vpack.c.b16 %v2953, %v2948
  %v3634 = vpack.c.b16 %v2954, %v2949
  %v3635 = vpack.c.b16 %v2960, %v2955
  %v3636 = vpack.c.b16 %v2961, %v2956
  %v3637 = vpack.c.b16 %v2962, %v2957
  %v3638 = vpack.c.b16 %v2963, %v2958
  %v3639 = vpack.c.b16 %v2964, %v2959
  %v3640 = vpack.c.b16 %v2970, %v2965
  %v3641 = vpack.c.b16 %v2971, %v2966
  %v3642 = vpack.c.b16 %v2972, %v2967
  %v3643 = vpack.c.b16 %v2973, %v2968
  %v3644 = vpack.c.b16 %v2974, %v2969
  %v3645 = vpack.c.b16 %v2980, %v2975
  %v3646 = vpack.c.b16 %v2981, %v2976
  %v3647 = vpack.c.b16 %v2982, %v2977
  %v3648 = vpack.c.b16 %v2983, %v2978
  %v3649 = vpack.c.b16 %v2984, %v2979
  %v3650 = vpack.c.b16 %v2990, %v2985
  %v3651 = vpack.c.b16 %v2991, %v2986
  %v3652 = vpack.c.b16 %v2992, %v2987
  %v3653 = vpack.c.b16 %v2993, %v2988
  %v3654 = vpack.c.b16 %v2994, %v2989
  %v3655 = vpack.c.b16 %v3000, %v2995
  %v3656 = vpack.c.b16 %v3001, %v2996
  %v3657 = vpack.c.b16 %v3002, %v2997
  %v3658 = vpack.c.b16 %v3003, %v2998
  %v3659 = vpack.c.b16 %v3004, %v2999
  %v3660 = vpack.c.b16 %v3010, %v3005
  %v3661 = vpack.c.b16 %v3011, %v3006
  %v3662 = vpack.c.b16 %v3012, %v3007
  %v3663 = vpack.c.b16 %v3013, %v3008
  %v3664 = vpack.c.b16 %v3014, %v3009
  %v3665 = vpack.c.b16 %v3020, %v3015
  %v3666 = vpack.c.b16 %v3021, %v3016
  %v3667 = vpack.c.b16 %v3022, %v3017
  %v3668 = vpack.c.b16 %v3023, %v3018
  %v3669 = vpack.c.b16 %v3024, %v3019
  %v3670 = vpack.c.b16 %v3030, %v3025
  %v3671 = vpack.c.b16 %v3031, %v3026
  %v3672 = vpack.c.b16 %v3032, %v3027
  %v3673 = vpack.c.b16 %v3033, %v3028
  %v3674 = vpack.c.b16 %v3034, %v3029
  %4315 = vmatprep.subr.bf16.mxu0 %v3071
  %4316 = vmatpush1.bf16.msra.mxu0 %v3070
  %4317 = vmatprep.subr.bf16.mxu0 %v3066
  %4318 = vmatpush1.bf16.msra.mxu0 %v3065
  %4319 = vmatprep.subr.bf16.mxu0 %v3061
  %4320 = vmatpush1.bf16.msra.mxu0 %v3060
  %4321 = vmatprep.subr.bf16.mxu0 %v3056
  %4322 = vmatpush1.bf16.msra.mxu0 %v3055
  %4323 = vmatprep.subr.bf16.mxu0 %v3051
  %4324 = vmatpush1.bf16.msra.mxu0 %v3050
  %4325 = vmatprep.subr.bf16.mxu0 %v3046
  %4326 = vmatpush1.bf16.msra.mxu0 %v3045
  %4327 = vmatprep.subr.bf16.mxu0 %v3041
  %4328 = vmatpush1.bf16.msra.mxu0 %v3040
  %4329 = vmatprep.subr.bf16.mxu0 %v3036
  %4330 = vmatpush1.bf16.msra.mxu0 %v3035
  %4331 = vmatprep.subr.bf16.mxu0 %v3111
  %4332 = vmatpush2.bf16.msra.mxu0 %v3110
  %4333 = vmatprep.subr.bf16.mxu0 %v3106
  %4334 = vmatpush2.bf16.msra.mxu0 %v3105
  %4335 = vmatprep.subr.bf16.mxu0 %v3101
  %4336 = vmatpush2.bf16.msra.mxu0 %v3100
  %4337 = vmatprep.subr.bf16.mxu0 %v3096
  %4338 = vmatpush2.bf16.msra.mxu0 %v3095
  %4339 = vmatprep.subr.bf16.mxu0 %v3091
  %4340 = vmatpush2.bf16.msra.mxu0 %v3090
  %4341 = vmatprep.subr.bf16.mxu0 %v3086
  %4342 = vmatpush2.bf16.msra.mxu0 %v3085
  %4343 = vmatprep.subr.bf16.mxu0 %v3081
  %4344 = vmatpush2.bf16.msra.mxu0 %v3080
  %4345 = vmatprep.subr.bf16.mxu0 %v3076
  %4346 = vmatpush2.bf16.msra.mxu0 %v3075
  %4347 = vmatprep.mubr.bf16.mxu0 %v910
  %4348 = vmatmul.mubr.bf16.gmra.mxu0 %v896
  %v4349 = vpop.f32.mrf.mxu0
  %v4350 = vadd.f32 %v849, %v4349
  %v4351 = vpop.f32.mrf.mxu0
  %v4352 = vadd.f32 %v853, %v4351
  %v4353 = vpop.f32.mrf.mxu0
  %v4354 = vpop.f32.mrf.mxu0
  %4355 = vdwg.mxu0
  %4356 = vmatprep.subr.bf16.mxu0 %v3151
  %4357 = vmatpush1.bf16.msra.mxu0 %v3150
  %4358 = vmatprep.subr.bf16.mxu0 %v3146
  %4359 = vmatpush1.bf16.msra.mxu0 %v3145
  %4360 = vmatprep.subr.bf16.mxu0 %v3141
  %4361 = vmatpush1.bf16.msra.mxu0 %v3140
  %4362 = vmatprep.subr.bf16.mxu0 %v3136
  %4363 = vmatpush1.bf16.msra.mxu0 %v3135
  %4364 = vmatprep.subr.bf16.mxu0 %v3131
  %4365 = vmatpush1.bf16.msra.mxu0 %v3130
  %4366 = vmatprep.subr.bf16.mxu0 %v3126
  %4367 = vmatpush1.bf16.msra.mxu0 %v3125
  %4368 = vmatprep.subr.bf16.mxu0 %v3121
  %4369 = vmatpush1.bf16.msra.mxu0 %v3120
  %4370 = vmatprep.subr.bf16.mxu0 %v3116
  %4371 = vmatpush1.bf16.msra.mxu0 %v3115
  %4372 = vmatprep.subr.bf16.mxu0 %v3191
  %4373 = vmatpush2.bf16.msra.mxu0 %v3190
  %4374 = vmatprep.subr.bf16.mxu0 %v3186
  %4375 = vmatpush2.bf16.msra.mxu0 %v3185
  %4376 = vmatprep.subr.bf16.mxu0 %v3181
  %4377 = vmatpush2.bf16.msra.mxu0 %v3180
  %4378 = vmatprep.subr.bf16.mxu0 %v3176
  %4379 = vmatpush2.bf16.msra.mxu0 %v3175
  %4380 = vmatprep.subr.bf16.mxu0 %v3171
  %4381 = vmatpush2.bf16.msra.mxu0 %v3170
  %4382 = vmatprep.subr.bf16.mxu0 %v3166
  %4383 = vmatpush2.bf16.msra.mxu0 %v3165
  %4384 = vmatprep.subr.bf16.mxu0 %v3161
  %4385 = vmatpush2.bf16.msra.mxu0 %v3160
  %4386 = vmatprep.subr.bf16.mxu0 %v3156
  %4387 = vmatpush2.bf16.msra.mxu0 %v3155
  %4388 = vmatprep.mubr.bf16.mxu0 %v920
  %4389 = vmatmul.mubr.bf16.gmra.mxu0 %v918
  %v4390 = vpop.f32.mrf.mxu0
  %v4391 = vadd.f32 %v4350, %v4390
  %v4392 = vpop.f32.mrf.mxu0
  %v4393 = vadd.f32 %v4352, %v4392
  %v4394 = vpop.f32.mrf.mxu0
  %v4395 = vpop.f32.mrf.mxu0
  %4396 = vdwg.mxu0
  %4397 = vmatprep.subr.bf16.mxu0 %v3231
  %4398 = vmatpush1.bf16.msra.mxu0 %v3230
  %4399 = vmatprep.subr.bf16.mxu0 %v3226
  %4400 = vmatpush1.bf16.msra.mxu0 %v3225
  %4401 = vmatprep.subr.bf16.mxu0 %v3221
  %4402 = vmatpush1.bf16.msra.mxu0 %v3220
  %4403 = vmatprep.subr.bf16.mxu0 %v3216
  %4404 = vmatpush1.bf16.msra.mxu0 %v3215
  %4405 = vmatprep.subr.bf16.mxu0 %v3211
  %4406 = vmatpush1.bf16.msra.mxu0 %v3210
  %4407 = vmatprep.subr.bf16.mxu0 %v3206
  %4408 = vmatpush1.bf16.msra.mxu0 %v3205
  %4409 = vmatprep.subr.bf16.mxu0 %v3201
  %4410 = vmatpush1.bf16.msra.mxu0 %v3200
  %4411 = vmatprep.subr.bf16.mxu0 %v3196
  %4412 = vmatpush1.bf16.msra.mxu0 %v3195
  %4413 = vmatprep.subr.bf16.mxu0 %v3271
  %4414 = vmatpush2.bf16.msra.mxu0 %v3270
  %4415 = vmatprep.subr.bf16.mxu0 %v3266
  %4416 = vmatpush2.bf16.msra.mxu0 %v3265
  %4417 = vmatprep.subr.bf16.mxu0 %v3261
  %4418 = vmatpush2.bf16.msra.mxu0 %v3260
  %4419 = vmatprep.subr.bf16.mxu0 %v3256
  %4420 = vmatpush2.bf16.msra.mxu0 %v3255
  %4421 = vmatprep.subr.bf16.mxu0 %v3251
  %4422 = vmatpush2.bf16.msra.mxu0 %v3250
  %4423 = vmatprep.subr.bf16.mxu0 %v3246
  %4424 = vmatpush2.bf16.msra.mxu0 %v3245
  %4425 = vmatprep.subr.bf16.mxu0 %v3241
  %4426 = vmatpush2.bf16.msra.mxu0 %v3240
  %4427 = vmatprep.subr.bf16.mxu0 %v3236
  %4428 = vmatpush2.bf16.msra.mxu0 %v3235
  %4429 = vmatprep.mubr.bf16.mxu0 %v917
  %4430 = vmatmul.mubr.bf16.gmra.mxu0 %v903
  %v4431 = vpop.f32.mrf.mxu0
  %v4432 = vadd.f32 %v4391, %v4431
  %v4433 = vpop.f32.mrf.mxu0
  %v4434 = vadd.f32 %v4393, %v4433
  %v4435 = vpop.f32.mrf.mxu0
  %v4436 = vpop.f32.mrf.mxu0
  %4437 = vdwg.mxu0
  %4438 = vmatprep.subr.bf16.mxu0 %v3311
  %4439 = vmatpush1.bf16.msra.mxu0 %v3310
  %4440 = vmatprep.subr.bf16.mxu0 %v3306
  %4441 = vmatpush1.bf16.msra.mxu0 %v3305
  %4442 = vmatprep.subr.bf16.mxu0 %v3301
  %4443 = vmatpush1.bf16.msra.mxu0 %v3300
  %4444 = vmatprep.subr.bf16.mxu0 %v3296
  %4445 = vmatpush1.bf16.msra.mxu0 %v3295
  %4446 = vmatprep.subr.bf16.mxu0 %v3291
  %4447 = vmatpush1.bf16.msra.mxu0 %v3290
  %4448 = vmatprep.subr.bf16.mxu0 %v3286
  %4449 = vmatpush1.bf16.msra.mxu0 %v3285
  %4450 = vmatprep.subr.bf16.mxu0 %v3281
  %4451 = vmatpush1.bf16.msra.mxu0 %v3280
  %4452 = vmatprep.subr.bf16.mxu0 %v3276
  %4453 = vmatpush1.bf16.msra.mxu0 %v3275
  %4454 = vmatprep.subr.bf16.mxu0 %v3351
  %4455 = vmatpush2.bf16.msra.mxu0 %v3350
  %4456 = vmatprep.subr.bf16.mxu0 %v3346
  %4457 = vmatpush2.bf16.msra.mxu0 %v3345
  %4458 = vmatprep.subr.bf16.mxu0 %v3341
  %4459 = vmatpush2.bf16.msra.mxu0 %v3340
  %4460 = vmatprep.subr.bf16.mxu0 %v3336
  %4461 = vmatpush2.bf16.msra.mxu0 %v3335
  %4462 = vmatprep.subr.bf16.mxu0 %v3331
  %4463 = vmatpush2.bf16.msra.mxu0 %v3330
  %4464 = vmatprep.subr.bf16.mxu0 %v3326
  %4465 = vmatpush2.bf16.msra.mxu0 %v3325
  %4466 = vmatprep.subr.bf16.mxu0 %v3321
  %4467 = vmatpush2.bf16.msra.mxu0 %v3320
  %4468 = vmatprep.subr.bf16.mxu0 %v3316
  %4469 = vmatpush2.bf16.msra.mxu0 %v3315
  %4470 = vmatprep.mubr.bf16.mxu0 %v921
  %4471 = vmatmul.mubr.bf16.gmra.mxu0 %v919
  %v4472 = vpop.f32.mrf.mxu0
  %v4473 = vadd.f32 %v4432, %v4472
  %v4474 = vpop.f32.mrf.mxu0
  %v4475 = vadd.f32 %v4434, %v4474
  %v4476 = vpop.f32.mrf.mxu0
  %v4477 = vpop.f32.mrf.mxu0
  %4478 = vdwg.mxu0
  %4479 = vmatprep.subr.bf16.mxu0 %v3391
  %4480 = vmatpush1.bf16.msra.mxu0 %v3390
  %4481 = vmatprep.subr.bf16.mxu0 %v3386
  %4482 = vmatpush1.bf16.msra.mxu0 %v3385
  %4483 = vmatprep.subr.bf16.mxu0 %v3381
  %4484 = vmatpush1.bf16.msra.mxu0 %v3380
  %4485 = vmatprep.subr.bf16.mxu0 %v3376
  %4486 = vmatpush1.bf16.msra.mxu0 %v3375
  %4487 = vmatprep.subr.bf16.mxu0 %v3371
  %4488 = vmatpush1.bf16.msra.mxu0 %v3370
  %4489 = vmatprep.subr.bf16.mxu0 %v3366
  %4490 = vmatpush1.bf16.msra.mxu0 %v3365
  %4491 = vmatprep.subr.bf16.mxu0 %v3361
  %4492 = vmatpush1.bf16.msra.mxu0 %v3360
  %4493 = vmatprep.subr.bf16.mxu0 %v3356
  %4494 = vmatpush1.bf16.msra.mxu0 %v3355
  %4495 = vmatprep.subr.bf16.mxu0 %v3431
  %4496 = vmatpush2.bf16.msra.mxu0 %v3430
  %4497 = vmatprep.subr.bf16.mxu0 %v3426
  %4498 = vmatpush2.bf16.msra.mxu0 %v3425
  %4499 = vmatprep.subr.bf16.mxu0 %v3421
  %4500 = vmatpush2.bf16.msra.mxu0 %v3420
  %4501 = vmatprep.subr.bf16.mxu0 %v3416
  %4502 = vmatpush2.bf16.msra.mxu0 %v3415
  %4503 = vmatprep.subr.bf16.mxu0 %v3411
  %4504 = vmatpush2.bf16.msra.mxu0 %v3410
  %4505 = vmatprep.subr.bf16.mxu0 %v3406
  %4506 = vmatpush2.bf16.msra.mxu0 %v3405
  %4507 = vmatprep.subr.bf16.mxu0 %v3401
  %4508 = vmatpush2.bf16.msra.mxu0 %v3400
  %4509 = vmatprep.subr.bf16.mxu0 %v3396
  %4510 = vmatpush2.bf16.msra.mxu0 %v3395
  %4511 = vmatprep.mubr.bf16.mxu0 %v959
  %4512 = vmatmul.mubr.bf16.gmra.mxu0 %v945
  %v4513 = vpop.f32.mrf.mxu0
  %v4514 = vadd.f32 %v4473, %v4513
  %v4515 = vpop.f32.mrf.mxu0
  %v4516 = vadd.f32 %v4475, %v4515
  %v4517 = vpop.f32.mrf.mxu0
  %v4518 = vpop.f32.mrf.mxu0
  %4519 = vdwg.mxu0
  %4520 = vmatprep.subr.bf16.mxu0 %v3471
  %4521 = vmatpush1.bf16.msra.mxu0 %v3470
  %4522 = vmatprep.subr.bf16.mxu0 %v3466
  %4523 = vmatpush1.bf16.msra.mxu0 %v3465
  %4524 = vmatprep.subr.bf16.mxu0 %v3461
  %4525 = vmatpush1.bf16.msra.mxu0 %v3460
  %4526 = vmatprep.subr.bf16.mxu0 %v3456
  %4527 = vmatpush1.bf16.msra.mxu0 %v3455
  %4528 = vmatprep.subr.bf16.mxu0 %v3451
  %4529 = vmatpush1.bf16.msra.mxu0 %v3450
  %4530 = vmatprep.subr.bf16.mxu0 %v3446
  %4531 = vmatpush1.bf16.msra.mxu0 %v3445
  %4532 = vmatprep.subr.bf16.mxu0 %v3441
  %4533 = vmatpush1.bf16.msra.mxu0 %v3440
  %4534 = vmatprep.subr.bf16.mxu0 %v3436
  %4535 = vmatpush1.bf16.msra.mxu0 %v3435
  %4536 = vmatprep.subr.bf16.mxu0 %v3511
  %4537 = vmatpush2.bf16.msra.mxu0 %v3510
  %4538 = vmatprep.subr.bf16.mxu0 %v3506
  %4539 = vmatpush2.bf16.msra.mxu0 %v3505
  %4540 = vmatprep.subr.bf16.mxu0 %v3501
  %4541 = vmatpush2.bf16.msra.mxu0 %v3500
  %4542 = vmatprep.subr.bf16.mxu0 %v3496
  %4543 = vmatpush2.bf16.msra.mxu0 %v3495
  %4544 = vmatprep.subr.bf16.mxu0 %v3491
  %4545 = vmatpush2.bf16.msra.mxu0 %v3490
  %4546 = vmatprep.subr.bf16.mxu0 %v3486
  %4547 = vmatpush2.bf16.msra.mxu0 %v3485
  %4548 = vmatprep.subr.bf16.mxu0 %v3481
  %4549 = vmatpush2.bf16.msra.mxu0 %v3480
  %4550 = vmatprep.subr.bf16.mxu0 %v3476
  %4551 = vmatpush2.bf16.msra.mxu0 %v3475
  %4552 = vmatprep.mubr.bf16.mxu0 %v969
  %4553 = vmatmul.mubr.bf16.gmra.mxu0 %v967
  %v4554 = vpop.f32.mrf.mxu0
  %v4555 = vadd.f32 %v4514, %v4554
  %v4556 = vpop.f32.mrf.mxu0
  %v4557 = vadd.f32 %v4516, %v4556
  %v4558 = vpop.f32.mrf.mxu0
  %v4559 = vpop.f32.mrf.mxu0
  %4560 = vdwg.mxu0
  %4561 = vmatprep.subr.bf16.mxu0 %v3551
  %4562 = vmatpush1.bf16.msra.mxu0 %v3550
  %4563 = vmatprep.subr.bf16.mxu0 %v3546
  %4564 = vmatpush1.bf16.msra.mxu0 %v3545
  %4565 = vmatprep.subr.bf16.mxu0 %v3541
  %4566 = vmatpush1.bf16.msra.mxu0 %v3540
  %4567 = vmatprep.subr.bf16.mxu0 %v3536
  %4568 = vmatpush1.bf16.msra.mxu0 %v3535
  %4569 = vmatprep.subr.bf16.mxu0 %v3531
  %4570 = vmatpush1.bf16.msra.mxu0 %v3530
  %4571 = vmatprep.subr.bf16.mxu0 %v3526
  %4572 = vmatpush1.bf16.msra.mxu0 %v3525
  %4573 = vmatprep.subr.bf16.mxu0 %v3521
  %4574 = vmatpush1.bf16.msra.mxu0 %v3520
  %4575 = vmatprep.subr.bf16.mxu0 %v3516
  %4576 = vmatpush1.bf16.msra.mxu0 %v3515
  %4577 = vmatprep.subr.bf16.mxu0 %v3591
  %4578 = vmatpush2.bf16.msra.mxu0 %v3590
  %4579 = vmatprep.subr.bf16.mxu0 %v3586
  %4580 = vmatpush2.bf16.msra.mxu0 %v3585
  %4581 = vmatprep.subr.bf16.mxu0 %v3581
  %4582 = vmatpush2.bf16.msra.mxu0 %v3580
  %4583 = vmatprep.subr.bf16.mxu0 %v3576
  %4584 = vmatpush2.bf16.msra.mxu0 %v3575
  %4585 = vmatprep.subr.bf16.mxu0 %v3571
  %4586 = vmatpush2.bf16.msra.mxu0 %v3570
  %4587 = vmatprep.subr.bf16.mxu0 %v3566
  %4588 = vmatpush2.bf16.msra.mxu0 %v3565
  %4589 = vmatprep.subr.bf16.mxu0 %v3561
  %4590 = vmatpush2.bf16.msra.mxu0 %v3560
  %4591 = vmatprep.subr.bf16.mxu0 %v3556
  %4592 = vmatpush2.bf16.msra.mxu0 %v3555
  %4593 = vmatprep.mubr.bf16.mxu0 %v966
  %4594 = vmatmul.mubr.bf16.gmra.mxu0 %v952
  %v4595 = vpop.f32.mrf.mxu0
  %v4596 = vadd.f32 %v4555, %v4595
  %v4597 = vpop.f32.mrf.mxu0
  %v4598 = vadd.f32 %v4557, %v4597
  %v4599 = vpop.f32.mrf.mxu0
  %v4600 = vpop.f32.mrf.mxu0
  %4601 = vdwg.mxu0
  %4602 = vmatprep.subr.bf16.mxu0 %v3631
  %4603 = vmatpush1.bf16.msra.mxu0 %v3630
  %4604 = vmatprep.subr.bf16.mxu0 %v3626
  %4605 = vmatpush1.bf16.msra.mxu0 %v3625
  %4606 = vmatprep.subr.bf16.mxu0 %v3621
  %4607 = vmatpush1.bf16.msra.mxu0 %v3620
  %4608 = vmatprep.subr.bf16.mxu0 %v3616
  %4609 = vmatpush1.bf16.msra.mxu0 %v3615
  %4610 = vmatprep.subr.bf16.mxu0 %v3611
  %4611 = vmatpush1.bf16.msra.mxu0 %v3610
  %4612 = vmatprep.subr.bf16.mxu0 %v3606
  %4613 = vmatpush1.bf16.msra.mxu0 %v3605
  %4614 = vmatprep.subr.bf16.mxu0 %v3601
  %4615 = vmatpush1.bf16.msra.mxu0 %v3600
  %4616 = vmatprep.subr.bf16.mxu0 %v3596
  %4617 = vmatpush1.bf16.msra.mxu0 %v3595
  %4618 = vmatprep.subr.bf16.mxu0 %v3671
  %4619 = vmatpush2.bf16.msra.mxu0 %v3670
  %4620 = vmatprep.subr.bf16.mxu0 %v3666
  %4621 = vmatpush2.bf16.msra.mxu0 %v3665
  %4622 = vmatprep.subr.bf16.mxu0 %v3661
  %4623 = vmatpush2.bf16.msra.mxu0 %v3660
  %4624 = vmatprep.subr.bf16.mxu0 %v3656
  %4625 = vmatpush2.bf16.msra.mxu0 %v3655
  %4626 = vmatprep.subr.bf16.mxu0 %v3651
  %4627 = vmatpush2.bf16.msra.mxu0 %v3650
  %4628 = vmatprep.subr.bf16.mxu0 %v3646
  %4629 = vmatpush2.bf16.msra.mxu0 %v3645
  %4630 = vmatprep.subr.bf16.mxu0 %v3641
  %4631 = vmatpush2.bf16.msra.mxu0 %v3640
  %4632 = vmatprep.subr.bf16.mxu0 %v3636
  %4633 = vmatpush2.bf16.msra.mxu0 %v3635
  %4634 = vmatprep.mubr.bf16.mxu0 %v970
  %4635 = vmatmul.mubr.bf16.gmra.mxu0 %v968
  %v4636 = vpop.f32.mrf.mxu0
  %v4637 = vadd.f32 %v4596, %v4636
  %v4638 = vpop.f32.mrf.mxu0
  %v4639 = vadd.f32 %v4598, %v4638
  %v4640 = vpop.f32.mrf.mxu0
  %v4641 = vpop.f32.mrf.mxu0
  %4642 = vdwg.mxu0
  %4643 = vmatprep.subr.bf16.mxu0 %v3073
  %4644 = vmatpush1.bf16.msra.mxu0 %v3072
  %4645 = vmatprep.subr.bf16.mxu0 %v3068
  %4646 = vmatpush1.bf16.msra.mxu0 %v3067
  %4647 = vmatprep.subr.bf16.mxu0 %v3063
  %4648 = vmatpush1.bf16.msra.mxu0 %v3062
  %4649 = vmatprep.subr.bf16.mxu0 %v3058
  %4650 = vmatpush1.bf16.msra.mxu0 %v3057
  %4651 = vmatprep.subr.bf16.mxu0 %v3053
  %4652 = vmatpush1.bf16.msra.mxu0 %v3052
  %4653 = vmatprep.subr.bf16.mxu0 %v3048
  %4654 = vmatpush1.bf16.msra.mxu0 %v3047
  %4655 = vmatprep.subr.bf16.mxu0 %v3043
  %4656 = vmatpush1.bf16.msra.mxu0 %v3042
  %4657 = vmatprep.subr.bf16.mxu0 %v3038
  %4658 = vmatpush1.bf16.msra.mxu0 %v3037
  %4659 = vmatprep.subr.bf16.mxu0 %v3113
  %4660 = vmatpush2.bf16.msra.mxu0 %v3112
  %4661 = vmatprep.subr.bf16.mxu0 %v3108
  %4662 = vmatpush2.bf16.msra.mxu0 %v3107
  %4663 = vmatprep.subr.bf16.mxu0 %v3103
  %4664 = vmatpush2.bf16.msra.mxu0 %v3102
  %4665 = vmatprep.subr.bf16.mxu0 %v3098
  %4666 = vmatpush2.bf16.msra.mxu0 %v3097
  %4667 = vmatprep.subr.bf16.mxu0 %v3093
  %4668 = vmatpush2.bf16.msra.mxu0 %v3092
  %4669 = vmatprep.subr.bf16.mxu0 %v3088
  %4670 = vmatpush2.bf16.msra.mxu0 %v3087
  %4671 = vmatprep.subr.bf16.mxu0 %v3083
  %4672 = vmatpush2.bf16.msra.mxu0 %v3082
  %4673 = vmatprep.subr.bf16.mxu0 %v3078
  %4674 = vmatpush2.bf16.msra.mxu0 %v3077
  %4675 = vmatprep.mubr.bf16.mxu0 %v910
  %4676 = vmatmul.mubr.bf16.gmra.mxu0 %v896
  %v4677 = vpop.f32.mrf.mxu0
  %v4678 = vadd.f32 %v857, %v4677
  %v4679 = vpop.f32.mrf.mxu0
  %v4680 = vadd.f32 %v861, %v4679
  %v4681 = vpop.f32.mrf.mxu0
  %v4682 = vpop.f32.mrf.mxu0
  %4683 = vdwg.mxu0
  %4684 = vmatprep.subr.bf16.mxu0 %v3153
  %4685 = vmatpush1.bf16.msra.mxu0 %v3152
  %4686 = vmatprep.subr.bf16.mxu0 %v3148
  %4687 = vmatpush1.bf16.msra.mxu0 %v3147
  %4688 = vmatprep.subr.bf16.mxu0 %v3143
  %4689 = vmatpush1.bf16.msra.mxu0 %v3142
  %4690 = vmatprep.subr.bf16.mxu0 %v3138
  %4691 = vmatpush1.bf16.msra.mxu0 %v3137
  %4692 = vmatprep.subr.bf16.mxu0 %v3133
  %4693 = vmatpush1.bf16.msra.mxu0 %v3132
  %4694 = vmatprep.subr.bf16.mxu0 %v3128
  %4695 = vmatpush1.bf16.msra.mxu0 %v3127
  %4696 = vmatprep.subr.bf16.mxu0 %v3123
  %4697 = vmatpush1.bf16.msra.mxu0 %v3122
  %4698 = vmatprep.subr.bf16.mxu0 %v3118
  %4699 = vmatpush1.bf16.msra.mxu0 %v3117
  %4700 = vmatprep.subr.bf16.mxu0 %v3193
  %4701 = vmatpush2.bf16.msra.mxu0 %v3192
  %4702 = vmatprep.subr.bf16.mxu0 %v3188
  %4703 = vmatpush2.bf16.msra.mxu0 %v3187
  %4704 = vmatprep.subr.bf16.mxu0 %v3183
  %4705 = vmatpush2.bf16.msra.mxu0 %v3182
  %4706 = vmatprep.subr.bf16.mxu0 %v3178
  %4707 = vmatpush2.bf16.msra.mxu0 %v3177
  %4708 = vmatprep.subr.bf16.mxu0 %v3173
  %4709 = vmatpush2.bf16.msra.mxu0 %v3172
  %4710 = vmatprep.subr.bf16.mxu0 %v3168
  %4711 = vmatpush2.bf16.msra.mxu0 %v3167
  %4712 = vmatprep.subr.bf16.mxu0 %v3163
  %4713 = vmatpush2.bf16.msra.mxu0 %v3162
  %4714 = vmatprep.subr.bf16.mxu0 %v3158
  %4715 = vmatpush2.bf16.msra.mxu0 %v3157
  %4716 = vmatprep.mubr.bf16.mxu0 %v920
  %4717 = vmatmul.mubr.bf16.gmra.mxu0 %v918
  %v4718 = vpop.f32.mrf.mxu0
  %v4719 = vadd.f32 %v4678, %v4718
  %v4720 = vpop.f32.mrf.mxu0
  %v4721 = vadd.f32 %v4680, %v4720
  %v4722 = vpop.f32.mrf.mxu0
  %v4723 = vpop.f32.mrf.mxu0
  %4724 = vdwg.mxu0
  %4725 = vmatprep.subr.bf16.mxu0 %v3233
  %4726 = vmatpush1.bf16.msra.mxu0 %v3232
  %4727 = vmatprep.subr.bf16.mxu0 %v3228
  %4728 = vmatpush1.bf16.msra.mxu0 %v3227
  %4729 = vmatprep.subr.bf16.mxu0 %v3223
  %4730 = vmatpush1.bf16.msra.mxu0 %v3222
  %4731 = vmatprep.subr.bf16.mxu0 %v3218
  %4732 = vmatpush1.bf16.msra.mxu0 %v3217
  %4733 = vmatprep.subr.bf16.mxu0 %v3213
  %4734 = vmatpush1.bf16.msra.mxu0 %v3212
  %4735 = vmatprep.subr.bf16.mxu0 %v3208
  %4736 = vmatpush1.bf16.msra.mxu0 %v3207
  %4737 = vmatprep.subr.bf16.mxu0 %v3203
  %4738 = vmatpush1.bf16.msra.mxu0 %v3202
  %4739 = vmatprep.subr.bf16.mxu0 %v3198
  %4740 = vmatpush1.bf16.msra.mxu0 %v3197
  %4741 = vmatprep.subr.bf16.mxu0 %v3273
  %4742 = vmatpush2.bf16.msra.mxu0 %v3272
  %4743 = vmatprep.subr.bf16.mxu0 %v3268
  %4744 = vmatpush2.bf16.msra.mxu0 %v3267
  %4745 = vmatprep.subr.bf16.mxu0 %v3263
  %4746 = vmatpush2.bf16.msra.mxu0 %v3262
  %4747 = vmatprep.subr.bf16.mxu0 %v3258
  %4748 = vmatpush2.bf16.msra.mxu0 %v3257
  %4749 = vmatprep.subr.bf16.mxu0 %v3253
  %4750 = vmatpush2.bf16.msra.mxu0 %v3252
  %4751 = vmatprep.subr.bf16.mxu0 %v3248
  %4752 = vmatpush2.bf16.msra.mxu0 %v3247
  %4753 = vmatprep.subr.bf16.mxu0 %v3243
  %4754 = vmatpush2.bf16.msra.mxu0 %v3242
  %4755 = vmatprep.subr.bf16.mxu0 %v3238
  %4756 = vmatpush2.bf16.msra.mxu0 %v3237
  %4757 = vmatprep.mubr.bf16.mxu0 %v917
  %4758 = vmatmul.mubr.bf16.gmra.mxu0 %v903
  %v4759 = vpop.f32.mrf.mxu0
  %v4760 = vadd.f32 %v4719, %v4759
  %v4761 = vpop.f32.mrf.mxu0
  %v4762 = vadd.f32 %v4721, %v4761
  %v4763 = vpop.f32.mrf.mxu0
  %v4764 = vpop.f32.mrf.mxu0
  %4765 = vdwg.mxu0
  %4766 = vmatprep.subr.bf16.mxu0 %v3313
  %4767 = vmatpush1.bf16.msra.mxu0 %v3312
  %4768 = vmatprep.subr.bf16.mxu0 %v3308
  %4769 = vmatpush1.bf16.msra.mxu0 %v3307
  %4770 = vmatprep.subr.bf16.mxu0 %v3303
  %4771 = vmatpush1.bf16.msra.mxu0 %v3302
  %4772 = vmatprep.subr.bf16.mxu0 %v3298
  %4773 = vmatpush1.bf16.msra.mxu0 %v3297
  %4774 = vmatprep.subr.bf16.mxu0 %v3293
  %4775 = vmatpush1.bf16.msra.mxu0 %v3292
  %4776 = vmatprep.subr.bf16.mxu0 %v3288
  %4777 = vmatpush1.bf16.msra.mxu0 %v3287
  %4778 = vmatprep.subr.bf16.mxu0 %v3283
  %4779 = vmatpush1.bf16.msra.mxu0 %v3282
  %4780 = vmatprep.subr.bf16.mxu0 %v3278
  %4781 = vmatpush1.bf16.msra.mxu0 %v3277
  %4782 = vmatprep.subr.bf16.mxu0 %v3353
  %4783 = vmatpush2.bf16.msra.mxu0 %v3352
  %4784 = vmatprep.subr.bf16.mxu0 %v3348
  %4785 = vmatpush2.bf16.msra.mxu0 %v3347
  %4786 = vmatprep.subr.bf16.mxu0 %v3343
  %4787 = vmatpush2.bf16.msra.mxu0 %v3342
  %4788 = vmatprep.subr.bf16.mxu0 %v3338
  %4789 = vmatpush2.bf16.msra.mxu0 %v3337
  %4790 = vmatprep.subr.bf16.mxu0 %v3333
  %4791 = vmatpush2.bf16.msra.mxu0 %v3332
  %4792 = vmatprep.subr.bf16.mxu0 %v3328
  %4793 = vmatpush2.bf16.msra.mxu0 %v3327
  %4794 = vmatprep.subr.bf16.mxu0 %v3323
  %4795 = vmatpush2.bf16.msra.mxu0 %v3322
  %4796 = vmatprep.subr.bf16.mxu0 %v3318
  %4797 = vmatpush2.bf16.msra.mxu0 %v3317
  %4798 = vmatprep.mubr.bf16.mxu0 %v921
  %4799 = vmatmul.mubr.bf16.gmra.mxu0 %v919
  %v4800 = vpop.f32.mrf.mxu0
  %v4801 = vadd.f32 %v4760, %v4800
  %v4802 = vpop.f32.mrf.mxu0
  %v4803 = vadd.f32 %v4762, %v4802
  %v4804 = vpop.f32.mrf.mxu0
  %v4805 = vpop.f32.mrf.mxu0
  %4806 = vdwg.mxu0
  %4807 = vmatprep.subr.bf16.mxu0 %v3393
  %4808 = vmatpush1.bf16.msra.mxu0 %v3392
  %4809 = vmatprep.subr.bf16.mxu0 %v3388
  %4810 = vmatpush1.bf16.msra.mxu0 %v3387
  %4811 = vmatprep.subr.bf16.mxu0 %v3383
  %4812 = vmatpush1.bf16.msra.mxu0 %v3382
  %4813 = vmatprep.subr.bf16.mxu0 %v3378
  %4814 = vmatpush1.bf16.msra.mxu0 %v3377
  %4815 = vmatprep.subr.bf16.mxu0 %v3373
  %4816 = vmatpush1.bf16.msra.mxu0 %v3372
  %4817 = vmatprep.subr.bf16.mxu0 %v3368
  %4818 = vmatpush1.bf16.msra.mxu0 %v3367
  %4819 = vmatprep.subr.bf16.mxu0 %v3363
  %4820 = vmatpush1.bf16.msra.mxu0 %v3362
  %4821 = vmatprep.subr.bf16.mxu0 %v3358
  %4822 = vmatpush1.bf16.msra.mxu0 %v3357
  %4823 = vmatprep.subr.bf16.mxu0 %v3433
  %4824 = vmatpush2.bf16.msra.mxu0 %v3432
  %4825 = vmatprep.subr.bf16.mxu0 %v3428
  %4826 = vmatpush2.bf16.msra.mxu0 %v3427
  %4827 = vmatprep.subr.bf16.mxu0 %v3423
  %4828 = vmatpush2.bf16.msra.mxu0 %v3422
  %4829 = vmatprep.subr.bf16.mxu0 %v3418
  %4830 = vmatpush2.bf16.msra.mxu0 %v3417
  %4831 = vmatprep.subr.bf16.mxu0 %v3413
  %4832 = vmatpush2.bf16.msra.mxu0 %v3412
  %4833 = vmatprep.subr.bf16.mxu0 %v3408
  %4834 = vmatpush2.bf16.msra.mxu0 %v3407
  %4835 = vmatprep.subr.bf16.mxu0 %v3403
  %4836 = vmatpush2.bf16.msra.mxu0 %v3402
  %4837 = vmatprep.subr.bf16.mxu0 %v3398
  %4838 = vmatpush2.bf16.msra.mxu0 %v3397
  %4839 = vmatprep.mubr.bf16.mxu0 %v959
  %4840 = vmatmul.mubr.bf16.gmra.mxu0 %v945
  %v4841 = vpop.f32.mrf.mxu0
  %v4842 = vadd.f32 %v4801, %v4841
  %v4843 = vpop.f32.mrf.mxu0
  %v4844 = vadd.f32 %v4803, %v4843
  %v4845 = vpop.f32.mrf.mxu0
  %v4846 = vpop.f32.mrf.mxu0
  %4847 = vdwg.mxu0
  %4848 = vmatprep.subr.bf16.mxu0 %v3473
  %4849 = vmatpush1.bf16.msra.mxu0 %v3472
  %4850 = vmatprep.subr.bf16.mxu0 %v3468
  %4851 = vmatpush1.bf16.msra.mxu0 %v3467
  %4852 = vmatprep.subr.bf16.mxu0 %v3463
  %4853 = vmatpush1.bf16.msra.mxu0 %v3462
  %4854 = vmatprep.subr.bf16.mxu0 %v3458
  %4855 = vmatpush1.bf16.msra.mxu0 %v3457
  %4856 = vmatprep.subr.bf16.mxu0 %v3453
  %4857 = vmatpush1.bf16.msra.mxu0 %v3452
  %4858 = vmatprep.subr.bf16.mxu0 %v3448
  %4859 = vmatpush1.bf16.msra.mxu0 %v3447
  %4860 = vmatprep.subr.bf16.mxu0 %v3443
  %4861 = vmatpush1.bf16.msra.mxu0 %v3442
  %4862 = vmatprep.subr.bf16.mxu0 %v3438
  %4863 = vmatpush1.bf16.msra.mxu0 %v3437
  %4864 = vmatprep.subr.bf16.mxu0 %v3513
  %4865 = vmatpush2.bf16.msra.mxu0 %v3512
  %4866 = vmatprep.subr.bf16.mxu0 %v3508
  %4867 = vmatpush2.bf16.msra.mxu0 %v3507
  %4868 = vmatprep.subr.bf16.mxu0 %v3503
  %4869 = vmatpush2.bf16.msra.mxu0 %v3502
  %4870 = vmatprep.subr.bf16.mxu0 %v3498
  %4871 = vmatpush2.bf16.msra.mxu0 %v3497
  %4872 = vmatprep.subr.bf16.mxu0 %v3493
  %4873 = vmatpush2.bf16.msra.mxu0 %v3492
  %4874 = vmatprep.subr.bf16.mxu0 %v3488
  %4875 = vmatpush2.bf16.msra.mxu0 %v3487
  %4876 = vmatprep.subr.bf16.mxu0 %v3483
  %4877 = vmatpush2.bf16.msra.mxu0 %v3482
  %4878 = vmatprep.subr.bf16.mxu0 %v3478
  %4879 = vmatpush2.bf16.msra.mxu0 %v3477
  %4880 = vmatprep.mubr.bf16.mxu0 %v969
  %4881 = vmatmul.mubr.bf16.gmra.mxu0 %v967
  %v4882 = vpop.f32.mrf.mxu0
  %v4883 = vadd.f32 %v4842, %v4882
  %v4884 = vpop.f32.mrf.mxu0
  %v4885 = vadd.f32 %v4844, %v4884
  %v4886 = vpop.f32.mrf.mxu0
  %v4887 = vpop.f32.mrf.mxu0
  %4888 = vdwg.mxu0
  %4889 = vmatprep.subr.bf16.mxu0 %v3553
  %4890 = vmatpush1.bf16.msra.mxu0 %v3552
  %4891 = vmatprep.subr.bf16.mxu0 %v3548
  %4892 = vmatpush1.bf16.msra.mxu0 %v3547
  %4893 = vmatprep.subr.bf16.mxu0 %v3543
  %4894 = vmatpush1.bf16.msra.mxu0 %v3542
  %4895 = vmatprep.subr.bf16.mxu0 %v3538
  %4896 = vmatpush1.bf16.msra.mxu0 %v3537
  %4897 = vmatprep.subr.bf16.mxu0 %v3533
  %4898 = vmatpush1.bf16.msra.mxu0 %v3532
  %4899 = vmatprep.subr.bf16.mxu0 %v3528
  %4900 = vmatpush1.bf16.msra.mxu0 %v3527
  %4901 = vmatprep.subr.bf16.mxu0 %v3523
  %4902 = vmatpush1.bf16.msra.mxu0 %v3522
  %4903 = vmatprep.subr.bf16.mxu0 %v3518
  %4904 = vmatpush1.bf16.msra.mxu0 %v3517
  %4905 = vmatprep.subr.bf16.mxu0 %v3593
  %4906 = vmatpush2.bf16.msra.mxu0 %v3592
  %4907 = vmatprep.subr.bf16.mxu0 %v3588
  %4908 = vmatpush2.bf16.msra.mxu0 %v3587
  %4909 = vmatprep.subr.bf16.mxu0 %v3583
  %4910 = vmatpush2.bf16.msra.mxu0 %v3582
  %4911 = vmatprep.subr.bf16.mxu0 %v3578
  %4912 = vmatpush2.bf16.msra.mxu0 %v3577
  %4913 = vmatprep.subr.bf16.mxu0 %v3573
  %4914 = vmatpush2.bf16.msra.mxu0 %v3572
  %4915 = vmatprep.subr.bf16.mxu0 %v3568
  %4916 = vmatpush2.bf16.msra.mxu0 %v3567
  %4917 = vmatprep.subr.bf16.mxu0 %v3563
  %4918 = vmatpush2.bf16.msra.mxu0 %v3562
  %4919 = vmatprep.subr.bf16.mxu0 %v3558
  %4920 = vmatpush2.bf16.msra.mxu0 %v3557
  %4921 = vmatprep.mubr.bf16.mxu0 %v966
  %4922 = vmatmul.mubr.bf16.gmra.mxu0 %v952
  %v4923 = vpop.f32.mrf.mxu0
  %v4924 = vadd.f32 %v4883, %v4923
  %v4925 = vpop.f32.mrf.mxu0
  %v4926 = vadd.f32 %v4885, %v4925
  %v4927 = vpop.f32.mrf.mxu0
  %v4928 = vpop.f32.mrf.mxu0
  %4929 = vdwg.mxu0
  %4930 = vmatprep.subr.bf16.mxu0 %v3633
  %4931 = vmatpush1.bf16.msra.mxu0 %v3632
  %4932 = vmatprep.subr.bf16.mxu0 %v3628
  %4933 = vmatpush1.bf16.msra.mxu0 %v3627
  %4934 = vmatprep.subr.bf16.mxu0 %v3623
  %4935 = vmatpush1.bf16.msra.mxu0 %v3622
  %4936 = vmatprep.subr.bf16.mxu0 %v3618
  %4937 = vmatpush1.bf16.msra.mxu0 %v3617
  %4938 = vmatprep.subr.bf16.mxu0 %v3613
  %4939 = vmatpush1.bf16.msra.mxu0 %v3612
  %4940 = vmatprep.subr.bf16.mxu0 %v3608
  %4941 = vmatpush1.bf16.msra.mxu0 %v3607
  %4942 = vmatprep.subr.bf16.mxu0 %v3603
  %4943 = vmatpush1.bf16.msra.mxu0 %v3602
  %4944 = vmatprep.subr.bf16.mxu0 %v3598
  %4945 = vmatpush1.bf16.msra.mxu0 %v3597
  %4946 = vmatprep.subr.bf16.mxu0 %v3673
  %4947 = vmatpush2.bf16.msra.mxu0 %v3672
  %4948 = vmatprep.subr.bf16.mxu0 %v3668
  %4949 = vmatpush2.bf16.msra.mxu0 %v3667
  %4950 = vmatprep.subr.bf16.mxu0 %v3663
  %4951 = vmatpush2.bf16.msra.mxu0 %v3662
  %4952 = vmatprep.subr.bf16.mxu0 %v3658
  %4953 = vmatpush2.bf16.msra.mxu0 %v3657
  %4954 = vmatprep.subr.bf16.mxu0 %v3653
  %4955 = vmatpush2.bf16.msra.mxu0 %v3652
  %4956 = vmatprep.subr.bf16.mxu0 %v3648
  %4957 = vmatpush2.bf16.msra.mxu0 %v3647
  %4958 = vmatprep.subr.bf16.mxu0 %v3643
  %4959 = vmatpush2.bf16.msra.mxu0 %v3642
  %4960 = vmatprep.subr.bf16.mxu0 %v3638
  %4961 = vmatpush2.bf16.msra.mxu0 %v3637
  %4962 = vmatprep.mubr.bf16.mxu0 %v970
  %4963 = vmatmul.mubr.bf16.gmra.mxu0 %v968
  %v4964 = vpop.f32.mrf.mxu0
  %v4965 = vadd.f32 %v4924, %v4964
  %v4966 = vpop.f32.mrf.mxu0
  %v4967 = vadd.f32 %v4926, %v4966
  %v4968 = vpop.f32.mrf.mxu0
  %v4969 = vpop.f32.mrf.mxu0
  %4970 = vdwg.mxu0
  %4971 = vmatprep.subr.bf16.mxu0 0
  %4972 = vmatpush1.bf16.msra.mxu0 %v3074
  %4973 = vmatprep.subr.bf16.mxu0 0
  %4974 = vmatpush1.bf16.msra.mxu0 %v3069
  %4975 = vmatprep.subr.bf16.mxu0 0
  %4976 = vmatpush1.bf16.msra.mxu0 %v3064
  %4977 = vmatprep.subr.bf16.mxu0 0
  %4978 = vmatpush1.bf16.msra.mxu0 %v3059
  %4979 = vmatprep.subr.bf16.mxu0 0
  %4980 = vmatpush1.bf16.msra.mxu0 %v3054
  %4981 = vmatprep.subr.bf16.mxu0 0
  %4982 = vmatpush1.bf16.msra.mxu0 %v3049
  %4983 = vmatprep.subr.bf16.mxu0 0
  %4984 = vmatpush1.bf16.msra.mxu0 %v3044
  %4985 = vmatprep.subr.bf16.mxu0 0
  %4986 = vmatpush1.bf16.msra.mxu0 %v3039
  %4987 = vmatprep.subr.bf16.mxu0 0
  %4988 = vmatpush2.bf16.msra.mxu0 %v3114
  %4989 = vmatprep.subr.bf16.mxu0 0
  %4990 = vmatpush2.bf16.msra.mxu0 %v3109
  %4991 = vmatprep.subr.bf16.mxu0 0
  %4992 = vmatpush2.bf16.msra.mxu0 %v3104
  %4993 = vmatprep.subr.bf16.mxu0 0
  %4994 = vmatpush2.bf16.msra.mxu0 %v3099
  %4995 = vmatprep.subr.bf16.mxu0 0
  %4996 = vmatpush2.bf16.msra.mxu0 %v3094
  %4997 = vmatprep.subr.bf16.mxu0 0
  %4998 = vmatpush2.bf16.msra.mxu0 %v3089
  %4999 = vmatprep.subr.bf16.mxu0 0
  %5000 = vmatpush2.bf16.msra.mxu0 %v3084
  %5001 = vmatprep.subr.bf16.mxu0 0
  %5002 = vmatpush2.bf16.msra.mxu0 %v3079
  %5003 = vmatprep.mubr.bf16.mxu0 %v910
  %5004 = vmatmul.mubr.bf16.gmra.mxu0 %v896
  %v5005 = vpop.f32.mrf.mxu0
  %v5006 = vadd.f32 %v865, %v5005
  %v5007 = vpop.f32.mrf.mxu0
  %v5008 = vpop.f32.mrf.mxu0
  %v5009 = vpop.f32.mrf.mxu0
  %5010 = vdwg.mxu0
  %5011 = vmatprep.subr.bf16.mxu0 0
  %5012 = vmatpush1.bf16.msra.mxu0 %v3154
  %5013 = vmatprep.subr.bf16.mxu0 0
  %5014 = vmatpush1.bf16.msra.mxu0 %v3149
  %5015 = vmatprep.subr.bf16.mxu0 0
  %5016 = vmatpush1.bf16.msra.mxu0 %v3144
  %5017 = vmatprep.subr.bf16.mxu0 0
  %5018 = vmatpush1.bf16.msra.mxu0 %v3139
  %5019 = vmatprep.subr.bf16.mxu0 0
  %5020 = vmatpush1.bf16.msra.mxu0 %v3134
  %5021 = vmatprep.subr.bf16.mxu0 0
  %5022 = vmatpush1.bf16.msra.mxu0 %v3129
  %5023 = vmatprep.subr.bf16.mxu0 0
  %5024 = vmatpush1.bf16.msra.mxu0 %v3124
  %5025 = vmatprep.subr.bf16.mxu0 0
  %5026 = vmatpush1.bf16.msra.mxu0 %v3119
  %5027 = vmatprep.subr.bf16.mxu0 0
  %5028 = vmatpush2.bf16.msra.mxu0 %v3194
  %5029 = vmatprep.subr.bf16.mxu0 0
  %5030 = vmatpush2.bf16.msra.mxu0 %v3189
  %5031 = vmatprep.subr.bf16.mxu0 0
  %5032 = vmatpush2.bf16.msra.mxu0 %v3184
  %5033 = vmatprep.subr.bf16.mxu0 0
  %5034 = vmatpush2.bf16.msra.mxu0 %v3179
  %5035 = vmatprep.subr.bf16.mxu0 0
  %5036 = vmatpush2.bf16.msra.mxu0 %v3174
  %5037 = vmatprep.subr.bf16.mxu0 0
  %5038 = vmatpush2.bf16.msra.mxu0 %v3169
  %5039 = vmatprep.subr.bf16.mxu0 0
  %5040 = vmatpush2.bf16.msra.mxu0 %v3164
  %5041 = vmatprep.subr.bf16.mxu0 0
  %5042 = vmatpush2.bf16.msra.mxu0 %v3159
  %5043 = vmatprep.mubr.bf16.mxu0 %v920
  %5044 = vmatmul.mubr.bf16.gmra.mxu0 %v918
  %v5045 = vpop.f32.mrf.mxu0
  %v5046 = vadd.f32 %v5006, %v5045
  %v5047 = vpop.f32.mrf.mxu0
  %v5048 = vpop.f32.mrf.mxu0
  %v5049 = vpop.f32.mrf.mxu0
  %5050 = vdwg.mxu0
  %5051 = vmatprep.subr.bf16.mxu0 0
  %5052 = vmatpush1.bf16.msra.mxu0 %v3234
  %5053 = vmatprep.subr.bf16.mxu0 0
  %5054 = vmatpush1.bf16.msra.mxu0 %v3229
  %5055 = vmatprep.subr.bf16.mxu0 0
  %5056 = vmatpush1.bf16.msra.mxu0 %v3224
  %5057 = vmatprep.subr.bf16.mxu0 0
  %5058 = vmatpush1.bf16.msra.mxu0 %v3219
  %5059 = vmatprep.subr.bf16.mxu0 0
  %5060 = vmatpush1.bf16.msra.mxu0 %v3214
  %5061 = vmatprep.subr.bf16.mxu0 0
  %5062 = vmatpush1.bf16.msra.mxu0 %v3209
  %5063 = vmatprep.subr.bf16.mxu0 0
  %5064 = vmatpush1.bf16.msra.mxu0 %v3204
  %5065 = vmatprep.subr.bf16.mxu0 0
  %5066 = vmatpush1.bf16.msra.mxu0 %v3199
  %5067 = vmatprep.subr.bf16.mxu0 0
  %5068 = vmatpush2.bf16.msra.mxu0 %v3274
  %5069 = vmatprep.subr.bf16.mxu0 0
  %5070 = vmatpush2.bf16.msra.mxu0 %v3269
  %5071 = vmatprep.subr.bf16.mxu0 0
  %5072 = vmatpush2.bf16.msra.mxu0 %v3264
  %5073 = vmatprep.subr.bf16.mxu0 0
  %5074 = vmatpush2.bf16.msra.mxu0 %v3259
  %5075 = vmatprep.subr.bf16.mxu0 0
  %5076 = vmatpush2.bf16.msra.mxu0 %v3254
  %5077 = vmatprep.subr.bf16.mxu0 0
  %5078 = vmatpush2.bf16.msra.mxu0 %v3249
  %5079 = vmatprep.subr.bf16.mxu0 0
  %5080 = vmatpush2.bf16.msra.mxu0 %v3244
  %5081 = vmatprep.subr.bf16.mxu0 0
  %5082 = vmatpush2.bf16.msra.mxu0 %v3239
  %5083 = vmatprep.mubr.bf16.mxu0 %v917
  %5084 = vmatmul.mubr.bf16.gmra.mxu0 %v903
  %v5085 = vpop.f32.mrf.mxu0
  %v5086 = vadd.f32 %v5046, %v5085
  %v5087 = vpop.f32.mrf.mxu0
  %v5088 = vpop.f32.mrf.mxu0
  %v5089 = vpop.f32.mrf.mxu0
  %5090 = vdwg.mxu0
  %5091 = vmatprep.subr.bf16.mxu0 0
  %5092 = vmatpush1.bf16.msra.mxu0 %v3314
  %5093 = vmatprep.subr.bf16.mxu0 0
  %5094 = vmatpush1.bf16.msra.mxu0 %v3309
  %5095 = vmatprep.subr.bf16.mxu0 0
  %5096 = vmatpush1.bf16.msra.mxu0 %v3304
  %5097 = vmatprep.subr.bf16.mxu0 0
  %5098 = vmatpush1.bf16.msra.mxu0 %v3299
  %5099 = vmatprep.subr.bf16.mxu0 0
  %5100 = vmatpush1.bf16.msra.mxu0 %v3294
  %5101 = vmatprep.subr.bf16.mxu0 0
  %5102 = vmatpush1.bf16.msra.mxu0 %v3289
  %5103 = vmatprep.subr.bf16.mxu0 0
  %5104 = vmatpush1.bf16.msra.mxu0 %v3284
  %5105 = vmatprep.subr.bf16.mxu0 0
  %5106 = vmatpush1.bf16.msra.mxu0 %v3279
  %5107 = vmatprep.subr.bf16.mxu0 0
  %5108 = vmatpush2.bf16.msra.mxu0 %v3354
  %5109 = vmatprep.subr.bf16.mxu0 0
  %5110 = vmatpush2.bf16.msra.mxu0 %v3349
  %5111 = vmatprep.subr.bf16.mxu0 0
  %5112 = vmatpush2.bf16.msra.mxu0 %v3344
  %5113 = vmatprep.subr.bf16.mxu0 0
  %5114 = vmatpush2.bf16.msra.mxu0 %v3339
  %5115 = vmatprep.subr.bf16.mxu0 0
  %5116 = vmatpush2.bf16.msra.mxu0 %v3334
  %5117 = vmatprep.subr.bf16.mxu0 0
  %5118 = vmatpush2.bf16.msra.mxu0 %v3329
  %5119 = vmatprep.subr.bf16.mxu0 0
  %5120 = vmatpush2.bf16.msra.mxu0 %v3324
  %5121 = vmatprep.subr.bf16.mxu0 0
  %5122 = vmatpush2.bf16.msra.mxu0 %v3319
  %5123 = vmatprep.mubr.bf16.mxu0 %v921
  %5124 = vmatmul.mubr.bf16.gmra.mxu0 %v919
  %v5125 = vpop.f32.mrf.mxu0
  %v5126 = vadd.f32 %v5086, %v5125
  %v5127 = vpop.f32.mrf.mxu0
  %v5128 = vpop.f32.mrf.mxu0
  %v5129 = vpop.f32.mrf.mxu0
  %5130 = vdwg.mxu0
  %5131 = vmatprep.subr.bf16.mxu0 0
  %5132 = vmatpush1.bf16.msra.mxu0 %v3394
  %5133 = vmatprep.subr.bf16.mxu0 0
  %5134 = vmatpush1.bf16.msra.mxu0 %v3389
  %5135 = vmatprep.subr.bf16.mxu0 0
  %5136 = vmatpush1.bf16.msra.mxu0 %v3384
  %5137 = vmatprep.subr.bf16.mxu0 0
  %5138 = vmatpush1.bf16.msra.mxu0 %v3379
  %5139 = vmatprep.subr.bf16.mxu0 0
  %5140 = vmatpush1.bf16.msra.mxu0 %v3374
  %5141 = vmatprep.subr.bf16.mxu0 0
  %5142 = vmatpush1.bf16.msra.mxu0 %v3369
  %5143 = vmatprep.subr.bf16.mxu0 0
  %5144 = vmatpush1.bf16.msra.mxu0 %v3364
  %5145 = vmatprep.subr.bf16.mxu0 0
  %5146 = vmatpush1.bf16.msra.mxu0 %v3359
  %5147 = vmatprep.subr.bf16.mxu0 0
  %5148 = vmatpush2.bf16.msra.mxu0 %v3434
  %5149 = vmatprep.subr.bf16.mxu0 0
  %5150 = vmatpush2.bf16.msra.mxu0 %v3429
  %5151 = vmatprep.subr.bf16.mxu0 0
  %5152 = vmatpush2.bf16.msra.mxu0 %v3424
  %5153 = vmatprep.subr.bf16.mxu0 0
  %5154 = vmatpush2.bf16.msra.mxu0 %v3419
  %5155 = vmatprep.subr.bf16.mxu0 0
  %5156 = vmatpush2.bf16.msra.mxu0 %v3414
  %5157 = vmatprep.subr.bf16.mxu0 0
  %5158 = vmatpush2.bf16.msra.mxu0 %v3409
  %5159 = vmatprep.subr.bf16.mxu0 0
  %5160 = vmatpush2.bf16.msra.mxu0 %v3404
  %5161 = vmatprep.subr.bf16.mxu0 0
  %5162 = vmatpush2.bf16.msra.mxu0 %v3399
  %5163 = vmatprep.mubr.bf16.mxu0 %v959
  %5164 = vmatmul.mubr.bf16.gmra.mxu0 %v945
  %v5165 = vpop.f32.mrf.mxu0
  %v5166 = vadd.f32 %v5126, %v5165
  %v5167 = vpop.f32.mrf.mxu0
  %v5168 = vpop.f32.mrf.mxu0
  %v5169 = vpop.f32.mrf.mxu0
  %5170 = vdwg.mxu0
  %5171 = vmatprep.subr.bf16.mxu0 0
  %5172 = vmatpush1.bf16.msra.mxu0 %v3474
  %5173 = vmatprep.subr.bf16.mxu0 0
  %5174 = vmatpush1.bf16.msra.mxu0 %v3469
  %5175 = vmatprep.subr.bf16.mxu0 0
  %5176 = vmatpush1.bf16.msra.mxu0 %v3464
  %5177 = vmatprep.subr.bf16.mxu0 0
  %5178 = vmatpush1.bf16.msra.mxu0 %v3459
  %5179 = vmatprep.subr.bf16.mxu0 0
  %5180 = vmatpush1.bf16.msra.mxu0 %v3454
  %5181 = vmatprep.subr.bf16.mxu0 0
  %5182 = vmatpush1.bf16.msra.mxu0 %v3449
  %5183 = vmatprep.subr.bf16.mxu0 0
  %5184 = vmatpush1.bf16.msra.mxu0 %v3444
  %5185 = vmatprep.subr.bf16.mxu0 0
  %5186 = vmatpush1.bf16.msra.mxu0 %v3439
  %5187 = vmatprep.subr.bf16.mxu0 0
  %5188 = vmatpush2.bf16.msra.mxu0 %v3514
  %5189 = vmatprep.subr.bf16.mxu0 0
  %5190 = vmatpush2.bf16.msra.mxu0 %v3509
  %5191 = vmatprep.subr.bf16.mxu0 0
  %5192 = vmatpush2.bf16.msra.mxu0 %v3504
  %5193 = vmatprep.subr.bf16.mxu0 0
  %5194 = vmatpush2.bf16.msra.mxu0 %v3499
  %5195 = vmatprep.subr.bf16.mxu0 0
  %5196 = vmatpush2.bf16.msra.mxu0 %v3494
  %5197 = vmatprep.subr.bf16.mxu0 0
  %5198 = vmatpush2.bf16.msra.mxu0 %v3489
  %5199 = vmatprep.subr.bf16.mxu0 0
  %5200 = vmatpush2.bf16.msra.mxu0 %v3484
  %5201 = vmatprep.subr.bf16.mxu0 0
  %5202 = vmatpush2.bf16.msra.mxu0 %v3479
  %5203 = vmatprep.mubr.bf16.mxu0 %v969
  %5204 = vmatmul.mubr.bf16.gmra.mxu0 %v967
  %v5205 = vpop.f32.mrf.mxu0
  %v5206 = vadd.f32 %v5166, %v5205
  %v5207 = vpop.f32.mrf.mxu0
  %v5208 = vpop.f32.mrf.mxu0
  %v5209 = vpop.f32.mrf.mxu0
  %5210 = vdwg.mxu0
  %5211 = vmatprep.subr.bf16.mxu0 0
  %5212 = vmatpush1.bf16.msra.mxu0 %v3554
  %5213 = vmatprep.subr.bf16.mxu0 0
  %5214 = vmatpush1.bf16.msra.mxu0 %v3549
  %5215 = vmatprep.subr.bf16.mxu0 0
  %5216 = vmatpush1.bf16.msra.mxu0 %v3544
  %5217 = vmatprep.subr.bf16.mxu0 0
  %5218 = vmatpush1.bf16.msra.mxu0 %v3539
  %5219 = vmatprep.subr.bf16.mxu0 0
  %5220 = vmatpush1.bf16.msra.mxu0 %v3534
  %5221 = vmatprep.subr.bf16.mxu0 0
  %5222 = vmatpush1.bf16.msra.mxu0 %v3529
  %5223 = vmatprep.subr.bf16.mxu0 0
  %5224 = vmatpush1.bf16.msra.mxu0 %v3524
  %5225 = vmatprep.subr.bf16.mxu0 0
  %5226 = vmatpush1.bf16.msra.mxu0 %v3519
  %5227 = vmatprep.subr.bf16.mxu0 0
  %5228 = vmatpush2.bf16.msra.mxu0 %v3594
  %5229 = vmatprep.subr.bf16.mxu0 0
  %5230 = vmatpush2.bf16.msra.mxu0 %v3589
  %5231 = vmatprep.subr.bf16.mxu0 0
  %5232 = vmatpush2.bf16.msra.mxu0 %v3584
  %5233 = vmatprep.subr.bf16.mxu0 0
  %5234 = vmatpush2.bf16.msra.mxu0 %v3579
  %5235 = vmatprep.subr.bf16.mxu0 0
  %5236 = vmatpush2.bf16.msra.mxu0 %v3574
  %5237 = vmatprep.subr.bf16.mxu0 0
  %5238 = vmatpush2.bf16.msra.mxu0 %v3569
  %5239 = vmatprep.subr.bf16.mxu0 0
  %5240 = vmatpush2.bf16.msra.mxu0 %v3564
  %5241 = vmatprep.subr.bf16.mxu0 0
  %5242 = vmatpush2.bf16.msra.mxu0 %v3559
  %5243 = vmatprep.mubr.bf16.mxu0 %v966
  %5244 = vmatmul.mubr.bf16.gmra.mxu0 %v952
  %v5245 = vpop.f32.mrf.mxu0
  %v5246 = vadd.f32 %v5206, %v5245
  %v5247 = vpop.f32.mrf.mxu0
  %v5248 = vpop.f32.mrf.mxu0
  %v5249 = vpop.f32.mrf.mxu0
  %5250 = vdwg.mxu0
  %5251 = vmatprep.subr.bf16.mxu0 0
  %5252 = vmatpush1.bf16.msra.mxu0 %v3634
  %5253 = vmatprep.subr.bf16.mxu0 0
  %5254 = vmatpush1.bf16.msra.mxu0 %v3629
  %5255 = vmatprep.subr.bf16.mxu0 0
  %5256 = vmatpush1.bf16.msra.mxu0 %v3624
  %5257 = vmatprep.subr.bf16.mxu0 0
  %5258 = vmatpush1.bf16.msra.mxu0 %v3619
  %5259 = vmatprep.subr.bf16.mxu0 0
  %5260 = vmatpush1.bf16.msra.mxu0 %v3614
  %5261 = vmatprep.subr.bf16.mxu0 0
  %5262 = vmatpush1.bf16.msra.mxu0 %v3609
  %5263 = vmatprep.subr.bf16.mxu0 0
  %5264 = vmatpush1.bf16.msra.mxu0 %v3604
  %5265 = vmatprep.subr.bf16.mxu0 0
  %5266 = vmatpush1.bf16.msra.mxu0 %v3599
  %5267 = vmatprep.subr.bf16.mxu0 0
  %5268 = vmatpush2.bf16.msra.mxu0 %v3674
  %5269 = vmatprep.subr.bf16.mxu0 0
  %5270 = vmatpush2.bf16.msra.mxu0 %v3669
  %5271 = vmatprep.subr.bf16.mxu0 0
  %5272 = vmatpush2.bf16.msra.mxu0 %v3664
  %5273 = vmatprep.subr.bf16.mxu0 0
  %5274 = vmatpush2.bf16.msra.mxu0 %v3659
  %5275 = vmatprep.subr.bf16.mxu0 0
  %5276 = vmatpush2.bf16.msra.mxu0 %v3654
  %5277 = vmatprep.subr.bf16.mxu0 0
  %5278 = vmatpush2.bf16.msra.mxu0 %v3649
  %5279 = vmatprep.subr.bf16.mxu0 0
  %5280 = vmatpush2.bf16.msra.mxu0 %v3644
  %5281 = vmatprep.subr.bf16.mxu0 0
  %5282 = vmatpush2.bf16.msra.mxu0 %v3639
  %5283 = vmatprep.mubr.bf16.mxu0 %v970
  %5284 = vmatmul.mubr.bf16.gmra.mxu0 %v968
  %v5285 = vpop.f32.mrf.mxu0
  %v5286 = vadd.f32 %v5246, %v5285
  %v5287 = vpop.f32.mrf.mxu0
  %v5288 = vpop.f32.mrf.mxu0
  %v5289 = vpop.f32.mrf.mxu0
  %5290 = vdwg.mxu0
  %v5291 = vld [vmem:[%s5] sm:$0x1f]
  %v5293 = vlaneseq
  %v5294 = vshrl.u32 %v5293, 7
  %v5295 = vsub.s32 0, %v5294
  %v5296 = vrot.slane %v5291, %v5295
  %v5297 = vlaneseq
  %v5298 = vshrl.u32 %v5297, 7
  %v5299 = vsub.s32 1, %v5298
  %v5300 = vrot.slane %v5291, %v5299
  %v5301 = vlaneseq
  %v5302 = vshrl.u32 %v5301, 7
  %v5303 = vsub.s32 2, %v5302
  %v5304 = vrot.slane %v5291, %v5303
  %v5305 = vlaneseq
  %v5306 = vshrl.u32 %v5305, 7
  %v5307 = vsub.s32 3, %v5306
  %v5308 = vrot.slane %v5291, %v5307
  %v5309 = vlaneseq
  %v5310 = vshrl.u32 %v5309, 7
  %v5311 = vsub.s32 4, %v5310
  %v5312 = vrot.slane %v5291, %v5311
  %v5318 = vmul.f32 %v5296, %v4637
  %v5319 = vmul.f32 %v5300, %v4639
  %v5320 = vmul.f32 %v5304, %v4965
  %v5321 = vmul.f32 %v5308, %v4967
  %v5322 = vmul.f32 %v5312, %v5286
  %v5323 = vsub.f32 0.0, %v5318
  %v5324 = vsub.f32 0.0, %v5319
  %v5325 = vsub.f32 0.0, %v5320
  %v5326 = vsub.f32 0.0, %v5321
  %v5327 = vsub.f32 0.0, %v5322
  %v5328 = vmul.f32 %v5323, 1.442695
  %v5329 = vpow.pop %v5328
  %v5330 = vmul.f32 %v5324, 1.442695
  %v5331 = vpow.pop %v5330
  %v5332 = vmul.f32 %v5325, 1.442695
  %v5333 = vpow.pop %v5332
  %v5334 = vmul.f32 %v5326, 1.442695
  %v5335 = vpow.pop %v5334
  %v5336 = vmul.f32 %v5327, 1.442695
  %v5337 = vpow.pop %v5336
  %v5338 = vadd.f32 %v5329, 1.0
  %v5339 = vadd.f32 %v5331, 1.0
  %v5340 = vadd.f32 %v5333, 1.0
  %v5341 = vadd.f32 %v5335, 1.0
  %v5342 = vadd.f32 %v5337, 1.0
  %v5343 = vrcp.pop %v5338
  %v5344 = vrcp.pop %v5339
  %v5345 = vrcp.pop %v5340
  %v5346 = vrcp.pop %v5341
  %v5347 = vrcp.pop %v5342
  %v5348 = vmul.f32 %v4637, %v5343
  %v5349 = vmul.f32 %v4639, %v5344
  %v5350 = vmul.f32 %v4965, %v5345
  %v5351 = vmul.f32 %v4967, %v5346
  %v5352 = vmul.f32 %v5286, %v5347
  %v5353 = vpack.c.bf16 %v5348, %v5348
  %v5354 = vpack.c.bf16 %v5349, %v5349
  %v5355 = vpack.c.bf16 %v5350, %v5350
  %v5356 = vpack.c.bf16 %v5351, %v5351
  %v5357 = vpack.c.bf16 %v5352, %v5352
  %v5358 = vld [vmem:[%s6] sm:$0xf]
  %v5359 = vld [vmem:[%s6 + $0x4] sm:$0xf]
  %v5360 = vld [vmem:[%s6 + $0x8] sm:$0xf]
  %v5361 = vld [vmem:[%s6 + $0xc] sm:$0xf]
  %v5362 = vld [vmem:[%s6 + $0x10] sm:$0xf]
  %v5363 = vld [vmem:[%s6 + $0x14] sm:$0xf]
  %v5364 = vld [vmem:[%s6 + $0x18] sm:$0xf]
  %v5365 = vld [vmem:[%s6 + $0x1c] sm:$0xf]
  %v5366 = vld [vmem:[%s6 + $0x20] sm:$0xf]
  %v5367 = vld [vmem:[%s6 + $0x24] sm:$0xf]
  %v5368 = vld [vmem:[%s6 + $0x28] sm:$0xf]
  %v5369 = vld [vmem:[%s6 + $0x2c] sm:$0xf]
  %v5370 = vld [vmem:[%s6 + $0x30] sm:$0xf]
  %v5371 = vld [vmem:[%s6 + $0x34] sm:$0xf]
  %v5372 = vld [vmem:[%s6 + $0x38] sm:$0xf]
  %v5373 = vld [vmem:[%s6 + $0x3c] sm:$0xf]
  %v5374 = vld [vmem:[%s6 + $0x40] sm:$0xf]
  %v5375 = vld [vmem:[%s6 + $0x44] sm:$0xf]
  %v5376 = vld [vmem:[%s6 + $0x48] sm:$0xf]
  %v5377 = vld [vmem:[%s6 + $0x4c] sm:$0xf]
  %v5378 = vld [vmem:[%s6 + $0x50] sm:$0xf]
  %v5379 = vld [vmem:[%s6 + $0x54] sm:$0xf]
  %v5380 = vld [vmem:[%s6 + $0x58] sm:$0xf]
  %v5381 = vld [vmem:[%s6 + $0x5c] sm:$0xf]
  %v5382 = vld [vmem:[%s6 + $0x60] sm:$0xf]
  %v5383 = vld [vmem:[%s6 + $0x64] sm:$0xf]
  %v5384 = vld [vmem:[%s6 + $0x68] sm:$0xf]
  %v5385 = vld [vmem:[%s6 + $0x6c] sm:$0xf]
  %v5386 = vld [vmem:[%s6 + $0x70] sm:$0xf]
  %v5387 = vld [vmem:[%s6 + $0x74] sm:$0xf]
  %v5388 = vld [vmem:[%s6 + $0x78] sm:$0xf]
  %v5389 = vld [vmem:[%s6 + $0x7c] sm:$0xf]
  %v5390 = vld [vmem:[%s6 + $0x80] sm:$0xf]
  %v5391 = vld [vmem:[%s6 + $0x84] sm:$0xf]
  %v5392 = vld [vmem:[%s6 + $0x88] sm:$0xf]
  %v5393 = vld [vmem:[%s6 + $0x8c] sm:$0xf]
  %v5394 = vld [vmem:[%s6 + $0x90] sm:$0xf]
  %v5395 = vld [vmem:[%s6 + $0x94] sm:$0xf]
  %v5396 = vld [vmem:[%s6 + $0x98] sm:$0xf]
  %v5397 = vld [vmem:[%s6 + $0x9c] sm:$0xf]
  %v5398 = vld [vmem:[%s6 + $0xa0] sm:$0xf]
  %v5399 = vld [vmem:[%s6 + $0xa4] sm:$0xf]
  %v5400 = vld [vmem:[%s6 + $0xa8] sm:$0xf]
  %v5401 = vld [vmem:[%s6 + $0xac] sm:$0xf]
  %v5402 = vld [vmem:[%s6 + $0xb0] sm:$0xf]
  %v5403 = vld [vmem:[%s6 + $0xb4] sm:$0xf]
  %v5404 = vld [vmem:[%s6 + $0xb8] sm:$0xf]
  %v5405 = vld [vmem:[%s6 + $0xbc] sm:$0xf]
  %v5406 = vld [vmem:[%s6 + $0xc0] sm:$0xf]
  %v5407 = vld [vmem:[%s6 + $0xc4] sm:$0xf]
  %v5408 = vld [vmem:[%s6 + $0xc8] sm:$0xf]
  %v5409 = vld [vmem:[%s6 + $0xcc] sm:$0xf]
  %v5410 = vld [vmem:[%s6 + $0xd0] sm:$0xf]
  %v5411 = vld [vmem:[%s6 + $0xd4] sm:$0xf]
  %v5412 = vld [vmem:[%s6 + $0xd8] sm:$0xf]
  %v5413 = vld [vmem:[%s6 + $0xdc] sm:$0xf]
  %v5414 = vld [vmem:[%s6 + $0xe0] sm:$0xf]
  %v5415 = vld [vmem:[%s6 + $0xe4] sm:$0xf]
  %v5416 = vld [vmem:[%s6 + $0xe8] sm:$0xf]
  %v5417 = vld [vmem:[%s6 + $0xec] sm:$0xf]
  %v5418 = vld [vmem:[%s6 + $0xf0] sm:$0xf]
  %v5419 = vld [vmem:[%s6 + $0xf4] sm:$0xf]
  %v5420 = vld [vmem:[%s6 + $0xf8] sm:$0xf]
  %v5421 = vld [vmem:[%s6 + $0xfc] sm:$0xf]
  %v5422 = vld [vmem:[%s6 + $0x100] sm:$0xf]
  %v5423 = vld [vmem:[%s6 + $0x104] sm:$0xf]
  %v5424 = vld [vmem:[%s6 + $0x108] sm:$0xf]
  %v5425 = vld [vmem:[%s6 + $0x10c] sm:$0xf]
  %v5426 = vld [vmem:[%s6 + $0x110] sm:$0xf]
  %v5427 = vld [vmem:[%s6 + $0x114] sm:$0xf]
  %v5428 = vld [vmem:[%s6 + $0x118] sm:$0xf]
  %v5429 = vld [vmem:[%s6 + $0x11c] sm:$0xf]
  %v5430 = vld [vmem:[%s7] sm:$0x1]
  %v5432 = vlaneseq
  %v5433 = vshrl.u32 %v5432, 7
  %v5434 = vsub.s32 0, %v5433
  %v5435 = vrot.slane %v5430, %v5434
  %v5509 = vunpack.c.l.b16 %v5358
  %v5510 = vunpack.c.l.b16 %v5359
  %v5511 = vunpack.c.l.b16 %v5360
  %v5512 = vunpack.c.l.b16 %v5361
  %v5513 = vunpack.c.l.b16 %v5362
  %v5514 = vunpack.c.l.b16 %v5363
  %v5515 = vunpack.c.l.b16 %v5364
  %v5516 = vunpack.c.l.b16 %v5365
  %v5517 = vunpack.c.l.b16 %v5366
  %v5518 = vunpack.c.l.b16 %v5367
  %v5519 = vunpack.c.l.b16 %v5368
  %v5520 = vunpack.c.l.b16 %v5369
  %v5521 = vunpack.c.l.b16 %v5370
  %v5522 = vunpack.c.l.b16 %v5371
  %v5523 = vunpack.c.l.b16 %v5372
  %v5524 = vunpack.c.l.b16 %v5373
  %v5525 = vunpack.c.l.b16 %v5374
  %v5526 = vunpack.c.l.b16 %v5375
  %v5527 = vunpack.c.l.b16 %v5376
  %v5528 = vunpack.c.l.b16 %v5377
  %v5529 = vunpack.c.l.b16 %v5378
  %v5530 = vunpack.c.l.b16 %v5379
  %v5531 = vunpack.c.l.b16 %v5380
  %v5532 = vunpack.c.l.b16 %v5381
  %v5533 = vunpack.c.l.b16 %v5382
  %v5534 = vunpack.c.l.b16 %v5383
  %v5535 = vunpack.c.l.b16 %v5384
  %v5536 = vunpack.c.l.b16 %v5385
  %v5537 = vunpack.c.l.b16 %v5386
  %v5538 = vunpack.c.l.b16 %v5387
  %v5539 = vunpack.c.l.b16 %v5388
  %v5540 = vunpack.c.l.b16 %v5389
  %v5541 = vunpack.c.l.b16 %v5390
  %v5542 = vunpack.c.l.b16 %v5391
  %v5543 = vunpack.c.l.b16 %v5392
  %v5544 = vunpack.c.l.b16 %v5393
  %v5545 = vunpack.c.l.b16 %v5394
  %v5546 = vunpack.c.l.b16 %v5395
  %v5547 = vunpack.c.l.b16 %v5396
  %v5548 = vunpack.c.l.b16 %v5397
  %v5549 = vunpack.c.l.b16 %v5398
  %v5550 = vunpack.c.l.b16 %v5399
  %v5551 = vunpack.c.l.b16 %v5400
  %v5552 = vunpack.c.l.b16 %v5401
  %v5553 = vunpack.c.l.b16 %v5402
  %v5554 = vunpack.c.l.b16 %v5403
  %v5555 = vunpack.c.l.b16 %v5404
  %v5556 = vunpack.c.l.b16 %v5405
  %v5557 = vunpack.c.l.b16 %v5406
  %v5558 = vunpack.c.l.b16 %v5407
  %v5559 = vunpack.c.l.b16 %v5408
  %v5560 = vunpack.c.l.b16 %v5409
  %v5561 = vunpack.c.l.b16 %v5410
  %v5562 = vunpack.c.l.b16 %v5411
  %v5563 = vunpack.c.l.b16 %v5412
  %v5564 = vunpack.c.l.b16 %v5413
  %v5565 = vunpack.c.l.b16 %v5414
  %v5566 = vunpack.c.l.b16 %v5415
  %v5567 = vunpack.c.l.b16 %v5416
  %v5568 = vunpack.c.l.b16 %v5417
  %v5569 = vunpack.c.l.b16 %v5418
  %v5570 = vunpack.c.l.b16 %v5419
  %v5571 = vunpack.c.l.b16 %v5420
  %v5572 = vunpack.c.l.b16 %v5421
  %v5573 = vunpack.c.l.b16 %v5422
  %v5574 = vunpack.c.l.b16 %v5423
  %v5575 = vunpack.c.l.b16 %v5424
  %v5576 = vunpack.c.l.b16 %v5425
  %v5577 = vunpack.c.l.b16 %v5426
  %v5578 = vunpack.c.l.b16 %v5427
  %v5579 = vunpack.c.l.b16 %v5428
  %v5580 = vunpack.c.l.b16 %v5429
  %v5581 = vpack.c.b16 %v5510, %v5509
  %v5582 = vpack.c.b16 %v5512, %v5511
  %v5583 = vpack.c.b16 %v5514, %v5513
  %v5584 = vpack.c.b16 %v5516, %v5515
  %v5585 = vpack.c.b16 %v5518, %v5517
  %v5586 = vpack.c.b16 %v5520, %v5519
  %v5587 = vpack.c.b16 %v5522, %v5521
  %v5588 = vpack.c.b16 %v5524, %v5523
  %v5589 = vpack.c.b16 %v5526, %v5525
  %v5590 = vpack.c.b16 %v5528, %v5527
  %v5591 = vpack.c.b16 %v5530, %v5529
  %v5592 = vpack.c.b16 %v5532, %v5531
  %v5593 = vpack.c.b16 %v5534, %v5533
  %v5594 = vpack.c.b16 %v5536, %v5535
  %v5595 = vpack.c.b16 %v5538, %v5537
  %v5596 = vpack.c.b16 %v5540, %v5539
  %v5597 = vpack.c.b16 %v5542, %v5541
  %v5598 = vpack.c.b16 %v5544, %v5543
  %v5599 = vpack.c.b16 %v5546, %v5545
  %v5600 = vpack.c.b16 %v5548, %v5547
  %v5601 = vpack.c.b16 %v5550, %v5549
  %v5602 = vpack.c.b16 %v5552, %v5551
  %v5603 = vpack.c.b16 %v5554, %v5553
  %v5604 = vpack.c.b16 %v5556, %v5555
  %v5605 = vpack.c.b16 %v5558, %v5557
  %v5606 = vpack.c.b16 %v5560, %v5559
  %v5607 = vpack.c.b16 %v5562, %v5561
  %v5608 = vpack.c.b16 %v5564, %v5563
  %v5609 = vpack.c.b16 %v5566, %v5565
  %v5610 = vpack.c.b16 %v5568, %v5567
  %v5611 = vpack.c.b16 %v5570, %v5569
  %v5612 = vpack.c.b16 %v5572, %v5571
  %v5613 = vpack.c.b16 %v5574, %v5573
  %v5614 = vpack.c.b16 %v5576, %v5575
  %v5615 = vpack.c.b16 %v5578, %v5577
  %v5616 = vpack.c.b16 %v5580, %v5579
  %vm5653 = vcmask 523264
  %v5655 = vsel %vm5653, %v5357, 0
  %5657 = vmatprep.subr.bf16.mxu0 0
  %5658 = vmatpush1.bf16.msra.mxu0 %v5588
  %5659 = vmatprep.subr.bf16.mxu0 0
  %5660 = vmatpush1.bf16.msra.mxu0 %v5587
  %5661 = vmatprep.subr.bf16.mxu0 0
  %5662 = vmatpush1.bf16.msra.mxu0 %v5586
  %5663 = vmatprep.subr.bf16.mxu0 0
  %5664 = vmatpush1.bf16.msra.mxu0 %v5585
  %5665 = vmatprep.subr.bf16.mxu0 0
  %5666 = vmatpush1.bf16.msra.mxu0 %v5584
  %5667 = vmatprep.subr.bf16.mxu0 0
  %5668 = vmatpush1.bf16.msra.mxu0 %v5583
  %5669 = vmatprep.subr.bf16.mxu0 0
  %5670 = vmatpush1.bf16.msra.mxu0 %v5582
  %5671 = vmatprep.subr.bf16.mxu0 0
  %5672 = vmatpush1.bf16.msra.mxu0 %v5581
  %5673 = vmatprep.subr.bf16.mxu0 0
  %5674 = vmatpush2.bf16.msra.mxu0 %v5596
  %5675 = vmatprep.subr.bf16.mxu0 0
  %5676 = vmatpush2.bf16.msra.mxu0 %v5595
  %5677 = vmatprep.subr.bf16.mxu0 0
  %5678 = vmatpush2.bf16.msra.mxu0 %v5594
  %5679 = vmatprep.subr.bf16.mxu0 0
  %5680 = vmatpush2.bf16.msra.mxu0 %v5593
  %5681 = vmatprep.subr.bf16.mxu0 0
  %5682 = vmatpush2.bf16.msra.mxu0 %v5592
  %5683 = vmatprep.subr.bf16.mxu0 0
  %5684 = vmatpush2.bf16.msra.mxu0 %v5591
  %5685 = vmatprep.subr.bf16.mxu0 0
  %5686 = vmatpush2.bf16.msra.mxu0 %v5590
  %5687 = vmatprep.subr.bf16.mxu0 0
  %5688 = vmatpush2.bf16.msra.mxu0 %v5589
  %5689 = vmatprep.mubr.bf16.mxu0 %v5354
  %5690 = vmatmul.mubr.bf16.gmra.mxu0 %v5353
  %v5691 = vpop.f32.mrf.mxu0
  %v5692 = vadd.f32 %v5435, %v5691
  %v5693 = vpop.f32.mrf.mxu0
  %v5694 = vpop.f32.mrf.mxu0
  %v5695 = vpop.f32.mrf.mxu0
  %5696 = vdwg.mxu0
  %5697 = vmatprep.subr.bf16.mxu0 0
  %5698 = vmatpush1.bf16.msra.mxu0 %v5604
  %5699 = vmatprep.subr.bf16.mxu0 0
  %5700 = vmatpush1.bf16.msra.mxu0 %v5603
  %5701 = vmatprep.subr.bf16.mxu0 0
  %5702 = vmatpush1.bf16.msra.mxu0 %v5602
  %5703 = vmatprep.subr.bf16.mxu0 0
  %5704 = vmatpush1.bf16.msra.mxu0 %v5601
  %5705 = vmatprep.subr.bf16.mxu0 0
  %5706 = vmatpush1.bf16.msra.mxu0 %v5600
  %5707 = vmatprep.subr.bf16.mxu0 0
  %5708 = vmatpush1.bf16.msra.mxu0 %v5599
  %5709 = vmatprep.subr.bf16.mxu0 0
  %5710 = vmatpush1.bf16.msra.mxu0 %v5598
  %5711 = vmatprep.subr.bf16.mxu0 0
  %5712 = vmatpush1.bf16.msra.mxu0 %v5597
  %5713 = vmatprep.subr.bf16.mxu0 0
  %5714 = vmatpush2.bf16.msra.mxu0 %v5612
  %5715 = vmatprep.subr.bf16.mxu0 0
  %5716 = vmatpush2.bf16.msra.mxu0 %v5611
  %5717 = vmatprep.subr.bf16.mxu0 0
  %5718 = vmatpush2.bf16.msra.mxu0 %v5610
  %5719 = vmatprep.subr.bf16.mxu0 0
  %5720 = vmatpush2.bf16.msra.mxu0 %v5609
  %5721 = vmatprep.subr.bf16.mxu0 0
  %5722 = vmatpush2.bf16.msra.mxu0 %v5608
  %5723 = vmatprep.subr.bf16.mxu0 0
  %5724 = vmatpush2.bf16.msra.mxu0 %v5607
  %5725 = vmatprep.subr.bf16.mxu0 0
  %5726 = vmatpush2.bf16.msra.mxu0 %v5606
  %5727 = vmatprep.subr.bf16.mxu0 0
  %5728 = vmatpush2.bf16.msra.mxu0 %v5605
  %5729 = vmatprep.mubr.bf16.mxu0 %v5356
  %5730 = vmatmul.mubr.bf16.gmra.mxu0 %v5355
  %v5731 = vpop.f32.mrf.mxu0
  %v5732 = vadd.f32 %v5692, %v5731
  %v5733 = vpop.f32.mrf.mxu0
  %v5734 = vpop.f32.mrf.mxu0
  %v5735 = vpop.f32.mrf.mxu0
  %5736 = vdwg.mxu0
  %5737 = vmatprep.subr.bf16.mxu0 0
  %5738 = vmatpush1.bf16.msra.mxu0 0
  %5739 = vmatprep.subr.bf16.mxu0 0
  %5740 = vmatpush1.bf16.msra.mxu0 0
  %5741 = vmatprep.subr.bf16.mxu0 0
  %5742 = vmatpush1.bf16.msra.mxu0 0
  %5743 = vmatprep.subr.bf16.mxu0 0
  %5744 = vmatpush1.bf16.msra.mxu0 0
  %5745 = vmatprep.subr.bf16.mxu0 0
  %5746 = vmatpush1.bf16.msra.mxu0 %v5616
  %5747 = vmatprep.subr.bf16.mxu0 0
  %5748 = vmatpush1.bf16.msra.mxu0 %v5615
  %5749 = vmatprep.subr.bf16.mxu0 0
  %5750 = vmatpush1.bf16.msra.mxu0 %v5614
  %5751 = vmatprep.subr.bf16.mxu0 0
  %5752 = vmatpush1.bf16.msra.mxu0 %v5613
  %5753 = vmatprep.subr.bf16.mxu0 0
  %5754 = vmatpush2.bf16.msra.mxu0 0
  %5755 = vmatprep.subr.bf16.mxu0 0
  %5756 = vmatpush2.bf16.msra.mxu0 0
  %5757 = vmatprep.subr.bf16.mxu0 0
  %5758 = vmatpush2.bf16.msra.mxu0 0
  %5759 = vmatprep.subr.bf16.mxu0 0
  %5760 = vmatpush2.bf16.msra.mxu0 0
  %5761 = vmatprep.subr.bf16.mxu0 0
  %5762 = vmatpush2.bf16.msra.mxu0 0
  %5763 = vmatprep.subr.bf16.mxu0 0
  %5764 = vmatpush2.bf16.msra.mxu0 0
  %5765 = vmatprep.subr.bf16.mxu0 0
  %5766 = vmatpush2.bf16.msra.mxu0 0
  %5767 = vmatprep.subr.bf16.mxu0 0
  %5768 = vmatpush2.bf16.msra.mxu0 0
  %5769 = vmatprep.mubr.bf16.mxu0 0
  %5770 = vmatmul.mubr.bf16.gmra.mxu0 %v5655
  %v5771 = vpop.f32.mrf.mxu0
  %v5772 = vadd.f32 %v5732, %v5771
  %v5773 = vpop.f32.mrf.mxu0
  %v5774 = vpop.f32.mrf.mxu0
  %v5775 = vpop.f32.mrf.mxu0
  %5776 = vdwg.mxu0
  %v5777 = vld [vmem:[%s8] sm:$0x1]
  %v5779 = vlaneseq
  %v5780 = vshrl.u32 %v5779, 7
  %v5781 = vsub.s32 0, %v5780
  %v5782 = vrot.slane %v5777, %v5781
  %v5784 = vmul.f32 %v5782, %v5772
  %v5785 = vsub.f32 0.0, %v5784
  %v5786 = vmul.f32 %v5785, 1.442695
  %v5787 = vpow.pop %v5786
  %v5788 = vadd.f32 %v5787, 1.0
  %v5789 = vrcp.pop %v5788
  %v5790 = vmul.f32 %v5772, %v5789
  %v5791 = vpack.c.bf16 %v5790, %v5790
  %v5792 = vld [vmem:[%s9] sm:$0xff]
  %v5793 = vld [vmem:[%s9 + $0x8] sm:$0xff]
  %v5794 = vld [vmem:[%s9 + $0x10] sm:$0xff]
  %v5795 = vld [vmem:[%s9 + $0x18] sm:$0xff]
  %v5796 = vld [vmem:[%s9 + $0x20] sm:$0xff]
  %v5797 = vld [vmem:[%s9 + $0x28] sm:$0xff]
  %v5798 = vld [vmem:[%s9 + $0x30] sm:$0xff]
  %v5799 = vld [vmem:[%s9 + $0x38] sm:$0xff]
  %v5800 = vld [vmem:[%s9 + $0x40] sm:$0xff]
  %v5801 = vld [vmem:[%s9 + $0x48] sm:$0xff]
  %v5802 = vld [vmem:[%s9 + $0x50] sm:$0xff]
  %v5803 = vld [vmem:[%s9 + $0x58] sm:$0xff]
  %v5804 = vld [vmem:[%s9 + $0x60] sm:$0xff]
  %v5805 = vld [vmem:[%s9 + $0x68] sm:$0xff]
  %v5806 = vld [vmem:[%s9 + $0x70] sm:$0xff]
  %v5807 = vld [vmem:[%s9 + $0x78] sm:$0xff]
  %v5808 = vld [vmem:[%s10] sm:$0xf]
  %v5810 = vlaneseq
  %v5811 = vshrl.u32 %v5810, 7
  %v5812 = vsub.s32 0, %v5811
  %v5813 = vrot.slane %v5808, %v5812
  %v5814 = vlaneseq
  %v5815 = vshrl.u32 %v5814, 7
  %v5816 = vsub.s32 1, %v5815
  %v5817 = vrot.slane %v5808, %v5816
  %v5818 = vlaneseq
  %v5819 = vshrl.u32 %v5818, 7
  %v5820 = vsub.s32 2, %v5819
  %v5821 = vrot.slane %v5808, %v5820
  %v5822 = vlaneseq
  %v5823 = vshrl.u32 %v5822, 7
  %v5824 = vsub.s32 3, %v5823
  %v5825 = vrot.slane %v5808, %v5824
  %v5846 = vunpack.c.l.b16 %v5792
  %v5847 = vunpack.c.h.b16 %v5792
  %v5848 = vunpack.c.l.b16 %v5793
  %v5849 = vunpack.c.h.b16 %v5793
  %v5850 = vunpack.c.l.b16 %v5794
  %v5851 = vunpack.c.h.b16 %v5794
  %v5852 = vunpack.c.l.b16 %v5795
  %v5853 = vunpack.c.h.b16 %v5795
  %v5854 = vunpack.c.l.b16 %v5796
  %v5855 = vunpack.c.h.b16 %v5796
  %v5856 = vunpack.c.l.b16 %v5797
  %v5857 = vunpack.c.h.b16 %v5797
  %v5858 = vunpack.c.l.b16 %v5798
  %v5859 = vunpack.c.h.b16 %v5798
  %v5860 = vunpack.c.l.b16 %v5799
  %v5861 = vunpack.c.h.b16 %v5799
  %v5862 = vunpack.c.l.b16 %v5800
  %v5863 = vunpack.c.h.b16 %v5800
  %v5864 = vunpack.c.l.b16 %v5801
  %v5865 = vunpack.c.h.b16 %v5801
  %v5866 = vunpack.c.l.b16 %v5802
  %v5867 = vunpack.c.h.b16 %v5802
  %v5868 = vunpack.c.l.b16 %v5803
  %v5869 = vunpack.c.h.b16 %v5803
  %v5870 = vunpack.c.l.b16 %v5804
  %v5871 = vunpack.c.h.b16 %v5804
  %v5872 = vunpack.c.l.b16 %v5805
  %v5873 = vunpack.c.h.b16 %v5805
  %v5874 = vunpack.c.l.b16 %v5806
  %v5875 = vunpack.c.h.b16 %v5806
  %v5876 = vunpack.c.l.b16 %v5807
  %v5877 = vunpack.c.h.b16 %v5807
  %v5878 = vpack.c.b16 %v5850, %v5846
  %v5879 = vpack.c.b16 %v5851, %v5847
  %v5880 = vpack.c.b16 %v5852, %v5848
  %v5881 = vpack.c.b16 %v5853, %v5849
  %v5882 = vpack.c.b16 %v5858, %v5854
  %v5883 = vpack.c.b16 %v5859, %v5855
  %v5884 = vpack.c.b16 %v5860, %v5856
  %v5885 = vpack.c.b16 %v5861, %v5857
  %v5886 = vpack.c.b16 %v5866, %v5862
  %v5887 = vpack.c.b16 %v5867, %v5863
  %v5888 = vpack.c.b16 %v5868, %v5864
  %v5889 = vpack.c.b16 %v5869, %v5865
  %v5890 = vpack.c.b16 %v5874, %v5870
  %v5891 = vpack.c.b16 %v5875, %v5871
  %v5892 = vpack.c.b16 %v5876, %v5872
  %v5893 = vpack.c.b16 %v5877, %v5873
  %v5911 = vsel %vm5653, %v5791, 0
  %5913 = vmatprep.subr.bf16.mxu0 0
  %5914 = vmatpush1.bf16.msra.mxu0 0
  %5915 = vmatprep.subr.bf16.mxu0 0
  %5916 = vmatpush1.bf16.msra.mxu0 0
  %5917 = vmatprep.subr.bf16.mxu0 0
  %5918 = vmatpush1.bf16.msra.mxu0 0
  %5919 = vmatprep.subr.bf16.mxu0 0
  %5920 = vmatpush1.bf16.msra.mxu0 0
  %5921 = vmatprep.subr.bf16.mxu0 %v5891
  %5922 = vmatpush1.bf16.msra.mxu0 %v5890
  %5923 = vmatprep.subr.bf16.mxu0 %v5887
  %5924 = vmatpush1.bf16.msra.mxu0 %v5886
  %5925 = vmatprep.subr.bf16.mxu0 %v5883
  %5926 = vmatpush1.bf16.msra.mxu0 %v5882
  %5927 = vmatprep.subr.bf16.mxu0 %v5879
  %5928 = vmatpush1.bf16.msra.mxu0 %v5878
  %5929 = vmatprep.subr.bf16.mxu0 0
  %5930 = vmatpush2.bf16.msra.mxu0 0
  %5931 = vmatprep.subr.bf16.mxu0 0
  %5932 = vmatpush2.bf16.msra.mxu0 0
  %5933 = vmatprep.subr.bf16.mxu0 0
  %5934 = vmatpush2.bf16.msra.mxu0 0
  %5935 = vmatprep.subr.bf16.mxu0 0
  %5936 = vmatpush2.bf16.msra.mxu0 0
  %5937 = vmatprep.subr.bf16.mxu0 0
  %5938 = vmatpush2.bf16.msra.mxu0 0
  %5939 = vmatprep.subr.bf16.mxu0 0
  %5940 = vmatpush2.bf16.msra.mxu0 0
  %5941 = vmatprep.subr.bf16.mxu0 0
  %5942 = vmatpush2.bf16.msra.mxu0 0
  %5943 = vmatprep.subr.bf16.mxu0 0
  %5944 = vmatpush2.bf16.msra.mxu0 0
  %5945 = vmatprep.mubr.bf16.mxu0 0
  %5946 = vmatmul.mubr.bf16.gmra.mxu0 %v5911
  %v5947 = vpop.f32.mrf.mxu0
  %v5948 = vadd.f32 %v5813, %v5947
  %v5949 = vpop.f32.mrf.mxu0
  %v5950 = vadd.f32 %v5817, %v5949
  %v5951 = vpop.f32.mrf.mxu0
  %v5952 = vpop.f32.mrf.mxu0
  %5953 = vdwg.mxu0
  %5954 = vmatprep.subr.bf16.mxu0 0
  %5955 = vmatpush1.bf16.msra.mxu0 0
  %5956 = vmatprep.subr.bf16.mxu0 0
  %5957 = vmatpush1.bf16.msra.mxu0 0
  %5958 = vmatprep.subr.bf16.mxu0 0
  %5959 = vmatpush1.bf16.msra.mxu0 0
  %5960 = vmatprep.subr.bf16.mxu0 0
  %5961 = vmatpush1.bf16.msra.mxu0 0
  %5962 = vmatprep.subr.bf16.mxu0 %v5893
  %5963 = vmatpush1.bf16.msra.mxu0 %v5892
  %5964 = vmatprep.subr.bf16.mxu0 %v5889
  %5965 = vmatpush1.bf16.msra.mxu0 %v5888
  %5966 = vmatprep.subr.bf16.mxu0 %v5885
  %5967 = vmatpush1.bf16.msra.mxu0 %v5884
  %5968 = vmatprep.subr.bf16.mxu0 %v5881
  %5969 = vmatpush1.bf16.msra.mxu0 %v5880
  %5970 = vmatprep.subr.bf16.mxu0 0
  %5971 = vmatpush2.bf16.msra.mxu0 0
  %5972 = vmatprep.subr.bf16.mxu0 0
  %5973 = vmatpush2.bf16.msra.mxu0 0
  %5974 = vmatprep.subr.bf16.mxu0 0
  %5975 = vmatpush2.bf16.msra.mxu0 0
  %5976 = vmatprep.subr.bf16.mxu0 0
  %5977 = vmatpush2.bf16.msra.mxu0 0
  %5978 = vmatprep.subr.bf16.mxu0 0
  %5979 = vmatpush2.bf16.msra.mxu0 0
  %5980 = vmatprep.subr.bf16.mxu0 0
  %5981 = vmatpush2.bf16.msra.mxu0 0
  %5982 = vmatprep.subr.bf16.mxu0 0
  %5983 = vmatpush2.bf16.msra.mxu0 0
  %5984 = vmatprep.subr.bf16.mxu0 0
  %5985 = vmatpush2.bf16.msra.mxu0 0
  %5986 = vmatprep.mubr.bf16.mxu0 0
  %5987 = vmatmul.mubr.bf16.gmra.mxu0 %v5911
  %v5988 = vpop.f32.mrf.mxu0
  %v5989 = vadd.f32 %v5821, %v5988
  %v5990 = vpop.f32.mrf.mxu0
  %v5991 = vadd.f32 %v5825, %v5990
  %v5992 = vpop.f32.mrf.mxu0
  %v5993 = vpop.f32.mrf.mxu0
  %5994 = vdwg.mxu0
  %v5995 = vld [vmem:[%s11] sm:$0xf]
  %v5997 = vlaneseq
  %v5998 = vshrl.u32 %v5997, 7
  %v5999 = vsub.s32 0, %v5998
  %v6000 = vrot.slane %v5995, %v5999
  %v6001 = vlaneseq
  %v6002 = vshrl.u32 %v6001, 7
  %v6003 = vsub.s32 1, %v6002
  %v6004 = vrot.slane %v5995, %v6003
  %v6005 = vlaneseq
  %v6006 = vshrl.u32 %v6005, 7
  %v6007 = vsub.s32 2, %v6006
  %v6008 = vrot.slane %v5995, %v6007
  %v6009 = vlaneseq
  %v6010 = vshrl.u32 %v6009, 7
  %v6011 = vsub.s32 3, %v6010
  %v6012 = vrot.slane %v5995, %v6011
  %v6017 = vmul.f32 %v6000, %v5948
  %v6018 = vmul.f32 %v6004, %v5950
  %v6019 = vmul.f32 %v6008, %v5989
  %v6020 = vmul.f32 %v6012, %v5991
  %v6021 = vsub.f32 0.0, %v6017
  %v6022 = vsub.f32 0.0, %v6018
  %v6023 = vsub.f32 0.0, %v6019
  %v6024 = vsub.f32 0.0, %v6020
  %v6025 = vmul.f32 %v6021, 1.442695
  %v6026 = vpow.pop %v6025
  %v6027 = vmul.f32 %v6022, 1.442695
  %v6028 = vpow.pop %v6027
  %v6029 = vmul.f32 %v6023, 1.442695
  %v6030 = vpow.pop %v6029
  %v6031 = vmul.f32 %v6024, 1.442695
  %v6032 = vpow.pop %v6031
  %v6033 = vadd.f32 %v6026, 1.0
  %v6034 = vadd.f32 %v6028, 1.0
  %v6035 = vadd.f32 %v6030, 1.0
  %v6036 = vadd.f32 %v6032, 1.0
  %v6037 = vrcp.pop %v6033
  %v6038 = vrcp.pop %v6034
  %v6039 = vrcp.pop %v6035
  %v6040 = vrcp.pop %v6036
  %v6041 = vmul.f32 %v5948, %v6037
  %v6042 = vmul.f32 %v5950, %v6038
  %v6043 = vmul.f32 %v5989, %v6039
  %v6044 = vmul.f32 %v5991, %v6040
  %v6045 = vld [vmem:[%s0] sm:$0x3]
  %v6046 = vlaneseq
  %v6047 = vand.u32 %v6046, 127
  %6048 = vset.pattern.permute.xlu0 0
  %6049 = vperm.xlu0 %6048, %v6045
  %v6050 = vpop.permute.xlu0 %6049
  %vm6051 = vcmp.eq.s32.totalorder %v6050, %v6047
  %v6052 = vsel %vm6051, 1, 0
  %v6053 = vcvt.s32.f32 %v6052
  %v6054 = vpack.c.bf16 %v6053, %v6053
  %v6055 = vld [vmem:[%s1] sm:$0x3]
  %v6056 = vpack.c.bf16 %v6055, %v6055
  %v6057 = vld [vmem:[%s12] sm:$0x3f]
  %v6058 = vld [vmem:[%s13] sm:$0x77]
  %v6059 = vld [vmem:[%s13 + $0x8] sm:$0x7]
  %v6062 = vunpack.c.l.b16 %v6058
  %v6063 = vunpack.c.h.b16 %v6058
  %v6064 = vunpack.c.l.b16 %v6059
  %v6065 = vpack.c.b16 %v6062, %v6062
  %v6066 = vpack.c.b16 %v6063, %v6063
  %v6067 = vpack.c.b16 %v6064, %v6064
  %vm6068 = vcmask 39936
  %v6070 = vsel %vm6068, %v6054, 0
  %vm6072 = vcmask 1041408
  %vm6073 = vcmask 1042432
  %v6074 = vsel %vm6072, 4294967295, 65535
  %v6075 = vsel %vm6073, %v6074, 0
  %v6077 = vand.u32 %v6065, %v6075
  %v6080 = vand.u32 %v6066, %v6075
  %v6083 = vand.u32 %v6067, %v6075
  %6085 = vmatprep.subr.bf16.mxu0 0
  %6086 = vmatpush1.bf16.msra.mxu0 0
  %6087 = vmatprep.subr.bf16.mxu0 0
  %6088 = vmatpush1.bf16.msra.mxu0 0
  %6089 = vmatprep.subr.bf16.mxu0 0
  %6090 = vmatpush1.bf16.msra.mxu0 0
  %6091 = vmatprep.subr.bf16.mxu0 0
  %6092 = vmatpush1.bf16.msra.mxu0 0
  %6093 = vmatprep.subr.bf16.mxu0 0
  %6094 = vmatpush1.bf16.msra.mxu0 0
  %6095 = vmatprep.subr.bf16.mxu0 0
  %6096 = vmatpush1.bf16.msra.mxu0 0
  %6097 = vmatprep.subr.bf16.mxu0 0
  %6098 = vmatpush1.bf16.msra.mxu0 0
  %6099 = vmatprep.subr.bf16.mxu0 %v6080
  %6100 = vmatpush1.bf16.msra.mxu0 %v6077
  %6101 = vmatprep.subr.bf16.mxu0 0
  %6102 = vmatpush2.bf16.msra.mxu0 0
  %6103 = vmatprep.subr.bf16.mxu0 0
  %6104 = vmatpush2.bf16.msra.mxu0 0
  %6105 = vmatprep.subr.bf16.mxu0 0
  %6106 = vmatpush2.bf16.msra.mxu0 0
  %6107 = vmatprep.subr.bf16.mxu0 0
  %6108 = vmatpush2.bf16.msra.mxu0 0
  %6109 = vmatprep.subr.bf16.mxu0 0
  %6110 = vmatpush2.bf16.msra.mxu0 0
  %6111 = vmatprep.subr.bf16.mxu0 0
  %6112 = vmatpush2.bf16.msra.mxu0 0
  %6113 = vmatprep.subr.bf16.mxu0 0
  %6114 = vmatpush2.bf16.msra.mxu0 0
  %6115 = vmatprep.subr.bf16.mxu0 0
  %6116 = vmatpush2.bf16.msra.mxu0 0
  %6117 = vmatprep.mubr.bf16.mxu0 0
  %6118 = vmatmul.mubr.bf16.gmra.mxu0 %v6070
  %v6119 = vpop.f32.mrf.mxu0
  %v6120 = vadd.f32 0.0, %v6119
  %v6121 = vpop.f32.mrf.mxu0
  %v6122 = vadd.f32 0.0, %v6121
  %v6123 = vpop.f32.mrf.mxu0
  %v6124 = vpop.f32.mrf.mxu0
  %6125 = vdwg.mxu0
  %6126 = vmatprep.subr.bf16.mxu0 0
  %6127 = vmatpush1.bf16.msra.mxu0 0
  %6128 = vmatprep.subr.bf16.mxu0 0
  %6129 = vmatpush1.bf16.msra.mxu0 0
  %6130 = vmatprep.subr.bf16.mxu0 0
  %6131 = vmatpush1.bf16.msra.mxu0 0
  %6132 = vmatprep.subr.bf16.mxu0 0
  %6133 = vmatpush1.bf16.msra.mxu0 0
  %6134 = vmatprep.subr.bf16.mxu0 0
  %6135 = vmatpush1.bf16.msra.mxu0 0
  %6136 = vmatprep.subr.bf16.mxu0 0
  %6137 = vmatpush1.bf16.msra.mxu0 0
  %6138 = vmatprep.subr.bf16.mxu0 0
  %6139 = vmatpush1.bf16.msra.mxu0 0
  %6140 = vmatprep.subr.bf16.mxu0 0
  %6141 = vmatpush1.bf16.msra.mxu0 %v6083
  %6142 = vmatprep.subr.bf16.mxu0 0
  %6143 = vmatpush2.bf16.msra.mxu0 0
  %6144 = vmatprep.subr.bf16.mxu0 0
  %6145 = vmatpush2.bf16.msra.mxu0 0
  %6146 = vmatprep.subr.bf16.mxu0 0
  %6147 = vmatpush2.bf16.msra.mxu0 0
  %6148 = vmatprep.subr.bf16.mxu0 0
  %6149 = vmatpush2.bf16.msra.mxu0 0
  %6150 = vmatprep.subr.bf16.mxu0 0
  %6151 = vmatpush2.bf16.msra.mxu0 0
  %6152 = vmatprep.subr.bf16.mxu0 0
  %6153 = vmatpush2.bf16.msra.mxu0 0
  %6154 = vmatprep.subr.bf16.mxu0 0
  %6155 = vmatpush2.bf16.msra.mxu0 0
  %6156 = vmatprep.subr.bf16.mxu0 0
  %6157 = vmatpush2.bf16.msra.mxu0 0
  %6158 = vmatprep.mubr.bf16.mxu0 0
  %6159 = vmatmul.mubr.bf16.gmra.mxu0 %v6070
  %v6160 = vpop.f32.mrf.mxu0
  %v6161 = vadd.f32 0.0, %v6160
  %v6162 = vpop.f32.mrf.mxu0
  %v6163 = vpop.f32.mrf.mxu0
  %v6164 = vpop.f32.mrf.mxu0
  %6165 = vdwg.mxu0
  %v6167 = vcombine.high %v6057, %v6057
  %v6169 = vunpack.c.l.s4 1983009808
  %v6170 = vunpack.c.0.s8 %v6169
  %v6171 = vlaneseq
  %v6172 = vshrl.u32 %v6171, 7
  %v6173 = vsub.s32 %v6170, %v6172
  %v6174 = vrot.slane %v6057, %v6173
  %v6176 = vunpack.c.l.s4 1983009808
  %v6177 = vunpack.c.0.s8 %v6176
  %v6178 = vlaneseq
  %v6179 = vshrl.u32 %v6178, 7
  %v6180 = vsub.s32 %v6177, %v6179
  %v6181 = vrot.slane %v6167, %v6180
  %v6182 = vcombine.high %v6174, %v6174
  %vm6183 = vcmask 23552
  %v6185 = vsel %vm6183, %v6056, 0
  %vm6187 = vcmask 1040384
  %v6188 = vsel %vm6187, 4294967295, 65535
  %v6189 = vsel %vm6072, %v6188, 0
  %v6191 = vand.u32 %v6174, %v6189
  %v6194 = vand.u32 %v6182, %v6189
  %v6197 = vand.u32 %v6181, %v6189
  %6199 = vmatprep.subr.bf16.mxu0 0
  %6200 = vmatpush1.bf16.msra.mxu0 0
  %6201 = vmatprep.subr.bf16.mxu0 0
  %6202 = vmatpush1.bf16.msra.mxu0 0
  %6203 = vmatprep.subr.bf16.mxu0 0
  %6204 = vmatpush1.bf16.msra.mxu0 0
  %6205 = vmatprep.subr.bf16.mxu0 0
  %6206 = vmatpush1.bf16.msra.mxu0 0
  %6207 = vmatprep.subr.bf16.mxu0 0
  %6208 = vmatpush1.bf16.msra.mxu0 0
  %6209 = vmatprep.subr.bf16.mxu0 0
  %6210 = vmatpush1.bf16.msra.mxu0 0
  %6211 = vmatprep.subr.bf16.mxu0 0
  %6212 = vmatpush1.bf16.msra.mxu0 0
  %6213 = vmatprep.subr.bf16.mxu0 %v6194
  %6214 = vmatpush1.bf16.msra.mxu0 %v6191
  %6215 = vmatprep.subr.bf16.mxu0 0
  %6216 = vmatpush2.bf16.msra.mxu0 0
  %6217 = vmatprep.subr.bf16.mxu0 0
  %6218 = vmatpush2.bf16.msra.mxu0 0
  %6219 = vmatprep.subr.bf16.mxu0 0
  %6220 = vmatpush2.bf16.msra.mxu0 0
  %6221 = vmatprep.subr.bf16.mxu0 0
  %6222 = vmatpush2.bf16.msra.mxu0 0
  %6223 = vmatprep.subr.bf16.mxu0 0
  %6224 = vmatpush2.bf16.msra.mxu0 0
  %6225 = vmatprep.subr.bf16.mxu0 0
  %6226 = vmatpush2.bf16.msra.mxu0 0
  %6227 = vmatprep.subr.bf16.mxu0 0
  %6228 = vmatpush2.bf16.msra.mxu0 0
  %6229 = vmatprep.subr.bf16.mxu0 0
  %6230 = vmatpush2.bf16.msra.mxu0 0
  %6231 = vmatprep.mubr.bf16.mxu0 0
  %6232 = vmatmul.mubr.bf16.gmra.mxu0 %v6185
  %v6233 = vpop.f32.mrf.mxu0
  %v6234 = vadd.f32 %v6120, %v6233
  %v6235 = vpop.f32.mrf.mxu0
  %v6236 = vadd.f32 %v6122, %v6235
  %v6237 = vpop.f32.mrf.mxu0
  %v6238 = vpop.f32.mrf.mxu0
  %6239 = vdwg.mxu0
  %6240 = vmatprep.subr.bf16.mxu0 0
  %6241 = vmatpush1.bf16.msra.mxu0 0
  %6242 = vmatprep.subr.bf16.mxu0 0
  %6243 = vmatpush1.bf16.msra.mxu0 0
  %6244 = vmatprep.subr.bf16.mxu0 0
  %6245 = vmatpush1.bf16.msra.mxu0 0
  %6246 = vmatprep.subr.bf16.mxu0 0
  %6247 = vmatpush1.bf16.msra.mxu0 0
  %6248 = vmatprep.subr.bf16.mxu0 0
  %6249 = vmatpush1.bf16.msra.mxu0 0
  %6250 = vmatprep.subr.bf16.mxu0 0
  %6251 = vmatpush1.bf16.msra.mxu0 0
  %6252 = vmatprep.subr.bf16.mxu0 0
  %6253 = vmatpush1.bf16.msra.mxu0 0
  %6254 = vmatprep.subr.bf16.mxu0 0
  %6255 = vmatpush1.bf16.msra.mxu0 %v6197
  %6256 = vmatprep.subr.bf16.mxu0 0
  %6257 = vmatpush2.bf16.msra.mxu0 0
  %6258 = vmatprep.subr.bf16.mxu0 0
  %6259 = vmatpush2.bf16.msra.mxu0 0
  %6260 = vmatprep.subr.bf16.mxu0 0
  %6261 = vmatpush2.bf16.msra.mxu0 0
  %6262 = vmatprep.subr.bf16.mxu0 0
  %6263 = vmatpush2.bf16.msra.mxu0 0
  %6264 = vmatprep.subr.bf16.mxu0 0
  %6265 = vmatpush2.bf16.msra.mxu0 0
  %6266 = vmatprep.subr.bf16.mxu0 0
  %6267 = vmatpush2.bf16.msra.mxu0 0
  %6268 = vmatprep.subr.bf16.mxu0 0
  %6269 = vmatpush2.bf16.msra.mxu0 0
  %6270 = vmatprep.subr.bf16.mxu0 0
  %6271 = vmatpush2.bf16.msra.mxu0 0
  %6272 = vmatprep.mubr.bf16.mxu0 0
  %6273 = vmatmul.mubr.bf16.gmra.mxu0 %v6185
  %v6274 = vpop.f32.mrf.mxu0
  %v6275 = vadd.f32 %v6161, %v6274
  %v6276 = vpop.f32.mrf.mxu0
  %v6277 = vpop.f32.mrf.mxu0
  %v6278 = vpop.f32.mrf.mxu0
  %6279 = vdwg.mxu0
  %v6280 = vld [vmem:[%s14] sm:$0x7]
  %v6282 = vlaneseq
  %v6283 = vshrl.u32 %v6282, 7
  %v6284 = vsub.s32 0, %v6283
  %v6285 = vrot.slane %v6280, %v6284
  %v6286 = vlaneseq
  %v6287 = vshrl.u32 %v6286, 7
  %v6288 = vsub.s32 1, %v6287
  %v6289 = vrot.slane %v6280, %v6288
  %v6290 = vlaneseq
  %v6291 = vshrl.u32 %v6290, 7
  %v6292 = vsub.s32 2, %v6291
  %v6293 = vrot.slane %v6280, %v6292
  %v6297 = vadd.f32 %v6234, %v6285
  %v6298 = vadd.f32 %v6236, %v6289
  %v6299 = vadd.f32 %v6275, %v6293
  %v6300 = vld [vmem:[%s15] sm:$0x7]
  %v6302 = vlaneseq
  %v6303 = vshrl.u32 %v6302, 7
  %v6304 = vsub.s32 0, %v6303
  %v6305 = vrot.slane %v6300, %v6304
  %v6306 = vlaneseq
  %v6307 = vshrl.u32 %v6306, 7
  %v6308 = vsub.s32 1, %v6307
  %v6309 = vrot.slane %v6300, %v6308
  %v6310 = vlaneseq
  %v6311 = vshrl.u32 %v6310, 7
  %v6312 = vsub.s32 2, %v6311
  %v6313 = vrot.slane %v6300, %v6312
  %v6317 = vmul.f32 %v6305, %v6297
  %v6318 = vmul.f32 %v6309, %v6298
  %v6319 = vmul.f32 %v6313, %v6299
  %v6320 = vsub.f32 0.0, %v6317
  %v6321 = vsub.f32 0.0, %v6318
  %v6322 = vsub.f32 0.0, %v6319
  %v6323 = vmul.f32 %v6320, 1.442695
  %v6324 = vpow.pop %v6323
  %v6325 = vmul.f32 %v6321, 1.442695
  %v6326 = vpow.pop %v6325
  %v6327 = vmul.f32 %v6322, 1.442695
  %v6328 = vpow.pop %v6327
  %v6329 = vadd.f32 %v6324, 1.0
  %v6330 = vadd.f32 %v6326, 1.0
  %v6331 = vadd.f32 %v6328, 1.0
  %v6332 = vrcp.pop %v6329
  %v6333 = vrcp.pop %v6330
  %v6334 = vrcp.pop %v6331
  %v6335 = vmul.f32 %v6297, %v6332
  %v6336 = vmul.f32 %v6298, %v6333
  %v6337 = vmul.f32 %v6299, %v6334
  %v6338 = vpack.c.bf16 %v6335, %v6335
  %v6339 = vpack.c.bf16 %v6336, %v6336
  %v6340 = vpack.c.bf16 %v6337, %v6337
  %v6341 = vld [vmem:[%s16] sm:$0xff]
  %v6342 = vld [vmem:[%s16 + $0x8] sm:$0xf]
  %v6343 = vld [vmem:[%s16 + $0xc] sm:$0xff]
  %v6344 = vld [vmem:[%s16 + $0x14] sm:$0xf]
  %v6345 = vld [vmem:[%s16 + $0x18] sm:$0xff]
  %v6346 = vld [vmem:[%s16 + $0x20] sm:$0xf]
  %v6347 = vld [vmem:[%s16 + $0x24] sm:$0xff]
  %v6348 = vld [vmem:[%s16 + $0x2c] sm:$0xf]
  %v6349 = vld [vmem:[%s16 + $0x30] sm:$0xff]
  %v6350 = vld [vmem:[%s16 + $0x38] sm:$0xf]
  %v6351 = vld [vmem:[%s16 + $0x3c] sm:$0xff]
  %v6352 = vld [vmem:[%s16 + $0x44] sm:$0xf]
  %v6353 = vld [vmem:[%s16 + $0x48] sm:$0xff]
  %v6354 = vld [vmem:[%s16 + $0x50] sm:$0xf]
  %v6355 = vld [vmem:[%s16 + $0x54] sm:$0xff]
  %v6356 = vld [vmem:[%s16 + $0x5c] sm:$0xf]
  %v6357 = vld [vmem:[%s16 + $0x60] sm:$0xff]
  %v6358 = vld [vmem:[%s16 + $0x68] sm:$0xf]
  %v6359 = vld [vmem:[%s16 + $0x6c] sm:$0xff]
  %v6360 = vld [vmem:[%s16 + $0x74] sm:$0xf]
  %v6361 = vld [vmem:[%s16 + $0x78] sm:$0xff]
  %v6362 = vld [vmem:[%s16 + $0x80] sm:$0xf]
  %v6363 = vld [vmem:[%s16 + $0x84] sm:$0xff]
  %v6364 = vld [vmem:[%s16 + $0x8c] sm:$0xf]
  %v6365 = vld [vmem:[%s16 + $0x90] sm:$0xff]
  %v6366 = vld [vmem:[%s16 + $0x98] sm:$0xf]
  %v6367 = vld [vmem:[%s16 + $0x9c] sm:$0xff]
  %v6368 = vld [vmem:[%s16 + $0xa4] sm:$0xf]
  %v6369 = vld [vmem:[%s16 + $0xa8] sm:$0xff]
  %v6370 = vld [vmem:[%s16 + $0xb0] sm:$0xf]
  %v6371 = vld [vmem:[%s16 + $0xb4] sm:$0xff]
  %v6372 = vld [vmem:[%s16 + $0xbc] sm:$0xf]
  %v6373 = vld [vmem:[%s16 + $0xc0] sm:$0xff]
  %v6374 = vld [vmem:[%s16 + $0xc8] sm:$0xf]
  %v6375 = vld [vmem:[%s16 + $0xcc] sm:$0xff]
  %v6376 = vld [vmem:[%s16 + $0xd4] sm:$0xf]
  %v6377 = vld [vmem:[%s16 + $0xd8] sm:$0xff]
  %v6378 = vld [vmem:[%s16 + $0xe0] sm:$0xf]
  %v6379 = vld [vmem:[%s16 + $0xe4] sm:$0xff]
  %v6380 = vld [vmem:[%s16 + $0xec] sm:$0xf]
  %v6381 = vld [vmem:[%s16 + $0xf0] sm:$0xff]
  %v6382 = vld [vmem:[%s16 + $0xf8] sm:$0xf]
  %v6383 = vld [vmem:[%s16 + $0xfc] sm:$0xff]
  %v6384 = vld [vmem:[%s16 + $0x104] sm:$0xf]
  %v6385 = vld [vmem:[%s16 + $0x108] sm:$0xff]
  %v6386 = vld [vmem:[%s16 + $0x110] sm:$0xf]
  %v6387 = vld [vmem:[%s16 + $0x114] sm:$0xff]
  %v6388 = vld [vmem:[%s16 + $0x11c] sm:$0xf]
  %v6389 = vld [vmem:[%s16 + $0x120] sm:$0xff]
  %v6390 = vld [vmem:[%s16 + $0x128] sm:$0xf]
  %v6391 = vld [vmem:[%s16 + $0x12c] sm:$0xff]
  %v6392 = vld [vmem:[%s16 + $0x134] sm:$0xf]
  %v6393 = vld [vmem:[%s16 + $0x138] sm:$0xff]
  %v6394 = vld [vmem:[%s16 + $0x140] sm:$0xf]
  %v6395 = vld [vmem:[%s16 + $0x144] sm:$0xff]
  %v6396 = vld [vmem:[%s16 + $0x14c] sm:$0xf]
  %v6397 = vld [vmem:[%s16 + $0x150] sm:$0xff]
  %v6398 = vld [vmem:[%s16 + $0x158] sm:$0xf]
  %v6399 = vld [vmem:[%s16 + $0x15c] sm:$0xff]
  %v6400 = vld [vmem:[%s16 + $0x164] sm:$0xf]
  %v6401 = vld [vmem:[%s16 + $0x168] sm:$0xff]
  %v6402 = vld [vmem:[%s16 + $0x170] sm:$0xf]
  %v6403 = vld [vmem:[%s16 + $0x174] sm:$0xff]
  %v6404 = vld [vmem:[%s16 + $0x17c] sm:$0xf]
  %v6405 = vld [vmem:[%s16 + $0x180] sm:$0xff]
  %v6406 = vld [vmem:[%s16 + $0x188] sm:$0xf]
  %v6407 = vld [vmem:[%s16 + $0x18c] sm:$0xff]
  %v6408 = vld [vmem:[%s16 + $0x194] sm:$0xf]
  %v6409 = vld [vmem:[%s16 + $0x198] sm:$0xff]
  %v6410 = vld [vmem:[%s16 + $0x1a0] sm:$0xf]
  %v6411 = vld [vmem:[%s16 + $0x1a4] sm:$0xff]
  %v6412 = vld [vmem:[%s16 + $0x1ac] sm:$0xf]
  %v6413 = vld [vmem:[%s16 + $0x1b0] sm:$0xff]
  %v6414 = vld [vmem:[%s16 + $0x1b8] sm:$0xf]
  %v6415 = vld [vmem:[%s16 + $0x1bc] sm:$0xff]
  %v6416 = vld [vmem:[%s16 + $0x1c4] sm:$0xf]
  %v6417 = vld [vmem:[%s16 + $0x1c8] sm:$0xff]
  %v6418 = vld [vmem:[%s16 + $0x1d0] sm:$0xf]
  %v6419 = vld [vmem:[%s16 + $0x1d4] sm:$0xff]
  %v6420 = vld [vmem:[%s16 + $0x1dc] sm:$0xf]
  %v6421 = vld [vmem:[%s16 + $0x1e0] sm:$0xff]
  %v6422 = vld [vmem:[%s16 + $0x1e8] sm:$0xf]
  %v6423 = vld [vmem:[%s16 + $0x1ec] sm:$0xff]
  %v6424 = vld [vmem:[%s16 + $0x1f4] sm:$0xf]
  %v6425 = vld [vmem:[%s16 + $0x1f8] sm:$0xff]
  %v6426 = vld [vmem:[%s16 + $0x200] sm:$0xf]
  %v6427 = vld [vmem:[%s16 + $0x204] sm:$0xff]
  %v6428 = vld [vmem:[%s16 + $0x20c] sm:$0xf]
  %v6429 = vld [vmem:[%s16 + $0x210] sm:$0xff]
  %v6430 = vld [vmem:[%s16 + $0x218] sm:$0xf]
  %v6431 = vld [vmem:[%s16 + $0x21c] sm:$0xff]
  %v6432 = vld [vmem:[%s16 + $0x224] sm:$0xf]
  %v6433 = vld [vmem:[%s16 + $0x228] sm:$0xff]
  %v6434 = vld [vmem:[%s16 + $0x230] sm:$0xf]
  %v6435 = vld [vmem:[%s16 + $0x234] sm:$0xff]
  %v6436 = vld [vmem:[%s16 + $0x23c] sm:$0xf]
  %v6437 = vpack.c.bf16 %v6041, %v6041
  %v6438 = vpack.c.bf16 %v6042, %v6042
  %v6439 = vpack.c.bf16 %v6043, %v6043
  %v6440 = vpack.c.bf16 %v6044, %v6044
  %v6441 = vld [vmem:[%s17] sm:$0xff]
  %v6442 = vld [vmem:[%s17 + $0x8] sm:$0xf]
  %v6443 = vld [vmem:[%s17 + $0xc] sm:$0xff]
  %v6444 = vld [vmem:[%s17 + $0x14] sm:$0xf]
  %v6445 = vld [vmem:[%s17 + $0x18] sm:$0xff]
  %v6446 = vld [vmem:[%s17 + $0x20] sm:$0xf]
  %v6447 = vld [vmem:[%s17 + $0x24] sm:$0xff]
  %v6448 = vld [vmem:[%s17 + $0x2c] sm:$0xf]
  %v6449 = vld [vmem:[%s17 + $0x30] sm:$0xff]
  %v6450 = vld [vmem:[%s17 + $0x38] sm:$0xf]
  %v6451 = vld [vmem:[%s17 + $0x3c] sm:$0xff]
  %v6452 = vld [vmem:[%s17 + $0x44] sm:$0xf]
  %v6453 = vld [vmem:[%s17 + $0x48] sm:$0xff]
  %v6454 = vld [vmem:[%s17 + $0x50] sm:$0xf]
  %v6455 = vld [vmem:[%s17 + $0x54] sm:$0xff]
  %v6456 = vld [vmem:[%s17 + $0x5c] sm:$0xf]
  %v6457 = vld [vmem:[%s17 + $0x60] sm:$0xff]
  %v6458 = vld [vmem:[%s17 + $0x68] sm:$0xf]
  %v6459 = vld [vmem:[%s17 + $0x6c] sm:$0xff]
  %v6460 = vld [vmem:[%s17 + $0x74] sm:$0xf]
  %v6461 = vld [vmem:[%s17 + $0x78] sm:$0xff]
  %v6462 = vld [vmem:[%s17 + $0x80] sm:$0xf]
  %v6463 = vld [vmem:[%s17 + $0x84] sm:$0xff]
  %v6464 = vld [vmem:[%s17 + $0x8c] sm:$0xf]
  %v6465 = vld [vmem:[%s17 + $0x90] sm:$0xff]
  %v6466 = vld [vmem:[%s17 + $0x98] sm:$0xf]
  %v6467 = vld [vmem:[%s17 + $0x9c] sm:$0xff]
  %v6468 = vld [vmem:[%s17 + $0xa4] sm:$0xf]
  %v6469 = vld [vmem:[%s17 + $0xa8] sm:$0xff]
  %v6470 = vld [vmem:[%s17 + $0xb0] sm:$0xf]
  %v6471 = vld [vmem:[%s17 + $0xb4] sm:$0xff]
  %v6472 = vld [vmem:[%s17 + $0xbc] sm:$0xf]
  %v6473 = vld [vmem:[%s17 + $0xc0] sm:$0xff]
  %v6474 = vld [vmem:[%s17 + $0xc8] sm:$0xf]
  %v6475 = vld [vmem:[%s17 + $0xcc] sm:$0xff]
  %v6476 = vld [vmem:[%s17 + $0xd4] sm:$0xf]
  %v6477 = vld [vmem:[%s17 + $0xd8] sm:$0xff]
  %v6478 = vld [vmem:[%s17 + $0xe0] sm:$0xf]
  %v6479 = vld [vmem:[%s17 + $0xe4] sm:$0xff]
  %v6480 = vld [vmem:[%s17 + $0xec] sm:$0xf]
  %v6481 = vld [vmem:[%s17 + $0xf0] sm:$0xff]
  %v6482 = vld [vmem:[%s17 + $0xf8] sm:$0xf]
  %v6483 = vld [vmem:[%s17 + $0xfc] sm:$0xff]
  %v6484 = vld [vmem:[%s17 + $0x104] sm:$0xf]
  %v6485 = vld [vmem:[%s17 + $0x108] sm:$0xff]
  %v6486 = vld [vmem:[%s17 + $0x110] sm:$0xf]
  %v6487 = vld [vmem:[%s17 + $0x114] sm:$0xff]
  %v6488 = vld [vmem:[%s17 + $0x11c] sm:$0xf]
  %v6489 = vld [vmem:[%s17 + $0x120] sm:$0xff]
  %v6490 = vld [vmem:[%s17 + $0x128] sm:$0xf]
  %v6491 = vld [vmem:[%s17 + $0x12c] sm:$0xff]
  %v6492 = vld [vmem:[%s17 + $0x134] sm:$0xf]
  %v6493 = vld [vmem:[%s17 + $0x138] sm:$0xff]
  %v6494 = vld [vmem:[%s17 + $0x140] sm:$0xf]
  %v6495 = vld [vmem:[%s17 + $0x144] sm:$0xff]
  %v6496 = vld [vmem:[%s17 + $0x14c] sm:$0xf]
  %v6497 = vld [vmem:[%s17 + $0x150] sm:$0xff]
  %v6498 = vld [vmem:[%s17 + $0x158] sm:$0xf]
  %v6499 = vld [vmem:[%s17 + $0x15c] sm:$0xff]
  %v6500 = vld [vmem:[%s17 + $0x164] sm:$0xf]
  %v6501 = vld [vmem:[%s17 + $0x168] sm:$0xff]
  %v6502 = vld [vmem:[%s17 + $0x170] sm:$0xf]
  %v6503 = vld [vmem:[%s17 + $0x174] sm:$0xff]
  %v6504 = vld [vmem:[%s17 + $0x17c] sm:$0xf]
  %v6505 = vld [vmem:[%s17 + $0x180] sm:$0xff]
  %v6506 = vld [vmem:[%s17 + $0x188] sm:$0xf]
  %v6507 = vld [vmem:[%s17 + $0x18c] sm:$0xff]
  %v6508 = vld [vmem:[%s17 + $0x194] sm:$0xf]
  %v6509 = vld [vmem:[%s17 + $0x198] sm:$0xff]
  %v6510 = vld [vmem:[%s17 + $0x1a0] sm:$0xf]
  %v6511 = vld [vmem:[%s17 + $0x1a4] sm:$0xff]
  %v6512 = vld [vmem:[%s17 + $0x1ac] sm:$0xf]
  %v6513 = vld [vmem:[%s17 + $0x1b0] sm:$0xff]
  %v6514 = vld [vmem:[%s17 + $0x1b8] sm:$0xf]
  %v6515 = vld [vmem:[%s17 + $0x1bc] sm:$0xff]
  %v6516 = vld [vmem:[%s17 + $0x1c4] sm:$0xf]
  %v6517 = vld [vmem:[%s17 + $0x1c8] sm:$0xff]
  %v6518 = vld [vmem:[%s17 + $0x1d0] sm:$0xf]
  %v6519 = vld [vmem:[%s17 + $0x1d4] sm:$0xff]
  %v6520 = vld [vmem:[%s17 + $0x1dc] sm:$0xf]
  %v6521 = vld [vmem:[%s17 + $0x1e0] sm:$0xff]
  %v6522 = vld [vmem:[%s17 + $0x1e8] sm:$0xf]
  %v6523 = vld [vmem:[%s17 + $0x1ec] sm:$0xff]
  %v6524 = vld [vmem:[%s17 + $0x1f4] sm:$0xf]
  %v6525 = vld [vmem:[%s17 + $0x1f8] sm:$0xff]
  %v6526 = vld [vmem:[%s17 + $0x200] sm:$0xf]
  %v6527 = vld [vmem:[%s17 + $0x204] sm:$0xff]
  %v6528 = vld [vmem:[%s17 + $0x20c] sm:$0xf]
  %v6529 = vld [vmem:[%s17 + $0x210] sm:$0xff]
  %v6530 = vld [vmem:[%s17 + $0x218] sm:$0xf]
  %v6531 = vld [vmem:[%s17 + $0x21c] sm:$0xff]
  %v6532 = vld [vmem:[%s17 + $0x224] sm:$0xf]
  %v6533 = vld [vmem:[%s17 + $0x228] sm:$0xff]
  %v6534 = vld [vmem:[%s17 + $0x230] sm:$0xf]
  %v6535 = vld [vmem:[%s17 + $0x234] sm:$0xff]
  %v6536 = vld [vmem:[%s17 + $0x23c] sm:$0xf]
  %v6537 = vld [vmem:[%s17 + $0x240] sm:$0xff]
  %v6538 = vld [vmem:[%s17 + $0x248] sm:$0xf]
  %v6539 = vld [vmem:[%s17 + $0x24c] sm:$0xff]
  %v6540 = vld [vmem:[%s17 + $0x254] sm:$0xf]
  %v6541 = vld [vmem:[%s17 + $0x258] sm:$0xff]
  %v6542 = vld [vmem:[%s17 + $0x260] sm:$0xf]
  %v6543 = vld [vmem:[%s17 + $0x264] sm:$0xff]
  %v6544 = vld [vmem:[%s17 + $0x26c] sm:$0xf]
  %v6545 = vld [vmem:[%s17 + $0x270] sm:$0xff]
  %v6546 = vld [vmem:[%s17 + $0x278] sm:$0xf]
  %v6547 = vld [vmem:[%s17 + $0x27c] sm:$0xff]
  %v6548 = vld [vmem:[%s17 + $0x284] sm:$0xf]
  %v6549 = vld [vmem:[%s17 + $0x288] sm:$0xff]
  %v6550 = vld [vmem:[%s17 + $0x290] sm:$0xf]
  %v6551 = vld [vmem:[%s17 + $0x294] sm:$0xff]
  %v6552 = vld [vmem:[%s17 + $0x29c] sm:$0xf]
  %v6553 = vld [vmem:[%s17 + $0x2a0] sm:$0xff]
  %v6554 = vld [vmem:[%s17 + $0x2a8] sm:$0xf]
  %v6555 = vld [vmem:[%s17 + $0x2ac] sm:$0xff]
  %v6556 = vld [vmem:[%s17 + $0x2b4] sm:$0xf]
  %v6557 = vld [vmem:[%s17 + $0x2b8] sm:$0xff]
  %v6558 = vld [vmem:[%s17 + $0x2c0] sm:$0xf]
  %v6559 = vld [vmem:[%s17 + $0x2c4] sm:$0xff]
  %v6560 = vld [vmem:[%s17 + $0x2cc] sm:$0xf]
  %v6561 = vld [vmem:[%s17 + $0x2d0] sm:$0xff]
  %v6562 = vld [vmem:[%s17 + $0x2d8] sm:$0xf]
  %v6563 = vld [vmem:[%s17 + $0x2dc] sm:$0xff]
  %v6564 = vld [vmem:[%s17 + $0x2e4] sm:$0xf]
  %v6565 = vld [vmem:[%s17 + $0x2e8] sm:$0xff]
  %v6566 = vld [vmem:[%s17 + $0x2f0] sm:$0xf]
  %v6567 = vld [vmem:[%s17 + $0x2f4] sm:$0xff]
  %v6568 = vld [vmem:[%s17 + $0x2fc] sm:$0xf]
  %v6697 = vunpack.c.l.b16 %v6441
  %v6698 = vunpack.c.h.b16 %v6441
  %v6699 = vunpack.c.l.b16 %v6442
  %v6700 = vunpack.c.l.b16 %v6443
  %v6701 = vunpack.c.h.b16 %v6443
  %v6702 = vunpack.c.l.b16 %v6444
  %v6703 = vunpack.c.l.b16 %v6445
  %v6704 = vunpack.c.h.b16 %v6445
  %v6705 = vunpack.c.l.b16 %v6446
  %v6706 = vunpack.c.l.b16 %v6447
  %v6707 = vunpack.c.h.b16 %v6447
  %v6708 = vunpack.c.l.b16 %v6448
  %v6709 = vunpack.c.l.b16 %v6449
  %v6710 = vunpack.c.h.b16 %v6449
  %v6711 = vunpack.c.l.b16 %v6450
  %v6712 = vunpack.c.l.b16 %v6451
  %v6713 = vunpack.c.h.b16 %v6451
  %v6714 = vunpack.c.l.b16 %v6452
  %v6715 = vunpack.c.l.b16 %v6453
  %v6716 = vunpack.c.h.b16 %v6453
  %v6717 = vunpack.c.l.b16 %v6454
  %v6718 = vunpack.c.l.b16 %v6455
  %v6719 = vunpack.c.h.b16 %v6455
  %v6720 = vunpack.c.l.b16 %v6456
  %v6721 = vunpack.c.l.b16 %v6457
  %v6722 = vunpack.c.h.b16 %v6457
  %v6723 = vunpack.c.l.b16 %v6458
  %v6724 = vunpack.c.l.b16 %v6459
  %v6725 = vunpack.c.h.b16 %v6459
  %v6726 = vunpack.c.l.b16 %v6460
  %v6727 = vunpack.c.l.b16 %v6461
  %v6728 = vunpack.c.h.b16 %v6461
  %v6729 = vunpack.c.l.b16 %v6462
  %v6730 = vunpack.c.l.b16 %v6463
  %v6731 = vunpack.c.h.b16 %v6463
  %v6732 = vunpack.c.l.b16 %v6464
  %v6733 = vunpack.c.l.b16 %v6465
  %v6734 = vunpack.c.h.b16 %v6465
  %v6735 = vunpack.c.l.b16 %v6466
  %v6736 = vunpack.c.l.b16 %v6467
  %v6737 = vunpack.c.h.b16 %v6467
  %v6738 = vunpack.c.l.b16 %v6468
  %v6739 = vunpack.c.l.b16 %v6469
  %v6740 = vunpack.c.h.b16 %v6469
  %v6741 = vunpack.c.l.b16 %v6470
  %v6742 = vunpack.c.l.b16 %v6471
  %v6743 = vunpack.c.h.b16 %v6471
  %v6744 = vunpack.c.l.b16 %v6472
  %v6745 = vunpack.c.l.b16 %v6473
  %v6746 = vunpack.c.h.b16 %v6473
  %v6747 = vunpack.c.l.b16 %v6474
  %v6748 = vunpack.c.l.b16 %v6475
  %v6749 = vunpack.c.h.b16 %v6475
  %v6750 = vunpack.c.l.b16 %v6476
  %v6751 = vunpack.c.l.b16 %v6477
  %v6752 = vunpack.c.h.b16 %v6477
  %v6753 = vunpack.c.l.b16 %v6478
  %v6754 = vunpack.c.l.b16 %v6479
  %v6755 = vunpack.c.h.b16 %v6479
  %v6756 = vunpack.c.l.b16 %v6480
  %v6757 = vunpack.c.l.b16 %v6481
  %v6758 = vunpack.c.h.b16 %v6481
  %v6759 = vunpack.c.l.b16 %v6482
  %v6760 = vunpack.c.l.b16 %v6483
  %v6761 = vunpack.c.h.b16 %v6483
  %v6762 = vunpack.c.l.b16 %v6484
  %v6763 = vunpack.c.l.b16 %v6485
  %v6764 = vunpack.c.h.b16 %v6485
  %v6765 = vunpack.c.l.b16 %v6486
  %v6766 = vunpack.c.l.b16 %v6487
  %v6767 = vunpack.c.h.b16 %v6487
  %v6768 = vunpack.c.l.b16 %v6488
  %v6769 = vunpack.c.l.b16 %v6489
  %v6770 = vunpack.c.h.b16 %v6489
  %v6771 = vunpack.c.l.b16 %v6490
  %v6772 = vunpack.c.l.b16 %v6491
  %v6773 = vunpack.c.h.b16 %v6491
  %v6774 = vunpack.c.l.b16 %v6492
  %v6775 = vunpack.c.l.b16 %v6493
  %v6776 = vunpack.c.h.b16 %v6493
  %v6777 = vunpack.c.l.b16 %v6494
  %v6778 = vunpack.c.l.b16 %v6495
  %v6779 = vunpack.c.h.b16 %v6495
  %v6780 = vunpack.c.l.b16 %v6496
  %v6781 = vunpack.c.l.b16 %v6497
  %v6782 = vunpack.c.h.b16 %v6497
  %v6783 = vunpack.c.l.b16 %v6498
  %v6784 = vunpack.c.l.b16 %v6499
  %v6785 = vunpack.c.h.b16 %v6499
  %v6786 = vunpack.c.l.b16 %v6500
  %v6787 = vunpack.c.l.b16 %v6501
  %v6788 = vunpack.c.h.b16 %v6501
  %v6789 = vunpack.c.l.b16 %v6502
  %v6790 = vunpack.c.l.b16 %v6503
  %v6791 = vunpack.c.h.b16 %v6503
  %v6792 = vunpack.c.l.b16 %v6504
  %v6793 = vunpack.c.l.b16 %v6505
  %v6794 = vunpack.c.h.b16 %v6505
  %v6795 = vunpack.c.l.b16 %v6506
  %v6796 = vunpack.c.l.b16 %v6507
  %v6797 = vunpack.c.h.b16 %v6507
  %v6798 = vunpack.c.l.b16 %v6508
  %v6799 = vunpack.c.l.b16 %v6509
  %v6800 = vunpack.c.h.b16 %v6509
  %v6801 = vunpack.c.l.b16 %v6510
  %v6802 = vunpack.c.l.b16 %v6511
  %v6803 = vunpack.c.h.b16 %v6511
  %v6804 = vunpack.c.l.b16 %v6512
  %v6805 = vunpack.c.l.b16 %v6513
  %v6806 = vunpack.c.h.b16 %v6513
  %v6807 = vunpack.c.l.b16 %v6514
  %v6808 = vunpack.c.l.b16 %v6515
  %v6809 = vunpack.c.h.b16 %v6515
  %v6810 = vunpack.c.l.b16 %v6516
  %v6811 = vunpack.c.l.b16 %v6517
  %v6812 = vunpack.c.h.b16 %v6517
  %v6813 = vunpack.c.l.b16 %v6518
  %v6814 = vunpack.c.l.b16 %v6519
  %v6815 = vunpack.c.h.b16 %v6519
  %v6816 = vunpack.c.l.b16 %v6520
  %v6817 = vunpack.c.l.b16 %v6521
  %v6818 = vunpack.c.h.b16 %v6521
  %v6819 = vunpack.c.l.b16 %v6522
  %v6820 = vunpack.c.l.b16 %v6523
  %v6821 = vunpack.c.h.b16 %v6523
  %v6822 = vunpack.c.l.b16 %v6524
  %v6823 = vunpack.c.l.b16 %v6525
  %v6824 = vunpack.c.h.b16 %v6525
  %v6825 = vunpack.c.l.b16 %v6526
  %v6826 = vunpack.c.l.b16 %v6527
  %v6827 = vunpack.c.h.b16 %v6527
  %v6828 = vunpack.c.l.b16 %v6528
  %v6829 = vunpack.c.l.b16 %v6529
  %v6830 = vunpack.c.h.b16 %v6529
  %v6831 = vunpack.c.l.b16 %v6530
  %v6832 = vunpack.c.l.b16 %v6531
  %v6833 = vunpack.c.h.b16 %v6531
  %v6834 = vunpack.c.l.b16 %v6532
  %v6835 = vunpack.c.l.b16 %v6533
  %v6836 = vunpack.c.h.b16 %v6533
  %v6837 = vunpack.c.l.b16 %v6534
  %v6838 = vunpack.c.l.b16 %v6535
  %v6839 = vunpack.c.h.b16 %v6535
  %v6840 = vunpack.c.l.b16 %v6536
  %v6841 = vunpack.c.l.b16 %v6537
  %v6842 = vunpack.c.h.b16 %v6537
  %v6843 = vunpack.c.l.b16 %v6538
  %v6844 = vunpack.c.l.b16 %v6539
  %v6845 = vunpack.c.h.b16 %v6539
  %v6846 = vunpack.c.l.b16 %v6540
  %v6847 = vunpack.c.l.b16 %v6541
  %v6848 = vunpack.c.h.b16 %v6541
  %v6849 = vunpack.c.l.b16 %v6542
  %v6850 = vunpack.c.l.b16 %v6543
  %v6851 = vunpack.c.h.b16 %v6543
  %v6852 = vunpack.c.l.b16 %v6544
  %v6853 = vunpack.c.l.b16 %v6545
  %v6854 = vunpack.c.h.b16 %v6545
  %v6855 = vunpack.c.l.b16 %v6546
  %v6856 = vunpack.c.l.b16 %v6547
  %v6857 = vunpack.c.h.b16 %v6547
  %v6858 = vunpack.c.l.b16 %v6548
  %v6859 = vunpack.c.l.b16 %v6549
  %v6860 = vunpack.c.h.b16 %v6549
  %v6861 = vunpack.c.l.b16 %v6550
  %v6862 = vunpack.c.l.b16 %v6551
  %v6863 = vunpack.c.h.b16 %v6551
  %v6864 = vunpack.c.l.b16 %v6552
  %v6865 = vunpack.c.l.b16 %v6553
  %v6866 = vunpack.c.h.b16 %v6553
  %v6867 = vunpack.c.l.b16 %v6554
  %v6868 = vunpack.c.l.b16 %v6555
  %v6869 = vunpack.c.h.b16 %v6555
  %v6870 = vunpack.c.l.b16 %v6556
  %v6871 = vunpack.c.l.b16 %v6557
  %v6872 = vunpack.c.h.b16 %v6557
  %v6873 = vunpack.c.l.b16 %v6558
  %v6874 = vunpack.c.l.b16 %v6559
  %v6875 = vunpack.c.h.b16 %v6559
  %v6876 = vunpack.c.l.b16 %v6560
  %v6877 = vunpack.c.l.b16 %v6561
  %v6878 = vunpack.c.h.b16 %v6561
  %v6879 = vunpack.c.l.b16 %v6562
  %v6880 = vunpack.c.l.b16 %v6563
  %v6881 = vunpack.c.h.b16 %v6563
  %v6882 = vunpack.c.l.b16 %v6564
  %v6883 = vunpack.c.l.b16 %v6565
  %v6884 = vunpack.c.h.b16 %v6565
  %v6885 = vunpack.c.l.b16 %v6566
  %v6886 = vunpack.c.l.b16 %v6567
  %v6887 = vunpack.c.h.b16 %v6567
  %v6888 = vunpack.c.l.b16 %v6568
  %v6889 = vpack.c.b16 %v6700, %v6697
  %v6890 = vpack.c.b16 %v6701, %v6698
  %v6891 = vpack.c.b16 %v6702, %v6699
  %v6892 = vpack.c.b16 %v6706, %v6703
  %v6893 = vpack.c.b16 %v6707, %v6704
  %v6894 = vpack.c.b16 %v6708, %v6705
  %v6895 = vpack.c.b16 %v6712, %v6709
  %v6896 = vpack.c.b16 %v6713, %v6710
  %v6897 = vpack.c.b16 %v6714, %v6711
  %v6898 = vpack.c.b16 %v6718, %v6715
  %v6899 = vpack.c.b16 %v6719, %v6716
  %v6900 = vpack.c.b16 %v6720, %v6717
  %v6901 = vpack.c.b16 %v6724, %v6721
  %v6902 = vpack.c.b16 %v6725, %v6722
  %v6903 = vpack.c.b16 %v6726, %v6723
  %v6904 = vpack.c.b16 %v6730, %v6727
  %v6905 = vpack.c.b16 %v6731, %v6728
  %v6906 = vpack.c.b16 %v6732, %v6729
  %v6907 = vpack.c.b16 %v6736, %v6733
  %v6908 = vpack.c.b16 %v6737, %v6734
  %v6909 = vpack.c.b16 %v6738, %v6735
  %v6910 = vpack.c.b16 %v6742, %v6739
  %v6911 = vpack.c.b16 %v6743, %v6740
  %v6912 = vpack.c.b16 %v6744, %v6741
  %v6913 = vpack.c.b16 %v6748, %v6745
  %v6914 = vpack.c.b16 %v6749, %v6746
  %v6915 = vpack.c.b16 %v6750, %v6747
  %v6916 = vpack.c.b16 %v6754, %v6751
  %v6917 = vpack.c.b16 %v6755, %v6752
  %v6918 = vpack.c.b16 %v6756, %v6753
  %v6919 = vpack.c.b16 %v6760, %v6757
  %v6920 = vpack.c.b16 %v6761, %v6758
  %v6921 = vpack.c.b16 %v6762, %v6759
  %v6922 = vpack.c.b16 %v6766, %v6763
  %v6923 = vpack.c.b16 %v6767, %v6764
  %v6924 = vpack.c.b16 %v6768, %v6765
  %v6925 = vpack.c.b16 %v6772, %v6769
  %v6926 = vpack.c.b16 %v6773, %v6770
  %v6927 = vpack.c.b16 %v6774, %v6771
  %v6928 = vpack.c.b16 %v6778, %v6775
  %v6929 = vpack.c.b16 %v6779, %v6776
  %v6930 = vpack.c.b16 %v6780, %v6777
  %v6931 = vpack.c.b16 %v6784, %v6781
  %v6932 = vpack.c.b16 %v6785, %v6782
  %v6933 = vpack.c.b16 %v6786, %v6783
  %v6934 = vpack.c.b16 %v6790, %v6787
  %v6935 = vpack.c.b16 %v6791, %v6788
  %v6936 = vpack.c.b16 %v6792, %v6789
  %v6937 = vpack.c.b16 %v6796, %v6793
  %v6938 = vpack.c.b16 %v6797, %v6794
  %v6939 = vpack.c.b16 %v6798, %v6795
  %v6940 = vpack.c.b16 %v6802, %v6799
  %v6941 = vpack.c.b16 %v6803, %v6800
  %v6942 = vpack.c.b16 %v6804, %v6801
  %v6943 = vpack.c.b16 %v6808, %v6805
  %v6944 = vpack.c.b16 %v6809, %v6806
  %v6945 = vpack.c.b16 %v6810, %v6807
  %v6946 = vpack.c.b16 %v6814, %v6811
  %v6947 = vpack.c.b16 %v6815, %v6812
  %v6948 = vpack.c.b16 %v6816, %v6813
  %v6949 = vpack.c.b16 %v6820, %v6817
  %v6950 = vpack.c.b16 %v6821, %v6818
  %v6951 = vpack.c.b16 %v6822, %v6819
  %v6952 = vpack.c.b16 %v6826, %v6823
  %v6953 = vpack.c.b16 %v6827, %v6824
  %v6954 = vpack.c.b16 %v6828, %v6825
  %v6955 = vpack.c.b16 %v6832, %v6829
  %v6956 = vpack.c.b16 %v6833, %v6830
  %v6957 = vpack.c.b16 %v6834, %v6831
  %v6958 = vpack.c.b16 %v6838, %v6835
  %v6959 = vpack.c.b16 %v6839, %v6836
  %v6960 = vpack.c.b16 %v6840, %v6837
  %v6961 = vpack.c.b16 %v6844, %v6841
  %v6962 = vpack.c.b16 %v6845, %v6842
  %v6963 = vpack.c.b16 %v6846, %v6843
  %v6964 = vpack.c.b16 %v6850, %v6847
  %v6965 = vpack.c.b16 %v6851, %v6848
  %v6966 = vpack.c.b16 %v6852, %v6849
  %v6967 = vpack.c.b16 %v6856, %v6853
  %v6968 = vpack.c.b16 %v6857, %v6854
  %v6969 = vpack.c.b16 %v6858, %v6855
  %v6970 = vpack.c.b16 %v6862, %v6859
  %v6971 = vpack.c.b16 %v6863, %v6860
  %v6972 = vpack.c.b16 %v6864, %v6861
  %v6973 = vpack.c.b16 %v6868, %v6865
  %v6974 = vpack.c.b16 %v6869, %v6866
  %v6975 = vpack.c.b16 %v6870, %v6867
  %v6976 = vpack.c.b16 %v6874, %v6871
  %v6977 = vpack.c.b16 %v6875, %v6872
  %v6978 = vpack.c.b16 %v6876, %v6873
  %v6979 = vpack.c.b16 %v6880, %v6877
  %v6980 = vpack.c.b16 %v6881, %v6878
  %v6981 = vpack.c.b16 %v6882, %v6879
  %v6982 = vpack.c.b16 %v6886, %v6883
  %v6983 = vpack.c.b16 %v6887, %v6884
  %v6984 = vpack.c.b16 %v6888, %v6885
  %7081 = vmatprep.subr.bf16.mxu0 %v6911
  %7082 = vmatpush1.bf16.msra.mxu0 %v6910
  %7083 = vmatprep.subr.bf16.mxu0 %v6908
  %7084 = vmatpush1.bf16.msra.mxu0 %v6907
  %7085 = vmatprep.subr.bf16.mxu0 %v6905
  %7086 = vmatpush1.bf16.msra.mxu0 %v6904
  %7087 = vmatprep.subr.bf16.mxu0 %v6902
  %7088 = vmatpush1.bf16.msra.mxu0 %v6901
  %7089 = vmatprep.subr.bf16.mxu0 %v6899
  %7090 = vmatpush1.bf16.msra.mxu0 %v6898
  %7091 = vmatprep.subr.bf16.mxu0 %v6896
  %7092 = vmatpush1.bf16.msra.mxu0 %v6895
  %7093 = vmatprep.subr.bf16.mxu0 %v6893
  %7094 = vmatpush1.bf16.msra.mxu0 %v6892
  %7095 = vmatprep.subr.bf16.mxu0 %v6890
  %7096 = vmatpush1.bf16.msra.mxu0 %v6889
  %7097 = vmatprep.subr.bf16.mxu0 %v6935
  %7098 = vmatpush2.bf16.msra.mxu0 %v6934
  %7099 = vmatprep.subr.bf16.mxu0 %v6932
  %7100 = vmatpush2.bf16.msra.mxu0 %v6931
  %7101 = vmatprep.subr.bf16.mxu0 %v6929
  %7102 = vmatpush2.bf16.msra.mxu0 %v6928
  %7103 = vmatprep.subr.bf16.mxu0 %v6926
  %7104 = vmatpush2.bf16.msra.mxu0 %v6925
  %7105 = vmatprep.subr.bf16.mxu0 %v6923
  %7106 = vmatpush2.bf16.msra.mxu0 %v6922
  %7107 = vmatprep.subr.bf16.mxu0 %v6920
  %7108 = vmatpush2.bf16.msra.mxu0 %v6919
  %7109 = vmatprep.subr.bf16.mxu0 %v6917
  %7110 = vmatpush2.bf16.msra.mxu0 %v6916
  %7111 = vmatprep.subr.bf16.mxu0 %v6914
  %7112 = vmatpush2.bf16.msra.mxu0 %v6913
  %7113 = vmatprep.mubr.bf16.mxu0 %v6438
  %7114 = vmatmul.mubr.bf16.gmra.mxu0 %v6437
  %v7115 = vpop.f32.mrf.mxu0
  %v7116 = vadd.f32 0.0, %v7115
  %v7117 = vpop.f32.mrf.mxu0
  %v7118 = vadd.f32 0.0, %v7117
  %v7119 = vpop.f32.mrf.mxu0
  %v7120 = vpop.f32.mrf.mxu0
  %7121 = vdwg.mxu0
  %7122 = vmatprep.subr.bf16.mxu0 %v6959
  %7123 = vmatpush1.bf16.msra.mxu0 %v6958
  %7124 = vmatprep.subr.bf16.mxu0 %v6956
  %7125 = vmatpush1.bf16.msra.mxu0 %v6955
  %7126 = vmatprep.subr.bf16.mxu0 %v6953
  %7127 = vmatpush1.bf16.msra.mxu0 %v6952
  %7128 = vmatprep.subr.bf16.mxu0 %v6950
  %7129 = vmatpush1.bf16.msra.mxu0 %v6949
  %7130 = vmatprep.subr.bf16.mxu0 %v6947
  %7131 = vmatpush1.bf16.msra.mxu0 %v6946
  %7132 = vmatprep.subr.bf16.mxu0 %v6944
  %7133 = vmatpush1.bf16.msra.mxu0 %v6943
  %7134 = vmatprep.subr.bf16.mxu0 %v6941
  %7135 = vmatpush1.bf16.msra.mxu0 %v6940
  %7136 = vmatprep.subr.bf16.mxu0 %v6938
  %7137 = vmatpush1.bf16.msra.mxu0 %v6937
  %7138 = vmatprep.subr.bf16.mxu0 %v6983
  %7139 = vmatpush2.bf16.msra.mxu0 %v6982
  %7140 = vmatprep.subr.bf16.mxu0 %v6980
  %7141 = vmatpush2.bf16.msra.mxu0 %v6979
  %7142 = vmatprep.subr.bf16.mxu0 %v6977
  %7143 = vmatpush2.bf16.msra.mxu0 %v6976
  %7144 = vmatprep.subr.bf16.mxu0 %v6974
  %7145 = vmatpush2.bf16.msra.mxu0 %v6973
  %7146 = vmatprep.subr.bf16.mxu0 %v6971
  %7147 = vmatpush2.bf16.msra.mxu0 %v6970
  %7148 = vmatprep.subr.bf16.mxu0 %v6968
  %7149 = vmatpush2.bf16.msra.mxu0 %v6967
  %7150 = vmatprep.subr.bf16.mxu0 %v6965
  %7151 = vmatpush2.bf16.msra.mxu0 %v6964
  %7152 = vmatprep.subr.bf16.mxu0 %v6962
  %7153 = vmatpush2.bf16.msra.mxu0 %v6961
  %7154 = vmatprep.mubr.bf16.mxu0 %v6440
  %7155 = vmatmul.mubr.bf16.gmra.mxu0 %v6439
  %v7156 = vpop.f32.mrf.mxu0
  %v7157 = vadd.f32 %v7116, %v7156
  %v7158 = vpop.f32.mrf.mxu0
  %v7159 = vadd.f32 %v7118, %v7158
  %v7160 = vpop.f32.mrf.mxu0
  %v7161 = vpop.f32.mrf.mxu0
  %7162 = vdwg.mxu0
  %7163 = vmatprep.subr.bf16.mxu0 0
  %7164 = vmatpush1.bf16.msra.mxu0 %v6912
  %7165 = vmatprep.subr.bf16.mxu0 0
  %7166 = vmatpush1.bf16.msra.mxu0 %v6909
  %7167 = vmatprep.subr.bf16.mxu0 0
  %7168 = vmatpush1.bf16.msra.mxu0 %v6906
  %7169 = vmatprep.subr.bf16.mxu0 0
  %7170 = vmatpush1.bf16.msra.mxu0 %v6903
  %7171 = vmatprep.subr.bf16.mxu0 0
  %7172 = vmatpush1.bf16.msra.mxu0 %v6900
  %7173 = vmatprep.subr.bf16.mxu0 0
  %7174 = vmatpush1.bf16.msra.mxu0 %v6897
  %7175 = vmatprep.subr.bf16.mxu0 0
  %7176 = vmatpush1.bf16.msra.mxu0 %v6894
  %7177 = vmatprep.subr.bf16.mxu0 0
  %7178 = vmatpush1.bf16.msra.mxu0 %v6891
  %7179 = vmatprep.subr.bf16.mxu0 0
  %7180 = vmatpush2.bf16.msra.mxu0 %v6936
  %7181 = vmatprep.subr.bf16.mxu0 0
  %7182 = vmatpush2.bf16.msra.mxu0 %v6933
  %7183 = vmatprep.subr.bf16.mxu0 0
  %7184 = vmatpush2.bf16.msra.mxu0 %v6930
  %7185 = vmatprep.subr.bf16.mxu0 0
  %7186 = vmatpush2.bf16.msra.mxu0 %v6927
  %7187 = vmatprep.subr.bf16.mxu0 0
  %7188 = vmatpush2.bf16.msra.mxu0 %v6924
  %7189 = vmatprep.subr.bf16.mxu0 0
  %7190 = vmatpush2.bf16.msra.mxu0 %v6921
  %7191 = vmatprep.subr.bf16.mxu0 0
  %7192 = vmatpush2.bf16.msra.mxu0 %v6918
  %7193 = vmatprep.subr.bf16.mxu0 0
  %7194 = vmatpush2.bf16.msra.mxu0 %v6915
  %7195 = vmatprep.mubr.bf16.mxu0 %v6438
  %7196 = vmatmul.mubr.bf16.gmra.mxu0 %v6437
  %v7197 = vpop.f32.mrf.mxu0
  %v7198 = vadd.f32 0.0, %v7197
  %v7199 = vpop.f32.mrf.mxu0
  %v7200 = vpop.f32.mrf.mxu0
  %v7201 = vpop.f32.mrf.mxu0
  %7202 = vdwg.mxu0
  %7203 = vmatprep.subr.bf16.mxu0 0
  %7204 = vmatpush1.bf16.msra.mxu0 %v6960
  %7205 = vmatprep.subr.bf16.mxu0 0
  %7206 = vmatpush1.bf16.msra.mxu0 %v6957
  %7207 = vmatprep.subr.bf16.mxu0 0
  %7208 = vmatpush1.bf16.msra.mxu0 %v6954
  %7209 = vmatprep.subr.bf16.mxu0 0
  %7210 = vmatpush1.bf16.msra.mxu0 %v6951
  %7211 = vmatprep.subr.bf16.mxu0 0
  %7212 = vmatpush1.bf16.msra.mxu0 %v6948
  %7213 = vmatprep.subr.bf16.mxu0 0
  %7214 = vmatpush1.bf16.msra.mxu0 %v6945
  %7215 = vmatprep.subr.bf16.mxu0 0
  %7216 = vmatpush1.bf16.msra.mxu0 %v6942
  %7217 = vmatprep.subr.bf16.mxu0 0
  %7218 = vmatpush1.bf16.msra.mxu0 %v6939
  %7219 = vmatprep.subr.bf16.mxu0 0
  %7220 = vmatpush2.bf16.msra.mxu0 %v6984
  %7221 = vmatprep.subr.bf16.mxu0 0
  %7222 = vmatpush2.bf16.msra.mxu0 %v6981
  %7223 = vmatprep.subr.bf16.mxu0 0
  %7224 = vmatpush2.bf16.msra.mxu0 %v6978
  %7225 = vmatprep.subr.bf16.mxu0 0
  %7226 = vmatpush2.bf16.msra.mxu0 %v6975
  %7227 = vmatprep.subr.bf16.mxu0 0
  %7228 = vmatpush2.bf16.msra.mxu0 %v6972
  %7229 = vmatprep.subr.bf16.mxu0 0
  %7230 = vmatpush2.bf16.msra.mxu0 %v6969
  %7231 = vmatprep.subr.bf16.mxu0 0
  %7232 = vmatpush2.bf16.msra.mxu0 %v6966
  %7233 = vmatprep.subr.bf16.mxu0 0
  %7234 = vmatpush2.bf16.msra.mxu0 %v6963
  %7235 = vmatprep.mubr.bf16.mxu0 %v6440
  %7236 = vmatmul.mubr.bf16.gmra.mxu0 %v6439
  %v7237 = vpop.f32.mrf.mxu0
  %v7238 = vadd.f32 %v7198, %v7237
  %v7239 = vpop.f32.mrf.mxu0
  %v7240 = vpop.f32.mrf.mxu0
  %v7241 = vpop.f32.mrf.mxu0
  %7242 = vdwg.mxu0
  %v7339 = vunpack.c.l.b16 %v6341
  %v7340 = vunpack.c.h.b16 %v6341
  %v7341 = vunpack.c.l.b16 %v6342
  %v7342 = vunpack.c.l.b16 %v6343
  %v7343 = vunpack.c.h.b16 %v6343
  %v7344 = vunpack.c.l.b16 %v6344
  %v7345 = vunpack.c.l.b16 %v6345
  %v7346 = vunpack.c.h.b16 %v6345
  %v7347 = vunpack.c.l.b16 %v6346
  %v7348 = vunpack.c.l.b16 %v6347
  %v7349 = vunpack.c.h.b16 %v6347
  %v7350 = vunpack.c.l.b16 %v6348
  %v7351 = vunpack.c.l.b16 %v6349
  %v7352 = vunpack.c.h.b16 %v6349
  %v7353 = vunpack.c.l.b16 %v6350
  %v7354 = vunpack.c.l.b16 %v6351
  %v7355 = vunpack.c.h.b16 %v6351
  %v7356 = vunpack.c.l.b16 %v6352
  %v7357 = vunpack.c.l.b16 %v6353
  %v7358 = vunpack.c.h.b16 %v6353
  %v7359 = vunpack.c.l.b16 %v6354
  %v7360 = vunpack.c.l.b16 %v6355
  %v7361 = vunpack.c.h.b16 %v6355
  %v7362 = vunpack.c.l.b16 %v6356
  %v7363 = vunpack.c.l.b16 %v6357
  %v7364 = vunpack.c.h.b16 %v6357
  %v7365 = vunpack.c.l.b16 %v6358
  %v7366 = vunpack.c.l.b16 %v6359
  %v7367 = vunpack.c.h.b16 %v6359
  %v7368 = vunpack.c.l.b16 %v6360
  %v7369 = vunpack.c.l.b16 %v6361
  %v7370 = vunpack.c.h.b16 %v6361
  %v7371 = vunpack.c.l.b16 %v6362
  %v7372 = vunpack.c.l.b16 %v6363
  %v7373 = vunpack.c.h.b16 %v6363
  %v7374 = vunpack.c.l.b16 %v6364
  %v7375 = vunpack.c.l.b16 %v6365
  %v7376 = vunpack.c.h.b16 %v6365
  %v7377 = vunpack.c.l.b16 %v6366
  %v7378 = vunpack.c.l.b16 %v6367
  %v7379 = vunpack.c.h.b16 %v6367
  %v7380 = vunpack.c.l.b16 %v6368
  %v7381 = vunpack.c.l.b16 %v6369
  %v7382 = vunpack.c.h.b16 %v6369
  %v7383 = vunpack.c.l.b16 %v6370
  %v7384 = vunpack.c.l.b16 %v6371
  %v7385 = vunpack.c.h.b16 %v6371
  %v7386 = vunpack.c.l.b16 %v6372
  %v7387 = vunpack.c.l.b16 %v6373
  %v7388 = vunpack.c.h.b16 %v6373
  %v7389 = vunpack.c.l.b16 %v6374
  %v7390 = vunpack.c.l.b16 %v6375
  %v7391 = vunpack.c.h.b16 %v6375
  %v7392 = vunpack.c.l.b16 %v6376
  %v7393 = vunpack.c.l.b16 %v6377
  %v7394 = vunpack.c.h.b16 %v6377
  %v7395 = vunpack.c.l.b16 %v6378
  %v7396 = vunpack.c.l.b16 %v6379
  %v7397 = vunpack.c.h.b16 %v6379
  %v7398 = vunpack.c.l.b16 %v6380
  %v7399 = vunpack.c.l.b16 %v6381
  %v7400 = vunpack.c.h.b16 %v6381
  %v7401 = vunpack.c.l.b16 %v6382
  %v7402 = vunpack.c.l.b16 %v6383
  %v7403 = vunpack.c.h.b16 %v6383
  %v7404 = vunpack.c.l.b16 %v6384
  %v7405 = vunpack.c.l.b16 %v6385
  %v7406 = vunpack.c.h.b16 %v6385
  %v7407 = vunpack.c.l.b16 %v6386
  %v7408 = vunpack.c.l.b16 %v6387
  %v7409 = vunpack.c.h.b16 %v6387
  %v7410 = vunpack.c.l.b16 %v6388
  %v7411 = vunpack.c.l.b16 %v6389
  %v7412 = vunpack.c.h.b16 %v6389
  %v7413 = vunpack.c.l.b16 %v6390
  %v7414 = vunpack.c.l.b16 %v6391
  %v7415 = vunpack.c.h.b16 %v6391
  %v7416 = vunpack.c.l.b16 %v6392
  %v7417 = vunpack.c.l.b16 %v6393
  %v7418 = vunpack.c.h.b16 %v6393
  %v7419 = vunpack.c.l.b16 %v6394
  %v7420 = vunpack.c.l.b16 %v6395
  %v7421 = vunpack.c.h.b16 %v6395
  %v7422 = vunpack.c.l.b16 %v6396
  %v7423 = vunpack.c.l.b16 %v6397
  %v7424 = vunpack.c.h.b16 %v6397
  %v7425 = vunpack.c.l.b16 %v6398
  %v7426 = vunpack.c.l.b16 %v6399
  %v7427 = vunpack.c.h.b16 %v6399
  %v7428 = vunpack.c.l.b16 %v6400
  %v7429 = vunpack.c.l.b16 %v6401
  %v7430 = vunpack.c.h.b16 %v6401
  %v7431 = vunpack.c.l.b16 %v6402
  %v7432 = vunpack.c.l.b16 %v6403
  %v7433 = vunpack.c.h.b16 %v6403
  %v7434 = vunpack.c.l.b16 %v6404
  %v7435 = vunpack.c.l.b16 %v6405
  %v7436 = vunpack.c.h.b16 %v6405
  %v7437 = vunpack.c.l.b16 %v6406
  %v7438 = vunpack.c.l.b16 %v6407
  %v7439 = vunpack.c.h.b16 %v6407
  %v7440 = vunpack.c.l.b16 %v6408
  %v7441 = vunpack.c.l.b16 %v6409
  %v7442 = vunpack.c.h.b16 %v6409
  %v7443 = vunpack.c.l.b16 %v6410
  %v7444 = vunpack.c.l.b16 %v6411
  %v7445 = vunpack.c.h.b16 %v6411
  %v7446 = vunpack.c.l.b16 %v6412
  %v7447 = vunpack.c.l.b16 %v6413
  %v7448 = vunpack.c.h.b16 %v6413
  %v7449 = vunpack.c.l.b16 %v6414
  %v7450 = vunpack.c.l.b16 %v6415
  %v7451 = vunpack.c.h.b16 %v6415
  %v7452 = vunpack.c.l.b16 %v6416
  %v7453 = vunpack.c.l.b16 %v6417
  %v7454 = vunpack.c.h.b16 %v6417
  %v7455 = vunpack.c.l.b16 %v6418
  %v7456 = vunpack.c.l.b16 %v6419
  %v7457 = vunpack.c.h.b16 %v6419
  %v7458 = vunpack.c.l.b16 %v6420
  %v7459 = vunpack.c.l.b16 %v6421
  %v7460 = vunpack.c.h.b16 %v6421
  %v7461 = vunpack.c.l.b16 %v6422
  %v7462 = vunpack.c.l.b16 %v6423
  %v7463 = vunpack.c.h.b16 %v6423
  %v7464 = vunpack.c.l.b16 %v6424
  %v7465 = vunpack.c.l.b16 %v6425
  %v7466 = vunpack.c.h.b16 %v6425
  %v7467 = vunpack.c.l.b16 %v6426
  %v7468 = vunpack.c.l.b16 %v6427
  %v7469 = vunpack.c.h.b16 %v6427
  %v7470 = vunpack.c.l.b16 %v6428
  %v7471 = vunpack.c.l.b16 %v6429
  %v7472 = vunpack.c.h.b16 %v6429
  %v7473 = vunpack.c.l.b16 %v6430
  %v7474 = vunpack.c.l.b16 %v6431
  %v7475 = vunpack.c.h.b16 %v6431
  %v7476 = vunpack.c.l.b16 %v6432
  %v7477 = vunpack.c.l.b16 %v6433
  %v7478 = vunpack.c.h.b16 %v6433
  %v7479 = vunpack.c.l.b16 %v6434
  %v7480 = vunpack.c.l.b16 %v6435
  %v7481 = vunpack.c.h.b16 %v6435
  %v7482 = vunpack.c.l.b16 %v6436
  %v7483 = vpack.c.b16 %v7342, %v7339
  %v7484 = vpack.c.b16 %v7343, %v7340
  %v7485 = vpack.c.b16 %v7344, %v7341
  %v7486 = vpack.c.b16 %v7348, %v7345
  %v7487 = vpack.c.b16 %v7349, %v7346
  %v7488 = vpack.c.b16 %v7350, %v7347
  %v7489 = vpack.c.b16 %v7354, %v7351
  %v7490 = vpack.c.b16 %v7355, %v7352
  %v7491 = vpack.c.b16 %v7356, %v7353
  %v7492 = vpack.c.b16 %v7360, %v7357
  %v7493 = vpack.c.b16 %v7361, %v7358
  %v7494 = vpack.c.b16 %v7362, %v7359
  %v7495 = vpack.c.b16 %v7366, %v7363
  %v7496 = vpack.c.b16 %v7367, %v7364
  %v7497 = vpack.c.b16 %v7368, %v7365
  %v7498 = vpack.c.b16 %v7372, %v7369
  %v7499 = vpack.c.b16 %v7373, %v7370
  %v7500 = vpack.c.b16 %v7374, %v7371
  %v7501 = vpack.c.b16 %v7378, %v7375
  %v7502 = vpack.c.b16 %v7379, %v7376
  %v7503 = vpack.c.b16 %v7380, %v7377
  %v7504 = vpack.c.b16 %v7384, %v7381
  %v7505 = vpack.c.b16 %v7385, %v7382
  %v7506 = vpack.c.b16 %v7386, %v7383
  %v7507 = vpack.c.b16 %v7390, %v7387
  %v7508 = vpack.c.b16 %v7391, %v7388
  %v7509 = vpack.c.b16 %v7392, %v7389
  %v7510 = vpack.c.b16 %v7396, %v7393
  %v7511 = vpack.c.b16 %v7397, %v7394
  %v7512 = vpack.c.b16 %v7398, %v7395
  %v7513 = vpack.c.b16 %v7402, %v7399
  %v7514 = vpack.c.b16 %v7403, %v7400
  %v7515 = vpack.c.b16 %v7404, %v7401
  %v7516 = vpack.c.b16 %v7408, %v7405
  %v7517 = vpack.c.b16 %v7409, %v7406
  %v7518 = vpack.c.b16 %v7410, %v7407
  %v7519 = vpack.c.b16 %v7414, %v7411
  %v7520 = vpack.c.b16 %v7415, %v7412
  %v7521 = vpack.c.b16 %v7416, %v7413
  %v7522 = vpack.c.b16 %v7420, %v7417
  %v7523 = vpack.c.b16 %v7421, %v7418
  %v7524 = vpack.c.b16 %v7422, %v7419
  %v7525 = vpack.c.b16 %v7426, %v7423
  %v7526 = vpack.c.b16 %v7427, %v7424
  %v7527 = vpack.c.b16 %v7428, %v7425
  %v7528 = vpack.c.b16 %v7432, %v7429
  %v7529 = vpack.c.b16 %v7433, %v7430
  %v7530 = vpack.c.b16 %v7434, %v7431
  %v7531 = vpack.c.b16 %v7438, %v7435
  %v7532 = vpack.c.b16 %v7439, %v7436
  %v7533 = vpack.c.b16 %v7440, %v7437
  %v7534 = vpack.c.b16 %v7444, %v7441
  %v7535 = vpack.c.b16 %v7445, %v7442
  %v7536 = vpack.c.b16 %v7446, %v7443
  %v7537 = vpack.c.b16 %v7450, %v7447
  %v7538 = vpack.c.b16 %v7451, %v7448
  %v7539 = vpack.c.b16 %v7452, %v7449
  %v7540 = vpack.c.b16 %v7456, %v7453
  %v7541 = vpack.c.b16 %v7457, %v7454
  %v7542 = vpack.c.b16 %v7458, %v7455
  %v7543 = vpack.c.b16 %v7462, %v7459
  %v7544 = vpack.c.b16 %v7463, %v7460
  %v7545 = vpack.c.b16 %v7464, %v7461
  %v7546 = vpack.c.b16 %v7468, %v7465
  %v7547 = vpack.c.b16 %v7469, %v7466
  %v7548 = vpack.c.b16 %v7470, %v7467
  %v7549 = vpack.c.b16 %v7474, %v7471
  %v7550 = vpack.c.b16 %v7475, %v7472
  %v7551 = vpack.c.b16 %v7476, %v7473
  %v7552 = vpack.c.b16 %v7480, %v7477
  %v7553 = vpack.c.b16 %v7481, %v7478
  %v7554 = vpack.c.b16 %v7482, %v7479
  %7627 = vmatprep.subr.bf16.mxu0 %v7505
  %7628 = vmatpush1.bf16.msra.mxu0 %v7504
  %7629 = vmatprep.subr.bf16.mxu0 %v7502
  %7630 = vmatpush1.bf16.msra.mxu0 %v7501
  %7631 = vmatprep.subr.bf16.mxu0 %v7499
  %7632 = vmatpush1.bf16.msra.mxu0 %v7498
  %7633 = vmatprep.subr.bf16.mxu0 %v7496
  %7634 = vmatpush1.bf16.msra.mxu0 %v7495
  %7635 = vmatprep.subr.bf16.mxu0 %v7493
  %7636 = vmatpush1.bf16.msra.mxu0 %v7492
  %7637 = vmatprep.subr.bf16.mxu0 %v7490
  %7638 = vmatpush1.bf16.msra.mxu0 %v7489
  %7639 = vmatprep.subr.bf16.mxu0 %v7487
  %7640 = vmatpush1.bf16.msra.mxu0 %v7486
  %7641 = vmatprep.subr.bf16.mxu0 %v7484
  %7642 = vmatpush1.bf16.msra.mxu0 %v7483
  %7643 = vmatprep.subr.bf16.mxu0 %v7529
  %7644 = vmatpush2.bf16.msra.mxu0 %v7528
  %7645 = vmatprep.subr.bf16.mxu0 %v7526
  %7646 = vmatpush2.bf16.msra.mxu0 %v7525
  %7647 = vmatprep.subr.bf16.mxu0 %v7523
  %7648 = vmatpush2.bf16.msra.mxu0 %v7522
  %7649 = vmatprep.subr.bf16.mxu0 %v7520
  %7650 = vmatpush2.bf16.msra.mxu0 %v7519
  %7651 = vmatprep.subr.bf16.mxu0 %v7517
  %7652 = vmatpush2.bf16.msra.mxu0 %v7516
  %7653 = vmatprep.subr.bf16.mxu0 %v7514
  %7654 = vmatpush2.bf16.msra.mxu0 %v7513
  %7655 = vmatprep.subr.bf16.mxu0 %v7511
  %7656 = vmatpush2.bf16.msra.mxu0 %v7510
  %7657 = vmatprep.subr.bf16.mxu0 %v7508
  %7658 = vmatpush2.bf16.msra.mxu0 %v7507
  %7659 = vmatprep.mubr.bf16.mxu0 %v6339
  %7660 = vmatmul.mubr.bf16.gmra.mxu0 %v6338
  %v7661 = vpop.f32.mrf.mxu0
  %v7662 = vadd.f32 %v7157, %v7661
  %v7663 = vpop.f32.mrf.mxu0
  %v7664 = vadd.f32 %v7159, %v7663
  %v7665 = vpop.f32.mrf.mxu0
  %v7666 = vpop.f32.mrf.mxu0
  %7667 = vdwg.mxu0
  %7668 = vmatprep.subr.bf16.mxu0 %v7553
  %7669 = vmatpush1.bf16.msra.mxu0 %v7552
  %7670 = vmatprep.subr.bf16.mxu0 %v7550
  %7671 = vmatpush1.bf16.msra.mxu0 %v7549
  %7672 = vmatprep.subr.bf16.mxu0 %v7547
  %7673 = vmatpush1.bf16.msra.mxu0 %v7546
  %7674 = vmatprep.subr.bf16.mxu0 %v7544
  %7675 = vmatpush1.bf16.msra.mxu0 %v7543
  %7676 = vmatprep.subr.bf16.mxu0 %v7541
  %7677 = vmatpush1.bf16.msra.mxu0 %v7540
  %7678 = vmatprep.subr.bf16.mxu0 %v7538
  %7679 = vmatpush1.bf16.msra.mxu0 %v7537
  %7680 = vmatprep.subr.bf16.mxu0 %v7535
  %7681 = vmatpush1.bf16.msra.mxu0 %v7534
  %7682 = vmatprep.subr.bf16.mxu0 %v7532
  %7683 = vmatpush1.bf16.msra.mxu0 %v7531
  %7684 = vmatprep.subr.bf16.mxu0 0
  %7685 = vmatpush2.bf16.msra.mxu0 0
  %7686 = vmatprep.subr.bf16.mxu0 0
  %7687 = vmatpush2.bf16.msra.mxu0 0
  %7688 = vmatprep.subr.bf16.mxu0 0
  %7689 = vmatpush2.bf16.msra.mxu0 0
  %7690 = vmatprep.subr.bf16.mxu0 0
  %7691 = vmatpush2.bf16.msra.mxu0 0
  %7692 = vmatprep.subr.bf16.mxu0 0
  %7693 = vmatpush2.bf16.msra.mxu0 0
  %7694 = vmatprep.subr.bf16.mxu0 0
  %7695 = vmatpush2.bf16.msra.mxu0 0
  %7696 = vmatprep.subr.bf16.mxu0 0
  %7697 = vmatpush2.bf16.msra.mxu0 0
  %7698 = vmatprep.subr.bf16.mxu0 0
  %7699 = vmatpush2.bf16.msra.mxu0 0
  %7700 = vmatprep.mubr.bf16.mxu0 0
  %7701 = vmatmul.mubr.bf16.gmra.mxu0 %v6340
  %v7702 = vpop.f32.mrf.mxu0
  %v7703 = vadd.f32 %v7662, %v7702
  %v7704 = vpop.f32.mrf.mxu0
  %v7705 = vadd.f32 %v7664, %v7704
  %v7706 = vpop.f32.mrf.mxu0
  %v7707 = vpop.f32.mrf.mxu0
  %7708 = vdwg.mxu0
  %7709 = vmatprep.subr.bf16.mxu0 0
  %7710 = vmatpush1.bf16.msra.mxu0 %v7506
  %7711 = vmatprep.subr.bf16.mxu0 0
  %7712 = vmatpush1.bf16.msra.mxu0 %v7503
  %7713 = vmatprep.subr.bf16.mxu0 0
  %7714 = vmatpush1.bf16.msra.mxu0 %v7500
  %7715 = vmatprep.subr.bf16.mxu0 0
  %7716 = vmatpush1.bf16.msra.mxu0 %v7497
  %7717 = vmatprep.subr.bf16.mxu0 0
  %7718 = vmatpush1.bf16.msra.mxu0 %v7494
  %7719 = vmatprep.subr.bf16.mxu0 0
  %7720 = vmatpush1.bf16.msra.mxu0 %v7491
  %7721 = vmatprep.subr.bf16.mxu0 0
  %7722 = vmatpush1.bf16.msra.mxu0 %v7488
  %7723 = vmatprep.subr.bf16.mxu0 0
  %7724 = vmatpush1.bf16.msra.mxu0 %v7485
  %7725 = vmatprep.subr.bf16.mxu0 0
  %7726 = vmatpush2.bf16.msra.mxu0 %v7530
  %7727 = vmatprep.subr.bf16.mxu0 0
  %7728 = vmatpush2.bf16.msra.mxu0 %v7527
  %7729 = vmatprep.subr.bf16.mxu0 0
  %7730 = vmatpush2.bf16.msra.mxu0 %v7524
  %7731 = vmatprep.subr.bf16.mxu0 0
  %7732 = vmatpush2.bf16.msra.mxu0 %v7521
  %7733 = vmatprep.subr.bf16.mxu0 0
  %7734 = vmatpush2.bf16.msra.mxu0 %v7518
  %7735 = vmatprep.subr.bf16.mxu0 0
  %7736 = vmatpush2.bf16.msra.mxu0 %v7515
  %7737 = vmatprep.subr.bf16.mxu0 0
  %7738 = vmatpush2.bf16.msra.mxu0 %v7512
  %7739 = vmatprep.subr.bf16.mxu0 0
  %7740 = vmatpush2.bf16.msra.mxu0 %v7509
  %7741 = vmatprep.mubr.bf16.mxu0 %v6339
  %7742 = vmatmul.mubr.bf16.gmra.mxu0 %v6338
  %v7743 = vpop.f32.mrf.mxu0
  %v7744 = vadd.f32 %v7238, %v7743
  %v7745 = vpop.f32.mrf.mxu0
  %v7746 = vpop.f32.mrf.mxu0
  %v7747 = vpop.f32.mrf.mxu0
  %7748 = vdwg.mxu0
  %7749 = vmatprep.subr.bf16.mxu0 0
  %7750 = vmatpush1.bf16.msra.mxu0 %v7554
  %7751 = vmatprep.subr.bf16.mxu0 0
  %7752 = vmatpush1.bf16.msra.mxu0 %v7551
  %7753 = vmatprep.subr.bf16.mxu0 0
  %7754 = vmatpush1.bf16.msra.mxu0 %v7548
  %7755 = vmatprep.subr.bf16.mxu0 0
  %7756 = vmatpush1.bf16.msra.mxu0 %v7545
  %7757 = vmatprep.subr.bf16.mxu0 0
  %7758 = vmatpush1.bf16.msra.mxu0 %v7542
  %7759 = vmatprep.subr.bf16.mxu0 0
  %7760 = vmatpush1.bf16.msra.mxu0 %v7539
  %7761 = vmatprep.subr.bf16.mxu0 0
  %7762 = vmatpush1.bf16.msra.mxu0 %v7536
  %7763 = vmatprep.subr.bf16.mxu0 0
  %7764 = vmatpush1.bf16.msra.mxu0 %v7533
  %7765 = vmatprep.subr.bf16.mxu0 0
  %7766 = vmatpush2.bf16.msra.mxu0 0
  %7767 = vmatprep.subr.bf16.mxu0 0
  %7768 = vmatpush2.bf16.msra.mxu0 0
  %7769 = vmatprep.subr.bf16.mxu0 0
  %7770 = vmatpush2.bf16.msra.mxu0 0
  %7771 = vmatprep.subr.bf16.mxu0 0
  %7772 = vmatpush2.bf16.msra.mxu0 0
  %7773 = vmatprep.subr.bf16.mxu0 0
  %7774 = vmatpush2.bf16.msra.mxu0 0
  %7775 = vmatprep.subr.bf16.mxu0 0
  %7776 = vmatpush2.bf16.msra.mxu0 0
  %7777 = vmatprep.subr.bf16.mxu0 0
  %7778 = vmatpush2.bf16.msra.mxu0 0
  %7779 = vmatprep.subr.bf16.mxu0 0
  %7780 = vmatpush2.bf16.msra.mxu0 0
  %7781 = vmatprep.mubr.bf16.mxu0 0
  %7782 = vmatmul.mubr.bf16.gmra.mxu0 %v6340
  %v7783 = vpop.f32.mrf.mxu0
  %v7784 = vadd.f32 %v7744, %v7783
  %v7785 = vpop.f32.mrf.mxu0
  %v7786 = vpop.f32.mrf.mxu0
  %v7787 = vpop.f32.mrf.mxu0
  %7788 = vdwg.mxu0
  %v7789 = vld [vmem:[%s18] sm:$0x7]
  %v7791 = vlaneseq
  %v7792 = vshrl.u32 %v7791, 7
  %v7793 = vsub.s32 0, %v7792
  %v7794 = vrot.slane %v7789, %v7793
  %v7795 = vlaneseq
  %v7796 = vshrl.u32 %v7795, 7
  %v7797 = vsub.s32 1, %v7796
  %v7798 = vrot.slane %v7789, %v7797
  %v7799 = vlaneseq
  %v7800 = vshrl.u32 %v7799, 7
  %v7801 = vsub.s32 2, %v7800
  %v7802 = vrot.slane %v7789, %v7801
  %v7806 = vadd.f32 %v7703, %v7794
  %v7807 = vadd.f32 %v7705, %v7798
  %v7808 = vadd.f32 %v7784, %v7802
  %v7809 = vld [vmem:[%s19] sm:$0x7]
  %v7811 = vlaneseq
  %v7812 = vshrl.u32 %v7811, 7
  %v7813 = vsub.s32 0, %v7812
  %v7814 = vrot.slane %v7809, %v7813
  %v7815 = vlaneseq
  %v7816 = vshrl.u32 %v7815, 7
  %v7817 = vsub.s32 1, %v7816
  %v7818 = vrot.slane %v7809, %v7817
  %v7819 = vlaneseq
  %v7820 = vshrl.u32 %v7819, 7
  %v7821 = vsub.s32 2, %v7820
  %v7822 = vrot.slane %v7809, %v7821
  %v7826 = vmul.f32 %v7814, %v7806
  %v7827 = vmul.f32 %v7818, %v7807
  %v7828 = vmul.f32 %v7822, %v7808
  %v7829 = vsub.f32 0.0, %v7826
  %v7830 = vsub.f32 0.0, %v7827
  %v7831 = vsub.f32 0.0, %v7828
  %v7832 = vmul.f32 %v7829, 1.442695
  %v7833 = vpow.pop %v7832
  %v7834 = vmul.f32 %v7830, 1.442695
  %v7835 = vpow.pop %v7834
  %v7836 = vmul.f32 %v7831, 1.442695
  %v7837 = vpow.pop %v7836
  %v7838 = vadd.f32 %v7833, 1.0
  %v7839 = vadd.f32 %v7835, 1.0
  %v7840 = vadd.f32 %v7837, 1.0
  %v7841 = vrcp.pop %v7838
  %v7842 = vrcp.pop %v7839
  %v7843 = vrcp.pop %v7840
  %v7844 = vmul.f32 %v7806, %v7841
  %v7845 = vmul.f32 %v7807, %v7842
  %v7846 = vmul.f32 %v7808, %v7843
  %v7847 = vld [vmem:[%s20] sm:$0x7]
  %v7849 = vlaneseq
  %v7850 = vshrl.u32 %v7849, 7
  %v7851 = vsub.s32 0, %v7850
  %v7852 = vrot.slane %v7847, %v7851
  %v7853 = vlaneseq
  %v7854 = vshrl.u32 %v7853, 7
  %v7855 = vsub.s32 1, %v7854
  %v7856 = vrot.slane %v7847, %v7855
  %v7857 = vlaneseq
  %v7858 = vshrl.u32 %v7857, 7
  %v7859 = vsub.s32 2, %v7858
  %v7860 = vrot.slane %v7847, %v7859
  %v7864 = vmul.f32 %v7844, %v7852
  %v7865 = vmul.f32 %v7845, %v7856
  %v7866 = vmul.f32 %v7846, %v7860
  %v7867 = vsel %vm6072, %v7864, 0.0
  %v7868 = vsel %vm6072, %v7865, 0.0
  %v7869 = vadd.f32 %v7867, %v7868
  %v7870 = vsel %vm6072, %v7866, 0.0
  %v7871 = vadd.f32 %v7869, %v7870
  %7872 = vadd.xlane.f32.xlu0 %v7871
  %v7873 = vpop.xlane.xlu0 %7872
  %v7874 = vld [vmem:[#allocation2] sm:$0x1]
  %v7876 = vlaneseq
  %v7877 = vshrl.u32 %v7876, 7
  %v7878 = vsub.s32 0, %v7877
  %v7879 = vrot.slane %v7874, %v7878
  %v7881 = vadd.f32 %v7873, %v7879
  %vm7882 = vcmask 1024
  %7883 = vst.msk [vmem:[%s22] sm:$0x3] %vm7882, %v7881
  // Predicated region
  $region90: #{_lambda_.3} parent=0 // pred_check
    _
  $region91: #{_lambda_.3} parent=0 // pred_check_branch
    %7885 = sbr.rel (0) target = $region93
  $region92: #{_lambda_.3} parent=0 // pred_region
    _
  $region93: #{_lambda_.3} parent=0 // pred_fallthru
    _
  // Predicated region
  $region94: #{_lambda_.3} parent=0 // pred_check
    _
  $region95: #{_lambda_.3} parent=0 // pred_check_branch
    %7887 = sbr.rel (0) target = $region97
  $region96: #{_lambda_.3} parent=0 // pred_region
    _
  $region97: #{_lambda_.3} parent=0 // pred_fallthru
    _

</llo_original>
